<compile_context>
chip_gen: v6e
topology: v6e:2x2x1
jax: 0.10.0
libtpu: 0.0.40
codegen_flags: <defaults>
</compile_context>

<pallas_src>
import math
import functools

import jax
import jax.numpy as jnp
from jax.experimental import pallas as pl
from jax.experimental.pallas import tpu as pltpu

# ---------------- model hyper-parameters (small, consistent with the module) --
VOCAB_SIZE = 50
VOCAB_PAD = 128          # pad the final projection to 128 lanes (lane-dense store)
MAX_SEQ_LEN = 16
NUM_LAYERS = 2
D_MODEL = 32
NUM_HEADS = 4
FFN_DIM = 64
BATCH = 2
SEQ = 8                  # decoder sequence length
SEQ_ENC = 8              # encoder-output sequence length
LN_EPS = 1e-5            # PyTorch nn.LayerNorm default


# ---------------- fused decoder kernel ----------------------------------------
def decoder_kernel(x_ref, enc_ref, bias_ref,
                   wqkv_ref, bqkv_ref, wo_ref, bo_ref, lna_g_ref, lna_b_ref,
                   w1_ref, b1_ref, w2_ref, b2_ref, lnf_g_ref, lnf_b_ref,
                   wout_ref, out_ref, *, num_layers, num_heads):
    B, S, D = x_ref.shape
    _, S_enc, _ = enc_ref.shape
    dk = D // num_heads

    def layer_norm(v, g, b):
        # PyTorch LayerNorm: biased variance, eps=1e-5
        mean = jnp.mean(v, axis=-1, keepdims=True)
        c = v - mean
        var = jnp.mean(c * c, axis=-1, keepdims=True)
        return c * jax.lax.rsqrt(var + LN_EPS) * g + b

    def softmax(s):
        m = jnp.max(s, axis=-1, keepdims=True)
        e = jnp.exp(s - m)
        denom = jnp.sum(e, axis=-1, keepdims=True)
        return e * pl.reciprocal(denom, approx=True)   # EUP slot, not a VPU divide

    def mha(q_flat, k_bsd, v_bsd, bias, resid_flat, wo, bo, g, b, s_q):
        # q_flat: (B*s_q, D); k_bsd / v_bsd: (B, s_k, D); 1/sqrt(dk) pre-folded in Wq.
        q_bsd = q_flat.reshape(B, s_q, D)
        ctx_heads = []
        for hh in range(num_heads):                    # static unroll, H = 4
            lo = hh * dk
            qs = q_bsd[:, :, lo:lo + dk]
            ks = k_bsd[:, :, lo:lo + dk]
            vs = v_bsd[:, :, lo:lo + dk]
            s = jnp.einsum("bqd,bkd->bqk", qs, ks,
                           preferred_element_type=jnp.float32)
            if bias is not None:
                s = s + bias                           # additive mask
            p = softmax(s)
            ctx_heads.append(jnp.einsum("bqk,bkd->bqd", p, vs,
                                        preferred_element_type=jnp.float32))
        # concat heads -> single output projection matmul
        ctx = jnp.concatenate(ctx_heads, axis=-1).reshape(B * s_q, D)
        proj = jnp.dot(ctx, wo, preferred_element_type=jnp.float32) + bo
        return layer_norm(resid_flat + proj, g, b)     # post-LN (inside MHA in the ref)

    h = x_ref[...].reshape(B * S, D)                   # (16, 32) activations, VMEM-resident
    enc_flat = enc_ref[...].reshape(B * S_enc, D)      # (16, 32)
    self_bias = bias_ref[...]                          # (B, S, S) additive mask

    for li in range(num_layers):                       # static unroll, L = 2
        wqkv = wqkv_ref[li]                            # (D, 3D) = [Wq*scale | Wk | Wv]
        bqkv = bqkv_ref[li]                            # (1, 3D)
        wo, bo = wo_ref[li], bo_ref[li]
        g_a, b_a = lna_g_ref[li], lna_b_ref[li]

        # ---- masked self-attention: packed QKV = one MXU push ----
        qkv = jnp.dot(h, wqkv, preferred_element_type=jnp.float32) + bqkv   # (16, 96)
        q = qkv[:, :D]
        k = qkv[:, D:2 * D].reshape(B, S, D)
        v = qkv[:, 2 * D:].reshape(B, S, D)
        h = mha(q, k, v, self_bias, h, wo, bo, g_a, b_a, S)

        # ---- cross-attention over encoder outputs ----
        # (reference DecoderLayer reuses the SAME attention module: same weights & norm)
        kv_e = (jnp.dot(enc_flat, wqkv[:, D:], preferred_element_type=jnp.float32)
                + bqkv[:, D:])                         # (B*S_enc, 2D)
        k_e = kv_e[:, :D].reshape(B, S_enc, D)
        v_e = kv_e[:, D:].reshape(B, S_enc, D)
        q_c = jnp.dot(h, wqkv[:, :D], preferred_element_type=jnp.float32) + bqkv[:, :D]
        # context_attn_mask defaults to None in the reference forward -> no bias
        h = mha(q_c, k_e, v_e, None, h, wo, bo, g_a, b_a, S)

        # ---- position-wise feed-forward + post-LN ----
        f = jnp.dot(h, w1_ref[li], preferred_element_type=jnp.float32) + b1_ref[li]
        f = jnp.maximum(f, 0.0)
        f = jnp.dot(f, w2_ref[li], preferred_element_type=jnp.float32) + b2_ref[li]
        h = layer_norm(h + f, lnf_g_ref[li], lnf_b_ref[li])

    # final bias-free vocab projection, written as a lane-dense (B*S, 128) slab
    out_ref[...] = jnp.dot(h, wout_ref[...], preferred_element_type=jnp.float32)


# ---------------- pallas_call wrapper (jit-fused with the glue ops) ------------
def _full_spec(shape):
    nd = len(shape)
    return pl.BlockSpec(tuple(shape), lambda i, _nd=nd: (0,) * _nd)


@jax.jit
def decoder_forward(x_tokens, enc_out, params):
    B, S = x_tokens.shape
    # --- glue (fused by XLA under jit): embedding, positional encoding, masks ---
    emb = jnp.take(params["emb"], x_tokens, axis=0)            # (B, S, D)
    pe = params["pe"][:S]
    # literal reference: output = embedding + pos_embedding(embedding) = emb + (emb + pe)
    x = (emb + (emb + pe[None, :, :])).astype(jnp.float32)

    pad = x_tokens == 0                                        # key-padding mask
    causal = jnp.arange(S)[None, :] > jnp.arange(S)[:, None]   # look-ahead (triu, k=1)
    self_mask = jnp.logical_or(pad[:, None, :], causal[None, :, :])
    self_bias = jnp.where(self_mask, jnp.float32(-1e9), jnp.float32(0.0))

    operands = (x, enc_out.astype(jnp.float32), self_bias,
                params["wqkv"], params["bqkv"], params["wo"], params["bo"],
                params["lna_g"], params["lna_b"],
                params["w1"], params["b1"], params["w2"], params["b2"],
                params["lnf_g"], params["lnf_b"], params["wout"])

    kernel = functools.partial(decoder_kernel,
                               num_layers=NUM_LAYERS, num_heads=NUM_HEADS)
    out = pl.pallas_call(
        kernel,
        out_shape=jax.ShapeDtypeStruct((B * S, VOCAB_PAD), jnp.float32),
        grid=(1,),                                   # single invocation, single core
        in_specs=[_full_spec(a.shape) for a in operands],
        out_specs=_full_spec((B * S, VOCAB_PAD)),
        compiler_params=pltpu.CompilerParams(
            dimension_semantics=("arbitrary",),
            vmem_limit_bytes=32 * 1024 * 1024),
    )(*operands)
    return out[:, :VOCAB_SIZE].reshape(B, S, VOCAB_SIZE)


# ---------------- parameters ---------------------------------------------------
def make_positional_encoding(max_seq_len, d_model):
    position = jnp.arange(0.0, max_seq_len)[:, None]
    div_term = jnp.exp(jnp.arange(0.0, d_model, 2) * (-math.log(10000.0) / d_model))
    pe = jnp.zeros((max_seq_len, d_model), jnp.float32)
    pe = pe.at[:, 0::2].set(jnp.sin(position * div_term))
    pe = pe.at[:, 1::2].set(jnp.cos(position * div_term))
    return pe


def init_params(key):
    def dense(k, shape, scale=0.05):
        return (scale * jax.random.normal(k, shape)).astype(jnp.float32)

    keys = jax.random.split(key, 2 + NUM_LAYERS)
    emb = dense(keys[0], (VOCAB_SIZE, D_MODEL), scale=1.0)
    emb = emb.at[0].set(0.0)                        # nn.Embedding(padding_idx=0)

    scale = 1.0 / math.sqrt(D_MODEL // NUM_HEADS)   # folded into the Q projection
    names = ("wqkv", "bqkv", "wo", "bo", "lna_g", "lna_b",
             "w1", "b1", "w2", "b2", "lnf_g", "lnf_b")
    stacked = {n: [] for n in names}
    for li in range(NUM_LAYERS):
        lk = jax.random.split(keys[1 + li], 10)
        wq, wk, wv, wo = (dense(lk[i], (D_MODEL, D_MODEL)) for i in range(4))
        bq, bk, bv, bo = (dense(lk[4 + i], (1, D_MODEL), scale=0.02) for i in range(4))
        w1 = dense(lk[8], (D_MODEL, FFN_DIM))
        w2 = dense(lk[9], (FFN_DIM, D_MODEL))
        stacked["wqkv"].append(jnp.concatenate([wq * scale, wk, wv], axis=1))
        stacked["bqkv"].append(jnp.concatenate([bq * scale, bk, bv], axis=1))
        stacked["wo"].append(wo)
        stacked["bo"].append(bo)
        stacked["lna_g"].append(jnp.ones((1, D_MODEL), jnp.float32))
        stacked["lna_b"].append(jnp.zeros((1, D_MODEL), jnp.float32))
        stacked["w1"].append(w1)
        stacked["b1"].append(jnp.zeros((1, FFN_DIM), jnp.float32))
        stacked["w2"].append(w2)
        stacked["b2"].append(jnp.zeros((1, D_MODEL), jnp.float32))
        stacked["lnf_g"].append(jnp.ones((1, D_MODEL), jnp.float32))
        stacked["lnf_b"].append(jnp.zeros((1, D_MODEL), jnp.float32))

    params = {n: jnp.stack(v) for n, v in stacked.items()}
    params["emb"] = emb
    params["pe"] = make_positional_encoding(MAX_SEQ_LEN, D_MODEL)
    w_final = dense(keys[-1], (D_MODEL, VOCAB_SIZE))           # nn.Linear(D, V, bias=False)
    params["wout"] = (jnp.zeros((D_MODEL, VOCAB_PAD), jnp.float32)
                      .at[:, :VOCAB_SIZE].set(w_final))        # lane-padded to 128
    return params


# ---------------- demo ----------------------------------------------------------
if __name__ == "__main__":
    key = jax.random.PRNGKey(0)
    pkey, tkey, ekey = jax.random.split(key, 3)
    params = init_params(pkey)

    # decoder token ids (0 = padding id); make sure the padding mask is exercised
    x_tokens = jax.random.randint(tkey, (BATCH, SEQ), 1, VOCAB_SIZE, dtype=jnp.int32)
    x_tokens = x_tokens.at[0, -1].set(0)
    # encoder outputs fed to cross-attention
    enc_out = 0.5 * jax.random.normal(ekey, (BATCH, SEQ_ENC, D_MODEL), dtype=jnp.float32)

    logits = jax.block_until_ready(decoder_forward(x_tokens, enc_out, params))
    assert logits.shape == (BATCH, SEQ, VOCAB_SIZE) and logits.dtype == jnp.float32
    assert bool(jnp.all(jnp.isfinite(logits)))
    print("KERNEL_OK")
</pallas_src>

<mosaic_0001>
module attributes {stable_mosaic.version = 11 : i64} {
  func.func @decoder_kernel(%arg0: i32, %arg1: memref<2x8x32xf32, #tpu.memory_space<vmem>>, %arg2: memref<2x8x32xf32, #tpu.memory_space<vmem>>, %arg3: memref<2x8x8xf32, #tpu.memory_space<vmem>>, %arg4: memref<2x32x96xf32, #tpu.memory_space<vmem>>, %arg5: memref<2x1x96xf32, #tpu.memory_space<vmem>>, %arg6: memref<2x32x32xf32, #tpu.memory_space<vmem>>, %arg7: memref<2x1x32xf32, #tpu.memory_space<vmem>>, %arg8: memref<2x1x32xf32, #tpu.memory_space<vmem>>, %arg9: memref<2x1x32xf32, #tpu.memory_space<vmem>>, %arg10: memref<2x32x64xf32, #tpu.memory_space<vmem>>, %arg11: memref<2x1x64xf32, #tpu.memory_space<vmem>>, %arg12: memref<2x64x32xf32, #tpu.memory_space<vmem>>, %arg13: memref<2x1x32xf32, #tpu.memory_space<vmem>>, %arg14: memref<2x1x32xf32, #tpu.memory_space<vmem>>, %arg15: memref<2x1x32xf32, #tpu.memory_space<vmem>>, %arg16: memref<32x128xf32, #tpu.memory_space<vmem>>, %arg17: memref<16x128xf32, #tpu.memory_space<vmem>>) attributes {dimension_semantics = [#tpu.dimension_semantics<arbitrary>], iteration_bounds = array<i64: 1>, scalar_prefetch = 0 : i64, scratch_operands = 0 : i64, tpu.core_type = #tpu.core_type<tc>, window_params = [{pipeline_mode = #tpu.pipeline_mode<synchronous>, transform_indices = @transform_0, window_bounds = array<i64: 2, 8, 32>}, {pipeline_mode = #tpu.pipeline_mode<synchronous>, transform_indices = @transform_1, window_bounds = array<i64: 2, 8, 32>}, {pipeline_mode = #tpu.pipeline_mode<synchronous>, transform_indices = @transform_2, window_bounds = array<i64: 2, 8, 8>}, {pipeline_mode = #tpu.pipeline_mode<synchronous>, transform_indices = @transform_3, window_bounds = array<i64: 2, 32, 96>}, {pipeline_mode = #tpu.pipeline_mode<synchronous>, transform_indices = @transform_4, window_bounds = array<i64: 2, 1, 96>}, {pipeline_mode = #tpu.pipeline_mode<synchronous>, transform_indices = @transform_5, window_bounds = array<i64: 2, 32, 32>}, {pipeline_mode = #tpu.pipeline_mode<synchronous>, transform_indices = @transform_6, window_bounds = array<i64: 2, 1, 32>}, {pipeline_mode = #tpu.pipeline_mode<synchronous>, transform_indices = @transform_7, window_bounds = array<i64: 2, 1, 32>}, {pipeline_mode = #tpu.pipeline_mode<synchronous>, transform_indices = @transform_8, window_bounds = array<i64: 2, 1, 32>}, {pipeline_mode = #tpu.pipeline_mode<synchronous>, transform_indices = @transform_9, window_bounds = array<i64: 2, 32, 64>}, {pipeline_mode = #tpu.pipeline_mode<synchronous>, transform_indices = @transform_10, window_bounds = array<i64: 2, 1, 64>}, {pipeline_mode = #tpu.pipeline_mode<synchronous>, transform_indices = @transform_11, window_bounds = array<i64: 2, 64, 32>}, {pipeline_mode = #tpu.pipeline_mode<synchronous>, transform_indices = @transform_12, window_bounds = array<i64: 2, 1, 32>}, {pipeline_mode = #tpu.pipeline_mode<synchronous>, transform_indices = @transform_13, window_bounds = array<i64: 2, 1, 32>}, {pipeline_mode = #tpu.pipeline_mode<synchronous>, transform_indices = @transform_14, window_bounds = array<i64: 2, 1, 32>}, {pipeline_mode = #tpu.pipeline_mode<synchronous>, transform_indices = @transform_15, window_bounds = array<i64: 32, 128>}, {pipeline_mode = #tpu.pipeline_mode<synchronous>, transform_indices = @transform_16, window_bounds = array<i64: 16, 128>}]} {
    %c0 = arith.constant 0 : index
    %c0_0 = arith.constant 0 : index
    %c0_1 = arith.constant 0 : index
    %0 = vector.load %arg1[%c0, %c0_0, %c0_1] : memref<2x8x32xf32, #tpu.memory_space<vmem>>, vector<2x8x32xf32>
    %1 = vector.shape_cast %0 : vector<2x8x32xf32> to vector<16x32xf32>
    %c0_2 = arith.constant 0 : index
    %c0_3 = arith.constant 0 : index
    %c0_4 = arith.constant 0 : index
    %2 = vector.load %arg2[%c0_2, %c0_3, %c0_4] : memref<2x8x32xf32, #tpu.memory_space<vmem>>, vector<2x8x32xf32>
    %3 = vector.shape_cast %2 : vector<2x8x32xf32> to vector<16x32xf32>
    %c0_5 = arith.constant 0 : index
    %c0_6 = arith.constant 0 : index
    %c0_7 = arith.constant 0 : index
    %4 = vector.load %arg3[%c0_5, %c0_6, %c0_7] : memref<2x8x8xf32, #tpu.memory_space<vmem>>, vector<2x8x8xf32>
    %c0_8 = arith.constant 0 : index
    %c0_9 = arith.constant 0 : index
    %c0_10 = arith.constant 0 : index
    %5 = vector.load %arg4[%c0_8, %c0_9, %c0_10] : memref<2x32x96xf32, #tpu.memory_space<vmem>>, vector<1x32x96xf32>
    %6 = vector.shape_cast %5 : vector<1x32x96xf32> to vector<32x96xf32>
    %c0_11 = arith.constant 0 : index
    %c0_12 = arith.constant 0 : index
    %c0_13 = arith.constant 0 : index
    %7 = vector.load %arg5[%c0_11, %c0_12, %c0_13] : memref<2x1x96xf32, #tpu.memory_space<vmem>>, vector<1x1x96xf32>
    %8 = vector.shape_cast %7 : vector<1x1x96xf32> to vector<1x96xf32>
    %c0_14 = arith.constant 0 : index
    %c0_15 = arith.constant 0 : index
    %c0_16 = arith.constant 0 : index
    %9 = vector.load %arg6[%c0_14, %c0_15, %c0_16] : memref<2x32x32xf32, #tpu.memory_space<vmem>>, vector<1x32x32xf32>
    %10 = vector.shape_cast %9 : vector<1x32x32xf32> to vector<32x32xf32>
    %c0_17 = arith.constant 0 : index
    %c0_18 = arith.constant 0 : index
    %c0_19 = arith.constant 0 : index
    %11 = vector.load %arg7[%c0_17, %c0_18, %c0_19] : memref<2x1x32xf32, #tpu.memory_space<vmem>>, vector<1x1x32xf32>
    %12 = vector.shape_cast %11 : vector<1x1x32xf32> to vector<1x32xf32>
    %c0_20 = arith.constant 0 : index
    %c0_21 = arith.constant 0 : index
    %c0_22 = arith.constant 0 : index
    %13 = vector.load %arg8[%c0_20, %c0_21, %c0_22] : memref<2x1x32xf32, #tpu.memory_space<vmem>>, vector<1x1x32xf32>
    %14 = vector.shape_cast %13 : vector<1x1x32xf32> to vector<1x32xf32>
    %c0_23 = arith.constant 0 : index
    %c0_24 = arith.constant 0 : index
    %c0_25 = arith.constant 0 : index
    %15 = vector.load %arg9[%c0_23, %c0_24, %c0_25] : memref<2x1x32xf32, #tpu.memory_space<vmem>>, vector<1x1x32xf32>
    %16 = vector.shape_cast %15 : vector<1x1x32xf32> to vector<1x32xf32>
    %cst = arith.constant dense<0.000000e+00> : vector<16x96xf32>
    %17 = tpu.matmul %1, %6, %cst {dimension_numbers = #tpu.dot_dimension_numbers<[1], [0], [0], [1], [0, 0, 1, 1], [], []>} : vector<16x32xf32>, vector<32x96xf32>, vector<16x96xf32> -> vector<16x96xf32>
    %18 = vector.broadcast %8 : vector<1x96xf32> to vector<16x96xf32>
    %19 = arith.addf %17, %18 : vector<16x96xf32>
    %20 = vector.extract_strided_slice %19 {offsets = [0, 0], sizes = [16, 32], strides = [1, 1]} : vector<16x96xf32> to vector<16x32xf32>
    %21 = vector.extract_strided_slice %19 {offsets = [0, 32], sizes = [16, 32], strides = [1, 1]} : vector<16x96xf32> to vector<16x32xf32>
    %22 = vector.shape_cast %21 : vector<16x32xf32> to vector<2x8x32xf32>
    %23 = vector.extract_strided_slice %19 {offsets = [0, 64], sizes = [16, 32], strides = [1, 1]} : vector<16x96xf32> to vector<16x32xf32>
    %24 = vector.shape_cast %23 : vector<16x32xf32> to vector<2x8x32xf32>
    %25 = vector.shape_cast %20 : vector<16x32xf32> to vector<2x8x32xf32>
    %26 = vector.extract_strided_slice %25 {offsets = [0, 0, 0], sizes = [2, 8, 8], strides = [1, 1, 1]} : vector<2x8x32xf32> to vector<2x8x8xf32>
    %27 = vector.extract_strided_slice %22 {offsets = [0, 0, 0], sizes = [2, 8, 8], strides = [1, 1, 1]} : vector<2x8x32xf32> to vector<2x8x8xf32>
    %28 = vector.extract_strided_slice %24 {offsets = [0, 0, 0], sizes = [2, 8, 8], strides = [1, 1, 1]} : vector<2x8x32xf32> to vector<2x8x8xf32>
    "tpu.trace_start"() <{level = 10 : i32, message = "bqd,bkd->bqk"}> : () -> ()
    %cst_26 = arith.constant dense<0.000000e+00> : vector<2x8x8xf32>
    %29 = tpu.matmul %26, %27, %cst_26 {dimension_numbers = #tpu.dot_dimension_numbers<[2], [2], [1], [1], [0, 0, 0, 1, 1, 1], [0], [0]>} : vector<2x8x8xf32>, vector<2x8x8xf32>, vector<2x8x8xf32> -> vector<2x8x8xf32>
    "tpu.trace_stop"() : () -> ()
    %30 = arith.addf %29, %4 : vector<2x8x8xf32>
    %cst_27 = arith.constant dense<0xFF800000> : vector<2x8xf32>
    %31 = vector.multi_reduction <maximumf>, %30, %cst_27 [2] : vector<2x8x8xf32> to vector<2x8xf32>
    %32 = vector.shape_cast %31 : vector<2x8xf32> to vector<2x8x1xf32>
    %33 = vector.broadcast %32 : vector<2x8x1xf32> to vector<2x8x8xf32>
    %34 = arith.subf %30, %33 : vector<2x8x8xf32>
    %35 = math.exp %34 : vector<2x8x8xf32>
    %cst_28 = arith.constant dense<0.000000e+00> : vector<2x8xf32>
    %36 = vector.multi_reduction <add>, %35, %cst_28 [2] : vector<2x8x8xf32> to vector<2x8xf32>
    %37 = vector.shape_cast %36 : vector<2x8xf32> to vector<2x8x1xf32>
    %38 = tpu.reciprocal %37 {approx = true} : vector<2x8x1xf32> -> vector<2x8x1xf32>
    %39 = vector.broadcast %38 : vector<2x8x1xf32> to vector<2x8x8xf32>
    %40 = arith.mulf %35, %39 : vector<2x8x8xf32>
    "tpu.trace_start"() <{level = 10 : i32, message = "bqk,bkd->bqd"}> : () -> ()
    %cst_29 = arith.constant dense<0.000000e+00> : vector<2x8x8xf32>
    %41 = tpu.matmul %40, %28, %cst_29 {dimension_numbers = #tpu.dot_dimension_numbers<[2], [1], [1], [2], [0, 0, 0, 1, 1, 2], [0], [0]>} : vector<2x8x8xf32>, vector<2x8x8xf32>, vector<2x8x8xf32> -> vector<2x8x8xf32>
    "tpu.trace_stop"() : () -> ()
    %42 = vector.extract_strided_slice %25 {offsets = [0, 0, 8], sizes = [2, 8, 8], strides = [1, 1, 1]} : vector<2x8x32xf32> to vector<2x8x8xf32>
    %43 = vector.extract_strided_slice %22 {offsets = [0, 0, 8], sizes = [2, 8, 8], strides = [1, 1, 1]} : vector<2x8x32xf32> to vector<2x8x8xf32>
    %44 = vector.extract_strided_slice %24 {offsets = [0, 0, 8], sizes = [2, 8, 8], strides = [1, 1, 1]} : vector<2x8x32xf32> to vector<2x8x8xf32>
    "tpu.trace_start"() <{level = 10 : i32, message = "bqd,bkd->bqk"}> : () -> ()
    %cst_30 = arith.constant dense<0.000000e+00> : vector<2x8x8xf32>
    %45 = tpu.matmul %42, %43, %cst_30 {dimension_numbers = #tpu.dot_dimension_numbers<[2], [2], [1], [1], [0, 0, 0, 1, 1, 1], [0], [0]>} : vector<2x8x8xf32>, vector<2x8x8xf32>, vector<2x8x8xf32> -> vector<2x8x8xf32>
    "tpu.trace_stop"() : () -> ()
    %46 = arith.addf %45, %4 : vector<2x8x8xf32>
    %cst_31 = arith.constant dense<0xFF800000> : vector<2x8xf32>
    %47 = vector.multi_reduction <maximumf>, %46, %cst_31 [2] : vector<2x8x8xf32> to vector<2x8xf32>
    %48 = vector.shape_cast %47 : vector<2x8xf32> to vector<2x8x1xf32>
    %49 = vector.broadcast %48 : vector<2x8x1xf32> to vector<2x8x8xf32>
    %50 = arith.subf %46, %49 : vector<2x8x8xf32>
    %51 = math.exp %50 : vector<2x8x8xf32>
    %cst_32 = arith.constant dense<0.000000e+00> : vector<2x8xf32>
    %52 = vector.multi_reduction <add>, %51, %cst_32 [2] : vector<2x8x8xf32> to vector<2x8xf32>
    %53 = vector.shape_cast %52 : vector<2x8xf32> to vector<2x8x1xf32>
    %54 = tpu.reciprocal %53 {approx = true} : vector<2x8x1xf32> -> vector<2x8x1xf32>
    %55 = vector.broadcast %54 : vector<2x8x1xf32> to vector<2x8x8xf32>
    %56 = arith.mulf %51, %55 : vector<2x8x8xf32>
    "tpu.trace_start"() <{level = 10 : i32, message = "bqk,bkd->bqd"}> : () -> ()
    %cst_33 = arith.constant dense<0.000000e+00> : vector<2x8x8xf32>
    %57 = tpu.matmul %56, %44, %cst_33 {dimension_numbers = #tpu.dot_dimension_numbers<[2], [1], [1], [2], [0, 0, 0, 1, 1, 2], [0], [0]>} : vector<2x8x8xf32>, vector<2x8x8xf32>, vector<2x8x8xf32> -> vector<2x8x8xf32>
    "tpu.trace_stop"() : () -> ()
    %58 = vector.extract_strided_slice %25 {offsets = [0, 0, 16], sizes = [2, 8, 8], strides = [1, 1, 1]} : vector<2x8x32xf32> to vector<2x8x8xf32>
    %59 = vector.extract_strided_slice %22 {offsets = [0, 0, 16], sizes = [2, 8, 8], strides = [1, 1, 1]} : vector<2x8x32xf32> to vector<2x8x8xf32>
    %60 = vector.extract_strided_slice %24 {offsets = [0, 0, 16], sizes = [2, 8, 8], strides = [1, 1, 1]} : vector<2x8x32xf32> to vector<2x8x8xf32>
    "tpu.trace_start"() <{level = 10 : i32, message = "bqd,bkd->bqk"}> : () -> ()
    %cst_34 = arith.constant dense<0.000000e+00> : vector<2x8x8xf32>
    %61 = tpu.matmul %58, %59, %cst_34 {dimension_numbers = #tpu.dot_dimension_numbers<[2], [2], [1], [1], [0, 0, 0, 1, 1, 1], [0], [0]>} : vector<2x8x8xf32>, vector<2x8x8xf32>, vector<2x8x8xf32> -> vector<2x8x8xf32>
    "tpu.trace_stop"() : () -> ()
    %62 = arith.addf %61, %4 : vector<2x8x8xf32>
    %cst_35 = arith.constant dense<0xFF800000> : vector<2x8xf32>
    %63 = vector.multi_reduction <maximumf>, %62, %cst_35 [2] : vector<2x8x8xf32> to vector<2x8xf32>
    %64 = vector.shape_cast %63 : vector<2x8xf32> to vector<2x8x1xf32>
    %65 = vector.broadcast %64 : vector<2x8x1xf32> to vector<2x8x8xf32>
    %66 = arith.subf %62, %65 : vector<2x8x8xf32>
    %67 = math.exp %66 : vector<2x8x8xf32>
    %cst_36 = arith.constant dense<0.000000e+00> : vector<2x8xf32>
    %68 = vector.multi_reduction <add>, %67, %cst_36 [2] : vector<2x8x8xf32> to vector<2x8xf32>
    %69 = vector.shape_cast %68 : vector<2x8xf32> to vector<2x8x1xf32>
    %70 = tpu.reciprocal %69 {approx = true} : vector<2x8x1xf32> -> vector<2x8x1xf32>
    %71 = vector.broadcast %70 : vector<2x8x1xf32> to vector<2x8x8xf32>
    %72 = arith.mulf %67, %71 : vector<2x8x8xf32>
    "tpu.trace_start"() <{level = 10 : i32, message = "bqk,bkd->bqd"}> : () -> ()
    %cst_37 = arith.constant dense<0.000000e+00> : vector<2x8x8xf32>
    %73 = tpu.matmul %72, %60, %cst_37 {dimension_numbers = #tpu.dot_dimension_numbers<[2], [1], [1], [2], [0, 0, 0, 1, 1, 2], [0], [0]>} : vector<2x8x8xf32>, vector<2x8x8xf32>, vector<2x8x8xf32> -> vector<2x8x8xf32>
    "tpu.trace_stop"() : () -> ()
    %74 = vector.extract_strided_slice %25 {offsets = [0, 0, 24], sizes = [2, 8, 8], strides = [1, 1, 1]} : vector<2x8x32xf32> to vector<2x8x8xf32>
    %75 = vector.extract_strided_slice %22 {offsets = [0, 0, 24], sizes = [2, 8, 8], strides = [1, 1, 1]} : vector<2x8x32xf32> to vector<2x8x8xf32>
    %76 = vector.extract_strided_slice %24 {offsets = [0, 0, 24], sizes = [2, 8, 8], strides = [1, 1, 1]} : vector<2x8x32xf32> to vector<2x8x8xf32>
    "tpu.trace_start"() <{level = 10 : i32, message = "bqd,bkd->bqk"}> : () -> ()
    %cst_38 = arith.constant dense<0.000000e+00> : vector<2x8x8xf32>
    %77 = tpu.matmul %74, %75, %cst_38 {dimension_numbers = #tpu.dot_dimension_numbers<[2], [2], [1], [1], [0, 0, 0, 1, 1, 1], [0], [0]>} : vector<2x8x8xf32>, vector<2x8x8xf32>, vector<2x8x8xf32> -> vector<2x8x8xf32>
    "tpu.trace_stop"() : () -> ()
    %78 = arith.addf %77, %4 : vector<2x8x8xf32>
    %cst_39 = arith.constant dense<0xFF800000> : vector<2x8xf32>
    %79 = vector.multi_reduction <maximumf>, %78, %cst_39 [2] : vector<2x8x8xf32> to vector<2x8xf32>
    %80 = vector.shape_cast %79 : vector<2x8xf32> to vector<2x8x1xf32>
    %81 = vector.broadcast %80 : vector<2x8x1xf32> to vector<2x8x8xf32>
    %82 = arith.subf %78, %81 : vector<2x8x8xf32>
    %83 = math.exp %82 : vector<2x8x8xf32>
    %cst_40 = arith.constant dense<0.000000e+00> : vector<2x8xf32>
    %84 = vector.multi_reduction <add>, %83, %cst_40 [2] : vector<2x8x8xf32> to vector<2x8xf32>
    %85 = vector.shape_cast %84 : vector<2x8xf32> to vector<2x8x1xf32>
    %86 = tpu.reciprocal %85 {approx = true} : vector<2x8x1xf32> -> vector<2x8x1xf32>
    %87 = vector.broadcast %86 : vector<2x8x1xf32> to vector<2x8x8xf32>
    %88 = arith.mulf %83, %87 : vector<2x8x8xf32>
    "tpu.trace_start"() <{level = 10 : i32, message = "bqk,bkd->bqd"}> : () -> ()
    %cst_41 = arith.constant dense<0.000000e+00> : vector<2x8x8xf32>
    %89 = tpu.matmul %88, %76, %cst_41 {dimension_numbers = #tpu.dot_dimension_numbers<[2], [1], [1], [2], [0, 0, 0, 1, 1, 2], [0], [0]>} : vector<2x8x8xf32>, vector<2x8x8xf32>, vector<2x8x8xf32> -> vector<2x8x8xf32>
    "tpu.trace_stop"() : () -> ()
    %90 = tpu.concatenate %41, %57, %73, %89 in 2 : vector<2x8x8xf32>, vector<2x8x8xf32>, vector<2x8x8xf32>, vector<2x8x8xf32> -> vector<2x8x32xf32>
    %91 = vector.shape_cast %90 : vector<2x8x32xf32> to vector<16x32xf32>
    %cst_42 = arith.constant dense<0.000000e+00> : vector<16x32xf32>
    %92 = tpu.matmul %91, %10, %cst_42 {dimension_numbers = #tpu.dot_dimension_numbers<[1], [0], [0], [1], [0, 0, 1, 1], [], []>} : vector<16x32xf32>, vector<32x32xf32>, vector<16x32xf32> -> vector<16x32xf32>
    %93 = vector.broadcast %12 : vector<1x32xf32> to vector<16x32xf32>
    %94 = arith.addf %92, %93 : vector<16x32xf32>
    %95 = arith.addf %1, %94 : vector<16x32xf32>
    %cst_43 = arith.constant dense<0.000000e+00> : vector<16xf32>
    %96 = vector.multi_reduction <add>, %95, %cst_43 [1] : vector<16x32xf32> to vector<16xf32>
    %97 = vector.shape_cast %96 : vector<16xf32> to vector<16x1xf32>
    %cst_44 = arith.constant 3.200000e+01 : f32
    %98 = vector.broadcast %cst_44 : f32 to vector<16x1xf32>
    %99 = arith.divf %97, %98 : vector<16x1xf32>
    %100 = vector.broadcast %99 : vector<16x1xf32> to vector<16x32xf32>
    %101 = arith.subf %95, %100 : vector<16x32xf32>
    %102 = arith.mulf %101, %101 : vector<16x32xf32>
    %cst_45 = arith.constant dense<0.000000e+00> : vector<16xf32>
    %103 = vector.multi_reduction <add>, %102, %cst_45 [1] : vector<16x32xf32> to vector<16xf32>
    %104 = vector.shape_cast %103 : vector<16xf32> to vector<16x1xf32>
    %cst_46 = arith.constant 3.200000e+01 : f32
    %105 = vector.broadcast %cst_46 : f32 to vector<16x1xf32>
    %106 = arith.divf %104, %105 : vector<16x1xf32>
    %cst_47 = arith.constant 9.99999974E-6 : f32
    %107 = vector.broadcast %cst_47 : f32 to vector<16x1xf32>
    %108 = arith.addf %106, %107 : vector<16x1xf32>
    %109 = math.rsqrt %108 : vector<16x1xf32>
    %110 = vector.broadcast %109 : vector<16x1xf32> to vector<16x32xf32>
    %111 = arith.mulf %101, %110 : vector<16x32xf32>
    %112 = vector.broadcast %14 : vector<1x32xf32> to vector<16x32xf32>
    %113 = arith.mulf %111, %112 : vector<16x32xf32>
    %114 = vector.broadcast %16 : vector<1x32xf32> to vector<16x32xf32>
    %115 = arith.addf %113, %114 : vector<16x32xf32>
    %116 = vector.extract_strided_slice %6 {offsets = [0, 32], sizes = [32, 64], strides = [1, 1]} : vector<32x96xf32> to vector<32x64xf32>
    %cst_48 = arith.constant dense<0.000000e+00> : vector<16x64xf32>
    %117 = tpu.matmul %3, %116, %cst_48 {dimension_numbers = #tpu.dot_dimension_numbers<[1], [0], [0], [1], [0, 0, 1, 1], [], []>} : vector<16x32xf32>, vector<32x64xf32>, vector<16x64xf32> -> vector<16x64xf32>
    %118 = vector.extract_strided_slice %8 {offsets = [0, 32], sizes = [1, 64], strides = [1, 1]} : vector<1x96xf32> to vector<1x64xf32>
    %119 = vector.broadcast %118 : vector<1x64xf32> to vector<16x64xf32>
    %120 = arith.addf %117, %119 : vector<16x64xf32>
    %121 = vector.extract_strided_slice %120 {offsets = [0, 0], sizes = [16, 32], strides = [1, 1]} : vector<16x64xf32> to vector<16x32xf32>
    %122 = vector.shape_cast %121 : vector<16x32xf32> to vector<2x8x32xf32>
    %123 = vector.extract_strided_slice %120 {offsets = [0, 32], sizes = [16, 32], strides = [1, 1]} : vector<16x64xf32> to vector<16x32xf32>
    %124 = vector.shape_cast %123 : vector<16x32xf32> to vector<2x8x32xf32>
    %125 = vector.extract_strided_slice %6 {offsets = [0, 0], sizes = [32, 32], strides = [1, 1]} : vector<32x96xf32> to vector<32x32xf32>
    %cst_49 = arith.constant dense<0.000000e+00> : vector<16x32xf32>
    %126 = tpu.matmul %115, %125, %cst_49 {dimension_numbers = #tpu.dot_dimension_numbers<[1], [0], [0], [1], [0, 0, 1, 1], [], []>} : vector<16x32xf32>, vector<32x32xf32>, vector<16x32xf32> -> vector<16x32xf32>
    %127 = vector.extract_strided_slice %8 {offsets = [0, 0], sizes = [1, 32], strides = [1, 1]} : vector<1x96xf32> to vector<1x32xf32>
    %128 = vector.broadcast %127 : vector<1x32xf32> to vector<16x32xf32>
    %129 = arith.addf %126, %128 : vector<16x32xf32>
    %130 = vector.shape_cast %129 : vector<16x32xf32> to vector<2x8x32xf32>
    %131 = vector.extract_strided_slice %130 {offsets = [0, 0, 0], sizes = [2, 8, 8], strides = [1, 1, 1]} : vector<2x8x32xf32> to vector<2x8x8xf32>
    %132 = vector.extract_strided_slice %122 {offsets = [0, 0, 0], sizes = [2, 8, 8], strides = [1, 1, 1]} : vector<2x8x32xf32> to vector<2x8x8xf32>
    %133 = vector.extract_strided_slice %124 {offsets = [0, 0, 0], sizes = [2, 8, 8], strides = [1, 1, 1]} : vector<2x8x32xf32> to vector<2x8x8xf32>
    "tpu.trace_start"() <{level = 10 : i32, message = "bqd,bkd->bqk"}> : () -> ()
    %cst_50 = arith.constant dense<0.000000e+00> : vector<2x8x8xf32>
    %134 = tpu.matmul %131, %132, %cst_50 {dimension_numbers = #tpu.dot_dimension_numbers<[2], [2], [1], [1], [0, 0, 0, 1, 1, 1], [0], [0]>} : vector<2x8x8xf32>, vector<2x8x8xf32>, vector<2x8x8xf32> -> vector<2x8x8xf32>
    "tpu.trace_stop"() : () -> ()
    %cst_51 = arith.constant dense<0xFF800000> : vector<2x8xf32>
    %135 = vector.multi_reduction <maximumf>, %134, %cst_51 [2] : vector<2x8x8xf32> to vector<2x8xf32>
    %136 = vector.shape_cast %135 : vector<2x8xf32> to vector<2x8x1xf32>
    %137 = vector.broadcast %136 : vector<2x8x1xf32> to vector<2x8x8xf32>
    %138 = arith.subf %134, %137 : vector<2x8x8xf32>
    %139 = math.exp %138 : vector<2x8x8xf32>
    %cst_52 = arith.constant dense<0.000000e+00> : vector<2x8xf32>
    %140 = vector.multi_reduction <add>, %139, %cst_52 [2] : vector<2x8x8xf32> to vector<2x8xf32>
    %141 = vector.shape_cast %140 : vector<2x8xf32> to vector<2x8x1xf32>
    %142 = tpu.reciprocal %141 {approx = true} : vector<2x8x1xf32> -> vector<2x8x1xf32>
    %143 = vector.broadcast %142 : vector<2x8x1xf32> to vector<2x8x8xf32>
    %144 = arith.mulf %139, %143 : vector<2x8x8xf32>
    "tpu.trace_start"() <{level = 10 : i32, message = "bqk,bkd->bqd"}> : () -> ()
    %cst_53 = arith.constant dense<0.000000e+00> : vector<2x8x8xf32>
    %145 = tpu.matmul %144, %133, %cst_53 {dimension_numbers = #tpu.dot_dimension_numbers<[2], [1], [1], [2], [0, 0, 0, 1, 1, 2], [0], [0]>} : vector<2x8x8xf32>, vector<2x8x8xf32>, vector<2x8x8xf32> -> vector<2x8x8xf32>
    "tpu.trace_stop"() : () -> ()
    %146 = vector.extract_strided_slice %130 {offsets = [0, 0, 8], sizes = [2, 8, 8], strides = [1, 1, 1]} : vector<2x8x32xf32> to vector<2x8x8xf32>
    %147 = vector.extract_strided_slice %122 {offsets = [0, 0, 8], sizes = [2, 8, 8], strides = [1, 1, 1]} : vector<2x8x32xf32> to vector<2x8x8xf32>
    %148 = vector.extract_strided_slice %124 {offsets = [0, 0, 8], sizes = [2, 8, 8], strides = [1, 1, 1]} : vector<2x8x32xf32> to vector<2x8x8xf32>
    "tpu.trace_start"() <{level = 10 : i32, message = "bqd,bkd->bqk"}> : () -> ()
    %cst_54 = arith.constant dense<0.000000e+00> : vector<2x8x8xf32>
    %149 = tpu.matmul %146, %147, %cst_54 {dimension_numbers = #tpu.dot_dimension_numbers<[2], [2], [1], [1], [0, 0, 0, 1, 1, 1], [0], [0]>} : vector<2x8x8xf32>, vector<2x8x8xf32>, vector<2x8x8xf32> -> vector<2x8x8xf32>
    "tpu.trace_stop"() : () -> ()
    %cst_55 = arith.constant dense<0xFF800000> : vector<2x8xf32>
    %150 = vector.multi_reduction <maximumf>, %149, %cst_55 [2] : vector<2x8x8xf32> to vector<2x8xf32>
    %151 = vector.shape_cast %150 : vector<2x8xf32> to vector<2x8x1xf32>
    %152 = vector.broadcast %151 : vector<2x8x1xf32> to vector<2x8x8xf32>
    %153 = arith.subf %149, %152 : vector<2x8x8xf32>
    %154 = math.exp %153 : vector<2x8x8xf32>
    %cst_56 = arith.constant dense<0.000000e+00> : vector<2x8xf32>
    %155 = vector.multi_reduction <add>, %154, %cst_56 [2] : vector<2x8x8xf32> to vector<2x8xf32>
    %156 = vector.shape_cast %155 : vector<2x8xf32> to vector<2x8x1xf32>
    %157 = tpu.reciprocal %156 {approx = true} : vector<2x8x1xf32> -> vector<2x8x1xf32>
    %158 = vector.broadcast %157 : vector<2x8x1xf32> to vector<2x8x8xf32>
    %159 = arith.mulf %154, %158 : vector<2x8x8xf32>
    "tpu.trace_start"() <{level = 10 : i32, message = "bqk,bkd->bqd"}> : () -> ()
    %cst_57 = arith.constant dense<0.000000e+00> : vector<2x8x8xf32>
    %160 = tpu.matmul %159, %148, %cst_57 {dimension_numbers = #tpu.dot_dimension_numbers<[2], [1], [1], [2], [0, 0, 0, 1, 1, 2], [0], [0]>} : vector<2x8x8xf32>, vector<2x8x8xf32>, vector<2x8x8xf32> -> vector<2x8x8xf32>
    "tpu.trace_stop"() : () -> ()
    %161 = vector.extract_strided_slice %130 {offsets = [0, 0, 16], sizes = [2, 8, 8], strides = [1, 1, 1]} : vector<2x8x32xf32> to vector<2x8x8xf32>
    %162 = vector.extract_strided_slice %122 {offsets = [0, 0, 16], sizes = [2, 8, 8], strides = [1, 1, 1]} : vector<2x8x32xf32> to vector<2x8x8xf32>
    %163 = vector.extract_strided_slice %124 {offsets = [0, 0, 16], sizes = [2, 8, 8], strides = [1, 1, 1]} : vector<2x8x32xf32> to vector<2x8x8xf32>
    "tpu.trace_start"() <{level = 10 : i32, message = "bqd,bkd->bqk"}> : () -> ()
    %cst_58 = arith.constant dense<0.000000e+00> : vector<2x8x8xf32>
    %164 = tpu.matmul %161, %162, %cst_58 {dimension_numbers = #tpu.dot_dimension_numbers<[2], [2], [1], [1], [0, 0, 0, 1, 1, 1], [0], [0]>} : vector<2x8x8xf32>, vector<2x8x8xf32>, vector<2x8x8xf32> -> vector<2x8x8xf32>
    "tpu.trace_stop"() : () -> ()
    %cst_59 = arith.constant dense<0xFF800000> : vector<2x8xf32>
    %165 = vector.multi_reduction <maximumf>, %164, %cst_59 [2] : vector<2x8x8xf32> to vector<2x8xf32>
    %166 = vector.shape_cast %165 : vector<2x8xf32> to vector<2x8x1xf32>
    %167 = vector.broadcast %166 : vector<2x8x1xf32> to vector<2x8x8xf32>
    %168 = arith.subf %164, %167 : vector<2x8x8xf32>
    %169 = math.exp %168 : vector<2x8x8xf32>
    %cst_60 = arith.constant dense<0.000000e+00> : vector<2x8xf32>
    %170 = vector.multi_reduction <add>, %169, %cst_60 [2] : vector<2x8x8xf32> to vector<2x8xf32>
    %171 = vector.shape_cast %170 : vector<2x8xf32> to vector<2x8x1xf32>
    %172 = tpu.reciprocal %171 {approx = true} : vector<2x8x1xf32> -> vector<2x8x1xf32>
    %173 = vector.broadcast %172 : vector<2x8x1xf32> to vector<2x8x8xf32>
    %174 = arith.mulf %169, %173 : vector<2x8x8xf32>
    "tpu.trace_start"() <{level = 10 : i32, message = "bqk,bkd->bqd"}> : () -> ()
    %cst_61 = arith.constant dense<0.000000e+00> : vector<2x8x8xf32>
    %175 = tpu.matmul %174, %163, %cst_61 {dimension_numbers = #tpu.dot_dimension_numbers<[2], [1], [1], [2], [0, 0, 0, 1, 1, 2], [0], [0]>} : vector<2x8x8xf32>, vector<2x8x8xf32>, vector<2x8x8xf32> -> vector<2x8x8xf32>
    "tpu.trace_stop"() : () -> ()
    %176 = vector.extract_strided_slice %130 {offsets = [0, 0, 24], sizes = [2, 8, 8], strides = [1, 1, 1]} : vector<2x8x32xf32> to vector<2x8x8xf32>
    %177 = vector.extract_strided_slice %122 {offsets = [0, 0, 24], sizes = [2, 8, 8], strides = [1, 1, 1]} : vector<2x8x32xf32> to vector<2x8x8xf32>
    %178 = vector.extract_strided_slice %124 {offsets = [0, 0, 24], sizes = [2, 8, 8], strides = [1, 1, 1]} : vector<2x8x32xf32> to vector<2x8x8xf32>
    "tpu.trace_start"() <{level = 10 : i32, message = "bqd,bkd->bqk"}> : () -> ()
    %cst_62 = arith.constant dense<0.000000e+00> : vector<2x8x8xf32>
    %179 = tpu.matmul %176, %177, %cst_62 {dimension_numbers = #tpu.dot_dimension_numbers<[2], [2], [1], [1], [0, 0, 0, 1, 1, 1], [0], [0]>} : vector<2x8x8xf32>, vector<2x8x8xf32>, vector<2x8x8xf32> -> vector<2x8x8xf32>
    "tpu.trace_stop"() : () -> ()
    %cst_63 = arith.constant dense<0xFF800000> : vector<2x8xf32>
    %180 = vector.multi_reduction <maximumf>, %179, %cst_63 [2] : vector<2x8x8xf32> to vector<2x8xf32>
    %181 = vector.shape_cast %180 : vector<2x8xf32> to vector<2x8x1xf32>
    %182 = vector.broadcast %181 : vector<2x8x1xf32> to vector<2x8x8xf32>
    %183 = arith.subf %179, %182 : vector<2x8x8xf32>
    %184 = math.exp %183 : vector<2x8x8xf32>
    %cst_64 = arith.constant dense<0.000000e+00> : vector<2x8xf32>
    %185 = vector.multi_reduction <add>, %184, %cst_64 [2] : vector<2x8x8xf32> to vector<2x8xf32>
    %186 = vector.shape_cast %185 : vector<2x8xf32> to vector<2x8x1xf32>
    %187 = tpu.reciprocal %186 {approx = true} : vector<2x8x1xf32> -> vector<2x8x1xf32>
    %188 = vector.broadcast %187 : vector<2x8x1xf32> to vector<2x8x8xf32>
    %189 = arith.mulf %184, %188 : vector<2x8x8xf32>
    "tpu.trace_start"() <{level = 10 : i32, message = "bqk,bkd->bqd"}> : () -> ()
    %cst_65 = arith.constant dense<0.000000e+00> : vector<2x8x8xf32>
    %190 = tpu.matmul %189, %178, %cst_65 {dimension_numbers = #tpu.dot_dimension_numbers<[2], [1], [1], [2], [0, 0, 0, 1, 1, 2], [0], [0]>} : vector<2x8x8xf32>, vector<2x8x8xf32>, vector<2x8x8xf32> -> vector<2x8x8xf32>
    "tpu.trace_stop"() : () -> ()
    %191 = tpu.concatenate %145, %160, %175, %190 in 2 : vector<2x8x8xf32>, vector<2x8x8xf32>, vector<2x8x8xf32>, vector<2x8x8xf32> -> vector<2x8x32xf32>
    %192 = vector.shape_cast %191 : vector<2x8x32xf32> to vector<16x32xf32>
    %cst_66 = arith.constant dense<0.000000e+00> : vector<16x32xf32>
    %193 = tpu.matmul %192, %10, %cst_66 {dimension_numbers = #tpu.dot_dimension_numbers<[1], [0], [0], [1], [0, 0, 1, 1], [], []>} : vector<16x32xf32>, vector<32x32xf32>, vector<16x32xf32> -> vector<16x32xf32>
    %194 = vector.broadcast %12 : vector<1x32xf32> to vector<16x32xf32>
    %195 = arith.addf %193, %194 : vector<16x32xf32>
    %196 = arith.addf %115, %195 : vector<16x32xf32>
    %cst_67 = arith.constant dense<0.000000e+00> : vector<16xf32>
    %197 = vector.multi_reduction <add>, %196, %cst_67 [1] : vector<16x32xf32> to vector<16xf32>
    %198 = vector.shape_cast %197 : vector<16xf32> to vector<16x1xf32>
    %cst_68 = arith.constant 3.200000e+01 : f32
    %199 = vector.broadcast %cst_68 : f32 to vector<16x1xf32>
    %200 = arith.divf %198, %199 : vector<16x1xf32>
    %201 = vector.broadcast %200 : vector<16x1xf32> to vector<16x32xf32>
    %202 = arith.subf %196, %201 : vector<16x32xf32>
    %203 = arith.mulf %202, %202 : vector<16x32xf32>
    %cst_69 = arith.constant dense<0.000000e+00> : vector<16xf32>
    %204 = vector.multi_reduction <add>, %203, %cst_69 [1] : vector<16x32xf32> to vector<16xf32>
    %205 = vector.shape_cast %204 : vector<16xf32> to vector<16x1xf32>
    %cst_70 = arith.constant 3.200000e+01 : f32
    %206 = vector.broadcast %cst_70 : f32 to vector<16x1xf32>
    %207 = arith.divf %205, %206 : vector<16x1xf32>
    %cst_71 = arith.constant 9.99999974E-6 : f32
    %208 = vector.broadcast %cst_71 : f32 to vector<16x1xf32>
    %209 = arith.addf %207, %208 : vector<16x1xf32>
    %210 = math.rsqrt %209 : vector<16x1xf32>
    %211 = vector.broadcast %210 : vector<16x1xf32> to vector<16x32xf32>
    %212 = arith.mulf %202, %211 : vector<16x32xf32>
    %213 = vector.broadcast %14 : vector<1x32xf32> to vector<16x32xf32>
    %214 = arith.mulf %212, %213 : vector<16x32xf32>
    %215 = vector.broadcast %16 : vector<1x32xf32> to vector<16x32xf32>
    %216 = arith.addf %214, %215 : vector<16x32xf32>
    %c0_72 = arith.constant 0 : index
    %c0_73 = arith.constant 0 : index
    %c0_74 = arith.constant 0 : index
    %217 = vector.load %arg10[%c0_72, %c0_73, %c0_74] : memref<2x32x64xf32, #tpu.memory_space<vmem>>, vector<1x32x64xf32>
    %218 = vector.shape_cast %217 : vector<1x32x64xf32> to vector<32x64xf32>
    %cst_75 = arith.constant dense<0.000000e+00> : vector<16x64xf32>
    %219 = tpu.matmul %216, %218, %cst_75 {dimension_numbers = #tpu.dot_dimension_numbers<[1], [0], [0], [1], [0, 0, 1, 1], [], []>} : vector<16x32xf32>, vector<32x64xf32>, vector<16x64xf32> -> vector<16x64xf32>
    %c0_76 = arith.constant 0 : index
    %c0_77 = arith.constant 0 : index
    %c0_78 = arith.constant 0 : index
    %220 = vector.load %arg11[%c0_76, %c0_77, %c0_78] : memref<2x1x64xf32, #tpu.memory_space<vmem>>, vector<1x1x64xf32>
    %221 = vector.shape_cast %220 : vector<1x1x64xf32> to vector<1x64xf32>
    %222 = vector.broadcast %221 : vector<1x64xf32> to vector<16x64xf32>
    %223 = arith.addf %219, %222 : vector<16x64xf32>
    %cst_79 = arith.constant 0.000000e+00 : f32
    %224 = vector.broadcast %cst_79 : f32 to vector<16x64xf32>
    %225 = arith.maximumf %223, %224 : vector<16x64xf32>
    %c0_80 = arith.constant 0 : index
    %c0_81 = arith.constant 0 : index
    %c0_82 = arith.constant 0 : index
    %226 = vector.load %arg12[%c0_80, %c0_81, %c0_82] : memref<2x64x32xf32, #tpu.memory_space<vmem>>, vector<1x64x32xf32>
    %227 = vector.shape_cast %226 : vector<1x64x32xf32> to vector<64x32xf32>
    %cst_83 = arith.constant dense<0.000000e+00> : vector<16x32xf32>
    %228 = tpu.matmul %225, %227, %cst_83 {dimension_numbers = #tpu.dot_dimension_numbers<[1], [0], [0], [1], [0, 0, 1, 1], [], []>} : vector<16x64xf32>, vector<64x32xf32>, vector<16x32xf32> -> vector<16x32xf32>
    %c0_84 = arith.constant 0 : index
    %c0_85 = arith.constant 0 : index
    %c0_86 = arith.constant 0 : index
    %229 = vector.load %arg13[%c0_84, %c0_85, %c0_86] : memref<2x1x32xf32, #tpu.memory_space<vmem>>, vector<1x1x32xf32>
    %230 = vector.shape_cast %229 : vector<1x1x32xf32> to vector<1x32xf32>
    %231 = vector.broadcast %230 : vector<1x32xf32> to vector<16x32xf32>
    %232 = arith.addf %228, %231 : vector<16x32xf32>
    %233 = arith.addf %216, %232 : vector<16x32xf32>
    %c0_87 = arith.constant 0 : index
    %c0_88 = arith.constant 0 : index
    %c0_89 = arith.constant 0 : index
    %234 = vector.load %arg14[%c0_87, %c0_88, %c0_89] : memref<2x1x32xf32, #tpu.memory_space<vmem>>, vector<1x1x32xf32>
    %235 = vector.shape_cast %234 : vector<1x1x32xf32> to vector<1x32xf32>
    %c0_90 = arith.constant 0 : index
    %c0_91 = arith.constant 0 : index
    %c0_92 = arith.constant 0 : index
    %236 = vector.load %arg15[%c0_90, %c0_91, %c0_92] : memref<2x1x32xf32, #tpu.memory_space<vmem>>, vector<1x1x32xf32>
    %237 = vector.shape_cast %236 : vector<1x1x32xf32> to vector<1x32xf32>
    %cst_93 = arith.constant dense<0.000000e+00> : vector<16xf32>
    %238 = vector.multi_reduction <add>, %233, %cst_93 [1] : vector<16x32xf32> to vector<16xf32>
    %239 = vector.shape_cast %238 : vector<16xf32> to vector<16x1xf32>
    %cst_94 = arith.constant 3.200000e+01 : f32
    %240 = vector.broadcast %cst_94 : f32 to vector<16x1xf32>
    %241 = arith.divf %239, %240 : vector<16x1xf32>
    %242 = vector.broadcast %241 : vector<16x1xf32> to vector<16x32xf32>
    %243 = arith.subf %233, %242 : vector<16x32xf32>
    %244 = arith.mulf %243, %243 : vector<16x32xf32>
    %cst_95 = arith.constant dense<0.000000e+00> : vector<16xf32>
    %245 = vector.multi_reduction <add>, %244, %cst_95 [1] : vector<16x32xf32> to vector<16xf32>
    %246 = vector.shape_cast %245 : vector<16xf32> to vector<16x1xf32>
    %cst_96 = arith.constant 3.200000e+01 : f32
    %247 = vector.broadcast %cst_96 : f32 to vector<16x1xf32>
    %248 = arith.divf %246, %247 : vector<16x1xf32>
    %cst_97 = arith.constant 9.99999974E-6 : f32
    %249 = vector.broadcast %cst_97 : f32 to vector<16x1xf32>
    %250 = arith.addf %248, %249 : vector<16x1xf32>
    %251 = math.rsqrt %250 : vector<16x1xf32>
    %252 = vector.broadcast %251 : vector<16x1xf32> to vector<16x32xf32>
    %253 = arith.mulf %243, %252 : vector<16x32xf32>
    %254 = vector.broadcast %235 : vector<1x32xf32> to vector<16x32xf32>
    %255 = arith.mulf %253, %254 : vector<16x32xf32>
    %256 = vector.broadcast %237 : vector<1x32xf32> to vector<16x32xf32>
    %257 = arith.addf %255, %256 : vector<16x32xf32>
    %c1 = arith.constant 1 : index
    %c0_98 = arith.constant 0 : index
    %c0_99 = arith.constant 0 : index
    %258 = vector.load %arg4[%c1, %c0_98, %c0_99] : memref<2x32x96xf32, #tpu.memory_space<vmem>>, vector<1x32x96xf32>
    %259 = vector.shape_cast %258 : vector<1x32x96xf32> to vector<32x96xf32>
    %c1_100 = arith.constant 1 : index
    %c0_101 = arith.constant 0 : index
    %c0_102 = arith.constant 0 : index
    %260 = vector.load %arg5[%c1_100, %c0_101, %c0_102] : memref<2x1x96xf32, #tpu.memory_space<vmem>>, vector<1x1x96xf32>
    %261 = vector.shape_cast %260 : vector<1x1x96xf32> to vector<1x96xf32>
    %c1_103 = arith.constant 1 : index
    %c0_104 = arith.constant 0 : index
    %c0_105 = arith.constant 0 : index
    %262 = vector.load %arg6[%c1_103, %c0_104, %c0_105] : memref<2x32x32xf32, #tpu.memory_space<vmem>>, vector<1x32x32xf32>
    %263 = vector.shape_cast %262 : vector<1x32x32xf32> to vector<32x32xf32>
    %c1_106 = arith.constant 1 : index
    %c0_107 = arith.constant 0 : index
    %c0_108 = arith.constant 0 : index
    %264 = vector.load %arg7[%c1_106, %c0_107, %c0_108] : memref<2x1x32xf32, #tpu.memory_space<vmem>>, vector<1x1x32xf32>
    %265 = vector.shape_cast %264 : vector<1x1x32xf32> to vector<1x32xf32>
    %c1_109 = arith.constant 1 : index
    %c0_110 = arith.constant 0 : index
    %c0_111 = arith.constant 0 : index
    %266 = vector.load %arg8[%c1_109, %c0_110, %c0_111] : memref<2x1x32xf32, #tpu.memory_space<vmem>>, vector<1x1x32xf32>
    %267 = vector.shape_cast %266 : vector<1x1x32xf32> to vector<1x32xf32>
    %c1_112 = arith.constant 1 : index
    %c0_113 = arith.constant 0 : index
    %c0_114 = arith.constant 0 : index
    %268 = vector.load %arg9[%c1_112, %c0_113, %c0_114] : memref<2x1x32xf32, #tpu.memory_space<vmem>>, vector<1x1x32xf32>
    %269 = vector.shape_cast %268 : vector<1x1x32xf32> to vector<1x32xf32>
    %cst_115 = arith.constant dense<0.000000e+00> : vector<16x96xf32>
    %270 = tpu.matmul %257, %259, %cst_115 {dimension_numbers = #tpu.dot_dimension_numbers<[1], [0], [0], [1], [0, 0, 1, 1], [], []>} : vector<16x32xf32>, vector<32x96xf32>, vector<16x96xf32> -> vector<16x96xf32>
    %271 = vector.broadcast %261 : vector<1x96xf32> to vector<16x96xf32>
    %272 = arith.addf %270, %271 : vector<16x96xf32>
    %273 = vector.extract_strided_slice %272 {offsets = [0, 0], sizes = [16, 32], strides = [1, 1]} : vector<16x96xf32> to vector<16x32xf32>
    %274 = vector.extract_strided_slice %272 {offsets = [0, 32], sizes = [16, 32], strides = [1, 1]} : vector<16x96xf32> to vector<16x32xf32>
    %275 = vector.shape_cast %274 : vector<16x32xf32> to vector<2x8x32xf32>
    %276 = vector.extract_strided_slice %272 {offsets = [0, 64], sizes = [16, 32], strides = [1, 1]} : vector<16x96xf32> to vector<16x32xf32>
    %277 = vector.shape_cast %276 : vector<16x32xf32> to vector<2x8x32xf32>
    %278 = vector.shape_cast %273 : vector<16x32xf32> to vector<2x8x32xf32>
    %279 = vector.extract_strided_slice %278 {offsets = [0, 0, 0], sizes = [2, 8, 8], strides = [1, 1, 1]} : vector<2x8x32xf32> to vector<2x8x8xf32>
    %280 = vector.extract_strided_slice %275 {offsets = [0, 0, 0], sizes = [2, 8, 8], strides = [1, 1, 1]} : vector<2x8x32xf32> to vector<2x8x8xf32>
    %281 = vector.extract_strided_slice %277 {offsets = [0, 0, 0], sizes = [2, 8, 8], strides = [1, 1, 1]} : vector<2x8x32xf32> to vector<2x8x8xf32>
    "tpu.trace_start"() <{level = 10 : i32, message = "bqd,bkd->bqk"}> : () -> ()
    %cst_116 = arith.constant dense<0.000000e+00> : vector<2x8x8xf32>
    %282 = tpu.matmul %279, %280, %cst_116 {dimension_numbers = #tpu.dot_dimension_numbers<[2], [2], [1], [1], [0, 0, 0, 1, 1, 1], [0], [0]>} : vector<2x8x8xf32>, vector<2x8x8xf32>, vector<2x8x8xf32> -> vector<2x8x8xf32>
    "tpu.trace_stop"() : () -> ()
    %283 = arith.addf %282, %4 : vector<2x8x8xf32>
    %cst_117 = arith.constant dense<0xFF800000> : vector<2x8xf32>
    %284 = vector.multi_reduction <maximumf>, %283, %cst_117 [2] : vector<2x8x8xf32> to vector<2x8xf32>
    %285 = vector.shape_cast %284 : vector<2x8xf32> to vector<2x8x1xf32>
    %286 = vector.broadcast %285 : vector<2x8x1xf32> to vector<2x8x8xf32>
    %287 = arith.subf %283, %286 : vector<2x8x8xf32>
    %288 = math.exp %287 : vector<2x8x8xf32>
    %cst_118 = arith.constant dense<0.000000e+00> : vector<2x8xf32>
    %289 = vector.multi_reduction <add>, %288, %cst_118 [2] : vector<2x8x8xf32> to vector<2x8xf32>
    %290 = vector.shape_cast %289 : vector<2x8xf32> to vector<2x8x1xf32>
    %291 = tpu.reciprocal %290 {approx = true} : vector<2x8x1xf32> -> vector<2x8x1xf32>
    %292 = vector.broadcast %291 : vector<2x8x1xf32> to vector<2x8x8xf32>
    %293 = arith.mulf %288, %292 : vector<2x8x8xf32>
    "tpu.trace_start"() <{level = 10 : i32, message = "bqk,bkd->bqd"}> : () -> ()
    %cst_119 = arith.constant dense<0.000000e+00> : vector<2x8x8xf32>
    %294 = tpu.matmul %293, %281, %cst_119 {dimension_numbers = #tpu.dot_dimension_numbers<[2], [1], [1], [2], [0, 0, 0, 1, 1, 2], [0], [0]>} : vector<2x8x8xf32>, vector<2x8x8xf32>, vector<2x8x8xf32> -> vector<2x8x8xf32>
    "tpu.trace_stop"() : () -> ()
    %295 = vector.extract_strided_slice %278 {offsets = [0, 0, 8], sizes = [2, 8, 8], strides = [1, 1, 1]} : vector<2x8x32xf32> to vector<2x8x8xf32>
    %296 = vector.extract_strided_slice %275 {offsets = [0, 0, 8], sizes = [2, 8, 8], strides = [1, 1, 1]} : vector<2x8x32xf32> to vector<2x8x8xf32>
    %297 = vector.extract_strided_slice %277 {offsets = [0, 0, 8], sizes = [2, 8, 8], strides = [1, 1, 1]} : vector<2x8x32xf32> to vector<2x8x8xf32>
    "tpu.trace_start"() <{level = 10 : i32, message = "bqd,bkd->bqk"}> : () -> ()
    %cst_120 = arith.constant dense<0.000000e+00> : vector<2x8x8xf32>
    %298 = tpu.matmul %295, %296, %cst_120 {dimension_numbers = #tpu.dot_dimension_numbers<[2], [2], [1], [1], [0, 0, 0, 1, 1, 1], [0], [0]>} : vector<2x8x8xf32>, vector<2x8x8xf32>, vector<2x8x8xf32> -> vector<2x8x8xf32>
    "tpu.trace_stop"() : () -> ()
    %299 = arith.addf %298, %4 : vector<2x8x8xf32>
    %cst_121 = arith.constant dense<0xFF800000> : vector<2x8xf32>
    %300 = vector.multi_reduction <maximumf>, %299, %cst_121 [2] : vector<2x8x8xf32> to vector<2x8xf32>
    %301 = vector.shape_cast %300 : vector<2x8xf32> to vector<2x8x1xf32>
    %302 = vector.broadcast %301 : vector<2x8x1xf32> to vector<2x8x8xf32>
    %303 = arith.subf %299, %302 : vector<2x8x8xf32>
    %304 = math.exp %303 : vector<2x8x8xf32>
    %cst_122 = arith.constant dense<0.000000e+00> : vector<2x8xf32>
    %305 = vector.multi_reduction <add>, %304, %cst_122 [2] : vector<2x8x8xf32> to vector<2x8xf32>
    %306 = vector.shape_cast %305 : vector<2x8xf32> to vector<2x8x1xf32>
    %307 = tpu.reciprocal %306 {approx = true} : vector<2x8x1xf32> -> vector<2x8x1xf32>
    %308 = vector.broadcast %307 : vector<2x8x1xf32> to vector<2x8x8xf32>
    %309 = arith.mulf %304, %308 : vector<2x8x8xf32>
    "tpu.trace_start"() <{level = 10 : i32, message = "bqk,bkd->bqd"}> : () -> ()
    %cst_123 = arith.constant dense<0.000000e+00> : vector<2x8x8xf32>
    %310 = tpu.matmul %309, %297, %cst_123 {dimension_numbers = #tpu.dot_dimension_numbers<[2], [1], [1], [2], [0, 0, 0, 1, 1, 2], [0], [0]>} : vector<2x8x8xf32>, vector<2x8x8xf32>, vector<2x8x8xf32> -> vector<2x8x8xf32>
    "tpu.trace_stop"() : () -> ()
    %311 = vector.extract_strided_slice %278 {offsets = [0, 0, 16], sizes = [2, 8, 8], strides = [1, 1, 1]} : vector<2x8x32xf32> to vector<2x8x8xf32>
    %312 = vector.extract_strided_slice %275 {offsets = [0, 0, 16], sizes = [2, 8, 8], strides = [1, 1, 1]} : vector<2x8x32xf32> to vector<2x8x8xf32>
    %313 = vector.extract_strided_slice %277 {offsets = [0, 0, 16], sizes = [2, 8, 8], strides = [1, 1, 1]} : vector<2x8x32xf32> to vector<2x8x8xf32>
    "tpu.trace_start"() <{level = 10 : i32, message = "bqd,bkd->bqk"}> : () -> ()
    %cst_124 = arith.constant dense<0.000000e+00> : vector<2x8x8xf32>
    %314 = tpu.matmul %311, %312, %cst_124 {dimension_numbers = #tpu.dot_dimension_numbers<[2], [2], [1], [1], [0, 0, 0, 1, 1, 1], [0], [0]>} : vector<2x8x8xf32>, vector<2x8x8xf32>, vector<2x8x8xf32> -> vector<2x8x8xf32>
    "tpu.trace_stop"() : () -> ()
    %315 = arith.addf %314, %4 : vector<2x8x8xf32>
    %cst_125 = arith.constant dense<0xFF800000> : vector<2x8xf32>
    %316 = vector.multi_reduction <maximumf>, %315, %cst_125 [2] : vector<2x8x8xf32> to vector<2x8xf32>
    %317 = vector.shape_cast %316 : vector<2x8xf32> to vector<2x8x1xf32>
    %318 = vector.broadcast %317 : vector<2x8x1xf32> to vector<2x8x8xf32>
    %319 = arith.subf %315, %318 : vector<2x8x8xf32>
    %320 = math.exp %319 : vector<2x8x8xf32>
    %cst_126 = arith.constant dense<0.000000e+00> : vector<2x8xf32>
    %321 = vector.multi_reduction <add>, %320, %cst_126 [2] : vector<2x8x8xf32> to vector<2x8xf32>
    %322 = vector.shape_cast %321 : vector<2x8xf32> to vector<2x8x1xf32>
    %323 = tpu.reciprocal %322 {approx = true} : vector<2x8x1xf32> -> vector<2x8x1xf32>
    %324 = vector.broadcast %323 : vector<2x8x1xf32> to vector<2x8x8xf32>
    %325 = arith.mulf %320, %324 : vector<2x8x8xf32>
    "tpu.trace_start"() <{level = 10 : i32, message = "bqk,bkd->bqd"}> : () -> ()
    %cst_127 = arith.constant dense<0.000000e+00> : vector<2x8x8xf32>
    %326 = tpu.matmul %325, %313, %cst_127 {dimension_numbers = #tpu.dot_dimension_numbers<[2], [1], [1], [2], [0, 0, 0, 1, 1, 2], [0], [0]>} : vector<2x8x8xf32>, vector<2x8x8xf32>, vector<2x8x8xf32> -> vector<2x8x8xf32>
    "tpu.trace_stop"() : () -> ()
    %327 = vector.extract_strided_slice %278 {offsets = [0, 0, 24], sizes = [2, 8, 8], strides = [1, 1, 1]} : vector<2x8x32xf32> to vector<2x8x8xf32>
    %328 = vector.extract_strided_slice %275 {offsets = [0, 0, 24], sizes = [2, 8, 8], strides = [1, 1, 1]} : vector<2x8x32xf32> to vector<2x8x8xf32>
    %329 = vector.extract_strided_slice %277 {offsets = [0, 0, 24], sizes = [2, 8, 8], strides = [1, 1, 1]} : vector<2x8x32xf32> to vector<2x8x8xf32>
    "tpu.trace_start"() <{level = 10 : i32, message = "bqd,bkd->bqk"}> : () -> ()
    %cst_128 = arith.constant dense<0.000000e+00> : vector<2x8x8xf32>
    %330 = tpu.matmul %327, %328, %cst_128 {dimension_numbers = #tpu.dot_dimension_numbers<[2], [2], [1], [1], [0, 0, 0, 1, 1, 1], [0], [0]>} : vector<2x8x8xf32>, vector<2x8x8xf32>, vector<2x8x8xf32> -> vector<2x8x8xf32>
    "tpu.trace_stop"() : () -> ()
    %331 = arith.addf %330, %4 : vector<2x8x8xf32>
    %cst_129 = arith.constant dense<0xFF800000> : vector<2x8xf32>
    %332 = vector.multi_reduction <maximumf>, %331, %cst_129 [2] : vector<2x8x8xf32> to vector<2x8xf32>
    %333 = vector.shape_cast %332 : vector<2x8xf32> to vector<2x8x1xf32>
    %334 = vector.broadcast %333 : vector<2x8x1xf32> to vector<2x8x8xf32>
    %335 = arith.subf %331, %334 : vector<2x8x8xf32>
    %336 = math.exp %335 : vector<2x8x8xf32>
    %cst_130 = arith.constant dense<0.000000e+00> : vector<2x8xf32>
    %337 = vector.multi_reduction <add>, %336, %cst_130 [2] : vector<2x8x8xf32> to vector<2x8xf32>
    %338 = vector.shape_cast %337 : vector<2x8xf32> to vector<2x8x1xf32>
    %339 = tpu.reciprocal %338 {approx = true} : vector<2x8x1xf32> -> vector<2x8x1xf32>
    %340 = vector.broadcast %339 : vector<2x8x1xf32> to vector<2x8x8xf32>
    %341 = arith.mulf %336, %340 : vector<2x8x8xf32>
    "tpu.trace_start"() <{level = 10 : i32, message = "bqk,bkd->bqd"}> : () -> ()
    %cst_131 = arith.constant dense<0.000000e+00> : vector<2x8x8xf32>
    %342 = tpu.matmul %341, %329, %cst_131 {dimension_numbers = #tpu.dot_dimension_numbers<[2], [1], [1], [2], [0, 0, 0, 1, 1, 2], [0], [0]>} : vector<2x8x8xf32>, vector<2x8x8xf32>, vector<2x8x8xf32> -> vector<2x8x8xf32>
    "tpu.trace_stop"() : () -> ()
    %343 = tpu.concatenate %294, %310, %326, %342 in 2 : vector<2x8x8xf32>, vector<2x8x8xf32>, vector<2x8x8xf32>, vector<2x8x8xf32> -> vector<2x8x32xf32>
    %344 = vector.shape_cast %343 : vector<2x8x32xf32> to vector<16x32xf32>
    %cst_132 = arith.constant dense<0.000000e+00> : vector<16x32xf32>
    %345 = tpu.matmul %344, %263, %cst_132 {dimension_numbers = #tpu.dot_dimension_numbers<[1], [0], [0], [1], [0, 0, 1, 1], [], []>} : vector<16x32xf32>, vector<32x32xf32>, vector<16x32xf32> -> vector<16x32xf32>
    %346 = vector.broadcast %265 : vector<1x32xf32> to vector<16x32xf32>
    %347 = arith.addf %345, %346 : vector<16x32xf32>
    %348 = arith.addf %257, %347 : vector<16x32xf32>
    %cst_133 = arith.constant dense<0.000000e+00> : vector<16xf32>
    %349 = vector.multi_reduction <add>, %348, %cst_133 [1] : vector<16x32xf32> to vector<16xf32>
    %350 = vector.shape_cast %349 : vector<16xf32> to vector<16x1xf32>
    %cst_134 = arith.constant 3.200000e+01 : f32
    %351 = vector.broadcast %cst_134 : f32 to vector<16x1xf32>
    %352 = arith.divf %350, %351 : vector<16x1xf32>
    %353 = vector.broadcast %352 : vector<16x1xf32> to vector<16x32xf32>
    %354 = arith.subf %348, %353 : vector<16x32xf32>
    %355 = arith.mulf %354, %354 : vector<16x32xf32>
    %cst_135 = arith.constant dense<0.000000e+00> : vector<16xf32>
    %356 = vector.multi_reduction <add>, %355, %cst_135 [1] : vector<16x32xf32> to vector<16xf32>
    %357 = vector.shape_cast %356 : vector<16xf32> to vector<16x1xf32>
    %cst_136 = arith.constant 3.200000e+01 : f32
    %358 = vector.broadcast %cst_136 : f32 to vector<16x1xf32>
    %359 = arith.divf %357, %358 : vector<16x1xf32>
    %cst_137 = arith.constant 9.99999974E-6 : f32
    %360 = vector.broadcast %cst_137 : f32 to vector<16x1xf32>
    %361 = arith.addf %359, %360 : vector<16x1xf32>
    %362 = math.rsqrt %361 : vector<16x1xf32>
    %363 = vector.broadcast %362 : vector<16x1xf32> to vector<16x32xf32>
    %364 = arith.mulf %354, %363 : vector<16x32xf32>
    %365 = vector.broadcast %267 : vector<1x32xf32> to vector<16x32xf32>
    %366 = arith.mulf %364, %365 : vector<16x32xf32>
    %367 = vector.broadcast %269 : vector<1x32xf32> to vector<16x32xf32>
    %368 = arith.addf %366, %367 : vector<16x32xf32>
    %369 = vector.extract_strided_slice %259 {offsets = [0, 32], sizes = [32, 64], strides = [1, 1]} : vector<32x96xf32> to vector<32x64xf32>
    %cst_138 = arith.constant dense<0.000000e+00> : vector<16x64xf32>
    %370 = tpu.matmul %3, %369, %cst_138 {dimension_numbers = #tpu.dot_dimension_numbers<[1], [0], [0], [1], [0, 0, 1, 1], [], []>} : vector<16x32xf32>, vector<32x64xf32>, vector<16x64xf32> -> vector<16x64xf32>
    %371 = vector.extract_strided_slice %261 {offsets = [0, 32], sizes = [1, 64], strides = [1, 1]} : vector<1x96xf32> to vector<1x64xf32>
    %372 = vector.broadcast %371 : vector<1x64xf32> to vector<16x64xf32>
    %373 = arith.addf %370, %372 : vector<16x64xf32>
    %374 = vector.extract_strided_slice %373 {offsets = [0, 0], sizes = [16, 32], strides = [1, 1]} : vector<16x64xf32> to vector<16x32xf32>
    %375 = vector.shape_cast %374 : vector<16x32xf32> to vector<2x8x32xf32>
    %376 = vector.extract_strided_slice %373 {offsets = [0, 32], sizes = [16, 32], strides = [1, 1]} : vector<16x64xf32> to vector<16x32xf32>
    %377 = vector.shape_cast %376 : vector<16x32xf32> to vector<2x8x32xf32>
    %378 = vector.extract_strided_slice %259 {offsets = [0, 0], sizes = [32, 32], strides = [1, 1]} : vector<32x96xf32> to vector<32x32xf32>
    %cst_139 = arith.constant dense<0.000000e+00> : vector<16x32xf32>
    %379 = tpu.matmul %368, %378, %cst_139 {dimension_numbers = #tpu.dot_dimension_numbers<[1], [0], [0], [1], [0, 0, 1, 1], [], []>} : vector<16x32xf32>, vector<32x32xf32>, vector<16x32xf32> -> vector<16x32xf32>
    %380 = vector.extract_strided_slice %261 {offsets = [0, 0], sizes = [1, 32], strides = [1, 1]} : vector<1x96xf32> to vector<1x32xf32>
    %381 = vector.broadcast %380 : vector<1x32xf32> to vector<16x32xf32>
    %382 = arith.addf %379, %381 : vector<16x32xf32>
    %383 = vector.shape_cast %382 : vector<16x32xf32> to vector<2x8x32xf32>
    %384 = vector.extract_strided_slice %383 {offsets = [0, 0, 0], sizes = [2, 8, 8], strides = [1, 1, 1]} : vector<2x8x32xf32> to vector<2x8x8xf32>
    %385 = vector.extract_strided_slice %375 {offsets = [0, 0, 0], sizes = [2, 8, 8], strides = [1, 1, 1]} : vector<2x8x32xf32> to vector<2x8x8xf32>
    %386 = vector.extract_strided_slice %377 {offsets = [0, 0, 0], sizes = [2, 8, 8], strides = [1, 1, 1]} : vector<2x8x32xf32> to vector<2x8x8xf32>
    "tpu.trace_start"() <{level = 10 : i32, message = "bqd,bkd->bqk"}> : () -> ()
    %cst_140 = arith.constant dense<0.000000e+00> : vector<2x8x8xf32>
    %387 = tpu.matmul %384, %385, %cst_140 {dimension_numbers = #tpu.dot_dimension_numbers<[2], [2], [1], [1], [0, 0, 0, 1, 1, 1], [0], [0]>} : vector<2x8x8xf32>, vector<2x8x8xf32>, vector<2x8x8xf32> -> vector<2x8x8xf32>
    "tpu.trace_stop"() : () -> ()
    %cst_141 = arith.constant dense<0xFF800000> : vector<2x8xf32>
    %388 = vector.multi_reduction <maximumf>, %387, %cst_141 [2] : vector<2x8x8xf32> to vector<2x8xf32>
    %389 = vector.shape_cast %388 : vector<2x8xf32> to vector<2x8x1xf32>
    %390 = vector.broadcast %389 : vector<2x8x1xf32> to vector<2x8x8xf32>
    %391 = arith.subf %387, %390 : vector<2x8x8xf32>
    %392 = math.exp %391 : vector<2x8x8xf32>
    %cst_142 = arith.constant dense<0.000000e+00> : vector<2x8xf32>
    %393 = vector.multi_reduction <add>, %392, %cst_142 [2] : vector<2x8x8xf32> to vector<2x8xf32>
    %394 = vector.shape_cast %393 : vector<2x8xf32> to vector<2x8x1xf32>
    %395 = tpu.reciprocal %394 {approx = true} : vector<2x8x1xf32> -> vector<2x8x1xf32>
    %396 = vector.broadcast %395 : vector<2x8x1xf32> to vector<2x8x8xf32>
    %397 = arith.mulf %392, %396 : vector<2x8x8xf32>
    "tpu.trace_start"() <{level = 10 : i32, message = "bqk,bkd->bqd"}> : () -> ()
    %cst_143 = arith.constant dense<0.000000e+00> : vector<2x8x8xf32>
    %398 = tpu.matmul %397, %386, %cst_143 {dimension_numbers = #tpu.dot_dimension_numbers<[2], [1], [1], [2], [0, 0, 0, 1, 1, 2], [0], [0]>} : vector<2x8x8xf32>, vector<2x8x8xf32>, vector<2x8x8xf32> -> vector<2x8x8xf32>
    "tpu.trace_stop"() : () -> ()
    %399 = vector.extract_strided_slice %383 {offsets = [0, 0, 8], sizes = [2, 8, 8], strides = [1, 1, 1]} : vector<2x8x32xf32> to vector<2x8x8xf32>
    %400 = vector.extract_strided_slice %375 {offsets = [0, 0, 8], sizes = [2, 8, 8], strides = [1, 1, 1]} : vector<2x8x32xf32> to vector<2x8x8xf32>
    %401 = vector.extract_strided_slice %377 {offsets = [0, 0, 8], sizes = [2, 8, 8], strides = [1, 1, 1]} : vector<2x8x32xf32> to vector<2x8x8xf32>
    "tpu.trace_start"() <{level = 10 : i32, message = "bqd,bkd->bqk"}> : () -> ()
    %cst_144 = arith.constant dense<0.000000e+00> : vector<2x8x8xf32>
    %402 = tpu.matmul %399, %400, %cst_144 {dimension_numbers = #tpu.dot_dimension_numbers<[2], [2], [1], [1], [0, 0, 0, 1, 1, 1], [0], [0]>} : vector<2x8x8xf32>, vector<2x8x8xf32>, vector<2x8x8xf32> -> vector<2x8x8xf32>
    "tpu.trace_stop"() : () -> ()
    %cst_145 = arith.constant dense<0xFF800000> : vector<2x8xf32>
    %403 = vector.multi_reduction <maximumf>, %402, %cst_145 [2] : vector<2x8x8xf32> to vector<2x8xf32>
    %404 = vector.shape_cast %403 : vector<2x8xf32> to vector<2x8x1xf32>
    %405 = vector.broadcast %404 : vector<2x8x1xf32> to vector<2x8x8xf32>
    %406 = arith.subf %402, %405 : vector<2x8x8xf32>
    %407 = math.exp %406 : vector<2x8x8xf32>
    %cst_146 = arith.constant dense<0.000000e+00> : vector<2x8xf32>
    %408 = vector.multi_reduction <add>, %407, %cst_146 [2] : vector<2x8x8xf32> to vector<2x8xf32>
    %409 = vector.shape_cast %408 : vector<2x8xf32> to vector<2x8x1xf32>
    %410 = tpu.reciprocal %409 {approx = true} : vector<2x8x1xf32> -> vector<2x8x1xf32>
    %411 = vector.broadcast %410 : vector<2x8x1xf32> to vector<2x8x8xf32>
    %412 = arith.mulf %407, %411 : vector<2x8x8xf32>
    "tpu.trace_start"() <{level = 10 : i32, message = "bqk,bkd->bqd"}> : () -> ()
    %cst_147 = arith.constant dense<0.000000e+00> : vector<2x8x8xf32>
    %413 = tpu.matmul %412, %401, %cst_147 {dimension_numbers = #tpu.dot_dimension_numbers<[2], [1], [1], [2], [0, 0, 0, 1, 1, 2], [0], [0]>} : vector<2x8x8xf32>, vector<2x8x8xf32>, vector<2x8x8xf32> -> vector<2x8x8xf32>
    "tpu.trace_stop"() : () -> ()
    %414 = vector.extract_strided_slice %383 {offsets = [0, 0, 16], sizes = [2, 8, 8], strides = [1, 1, 1]} : vector<2x8x32xf32> to vector<2x8x8xf32>
    %415 = vector.extract_strided_slice %375 {offsets = [0, 0, 16], sizes = [2, 8, 8], strides = [1, 1, 1]} : vector<2x8x32xf32> to vector<2x8x8xf32>
    %416 = vector.extract_strided_slice %377 {offsets = [0, 0, 16], sizes = [2, 8, 8], strides = [1, 1, 1]} : vector<2x8x32xf32> to vector<2x8x8xf32>
    "tpu.trace_start"() <{level = 10 : i32, message = "bqd,bkd->bqk"}> : () -> ()
    %cst_148 = arith.constant dense<0.000000e+00> : vector<2x8x8xf32>
    %417 = tpu.matmul %414, %415, %cst_148 {dimension_numbers = #tpu.dot_dimension_numbers<[2], [2], [1], [1], [0, 0, 0, 1, 1, 1], [0], [0]>} : vector<2x8x8xf32>, vector<2x8x8xf32>, vector<2x8x8xf32> -> vector<2x8x8xf32>
    "tpu.trace_stop"() : () -> ()
    %cst_149 = arith.constant dense<0xFF800000> : vector<2x8xf32>
    %418 = vector.multi_reduction <maximumf>, %417, %cst_149 [2] : vector<2x8x8xf32> to vector<2x8xf32>
    %419 = vector.shape_cast %418 : vector<2x8xf32> to vector<2x8x1xf32>
    %420 = vector.broadcast %419 : vector<2x8x1xf32> to vector<2x8x8xf32>
    %421 = arith.subf %417, %420 : vector<2x8x8xf32>
    %422 = math.exp %421 : vector<2x8x8xf32>
    %cst_150 = arith.constant dense<0.000000e+00> : vector<2x8xf32>
    %423 = vector.multi_reduction <add>, %422, %cst_150 [2] : vector<2x8x8xf32> to vector<2x8xf32>
    %424 = vector.shape_cast %423 : vector<2x8xf32> to vector<2x8x1xf32>
    %425 = tpu.reciprocal %424 {approx = true} : vector<2x8x1xf32> -> vector<2x8x1xf32>
    %426 = vector.broadcast %425 : vector<2x8x1xf32> to vector<2x8x8xf32>
    %427 = arith.mulf %422, %426 : vector<2x8x8xf32>
    "tpu.trace_start"() <{level = 10 : i32, message = "bqk,bkd->bqd"}> : () -> ()
    %cst_151 = arith.constant dense<0.000000e+00> : vector<2x8x8xf32>
    %428 = tpu.matmul %427, %416, %cst_151 {dimension_numbers = #tpu.dot_dimension_numbers<[2], [1], [1], [2], [0, 0, 0, 1, 1, 2], [0], [0]>} : vector<2x8x8xf32>, vector<2x8x8xf32>, vector<2x8x8xf32> -> vector<2x8x8xf32>
    "tpu.trace_stop"() : () -> ()
    %429 = vector.extract_strided_slice %383 {offsets = [0, 0, 24], sizes = [2, 8, 8], strides = [1, 1, 1]} : vector<2x8x32xf32> to vector<2x8x8xf32>
    %430 = vector.extract_strided_slice %375 {offsets = [0, 0, 24], sizes = [2, 8, 8], strides = [1, 1, 1]} : vector<2x8x32xf32> to vector<2x8x8xf32>
    %431 = vector.extract_strided_slice %377 {offsets = [0, 0, 24], sizes = [2, 8, 8], strides = [1, 1, 1]} : vector<2x8x32xf32> to vector<2x8x8xf32>
    "tpu.trace_start"() <{level = 10 : i32, message = "bqd,bkd->bqk"}> : () -> ()
    %cst_152 = arith.constant dense<0.000000e+00> : vector<2x8x8xf32>
    %432 = tpu.matmul %429, %430, %cst_152 {dimension_numbers = #tpu.dot_dimension_numbers<[2], [2], [1], [1], [0, 0, 0, 1, 1, 1], [0], [0]>} : vector<2x8x8xf32>, vector<2x8x8xf32>, vector<2x8x8xf32> -> vector<2x8x8xf32>
    "tpu.trace_stop"() : () -> ()
    %cst_153 = arith.constant dense<0xFF800000> : vector<2x8xf32>
    %433 = vector.multi_reduction <maximumf>, %432, %cst_153 [2] : vector<2x8x8xf32> to vector<2x8xf32>
    %434 = vector.shape_cast %433 : vector<2x8xf32> to vector<2x8x1xf32>
    %435 = vector.broadcast %434 : vector<2x8x1xf32> to vector<2x8x8xf32>
    %436 = arith.subf %432, %435 : vector<2x8x8xf32>
    %437 = math.exp %436 : vector<2x8x8xf32>
    %cst_154 = arith.constant dense<0.000000e+00> : vector<2x8xf32>
    %438 = vector.multi_reduction <add>, %437, %cst_154 [2] : vector<2x8x8xf32> to vector<2x8xf32>
    %439 = vector.shape_cast %438 : vector<2x8xf32> to vector<2x8x1xf32>
    %440 = tpu.reciprocal %439 {approx = true} : vector<2x8x1xf32> -> vector<2x8x1xf32>
    %441 = vector.broadcast %440 : vector<2x8x1xf32> to vector<2x8x8xf32>
    %442 = arith.mulf %437, %441 : vector<2x8x8xf32>
    "tpu.trace_start"() <{level = 10 : i32, message = "bqk,bkd->bqd"}> : () -> ()
    %cst_155 = arith.constant dense<0.000000e+00> : vector<2x8x8xf32>
    %443 = tpu.matmul %442, %431, %cst_155 {dimension_numbers = #tpu.dot_dimension_numbers<[2], [1], [1], [2], [0, 0, 0, 1, 1, 2], [0], [0]>} : vector<2x8x8xf32>, vector<2x8x8xf32>, vector<2x8x8xf32> -> vector<2x8x8xf32>
    "tpu.trace_stop"() : () -> ()
    %444 = tpu.concatenate %398, %413, %428, %443 in 2 : vector<2x8x8xf32>, vector<2x8x8xf32>, vector<2x8x8xf32>, vector<2x8x8xf32> -> vector<2x8x32xf32>
    %445 = vector.shape_cast %444 : vector<2x8x32xf32> to vector<16x32xf32>
    %cst_156 = arith.constant dense<0.000000e+00> : vector<16x32xf32>
    %446 = tpu.matmul %445, %263, %cst_156 {dimension_numbers = #tpu.dot_dimension_numbers<[1], [0], [0], [1], [0, 0, 1, 1], [], []>} : vector<16x32xf32>, vector<32x32xf32>, vector<16x32xf32> -> vector<16x32xf32>
    %447 = vector.broadcast %265 : vector<1x32xf32> to vector<16x32xf32>
    %448 = arith.addf %446, %447 : vector<16x32xf32>
    %449 = arith.addf %368, %448 : vector<16x32xf32>
    %cst_157 = arith.constant dense<0.000000e+00> : vector<16xf32>
    %450 = vector.multi_reduction <add>, %449, %cst_157 [1] : vector<16x32xf32> to vector<16xf32>
    %451 = vector.shape_cast %450 : vector<16xf32> to vector<16x1xf32>
    %cst_158 = arith.constant 3.200000e+01 : f32
    %452 = vector.broadcast %cst_158 : f32 to vector<16x1xf32>
    %453 = arith.divf %451, %452 : vector<16x1xf32>
    %454 = vector.broadcast %453 : vector<16x1xf32> to vector<16x32xf32>
    %455 = arith.subf %449, %454 : vector<16x32xf32>
    %456 = arith.mulf %455, %455 : vector<16x32xf32>
    %cst_159 = arith.constant dense<0.000000e+00> : vector<16xf32>
    %457 = vector.multi_reduction <add>, %456, %cst_159 [1] : vector<16x32xf32> to vector<16xf32>
    %458 = vector.shape_cast %457 : vector<16xf32> to vector<16x1xf32>
    %cst_160 = arith.constant 3.200000e+01 : f32
    %459 = vector.broadcast %cst_160 : f32 to vector<16x1xf32>
    %460 = arith.divf %458, %459 : vector<16x1xf32>
    %cst_161 = arith.constant 9.99999974E-6 : f32
    %461 = vector.broadcast %cst_161 : f32 to vector<16x1xf32>
    %462 = arith.addf %460, %461 : vector<16x1xf32>
    %463 = math.rsqrt %462 : vector<16x1xf32>
    %464 = vector.broadcast %463 : vector<16x1xf32> to vector<16x32xf32>
    %465 = arith.mulf %455, %464 : vector<16x32xf32>
    %466 = vector.broadcast %267 : vector<1x32xf32> to vector<16x32xf32>
    %467 = arith.mulf %465, %466 : vector<16x32xf32>
    %468 = vector.broadcast %269 : vector<1x32xf32> to vector<16x32xf32>
    %469 = arith.addf %467, %468 : vector<16x32xf32>
    %c1_162 = arith.constant 1 : index
    %c0_163 = arith.constant 0 : index
    %c0_164 = arith.constant 0 : index
    %470 = vector.load %arg10[%c1_162, %c0_163, %c0_164] : memref<2x32x64xf32, #tpu.memory_space<vmem>>, vector<1x32x64xf32>
    %471 = vector.shape_cast %470 : vector<1x32x64xf32> to vector<32x64xf32>
    %cst_165 = arith.constant dense<0.000000e+00> : vector<16x64xf32>
    %472 = tpu.matmul %469, %471, %cst_165 {dimension_numbers = #tpu.dot_dimension_numbers<[1], [0], [0], [1], [0, 0, 1, 1], [], []>} : vector<16x32xf32>, vector<32x64xf32>, vector<16x64xf32> -> vector<16x64xf32>
    %c1_166 = arith.constant 1 : index
    %c0_167 = arith.constant 0 : index
    %c0_168 = arith.constant 0 : index
    %473 = vector.load %arg11[%c1_166, %c0_167, %c0_168] : memref<2x1x64xf32, #tpu.memory_space<vmem>>, vector<1x1x64xf32>
    %474 = vector.shape_cast %473 : vector<1x1x64xf32> to vector<1x64xf32>
    %475 = vector.broadcast %474 : vector<1x64xf32> to vector<16x64xf32>
    %476 = arith.addf %472, %475 : vector<16x64xf32>
    %cst_169 = arith.constant 0.000000e+00 : f32
    %477 = vector.broadcast %cst_169 : f32 to vector<16x64xf32>
    %478 = arith.maximumf %476, %477 : vector<16x64xf32>
    %c1_170 = arith.constant 1 : index
    %c0_171 = arith.constant 0 : index
    %c0_172 = arith.constant 0 : index
    %479 = vector.load %arg12[%c1_170, %c0_171, %c0_172] : memref<2x64x32xf32, #tpu.memory_space<vmem>>, vector<1x64x32xf32>
    %480 = vector.shape_cast %479 : vector<1x64x32xf32> to vector<64x32xf32>
    %cst_173 = arith.constant dense<0.000000e+00> : vector<16x32xf32>
    %481 = tpu.matmul %478, %480, %cst_173 {dimension_numbers = #tpu.dot_dimension_numbers<[1], [0], [0], [1], [0, 0, 1, 1], [], []>} : vector<16x64xf32>, vector<64x32xf32>, vector<16x32xf32> -> vector<16x32xf32>
    %c1_174 = arith.constant 1 : index
    %c0_175 = arith.constant 0 : index
    %c0_176 = arith.constant 0 : index
    %482 = vector.load %arg13[%c1_174, %c0_175, %c0_176] : memref<2x1x32xf32, #tpu.memory_space<vmem>>, vector<1x1x32xf32>
    %483 = vector.shape_cast %482 : vector<1x1x32xf32> to vector<1x32xf32>
    %484 = vector.broadcast %483 : vector<1x32xf32> to vector<16x32xf32>
    %485 = arith.addf %481, %484 : vector<16x32xf32>
    %486 = arith.addf %469, %485 : vector<16x32xf32>
    %c1_177 = arith.constant 1 : index
    %c0_178 = arith.constant 0 : index
    %c0_179 = arith.constant 0 : index
    %487 = vector.load %arg14[%c1_177, %c0_178, %c0_179] : memref<2x1x32xf32, #tpu.memory_space<vmem>>, vector<1x1x32xf32>
    %488 = vector.shape_cast %487 : vector<1x1x32xf32> to vector<1x32xf32>
    %c1_180 = arith.constant 1 : index
    %c0_181 = arith.constant 0 : index
    %c0_182 = arith.constant 0 : index
    %489 = vector.load %arg15[%c1_180, %c0_181, %c0_182] : memref<2x1x32xf32, #tpu.memory_space<vmem>>, vector<1x1x32xf32>
    %490 = vector.shape_cast %489 : vector<1x1x32xf32> to vector<1x32xf32>
    %cst_183 = arith.constant dense<0.000000e+00> : vector<16xf32>
    %491 = vector.multi_reduction <add>, %486, %cst_183 [1] : vector<16x32xf32> to vector<16xf32>
    %492 = vector.shape_cast %491 : vector<16xf32> to vector<16x1xf32>
    %cst_184 = arith.constant 3.200000e+01 : f32
    %493 = vector.broadcast %cst_184 : f32 to vector<16x1xf32>
    %494 = arith.divf %492, %493 : vector<16x1xf32>
    %495 = vector.broadcast %494 : vector<16x1xf32> to vector<16x32xf32>
    %496 = arith.subf %486, %495 : vector<16x32xf32>
    %497 = arith.mulf %496, %496 : vector<16x32xf32>
    %cst_185 = arith.constant dense<0.000000e+00> : vector<16xf32>
    %498 = vector.multi_reduction <add>, %497, %cst_185 [1] : vector<16x32xf32> to vector<16xf32>
    %499 = vector.shape_cast %498 : vector<16xf32> to vector<16x1xf32>
    %cst_186 = arith.constant 3.200000e+01 : f32
    %500 = vector.broadcast %cst_186 : f32 to vector<16x1xf32>
    %501 = arith.divf %499, %500 : vector<16x1xf32>
    %cst_187 = arith.constant 9.99999974E-6 : f32
    %502 = vector.broadcast %cst_187 : f32 to vector<16x1xf32>
    %503 = arith.addf %501, %502 : vector<16x1xf32>
    %504 = math.rsqrt %503 : vector<16x1xf32>
    %505 = vector.broadcast %504 : vector<16x1xf32> to vector<16x32xf32>
    %506 = arith.mulf %496, %505 : vector<16x32xf32>
    %507 = vector.broadcast %488 : vector<1x32xf32> to vector<16x32xf32>
    %508 = arith.mulf %506, %507 : vector<16x32xf32>
    %509 = vector.broadcast %490 : vector<1x32xf32> to vector<16x32xf32>
    %510 = arith.addf %508, %509 : vector<16x32xf32>
    %c0_188 = arith.constant 0 : index
    %c0_189 = arith.constant 0 : index
    %511 = vector.load %arg16[%c0_188, %c0_189] : memref<32x128xf32, #tpu.memory_space<vmem>>, vector<32x128xf32>
    %cst_190 = arith.constant dense<0.000000e+00> : vector<16x128xf32>
    %512 = tpu.matmul %510, %511, %cst_190 {dimension_numbers = #tpu.dot_dimension_numbers<[1], [0], [0], [1], [0, 0, 1, 1], [], []>} : vector<16x32xf32>, vector<32x128xf32>, vector<16x128xf32> -> vector<16x128xf32>
    %c0_191 = arith.constant 0 : index
    %c0_192 = arith.constant 0 : index
    %513 = vector.load %arg17[%c0_191, %c0_192] : memref<16x128xf32, #tpu.memory_space<vmem>>, vector<16x128xf32>
    tpu.vector_store %arg17[%c0_191, %c0_192], %512 {strides = array<i32>} : memref<16x128xf32, #tpu.memory_space<vmem>>, vector<16x128xf32>,
    return
  }
  func.func @transform_0(%arg0: i32) -> (i32, i32, i32) {
    %c0_i32 = arith.constant 0 : i32
    %c0_i32_0 = arith.constant 0 : i32
    %c0_i32_1 = arith.constant 0 : i32
    %c0_i32_2 = arith.constant 0 : i32
    return %c0_i32, %c0_i32_0, %c0_i32_1 : i32, i32, i32
  }
  func.func @transform_1(%arg0: i32) -> (i32, i32, i32) {
    %c0_i32 = arith.constant 0 : i32
    %c0_i32_0 = arith.constant 0 : i32
    %c0_i32_1 = arith.constant 0 : i32
    %c0_i32_2 = arith.constant 0 : i32
    return %c0_i32, %c0_i32_0, %c0_i32_1 : i32, i32, i32
  }
  func.func @transform_2(%arg0: i32) -> (i32, i32, i32) {
    %c0_i32 = arith.constant 0 : i32
    %c0_i32_0 = arith.constant 0 : i32
    %c0_i32_1 = arith.constant 0 : i32
    %c0_i32_2 = arith.constant 0 : i32
    return %c0_i32, %c0_i32_0, %c0_i32_1 : i32, i32, i32
  }
  func.func @transform_3(%arg0: i32) -> (i32, i32, i32) {
    %c0_i32 = arith.constant 0 : i32
    %c0_i32_0 = arith.constant 0 : i32
    %c0_i32_1 = arith.constant 0 : i32
    %c0_i32_2 = arith.constant 0 : i32
    return %c0_i32, %c0_i32_0, %c0_i32_1 : i32, i32, i32
  }
  func.func @transform_4(%arg0: i32) -> (i32, i32, i32) {
    %c0_i32 = arith.constant 0 : i32
    %c0_i32_0 = arith.constant 0 : i32
    %c0_i32_1 = arith.constant 0 : i32
    %c0_i32_2 = arith.constant 0 : i32
    return %c0_i32, %c0_i32_0, %c0_i32_1 : i32, i32, i32
  }
  func.func @transform_5(%arg0: i32) -> (i32, i32, i32) {
    %c0_i32 = arith.constant 0 : i32
    %c0_i32_0 = arith.constant 0 : i32
    %c0_i32_1 = arith.constant 0 : i32
    %c0_i32_2 = arith.constant 0 : i32
    return %c0_i32, %c0_i32_0, %c0_i32_1 : i32, i32, i32
  }
  func.func @transform_6(%arg0: i32) -> (i32, i32, i32) {
    %c0_i32 = arith.constant 0 : i32
    %c0_i32_0 = arith.constant 0 : i32
    %c0_i32_1 = arith.constant 0 : i32
    %c0_i32_2 = arith.constant 0 : i32
    return %c0_i32, %c0_i32_0, %c0_i32_1 : i32, i32, i32
  }
  func.func @transform_7(%arg0: i32) -> (i32, i32, i32) {
    %c0_i32 = arith.constant 0 : i32
    %c0_i32_0 = arith.constant 0 : i32
    %c0_i32_1 = arith.constant 0 : i32
    %c0_i32_2 = arith.constant 0 : i32
    return %c0_i32, %c0_i32_0, %c0_i32_1 : i32, i32, i32
  }
  func.func @transform_8(%arg0: i32) -> (i32, i32, i32) {
    %c0_i32 = arith.constant 0 : i32
    %c0_i32_0 = arith.constant 0 : i32
    %c0_i32_1 = arith.constant 0 : i32
    %c0_i32_2 = arith.constant 0 : i32
    return %c0_i32, %c0_i32_0, %c0_i32_1 : i32, i32, i32
  }
  func.func @transform_9(%arg0: i32) -> (i32, i32, i32) {
    %c0_i32 = arith.constant 0 : i32
    %c0_i32_0 = arith.constant 0 : i32
    %c0_i32_1 = arith.constant 0 : i32
    %c0_i32_2 = arith.constant 0 : i32
    return %c0_i32, %c0_i32_0, %c0_i32_1 : i32, i32, i32
  }
  func.func @transform_10(%arg0: i32) -> (i32, i32, i32) {
    %c0_i32 = arith.constant 0 : i32
    %c0_i32_0 = arith.constant 0 : i32
    %c0_i32_1 = arith.constant 0 : i32
    %c0_i32_2 = arith.constant 0 : i32
    return %c0_i32, %c0_i32_0, %c0_i32_1 : i32, i32, i32
  }
  func.func @transform_11(%arg0: i32) -> (i32, i32, i32) {
    %c0_i32 = arith.constant 0 : i32
    %c0_i32_0 = arith.constant 0 : i32
    %c0_i32_1 = arith.constant 0 : i32
    %c0_i32_2 = arith.constant 0 : i32
    return %c0_i32, %c0_i32_0, %c0_i32_1 : i32, i32, i32
  }
  func.func @transform_12(%arg0: i32) -> (i32, i32, i32) {
    %c0_i32 = arith.constant 0 : i32
    %c0_i32_0 = arith.constant 0 : i32
    %c0_i32_1 = arith.constant 0 : i32
    %c0_i32_2 = arith.constant 0 : i32
    return %c0_i32, %c0_i32_0, %c0_i32_1 : i32, i32, i32
  }
  func.func @transform_13(%arg0: i32) -> (i32, i32, i32) {
    %c0_i32 = arith.constant 0 : i32
    %c0_i32_0 = arith.constant 0 : i32
    %c0_i32_1 = arith.constant 0 : i32
    %c0_i32_2 = arith.constant 0 : i32
    return %c0_i32, %c0_i32_0, %c0_i32_1 : i32, i32, i32
  }
  func.func @transform_14(%arg0: i32) -> (i32, i32, i32) {
    %c0_i32 = arith.constant 0 : i32
    %c0_i32_0 = arith.constant 0 : i32
    %c0_i32_1 = arith.constant 0 : i32
    %c0_i32_2 = arith.constant 0 : i32
    return %c0_i32, %c0_i32_0, %c0_i32_1 : i32, i32, i32
  }
  func.func @transform_15(%arg0: i32) -> (i32, i32) {
    %c0_i32 = arith.constant 0 : i32
    %c0_i32_0 = arith.constant 0 : i32
    %c0_i32_1 = arith.constant 0 : i32
    return %c0_i32, %c0_i32_0 : i32, i32
  }
  func.func @transform_16(%arg0: i32) -> (i32, i32) {
    %c0_i32 = arith.constant 0 : i32
    %c0_i32_0 = arith.constant 0 : i32
    %c0_i32_1 = arith.constant 0 : i32
    return %c0_i32, %c0_i32_0 : i32, i32
  }
}

</mosaic_0001>

<llo_original>
// kernel: decoder_forward.1
$region0: #{decoder_forward.1}
  #allocation0 [shape = 'u32[]', space=smem, size = 0x4, offset = 0x4, fixed_abs, tag = 'smem constant byte address 0x4 - core index']
  #allocation1 [shape = 'u32[144,128]{1,0:T(1,128)}', space=vmem, size = 0x12000, scoped, tag = 'internal scratch']
  %s0 = inlined_call_operand.vmem [shape: f32[2,8,32], index: 0, kind: input, shape index: {}]
  %s1 = inlined_call_operand.vmem [shape: f32[2,8,32], index: 1, kind: input, shape index: {}]
  %s2 = inlined_call_operand.vmem [shape: f32[2,8,8], index: 2, kind: input, shape index: {}]
  %s3 = inlined_call_operand.vmem [shape: f32[2,32,96], index: 3, kind: input, shape index: {}]
  %s4 = inlined_call_operand.vmem [shape: f32[2,1,96], index: 4, kind: input, shape index: {}]
  %s5 = inlined_call_operand.vmem [shape: f32[2,32,32], index: 5, kind: input, shape index: {}]
  %s6 = inlined_call_operand.vmem [shape: f32[2,1,32], index: 6, kind: input, shape index: {}]
  %s7 = inlined_call_operand.vmem [shape: f32[2,1,32], index: 7, kind: input, shape index: {}]
  %s8 = inlined_call_operand.vmem [shape: f32[2,1,32], index: 8, kind: input, shape index: {}]
  %s9 = inlined_call_operand.vmem [shape: f32[2,32,64], index: 9, kind: input, shape index: {}]
  %s10 = inlined_call_operand.vmem [shape: f32[2,1,64], index: 10, kind: input, shape index: {}]
  %s11 = inlined_call_operand.vmem [shape: f32[2,64,32], index: 11, kind: input, shape index: {}]
  %s12 = inlined_call_operand.vmem [shape: f32[2,1,32], index: 12, kind: input, shape index: {}]
  %s13 = inlined_call_operand.vmem [shape: f32[2,1,32], index: 13, kind: input, shape index: {}]
  %s14 = inlined_call_operand.vmem [shape: f32[2,1,32], index: 14, kind: input, shape index: {}]
  %s15 = inlined_call_operand.vmem [shape: f32[32,128], index: 15, kind: input, shape index: {}]
  %s16 = inlined_call_operand.vmem [shape: f32[16,128], index: 16, kind: output, shape index: {}]
  %s17 = sld [smem:[#allocation0]]
  $region74: #{decoder_forward.1} parent=0
    _
  %s19 = ssub.s32 1, %s17
  %s20 = scalar_select 0, %s19, %s17
  // Predicated region
  $region2: #{decoder_forward.1} parent=0 // pred_check
    _
  $region3: #{decoder_forward.1} parent=0 // pred_check_branch
    %22 = sbr.rel (0) target = $region5
  $region4: #{decoder_forward.1} parent=0 // pred_region
    _
  $region5: #{decoder_forward.1} parent=0 // pred_fallthru
    _
  // Predicated region
  $region6: #{decoder_forward.1} parent=0 // pred_check
    _
  $region7: #{decoder_forward.1} parent=0 // pred_check_branch
    %24 = sbr.rel (0) target = $region9
  $region8: #{decoder_forward.1} parent=0 // pred_region
    _
  $region9: #{decoder_forward.1} parent=0 // pred_fallthru
    _
  // Predicated region
  $region10: #{decoder_forward.1} parent=0 // pred_check
    _
  $region11: #{decoder_forward.1} parent=0 // pred_check_branch
    %26 = sbr.rel (0) target = $region13
  $region12: #{decoder_forward.1} parent=0 // pred_region
    _
  $region13: #{decoder_forward.1} parent=0 // pred_fallthru
    _
  // Predicated region
  $region14: #{decoder_forward.1} parent=0 // pred_check
    _
  $region15: #{decoder_forward.1} parent=0 // pred_check_branch
    %28 = sbr.rel (0) target = $region17
  $region16: #{decoder_forward.1} parent=0 // pred_region
    _
  $region17: #{decoder_forward.1} parent=0 // pred_fallthru
    _
  // Predicated region
  $region18: #{decoder_forward.1} parent=0 // pred_check
    _
  $region19: #{decoder_forward.1} parent=0 // pred_check_branch
    %30 = sbr.rel (0) target = $region21
  $region20: #{decoder_forward.1} parent=0 // pred_region
    _
  $region21: #{decoder_forward.1} parent=0 // pred_fallthru
    _
  // Predicated region
  $region22: #{decoder_forward.1} parent=0 // pred_check
    _
  $region23: #{decoder_forward.1} parent=0 // pred_check_branch
    %32 = sbr.rel (0) target = $region25
  $region24: #{decoder_forward.1} parent=0 // pred_region
    _
  $region25: #{decoder_forward.1} parent=0 // pred_fallthru
    _
  // Predicated region
  $region26: #{decoder_forward.1} parent=0 // pred_check
    _
  $region27: #{decoder_forward.1} parent=0 // pred_check_branch
    %34 = sbr.rel (0) target = $region29
  $region28: #{decoder_forward.1} parent=0 // pred_region
    _
  $region29: #{decoder_forward.1} parent=0 // pred_fallthru
    _
  // Predicated region
  $region30: #{decoder_forward.1} parent=0 // pred_check
    _
  $region31: #{decoder_forward.1} parent=0 // pred_check_branch
    %36 = sbr.rel (0) target = $region33
  $region32: #{decoder_forward.1} parent=0 // pred_region
    _
  $region33: #{decoder_forward.1} parent=0 // pred_fallthru
    _
  // Predicated region
  $region34: #{decoder_forward.1} parent=0 // pred_check
    _
  $region35: #{decoder_forward.1} parent=0 // pred_check_branch
    %38 = sbr.rel (0) target = $region37
  $region36: #{decoder_forward.1} parent=0 // pred_region
    _
  $region37: #{decoder_forward.1} parent=0 // pred_fallthru
    _
  // Predicated region
  $region38: #{decoder_forward.1} parent=0 // pred_check
    _
  $region39: #{decoder_forward.1} parent=0 // pred_check_branch
    %40 = sbr.rel (0) target = $region41
  $region40: #{decoder_forward.1} parent=0 // pred_region
    _
  $region41: #{decoder_forward.1} parent=0 // pred_fallthru
    _
  // Predicated region
  $region42: #{decoder_forward.1} parent=0 // pred_check
    _
  $region43: #{decoder_forward.1} parent=0 // pred_check_branch
    %42 = sbr.rel (0) target = $region45
  $region44: #{decoder_forward.1} parent=0 // pred_region
    _
  $region45: #{decoder_forward.1} parent=0 // pred_fallthru
    _
  // Predicated region
  $region46: #{decoder_forward.1} parent=0 // pred_check
    _
  $region47: #{decoder_forward.1} parent=0 // pred_check_branch
    %44 = sbr.rel (0) target = $region49
  $region48: #{decoder_forward.1} parent=0 // pred_region
    _
  $region49: #{decoder_forward.1} parent=0 // pred_fallthru
    _
  // Predicated region
  $region50: #{decoder_forward.1} parent=0 // pred_check
    _
  $region51: #{decoder_forward.1} parent=0 // pred_check_branch
    %46 = sbr.rel (0) target = $region53
  $region52: #{decoder_forward.1} parent=0 // pred_region
    _
  $region53: #{decoder_forward.1} parent=0 // pred_fallthru
    _
  // Predicated region
  $region54: #{decoder_forward.1} parent=0 // pred_check
    _
  $region55: #{decoder_forward.1} parent=0 // pred_check_branch
    %48 = sbr.rel (0) target = $region57
  $region56: #{decoder_forward.1} parent=0 // pred_region
    _
  $region57: #{decoder_forward.1} parent=0 // pred_fallthru
    _
  // Predicated region
  $region58: #{decoder_forward.1} parent=0 // pred_check
    _
  $region59: #{decoder_forward.1} parent=0 // pred_check_branch
    %50 = sbr.rel (0) target = $region61
  $region60: #{decoder_forward.1} parent=0 // pred_region
    _
  $region61: #{decoder_forward.1} parent=0 // pred_fallthru
    _
  // Predicated region
  $region62: #{decoder_forward.1} parent=0 // pred_check
    _
  $region63: #{decoder_forward.1} parent=0 // pred_check_branch
    %52 = sbr.rel (0) target = $region65
  $region64: #{decoder_forward.1} parent=0 // pred_region
    _
  $region65: #{decoder_forward.1} parent=0 // pred_fallthru
    _
  %v53 = vld [vmem:[%s0] sm:$0xff]
  %v54 = vld [vmem:[%s0 + $0x8] sm:$0xff]
  %v55 = vld [vmem:[%s1] sm:$0xff]
  %v56 = vld [vmem:[%s1 + $0x8] sm:$0xff]
  %v57 = vld [vmem:[%s2] sm:$0xff]
  %v58 = vld [vmem:[%s2 + $0x8] sm:$0xff]
  %v59 = vld [vmem:[%s3] sm:$0xff]
  %v60 = vld [vmem:[%s3 + $0x8] sm:$0xff]
  %v61 = vld [vmem:[%s3 + $0x10] sm:$0xff]
  %v62 = vld [vmem:[%s3 + $0x18] sm:$0xff]
  %v63 = vld [vmem:[%s4] sm:$0x1]
  %v64 = vld [vmem:[%s5] sm:$0xff]
  %v65 = vld [vmem:[%s5 + $0x8] sm:$0xff]
  %v66 = vld [vmem:[%s5 + $0x10] sm:$0xff]
  %v67 = vld [vmem:[%s5 + $0x18] sm:$0xff]
  %v68 = vld [vmem:[%s6] sm:$0x1]
  %v69 = vld [vmem:[%s7] sm:$0x1]
  %v70 = vld [vmem:[%s8] sm:$0x1]
  %v72 = vlaneseq
  %v73 = vshrl.u32 %v72, 7
  %v74 = vsub.s32 0, %v73
  %v75 = vrot.slane %v63, %v74
  %vm77 = vcmask 261120
  %v79 = vsel %vm77, %v53, 0
  %v82 = vsel %vm77, %v54, 0
  %84 = vmatprep.subr.mxu0 0.0
  %85 = vmatpush1.msra.mxu0 0.0
  %86 = vmatprep.subr.mxu0 0.0
  %87 = vmatpush1.msra.mxu0 0.0
  %88 = vmatprep.subr.mxu0 0.0
  %89 = vmatpush1.msra.mxu0 0.0
  %90 = vmatprep.subr.mxu0 0.0
  %91 = vmatpush1.msra.mxu0 0.0
  %92 = vmatprep.subr.mxu0 0.0
  %93 = vmatpush1.msra.mxu0 0.0
  %94 = vmatprep.subr.mxu0 0.0
  %95 = vmatpush1.msra.mxu0 0.0
  %96 = vmatprep.subr.mxu0 0.0
  %97 = vmatpush1.msra.mxu0 0.0
  %98 = vmatprep.subr.mxu0 0.0
  %99 = vmatpush1.msra.mxu0 0.0
  %100 = vmatprep.subr.mxu0 0.0
  %101 = vmatpush1.msra.mxu0 0.0
  %102 = vmatprep.subr.mxu0 0.0
  %103 = vmatpush1.msra.mxu0 0.0
  %104 = vmatprep.subr.mxu0 0.0
  %105 = vmatpush1.msra.mxu0 0.0
  %106 = vmatprep.subr.mxu0 0.0
  %107 = vmatpush1.msra.mxu0 0.0
  %108 = vmatprep.subr.mxu0 0.0
  %109 = vmatpush1.msra.mxu0 %v62
  %110 = vmatprep.subr.mxu0 0.0
  %111 = vmatpush1.msra.mxu0 %v61
  %112 = vmatprep.subr.mxu0 0.0
  %113 = vmatpush1.msra.mxu0 %v60
  %114 = vmatprep.subr.mxu0 0.0
  %115 = vmatpush1.msra.mxu0 %v59
  %116 = vmatprep.subr.mxu0 0.0
  %117 = vmatpush2.msra.mxu0 0.0
  %118 = vmatprep.subr.mxu0 0.0
  %119 = vmatpush2.msra.mxu0 0.0
  %120 = vmatprep.subr.mxu0 0.0
  %121 = vmatpush2.msra.mxu0 0.0
  %122 = vmatprep.subr.mxu0 0.0
  %123 = vmatpush2.msra.mxu0 0.0
  %124 = vmatprep.subr.mxu0 0.0
  %125 = vmatpush2.msra.mxu0 0.0
  %126 = vmatprep.subr.mxu0 0.0
  %127 = vmatpush2.msra.mxu0 0.0
  %128 = vmatprep.subr.mxu0 0.0
  %129 = vmatpush2.msra.mxu0 0.0
  %130 = vmatprep.subr.mxu0 0.0
  %131 = vmatpush2.msra.mxu0 0.0
  %132 = vmatprep.subr.mxu0 0.0
  %133 = vmatpush2.msra.mxu0 0.0
  %134 = vmatprep.subr.mxu0 0.0
  %135 = vmatpush2.msra.mxu0 0.0
  %136 = vmatprep.subr.mxu0 0.0
  %137 = vmatpush2.msra.mxu0 0.0
  %138 = vmatprep.subr.mxu0 0.0
  %139 = vmatpush2.msra.mxu0 0.0
  %140 = vmatprep.subr.mxu0 0.0
  %141 = vmatpush2.msra.mxu0 0.0
  %142 = vmatprep.subr.mxu0 0.0
  %143 = vmatpush2.msra.mxu0 0.0
  %144 = vmatprep.subr.mxu0 0.0
  %145 = vmatpush2.msra.mxu0 0.0
  %146 = vmatprep.subr.mxu0 0.0
  %147 = vmatpush2.msra.mxu0 0.0
  %148 = vmatprep.mubr.f32.mxu0 0.0
  %149 = vmatmul.mubr.f32.gmra.mxu0 %v79
  %v150 = vpop.f32.mrf.mxu0
  %v151 = vadd.f32 %v75, %v150
  %v152 = vpop.f32.mrf.mxu0
  %153 = vmatprep.mubr.f32.mxu0 0.0
  %154 = vmatmul.mubr.f32.gmra.mxu0 %v82
  %v155 = vpop.f32.mrf.mxu0
  %v156 = vadd.f32 %v75, %v155
  %v157 = vpop.f32.mrf.mxu0
  %158 = vdwg.mxu0
  %160 = vrot.lane.b32.xlu0 %v151, 96
  %v161 = vpop.permute.xlu0 %160
  %vm162 = vcmask 64512
  %v163 = vsel %vm162, %v151, 0
  %v165 = vsel %vm162, %v161, 0
  %167 = vmatprep.subr.mxu0 0.0
  %168 = vmatpush1.xpose.msra.mxu0 0.0
  %169 = vmatprep.subr.mxu0 0.0
  %170 = vmatpush1.xpose.msra.mxu0 0.0
  %171 = vmatprep.subr.mxu0 0.0
  %172 = vmatpush1.xpose.msra.mxu0 0.0
  %173 = vmatprep.subr.mxu0 0.0
  %174 = vmatpush1.xpose.msra.mxu0 0.0
  %175 = vmatprep.subr.mxu0 0.0
  %176 = vmatpush1.xpose.msra.mxu0 0.0
  %177 = vmatprep.subr.mxu0 0.0
  %178 = vmatpush1.xpose.msra.mxu0 0.0
  %179 = vmatprep.subr.mxu0 0.0
  %180 = vmatpush1.xpose.msra.mxu0 0.0
  %181 = vmatprep.subr.mxu0 0.0
  %182 = vmatpush1.xpose.msra.mxu0 0.0
  %183 = vmatprep.subr.mxu0 0.0
  %184 = vmatpush1.xpose.msra.mxu0 0.0
  %185 = vmatprep.subr.mxu0 0.0
  %186 = vmatpush1.xpose.msra.mxu0 0.0
  %187 = vmatprep.subr.mxu0 0.0
  %188 = vmatpush1.xpose.msra.mxu0 0.0
  %189 = vmatprep.subr.mxu0 0.0
  %190 = vmatpush1.xpose.msra.mxu0 0.0
  %191 = vmatprep.subr.mxu0 0.0
  %192 = vmatpush1.xpose.msra.mxu0 0.0
  %193 = vmatprep.subr.mxu0 0.0
  %194 = vmatpush1.xpose.msra.mxu0 0.0
  %195 = vmatprep.subr.mxu0 0.0
  %196 = vmatpush1.xpose.msra.mxu0 0.0
  %197 = vmatprep.subr.mxu0 0.0
  %198 = vmatpush1.xpose.msra.mxu0 %v165
  %199 = vmatprep.subr.mxu0 0.0
  %200 = vmatpush2.xpose.msra.mxu0 0.0
  %201 = vmatprep.subr.mxu0 0.0
  %202 = vmatpush2.xpose.msra.mxu0 0.0
  %203 = vmatprep.subr.mxu0 0.0
  %204 = vmatpush2.xpose.msra.mxu0 0.0
  %205 = vmatprep.subr.mxu0 0.0
  %206 = vmatpush2.xpose.msra.mxu0 0.0
  %207 = vmatprep.subr.mxu0 0.0
  %208 = vmatpush2.xpose.msra.mxu0 0.0
  %209 = vmatprep.subr.mxu0 0.0
  %210 = vmatpush2.xpose.msra.mxu0 0.0
  %211 = vmatprep.subr.mxu0 0.0
  %212 = vmatpush2.xpose.msra.mxu0 0.0
  %213 = vmatprep.subr.mxu0 0.0
  %214 = vmatpush2.xpose.msra.mxu0 0.0
  %215 = vmatprep.subr.mxu0 0.0
  %216 = vmatpush2.xpose.msra.mxu0 0.0
  %217 = vmatprep.subr.mxu0 0.0
  %218 = vmatpush2.xpose.msra.mxu0 0.0
  %219 = vmatprep.subr.mxu0 0.0
  %220 = vmatpush2.xpose.msra.mxu0 0.0
  %221 = vmatprep.subr.mxu0 0.0
  %222 = vmatpush2.xpose.msra.mxu0 0.0
  %223 = vmatprep.subr.mxu0 0.0
  %224 = vmatpush2.xpose.msra.mxu0 0.0
  %225 = vmatprep.subr.mxu0 0.0
  %226 = vmatpush2.xpose.msra.mxu0 0.0
  %227 = vmatprep.subr.mxu0 0.0
  %228 = vmatpush2.xpose.msra.mxu0 0.0
  %229 = vmatprep.subr.mxu0 0.0
  %230 = vmatpush2.xpose.msra.mxu0 0.0
  %231 = vmatprep.mubr.f32.mxu0 0.0
  %232 = vmatmul.mubr.f32.gmra.mxu0 %v163
  %v233 = vpop.f32.mrf.mxu0
  %v234 = vadd.f32 %v57, %v233
  %v235 = vpop.f32.mrf.mxu0
  %236 = vdwg.mxu0
  %238 = vrot.lane.b32.xlu0 %v156, 96
  %v239 = vpop.permute.xlu0 %238
  %v240 = vsel %vm162, %v156, 0
  %v242 = vsel %vm162, %v239, 0
  %244 = vmatprep.subr.mxu0 0.0
  %245 = vmatpush1.xpose.msra.mxu0 0.0
  %246 = vmatprep.subr.mxu0 0.0
  %247 = vmatpush1.xpose.msra.mxu0 0.0
  %248 = vmatprep.subr.mxu0 0.0
  %249 = vmatpush1.xpose.msra.mxu0 0.0
  %250 = vmatprep.subr.mxu0 0.0
  %251 = vmatpush1.xpose.msra.mxu0 0.0
  %252 = vmatprep.subr.mxu0 0.0
  %253 = vmatpush1.xpose.msra.mxu0 0.0
  %254 = vmatprep.subr.mxu0 0.0
  %255 = vmatpush1.xpose.msra.mxu0 0.0
  %256 = vmatprep.subr.mxu0 0.0
  %257 = vmatpush1.xpose.msra.mxu0 0.0
  %258 = vmatprep.subr.mxu0 0.0
  %259 = vmatpush1.xpose.msra.mxu0 0.0
  %260 = vmatprep.subr.mxu0 0.0
  %261 = vmatpush1.xpose.msra.mxu0 0.0
  %262 = vmatprep.subr.mxu0 0.0
  %263 = vmatpush1.xpose.msra.mxu0 0.0
  %264 = vmatprep.subr.mxu0 0.0
  %265 = vmatpush1.xpose.msra.mxu0 0.0
  %266 = vmatprep.subr.mxu0 0.0
  %267 = vmatpush1.xpose.msra.mxu0 0.0
  %268 = vmatprep.subr.mxu0 0.0
  %269 = vmatpush1.xpose.msra.mxu0 0.0
  %270 = vmatprep.subr.mxu0 0.0
  %271 = vmatpush1.xpose.msra.mxu0 0.0
  %272 = vmatprep.subr.mxu0 0.0
  %273 = vmatpush1.xpose.msra.mxu0 0.0
  %274 = vmatprep.subr.mxu0 0.0
  %275 = vmatpush1.xpose.msra.mxu0 %v242
  %276 = vmatprep.subr.mxu0 0.0
  %277 = vmatpush2.xpose.msra.mxu0 0.0
  %278 = vmatprep.subr.mxu0 0.0
  %279 = vmatpush2.xpose.msra.mxu0 0.0
  %280 = vmatprep.subr.mxu0 0.0
  %281 = vmatpush2.xpose.msra.mxu0 0.0
  %282 = vmatprep.subr.mxu0 0.0
  %283 = vmatpush2.xpose.msra.mxu0 0.0
  %284 = vmatprep.subr.mxu0 0.0
  %285 = vmatpush2.xpose.msra.mxu0 0.0
  %286 = vmatprep.subr.mxu0 0.0
  %287 = vmatpush2.xpose.msra.mxu0 0.0
  %288 = vmatprep.subr.mxu0 0.0
  %289 = vmatpush2.xpose.msra.mxu0 0.0
  %290 = vmatprep.subr.mxu0 0.0
  %291 = vmatpush2.xpose.msra.mxu0 0.0
  %292 = vmatprep.subr.mxu0 0.0
  %293 = vmatpush2.xpose.msra.mxu0 0.0
  %294 = vmatprep.subr.mxu0 0.0
  %295 = vmatpush2.xpose.msra.mxu0 0.0
  %296 = vmatprep.subr.mxu0 0.0
  %297 = vmatpush2.xpose.msra.mxu0 0.0
  %298 = vmatprep.subr.mxu0 0.0
  %299 = vmatpush2.xpose.msra.mxu0 0.0
  %300 = vmatprep.subr.mxu0 0.0
  %301 = vmatpush2.xpose.msra.mxu0 0.0
  %302 = vmatprep.subr.mxu0 0.0
  %303 = vmatpush2.xpose.msra.mxu0 0.0
  %304 = vmatprep.subr.mxu0 0.0
  %305 = vmatpush2.xpose.msra.mxu0 0.0
  %306 = vmatprep.subr.mxu0 0.0
  %307 = vmatpush2.xpose.msra.mxu0 0.0
  %308 = vmatprep.mubr.f32.mxu0 0.0
  %309 = vmatmul.mubr.f32.gmra.mxu0 %v240
  %v310 = vpop.f32.mrf.mxu0
  %v311 = vadd.f32 %v58, %v310
  %v312 = vpop.f32.mrf.mxu0
  %313 = vdwg.mxu0
  %v314 = vsel %vm162, %v234, -inf
  %315 = vmax.xlane.f32.xlu0 %v314
  %v316 = vpop.xlane.xlu0 %315
  %v317 = vsel %vm162, %v311, -inf
  %318 = vmax.xlane.f32.xlu0 %v317
  %v319 = vpop.xlane.xlu0 %318
  %v320 = vsub.f32 %v234, %v316
  %v321 = vsub.f32 %v311, %v319
  %v322 = vmul.f32 %v320, 1.442695
  %v323 = vpow.pop %v322
  %v324 = vmul.f32 %v321, 1.442695
  %v325 = vpow.pop %v324
  %v326 = vsel %vm162, %v323, 0.0
  %327 = vadd.xlane.f32.xlu0 %v326
  %v328 = vpop.xlane.xlu0 %327
  %v329 = vsel %vm162, %v325, 0.0
  %330 = vadd.xlane.f32.xlu0 %v329
  %v331 = vpop.xlane.xlu0 %330
  %v332 = vrcp.pop %v328
  %v333 = vrcp.pop %v331
  %v334 = vmul.f32 %v323, %v332
  %v335 = vmul.f32 %v325, %v333
  %336 = vrot.lane.b32.xlu0 %v151, 64
  %v337 = vpop.permute.xlu0 %336
  %v340 = vsel %vm162, %v334, 0
  %342 = vmatprep.subr.mxu0 0.0
  %343 = vmatpush1.msra.mxu0 0.0
  %344 = vmatprep.subr.mxu0 0.0
  %345 = vmatpush1.msra.mxu0 0.0
  %346 = vmatprep.subr.mxu0 0.0
  %347 = vmatpush1.msra.mxu0 0.0
  %348 = vmatprep.subr.mxu0 0.0
  %349 = vmatpush1.msra.mxu0 0.0
  %350 = vmatprep.subr.mxu0 0.0
  %351 = vmatpush1.msra.mxu0 0.0
  %352 = vmatprep.subr.mxu0 0.0
  %353 = vmatpush1.msra.mxu0 0.0
  %354 = vmatprep.subr.mxu0 0.0
  %355 = vmatpush1.msra.mxu0 0.0
  %356 = vmatprep.subr.mxu0 0.0
  %357 = vmatpush1.msra.mxu0 0.0
  %358 = vmatprep.subr.mxu0 0.0
  %359 = vmatpush1.msra.mxu0 0.0
  %360 = vmatprep.subr.mxu0 0.0
  %361 = vmatpush1.msra.mxu0 0.0
  %362 = vmatprep.subr.mxu0 0.0
  %363 = vmatpush1.msra.mxu0 0.0
  %364 = vmatprep.subr.mxu0 0.0
  %365 = vmatpush1.msra.mxu0 0.0
  %366 = vmatprep.subr.mxu0 0.0
  %367 = vmatpush1.msra.mxu0 0.0
  %368 = vmatprep.subr.mxu0 0.0
  %369 = vmatpush1.msra.mxu0 0.0
  %370 = vmatprep.subr.mxu0 0.0
  %371 = vmatpush1.msra.mxu0 0.0
  %372 = vmatprep.subr.mxu0 0.0
  %373 = vmatpush1.msra.mxu0 %v337
  %374 = vmatprep.subr.mxu0 0.0
  %375 = vmatpush2.msra.mxu0 0.0
  %376 = vmatprep.subr.mxu0 0.0
  %377 = vmatpush2.msra.mxu0 0.0
  %378 = vmatprep.subr.mxu0 0.0
  %379 = vmatpush2.msra.mxu0 0.0
  %380 = vmatprep.subr.mxu0 0.0
  %381 = vmatpush2.msra.mxu0 0.0
  %382 = vmatprep.subr.mxu0 0.0
  %383 = vmatpush2.msra.mxu0 0.0
  %384 = vmatprep.subr.mxu0 0.0
  %385 = vmatpush2.msra.mxu0 0.0
  %386 = vmatprep.subr.mxu0 0.0
  %387 = vmatpush2.msra.mxu0 0.0
  %388 = vmatprep.subr.mxu0 0.0
  %389 = vmatpush2.msra.mxu0 0.0
  %390 = vmatprep.subr.mxu0 0.0
  %391 = vmatpush2.msra.mxu0 0.0
  %392 = vmatprep.subr.mxu0 0.0
  %393 = vmatpush2.msra.mxu0 0.0
  %394 = vmatprep.subr.mxu0 0.0
  %395 = vmatpush2.msra.mxu0 0.0
  %396 = vmatprep.subr.mxu0 0.0
  %397 = vmatpush2.msra.mxu0 0.0
  %398 = vmatprep.subr.mxu0 0.0
  %399 = vmatpush2.msra.mxu0 0.0
  %400 = vmatprep.subr.mxu0 0.0
  %401 = vmatpush2.msra.mxu0 0.0
  %402 = vmatprep.subr.mxu0 0.0
  %403 = vmatpush2.msra.mxu0 0.0
  %404 = vmatprep.subr.mxu0 0.0
  %405 = vmatpush2.msra.mxu0 0.0
  %406 = vmatprep.mubr.f32.mxu0 0.0
  %407 = vmatmul.mubr.f32.gmra.mxu0 %v340
  %v408 = vpop.f32.mrf.mxu0
  %v409 = vadd.f32 0.0, %v408
  %v410 = vpop.f32.mrf.mxu0
  %411 = vdwg.mxu0
  %412 = vrot.lane.b32.xlu0 %v156, 64
  %v413 = vpop.permute.xlu0 %412
  %v416 = vsel %vm162, %v335, 0
  %418 = vmatprep.subr.mxu0 0.0
  %419 = vmatpush1.msra.mxu0 0.0
  %420 = vmatprep.subr.mxu0 0.0
  %421 = vmatpush1.msra.mxu0 0.0
  %422 = vmatprep.subr.mxu0 0.0
  %423 = vmatpush1.msra.mxu0 0.0
  %424 = vmatprep.subr.mxu0 0.0
  %425 = vmatpush1.msra.mxu0 0.0
  %426 = vmatprep.subr.mxu0 0.0
  %427 = vmatpush1.msra.mxu0 0.0
  %428 = vmatprep.subr.mxu0 0.0
  %429 = vmatpush1.msra.mxu0 0.0
  %430 = vmatprep.subr.mxu0 0.0
  %431 = vmatpush1.msra.mxu0 0.0
  %432 = vmatprep.subr.mxu0 0.0
  %433 = vmatpush1.msra.mxu0 0.0
  %434 = vmatprep.subr.mxu0 0.0
  %435 = vmatpush1.msra.mxu0 0.0
  %436 = vmatprep.subr.mxu0 0.0
  %437 = vmatpush1.msra.mxu0 0.0
  %438 = vmatprep.subr.mxu0 0.0
  %439 = vmatpush1.msra.mxu0 0.0
  %440 = vmatprep.subr.mxu0 0.0
  %441 = vmatpush1.msra.mxu0 0.0
  %442 = vmatprep.subr.mxu0 0.0
  %443 = vmatpush1.msra.mxu0 0.0
  %444 = vmatprep.subr.mxu0 0.0
  %445 = vmatpush1.msra.mxu0 0.0
  %446 = vmatprep.subr.mxu0 0.0
  %447 = vmatpush1.msra.mxu0 0.0
  %448 = vmatprep.subr.mxu0 0.0
  %449 = vmatpush1.msra.mxu0 %v413
  %450 = vmatprep.subr.mxu0 0.0
  %451 = vmatpush2.msra.mxu0 0.0
  %452 = vmatprep.subr.mxu0 0.0
  %453 = vmatpush2.msra.mxu0 0.0
  %454 = vmatprep.subr.mxu0 0.0
  %455 = vmatpush2.msra.mxu0 0.0
  %456 = vmatprep.subr.mxu0 0.0
  %457 = vmatpush2.msra.mxu0 0.0
  %458 = vmatprep.subr.mxu0 0.0
  %459 = vmatpush2.msra.mxu0 0.0
  %460 = vmatprep.subr.mxu0 0.0
  %461 = vmatpush2.msra.mxu0 0.0
  %462 = vmatprep.subr.mxu0 0.0
  %463 = vmatpush2.msra.mxu0 0.0
  %464 = vmatprep.subr.mxu0 0.0
  %465 = vmatpush2.msra.mxu0 0.0
  %466 = vmatprep.subr.mxu0 0.0
  %467 = vmatpush2.msra.mxu0 0.0
  %468 = vmatprep.subr.mxu0 0.0
  %469 = vmatpush2.msra.mxu0 0.0
  %470 = vmatprep.subr.mxu0 0.0
  %471 = vmatpush2.msra.mxu0 0.0
  %472 = vmatprep.subr.mxu0 0.0
  %473 = vmatpush2.msra.mxu0 0.0
  %474 = vmatprep.subr.mxu0 0.0
  %475 = vmatpush2.msra.mxu0 0.0
  %476 = vmatprep.subr.mxu0 0.0
  %477 = vmatpush2.msra.mxu0 0.0
  %478 = vmatprep.subr.mxu0 0.0
  %479 = vmatpush2.msra.mxu0 0.0
  %480 = vmatprep.subr.mxu0 0.0
  %481 = vmatpush2.msra.mxu0 0.0
  %482 = vmatprep.mubr.f32.mxu0 0.0
  %483 = vmatmul.mubr.f32.gmra.mxu0 %v416
  %v484 = vpop.f32.mrf.mxu0
  %v485 = vadd.f32 0.0, %v484
  %v486 = vpop.f32.mrf.mxu0
  %487 = vdwg.mxu0
  %488 = vrot.lane.b32.xlu0 %v151, 120
  %v489 = vpop.permute.xlu0 %488
  %490 = vrot.lane.b32.xlu0 %v151, 88
  %v491 = vpop.permute.xlu0 %490
  %v492 = vsel %vm162, %v489, 0
  %v494 = vsel %vm162, %v491, 0
  %496 = vmatprep.subr.mxu0 0.0
  %497 = vmatpush1.xpose.msra.mxu0 0.0
  %498 = vmatprep.subr.mxu0 0.0
  %499 = vmatpush1.xpose.msra.mxu0 0.0
  %500 = vmatprep.subr.mxu0 0.0
  %501 = vmatpush1.xpose.msra.mxu0 0.0
  %502 = vmatprep.subr.mxu0 0.0
  %503 = vmatpush1.xpose.msra.mxu0 0.0
  %504 = vmatprep.subr.mxu0 0.0
  %505 = vmatpush1.xpose.msra.mxu0 0.0
  %506 = vmatprep.subr.mxu0 0.0
  %507 = vmatpush1.xpose.msra.mxu0 0.0
  %508 = vmatprep.subr.mxu0 0.0
  %509 = vmatpush1.xpose.msra.mxu0 0.0
  %510 = vmatprep.subr.mxu0 0.0
  %511 = vmatpush1.xpose.msra.mxu0 0.0
  %512 = vmatprep.subr.mxu0 0.0
  %513 = vmatpush1.xpose.msra.mxu0 0.0
  %514 = vmatprep.subr.mxu0 0.0
  %515 = vmatpush1.xpose.msra.mxu0 0.0
  %516 = vmatprep.subr.mxu0 0.0
  %517 = vmatpush1.xpose.msra.mxu0 0.0
  %518 = vmatprep.subr.mxu0 0.0
  %519 = vmatpush1.xpose.msra.mxu0 0.0
  %520 = vmatprep.subr.mxu0 0.0
  %521 = vmatpush1.xpose.msra.mxu0 0.0
  %522 = vmatprep.subr.mxu0 0.0
  %523 = vmatpush1.xpose.msra.mxu0 0.0
  %524 = vmatprep.subr.mxu0 0.0
  %525 = vmatpush1.xpose.msra.mxu0 0.0
  %526 = vmatprep.subr.mxu0 0.0
  %527 = vmatpush1.xpose.msra.mxu0 %v494
  %528 = vmatprep.subr.mxu0 0.0
  %529 = vmatpush2.xpose.msra.mxu0 0.0
  %530 = vmatprep.subr.mxu0 0.0
  %531 = vmatpush2.xpose.msra.mxu0 0.0
  %532 = vmatprep.subr.mxu0 0.0
  %533 = vmatpush2.xpose.msra.mxu0 0.0
  %534 = vmatprep.subr.mxu0 0.0
  %535 = vmatpush2.xpose.msra.mxu0 0.0
  %536 = vmatprep.subr.mxu0 0.0
  %537 = vmatpush2.xpose.msra.mxu0 0.0
  %538 = vmatprep.subr.mxu0 0.0
  %539 = vmatpush2.xpose.msra.mxu0 0.0
  %540 = vmatprep.subr.mxu0 0.0
  %541 = vmatpush2.xpose.msra.mxu0 0.0
  %542 = vmatprep.subr.mxu0 0.0
  %543 = vmatpush2.xpose.msra.mxu0 0.0
  %544 = vmatprep.subr.mxu0 0.0
  %545 = vmatpush2.xpose.msra.mxu0 0.0
  %546 = vmatprep.subr.mxu0 0.0
  %547 = vmatpush2.xpose.msra.mxu0 0.0
  %548 = vmatprep.subr.mxu0 0.0
  %549 = vmatpush2.xpose.msra.mxu0 0.0
  %550 = vmatprep.subr.mxu0 0.0
  %551 = vmatpush2.xpose.msra.mxu0 0.0
  %552 = vmatprep.subr.mxu0 0.0
  %553 = vmatpush2.xpose.msra.mxu0 0.0
  %554 = vmatprep.subr.mxu0 0.0
  %555 = vmatpush2.xpose.msra.mxu0 0.0
  %556 = vmatprep.subr.mxu0 0.0
  %557 = vmatpush2.xpose.msra.mxu0 0.0
  %558 = vmatprep.subr.mxu0 0.0
  %559 = vmatpush2.xpose.msra.mxu0 0.0
  %560 = vmatprep.mubr.f32.mxu0 0.0
  %561 = vmatmul.mubr.f32.gmra.mxu0 %v492
  %v562 = vpop.f32.mrf.mxu0
  %v563 = vadd.f32 %v57, %v562
  %v564 = vpop.f32.mrf.mxu0
  %565 = vdwg.mxu0
  %566 = vrot.lane.b32.xlu0 %v156, 120
  %v567 = vpop.permute.xlu0 %566
  %568 = vrot.lane.b32.xlu0 %v156, 88
  %v569 = vpop.permute.xlu0 %568
  %v570 = vsel %vm162, %v567, 0
  %v572 = vsel %vm162, %v569, 0
  %574 = vmatprep.subr.mxu0 0.0
  %575 = vmatpush1.xpose.msra.mxu0 0.0
  %576 = vmatprep.subr.mxu0 0.0
  %577 = vmatpush1.xpose.msra.mxu0 0.0
  %578 = vmatprep.subr.mxu0 0.0
  %579 = vmatpush1.xpose.msra.mxu0 0.0
  %580 = vmatprep.subr.mxu0 0.0
  %581 = vmatpush1.xpose.msra.mxu0 0.0
  %582 = vmatprep.subr.mxu0 0.0
  %583 = vmatpush1.xpose.msra.mxu0 0.0
  %584 = vmatprep.subr.mxu0 0.0
  %585 = vmatpush1.xpose.msra.mxu0 0.0
  %586 = vmatprep.subr.mxu0 0.0
  %587 = vmatpush1.xpose.msra.mxu0 0.0
  %588 = vmatprep.subr.mxu0 0.0
  %589 = vmatpush1.xpose.msra.mxu0 0.0
  %590 = vmatprep.subr.mxu0 0.0
  %591 = vmatpush1.xpose.msra.mxu0 0.0
  %592 = vmatprep.subr.mxu0 0.0
  %593 = vmatpush1.xpose.msra.mxu0 0.0
  %594 = vmatprep.subr.mxu0 0.0
  %595 = vmatpush1.xpose.msra.mxu0 0.0
  %596 = vmatprep.subr.mxu0 0.0
  %597 = vmatpush1.xpose.msra.mxu0 0.0
  %598 = vmatprep.subr.mxu0 0.0
  %599 = vmatpush1.xpose.msra.mxu0 0.0
  %600 = vmatprep.subr.mxu0 0.0
  %601 = vmatpush1.xpose.msra.mxu0 0.0
  %602 = vmatprep.subr.mxu0 0.0
  %603 = vmatpush1.xpose.msra.mxu0 0.0
  %604 = vmatprep.subr.mxu0 0.0
  %605 = vmatpush1.xpose.msra.mxu0 %v572
  %606 = vmatprep.subr.mxu0 0.0
  %607 = vmatpush2.xpose.msra.mxu0 0.0
  %608 = vmatprep.subr.mxu0 0.0
  %609 = vmatpush2.xpose.msra.mxu0 0.0
  %610 = vmatprep.subr.mxu0 0.0
  %611 = vmatpush2.xpose.msra.mxu0 0.0
  %612 = vmatprep.subr.mxu0 0.0
  %613 = vmatpush2.xpose.msra.mxu0 0.0
  %614 = vmatprep.subr.mxu0 0.0
  %615 = vmatpush2.xpose.msra.mxu0 0.0
  %616 = vmatprep.subr.mxu0 0.0
  %617 = vmatpush2.xpose.msra.mxu0 0.0
  %618 = vmatprep.subr.mxu0 0.0
  %619 = vmatpush2.xpose.msra.mxu0 0.0
  %620 = vmatprep.subr.mxu0 0.0
  %621 = vmatpush2.xpose.msra.mxu0 0.0
  %622 = vmatprep.subr.mxu0 0.0
  %623 = vmatpush2.xpose.msra.mxu0 0.0
  %624 = vmatprep.subr.mxu0 0.0
  %625 = vmatpush2.xpose.msra.mxu0 0.0
  %626 = vmatprep.subr.mxu0 0.0
  %627 = vmatpush2.xpose.msra.mxu0 0.0
  %628 = vmatprep.subr.mxu0 0.0
  %629 = vmatpush2.xpose.msra.mxu0 0.0
  %630 = vmatprep.subr.mxu0 0.0
  %631 = vmatpush2.xpose.msra.mxu0 0.0
  %632 = vmatprep.subr.mxu0 0.0
  %633 = vmatpush2.xpose.msra.mxu0 0.0
  %634 = vmatprep.subr.mxu0 0.0
  %635 = vmatpush2.xpose.msra.mxu0 0.0
  %636 = vmatprep.subr.mxu0 0.0
  %637 = vmatpush2.xpose.msra.mxu0 0.0
  %638 = vmatprep.mubr.f32.mxu0 0.0
  %639 = vmatmul.mubr.f32.gmra.mxu0 %v570
  %v640 = vpop.f32.mrf.mxu0
  %v641 = vadd.f32 %v58, %v640
  %v642 = vpop.f32.mrf.mxu0
  %643 = vdwg.mxu0
  %v644 = vsel %vm162, %v563, -inf
  %645 = vmax.xlane.f32.xlu0 %v644
  %v646 = vpop.xlane.xlu0 %645
  %v647 = vsel %vm162, %v641, -inf
  %648 = vmax.xlane.f32.xlu0 %v647
  %v649 = vpop.xlane.xlu0 %648
  %v650 = vsub.f32 %v563, %v646
  %v651 = vsub.f32 %v641, %v649
  %v652 = vmul.f32 %v650, 1.442695
  %v653 = vpow.pop %v652
  %v654 = vmul.f32 %v651, 1.442695
  %v655 = vpow.pop %v654
  %v656 = vsel %vm162, %v653, 0.0
  %657 = vadd.xlane.f32.xlu0 %v656
  %v658 = vpop.xlane.xlu0 %657
  %v659 = vsel %vm162, %v655, 0.0
  %660 = vadd.xlane.f32.xlu0 %v659
  %v661 = vpop.xlane.xlu0 %660
  %v662 = vrcp.pop %v658
  %v663 = vrcp.pop %v661
  %v664 = vmul.f32 %v653, %v662
  %v665 = vmul.f32 %v655, %v663
  %666 = vrot.lane.b32.xlu0 %v151, 56
  %v667 = vpop.permute.xlu0 %666
  %v670 = vsel %vm162, %v664, 0
  %672 = vmatprep.subr.mxu0 0.0
  %673 = vmatpush1.msra.mxu0 0.0
  %674 = vmatprep.subr.mxu0 0.0
  %675 = vmatpush1.msra.mxu0 0.0
  %676 = vmatprep.subr.mxu0 0.0
  %677 = vmatpush1.msra.mxu0 0.0
  %678 = vmatprep.subr.mxu0 0.0
  %679 = vmatpush1.msra.mxu0 0.0
  %680 = vmatprep.subr.mxu0 0.0
  %681 = vmatpush1.msra.mxu0 0.0
  %682 = vmatprep.subr.mxu0 0.0
  %683 = vmatpush1.msra.mxu0 0.0
  %684 = vmatprep.subr.mxu0 0.0
  %685 = vmatpush1.msra.mxu0 0.0
  %686 = vmatprep.subr.mxu0 0.0
  %687 = vmatpush1.msra.mxu0 0.0
  %688 = vmatprep.subr.mxu0 0.0
  %689 = vmatpush1.msra.mxu0 0.0
  %690 = vmatprep.subr.mxu0 0.0
  %691 = vmatpush1.msra.mxu0 0.0
  %692 = vmatprep.subr.mxu0 0.0
  %693 = vmatpush1.msra.mxu0 0.0
  %694 = vmatprep.subr.mxu0 0.0
  %695 = vmatpush1.msra.mxu0 0.0
  %696 = vmatprep.subr.mxu0 0.0
  %697 = vmatpush1.msra.mxu0 0.0
  %698 = vmatprep.subr.mxu0 0.0
  %699 = vmatpush1.msra.mxu0 0.0
  %700 = vmatprep.subr.mxu0 0.0
  %701 = vmatpush1.msra.mxu0 0.0
  %702 = vmatprep.subr.mxu0 0.0
  %703 = vmatpush1.msra.mxu0 %v667
  %704 = vmatprep.subr.mxu0 0.0
  %705 = vmatpush2.msra.mxu0 0.0
  %706 = vmatprep.subr.mxu0 0.0
  %707 = vmatpush2.msra.mxu0 0.0
  %708 = vmatprep.subr.mxu0 0.0
  %709 = vmatpush2.msra.mxu0 0.0
  %710 = vmatprep.subr.mxu0 0.0
  %711 = vmatpush2.msra.mxu0 0.0
  %712 = vmatprep.subr.mxu0 0.0
  %713 = vmatpush2.msra.mxu0 0.0
  %714 = vmatprep.subr.mxu0 0.0
  %715 = vmatpush2.msra.mxu0 0.0
  %716 = vmatprep.subr.mxu0 0.0
  %717 = vmatpush2.msra.mxu0 0.0
  %718 = vmatprep.subr.mxu0 0.0
  %719 = vmatpush2.msra.mxu0 0.0
  %720 = vmatprep.subr.mxu0 0.0
  %721 = vmatpush2.msra.mxu0 0.0
  %722 = vmatprep.subr.mxu0 0.0
  %723 = vmatpush2.msra.mxu0 0.0
  %724 = vmatprep.subr.mxu0 0.0
  %725 = vmatpush2.msra.mxu0 0.0
  %726 = vmatprep.subr.mxu0 0.0
  %727 = vmatpush2.msra.mxu0 0.0
  %728 = vmatprep.subr.mxu0 0.0
  %729 = vmatpush2.msra.mxu0 0.0
  %730 = vmatprep.subr.mxu0 0.0
  %731 = vmatpush2.msra.mxu0 0.0
  %732 = vmatprep.subr.mxu0 0.0
  %733 = vmatpush2.msra.mxu0 0.0
  %734 = vmatprep.subr.mxu0 0.0
  %735 = vmatpush2.msra.mxu0 0.0
  %736 = vmatprep.mubr.f32.mxu0 0.0
  %737 = vmatmul.mubr.f32.gmra.mxu0 %v670
  %v738 = vpop.f32.mrf.mxu0
  %v739 = vadd.f32 0.0, %v738
  %v740 = vpop.f32.mrf.mxu0
  %741 = vdwg.mxu0
  %742 = vrot.lane.b32.xlu0 %v156, 56
  %v743 = vpop.permute.xlu0 %742
  %v746 = vsel %vm162, %v665, 0
  %748 = vmatprep.subr.mxu0 0.0
  %749 = vmatpush1.msra.mxu0 0.0
  %750 = vmatprep.subr.mxu0 0.0
  %751 = vmatpush1.msra.mxu0 0.0
  %752 = vmatprep.subr.mxu0 0.0
  %753 = vmatpush1.msra.mxu0 0.0
  %754 = vmatprep.subr.mxu0 0.0
  %755 = vmatpush1.msra.mxu0 0.0
  %756 = vmatprep.subr.mxu0 0.0
  %757 = vmatpush1.msra.mxu0 0.0
  %758 = vmatprep.subr.mxu0 0.0
  %759 = vmatpush1.msra.mxu0 0.0
  %760 = vmatprep.subr.mxu0 0.0
  %761 = vmatpush1.msra.mxu0 0.0
  %762 = vmatprep.subr.mxu0 0.0
  %763 = vmatpush1.msra.mxu0 0.0
  %764 = vmatprep.subr.mxu0 0.0
  %765 = vmatpush1.msra.mxu0 0.0
  %766 = vmatprep.subr.mxu0 0.0
  %767 = vmatpush1.msra.mxu0 0.0
  %768 = vmatprep.subr.mxu0 0.0
  %769 = vmatpush1.msra.mxu0 0.0
  %770 = vmatprep.subr.mxu0 0.0
  %771 = vmatpush1.msra.mxu0 0.0
  %772 = vmatprep.subr.mxu0 0.0
  %773 = vmatpush1.msra.mxu0 0.0
  %774 = vmatprep.subr.mxu0 0.0
  %775 = vmatpush1.msra.mxu0 0.0
  %776 = vmatprep.subr.mxu0 0.0
  %777 = vmatpush1.msra.mxu0 0.0
  %778 = vmatprep.subr.mxu0 0.0
  %779 = vmatpush1.msra.mxu0 %v743
  %780 = vmatprep.subr.mxu0 0.0
  %781 = vmatpush2.msra.mxu0 0.0
  %782 = vmatprep.subr.mxu0 0.0
  %783 = vmatpush2.msra.mxu0 0.0
  %784 = vmatprep.subr.mxu0 0.0
  %785 = vmatpush2.msra.mxu0 0.0
  %786 = vmatprep.subr.mxu0 0.0
  %787 = vmatpush2.msra.mxu0 0.0
  %788 = vmatprep.subr.mxu0 0.0
  %789 = vmatpush2.msra.mxu0 0.0
  %790 = vmatprep.subr.mxu0 0.0
  %791 = vmatpush2.msra.mxu0 0.0
  %792 = vmatprep.subr.mxu0 0.0
  %793 = vmatpush2.msra.mxu0 0.0
  %794 = vmatprep.subr.mxu0 0.0
  %795 = vmatpush2.msra.mxu0 0.0
  %796 = vmatprep.subr.mxu0 0.0
  %797 = vmatpush2.msra.mxu0 0.0
  %798 = vmatprep.subr.mxu0 0.0
  %799 = vmatpush2.msra.mxu0 0.0
  %800 = vmatprep.subr.mxu0 0.0
  %801 = vmatpush2.msra.mxu0 0.0
  %802 = vmatprep.subr.mxu0 0.0
  %803 = vmatpush2.msra.mxu0 0.0
  %804 = vmatprep.subr.mxu0 0.0
  %805 = vmatpush2.msra.mxu0 0.0
  %806 = vmatprep.subr.mxu0 0.0
  %807 = vmatpush2.msra.mxu0 0.0
  %808 = vmatprep.subr.mxu0 0.0
  %809 = vmatpush2.msra.mxu0 0.0
  %810 = vmatprep.subr.mxu0 0.0
  %811 = vmatpush2.msra.mxu0 0.0
  %812 = vmatprep.mubr.f32.mxu0 0.0
  %813 = vmatmul.mubr.f32.gmra.mxu0 %v746
  %v814 = vpop.f32.mrf.mxu0
  %v815 = vadd.f32 0.0, %v814
  %v816 = vpop.f32.mrf.mxu0
  %817 = vdwg.mxu0
  %818 = vrot.lane.b32.xlu0 %v151, 112
  %v819 = vpop.permute.xlu0 %818
  %820 = vrot.lane.b32.xlu0 %v151, 80
  %v821 = vpop.permute.xlu0 %820
  %v822 = vsel %vm162, %v819, 0
  %v824 = vsel %vm162, %v821, 0
  %826 = vmatprep.subr.mxu0 0.0
  %827 = vmatpush1.xpose.msra.mxu0 0.0
  %828 = vmatprep.subr.mxu0 0.0
  %829 = vmatpush1.xpose.msra.mxu0 0.0
  %830 = vmatprep.subr.mxu0 0.0
  %831 = vmatpush1.xpose.msra.mxu0 0.0
  %832 = vmatprep.subr.mxu0 0.0
  %833 = vmatpush1.xpose.msra.mxu0 0.0
  %834 = vmatprep.subr.mxu0 0.0
  %835 = vmatpush1.xpose.msra.mxu0 0.0
  %836 = vmatprep.subr.mxu0 0.0
  %837 = vmatpush1.xpose.msra.mxu0 0.0
  %838 = vmatprep.subr.mxu0 0.0
  %839 = vmatpush1.xpose.msra.mxu0 0.0
  %840 = vmatprep.subr.mxu0 0.0
  %841 = vmatpush1.xpose.msra.mxu0 0.0
  %842 = vmatprep.subr.mxu0 0.0
  %843 = vmatpush1.xpose.msra.mxu0 0.0
  %844 = vmatprep.subr.mxu0 0.0
  %845 = vmatpush1.xpose.msra.mxu0 0.0
  %846 = vmatprep.subr.mxu0 0.0
  %847 = vmatpush1.xpose.msra.mxu0 0.0
  %848 = vmatprep.subr.mxu0 0.0
  %849 = vmatpush1.xpose.msra.mxu0 0.0
  %850 = vmatprep.subr.mxu0 0.0
  %851 = vmatpush1.xpose.msra.mxu0 0.0
  %852 = vmatprep.subr.mxu0 0.0
  %853 = vmatpush1.xpose.msra.mxu0 0.0
  %854 = vmatprep.subr.mxu0 0.0
  %855 = vmatpush1.xpose.msra.mxu0 0.0
  %856 = vmatprep.subr.mxu0 0.0
  %857 = vmatpush1.xpose.msra.mxu0 %v824
  %858 = vmatprep.subr.mxu0 0.0
  %859 = vmatpush2.xpose.msra.mxu0 0.0
  %860 = vmatprep.subr.mxu0 0.0
  %861 = vmatpush2.xpose.msra.mxu0 0.0
  %862 = vmatprep.subr.mxu0 0.0
  %863 = vmatpush2.xpose.msra.mxu0 0.0
  %864 = vmatprep.subr.mxu0 0.0
  %865 = vmatpush2.xpose.msra.mxu0 0.0
  %866 = vmatprep.subr.mxu0 0.0
  %867 = vmatpush2.xpose.msra.mxu0 0.0
  %868 = vmatprep.subr.mxu0 0.0
  %869 = vmatpush2.xpose.msra.mxu0 0.0
  %870 = vmatprep.subr.mxu0 0.0
  %871 = vmatpush2.xpose.msra.mxu0 0.0
  %872 = vmatprep.subr.mxu0 0.0
  %873 = vmatpush2.xpose.msra.mxu0 0.0
  %874 = vmatprep.subr.mxu0 0.0
  %875 = vmatpush2.xpose.msra.mxu0 0.0
  %876 = vmatprep.subr.mxu0 0.0
  %877 = vmatpush2.xpose.msra.mxu0 0.0
  %878 = vmatprep.subr.mxu0 0.0
  %879 = vmatpush2.xpose.msra.mxu0 0.0
  %880 = vmatprep.subr.mxu0 0.0
  %881 = vmatpush2.xpose.msra.mxu0 0.0
  %882 = vmatprep.subr.mxu0 0.0
  %883 = vmatpush2.xpose.msra.mxu0 0.0
  %884 = vmatprep.subr.mxu0 0.0
  %885 = vmatpush2.xpose.msra.mxu0 0.0
  %886 = vmatprep.subr.mxu0 0.0
  %887 = vmatpush2.xpose.msra.mxu0 0.0
  %888 = vmatprep.subr.mxu0 0.0
  %889 = vmatpush2.xpose.msra.mxu0 0.0
  %890 = vmatprep.mubr.f32.mxu0 0.0
  %891 = vmatmul.mubr.f32.gmra.mxu0 %v822
  %v892 = vpop.f32.mrf.mxu0
  %v893 = vadd.f32 %v57, %v892
  %v894 = vpop.f32.mrf.mxu0
  %895 = vdwg.mxu0
  %896 = vrot.lane.b32.xlu0 %v156, 112
  %v897 = vpop.permute.xlu0 %896
  %898 = vrot.lane.b32.xlu0 %v156, 80
  %v899 = vpop.permute.xlu0 %898
  %v900 = vsel %vm162, %v897, 0
  %v902 = vsel %vm162, %v899, 0
  %904 = vmatprep.subr.mxu0 0.0
  %905 = vmatpush1.xpose.msra.mxu0 0.0
  %906 = vmatprep.subr.mxu0 0.0
  %907 = vmatpush1.xpose.msra.mxu0 0.0
  %908 = vmatprep.subr.mxu0 0.0
  %909 = vmatpush1.xpose.msra.mxu0 0.0
  %910 = vmatprep.subr.mxu0 0.0
  %911 = vmatpush1.xpose.msra.mxu0 0.0
  %912 = vmatprep.subr.mxu0 0.0
  %913 = vmatpush1.xpose.msra.mxu0 0.0
  %914 = vmatprep.subr.mxu0 0.0
  %915 = vmatpush1.xpose.msra.mxu0 0.0
  %916 = vmatprep.subr.mxu0 0.0
  %917 = vmatpush1.xpose.msra.mxu0 0.0
  %918 = vmatprep.subr.mxu0 0.0
  %919 = vmatpush1.xpose.msra.mxu0 0.0
  %920 = vmatprep.subr.mxu0 0.0
  %921 = vmatpush1.xpose.msra.mxu0 0.0
  %922 = vmatprep.subr.mxu0 0.0
  %923 = vmatpush1.xpose.msra.mxu0 0.0
  %924 = vmatprep.subr.mxu0 0.0
  %925 = vmatpush1.xpose.msra.mxu0 0.0
  %926 = vmatprep.subr.mxu0 0.0
  %927 = vmatpush1.xpose.msra.mxu0 0.0
  %928 = vmatprep.subr.mxu0 0.0
  %929 = vmatpush1.xpose.msra.mxu0 0.0
  %930 = vmatprep.subr.mxu0 0.0
  %931 = vmatpush1.xpose.msra.mxu0 0.0
  %932 = vmatprep.subr.mxu0 0.0
  %933 = vmatpush1.xpose.msra.mxu0 0.0
  %934 = vmatprep.subr.mxu0 0.0
  %935 = vmatpush1.xpose.msra.mxu0 %v902
  %936 = vmatprep.subr.mxu0 0.0
  %937 = vmatpush2.xpose.msra.mxu0 0.0
  %938 = vmatprep.subr.mxu0 0.0
  %939 = vmatpush2.xpose.msra.mxu0 0.0
  %940 = vmatprep.subr.mxu0 0.0
  %941 = vmatpush2.xpose.msra.mxu0 0.0
  %942 = vmatprep.subr.mxu0 0.0
  %943 = vmatpush2.xpose.msra.mxu0 0.0
  %944 = vmatprep.subr.mxu0 0.0
  %945 = vmatpush2.xpose.msra.mxu0 0.0
  %946 = vmatprep.subr.mxu0 0.0
  %947 = vmatpush2.xpose.msra.mxu0 0.0
  %948 = vmatprep.subr.mxu0 0.0
  %949 = vmatpush2.xpose.msra.mxu0 0.0
  %950 = vmatprep.subr.mxu0 0.0
  %951 = vmatpush2.xpose.msra.mxu0 0.0
  %952 = vmatprep.subr.mxu0 0.0
  %953 = vmatpush2.xpose.msra.mxu0 0.0
  %954 = vmatprep.subr.mxu0 0.0
  %955 = vmatpush2.xpose.msra.mxu0 0.0
  %956 = vmatprep.subr.mxu0 0.0
  %957 = vmatpush2.xpose.msra.mxu0 0.0
  %958 = vmatprep.subr.mxu0 0.0
  %959 = vmatpush2.xpose.msra.mxu0 0.0
  %960 = vmatprep.subr.mxu0 0.0
  %961 = vmatpush2.xpose.msra.mxu0 0.0
  %962 = vmatprep.subr.mxu0 0.0
  %963 = vmatpush2.xpose.msra.mxu0 0.0
  %964 = vmatprep.subr.mxu0 0.0
  %965 = vmatpush2.xpose.msra.mxu0 0.0
  %966 = vmatprep.subr.mxu0 0.0
  %967 = vmatpush2.xpose.msra.mxu0 0.0
  %968 = vmatprep.mubr.f32.mxu0 0.0
  %969 = vmatmul.mubr.f32.gmra.mxu0 %v900
  %v970 = vpop.f32.mrf.mxu0
  %v971 = vadd.f32 %v58, %v970
  %v972 = vpop.f32.mrf.mxu0
  %973 = vdwg.mxu0
  %v974 = vsel %vm162, %v893, -inf
  %975 = vmax.xlane.f32.xlu0 %v974
  %v976 = vpop.xlane.xlu0 %975
  %v977 = vsel %vm162, %v971, -inf
  %978 = vmax.xlane.f32.xlu0 %v977
  %v979 = vpop.xlane.xlu0 %978
  %v980 = vsub.f32 %v893, %v976
  %v981 = vsub.f32 %v971, %v979
  %v982 = vmul.f32 %v980, 1.442695
  %v983 = vpow.pop %v982
  %v984 = vmul.f32 %v981, 1.442695
  %v985 = vpow.pop %v984
  %v986 = vsel %vm162, %v983, 0.0
  %987 = vadd.xlane.f32.xlu0 %v986
  %v988 = vpop.xlane.xlu0 %987
  %v989 = vsel %vm162, %v985, 0.0
  %990 = vadd.xlane.f32.xlu0 %v989
  %v991 = vpop.xlane.xlu0 %990
  %v992 = vrcp.pop %v988
  %v993 = vrcp.pop %v991
  %v994 = vmul.f32 %v983, %v992
  %v995 = vmul.f32 %v985, %v993
  %996 = vrot.lane.b32.xlu0 %v151, 48
  %v997 = vpop.permute.xlu0 %996
  %v1000 = vsel %vm162, %v994, 0
  %1002 = vmatprep.subr.mxu0 0.0
  %1003 = vmatpush1.msra.mxu0 0.0
  %1004 = vmatprep.subr.mxu0 0.0
  %1005 = vmatpush1.msra.mxu0 0.0
  %1006 = vmatprep.subr.mxu0 0.0
  %1007 = vmatpush1.msra.mxu0 0.0
  %1008 = vmatprep.subr.mxu0 0.0
  %1009 = vmatpush1.msra.mxu0 0.0
  %1010 = vmatprep.subr.mxu0 0.0
  %1011 = vmatpush1.msra.mxu0 0.0
  %1012 = vmatprep.subr.mxu0 0.0
  %1013 = vmatpush1.msra.mxu0 0.0
  %1014 = vmatprep.subr.mxu0 0.0
  %1015 = vmatpush1.msra.mxu0 0.0
  %1016 = vmatprep.subr.mxu0 0.0
  %1017 = vmatpush1.msra.mxu0 0.0
  %1018 = vmatprep.subr.mxu0 0.0
  %1019 = vmatpush1.msra.mxu0 0.0
  %1020 = vmatprep.subr.mxu0 0.0
  %1021 = vmatpush1.msra.mxu0 0.0
  %1022 = vmatprep.subr.mxu0 0.0
  %1023 = vmatpush1.msra.mxu0 0.0
  %1024 = vmatprep.subr.mxu0 0.0
  %1025 = vmatpush1.msra.mxu0 0.0
  %1026 = vmatprep.subr.mxu0 0.0
  %1027 = vmatpush1.msra.mxu0 0.0
  %1028 = vmatprep.subr.mxu0 0.0
  %1029 = vmatpush1.msra.mxu0 0.0
  %1030 = vmatprep.subr.mxu0 0.0
  %1031 = vmatpush1.msra.mxu0 0.0
  %1032 = vmatprep.subr.mxu0 0.0
  %1033 = vmatpush1.msra.mxu0 %v997
  %1034 = vmatprep.subr.mxu0 0.0
  %1035 = vmatpush2.msra.mxu0 0.0
  %1036 = vmatprep.subr.mxu0 0.0
  %1037 = vmatpush2.msra.mxu0 0.0
  %1038 = vmatprep.subr.mxu0 0.0
  %1039 = vmatpush2.msra.mxu0 0.0
  %1040 = vmatprep.subr.mxu0 0.0
  %1041 = vmatpush2.msra.mxu0 0.0
  %1042 = vmatprep.subr.mxu0 0.0
  %1043 = vmatpush2.msra.mxu0 0.0
  %1044 = vmatprep.subr.mxu0 0.0
  %1045 = vmatpush2.msra.mxu0 0.0
  %1046 = vmatprep.subr.mxu0 0.0
  %1047 = vmatpush2.msra.mxu0 0.0
  %1048 = vmatprep.subr.mxu0 0.0
  %1049 = vmatpush2.msra.mxu0 0.0
  %1050 = vmatprep.subr.mxu0 0.0
  %1051 = vmatpush2.msra.mxu0 0.0
  %1052 = vmatprep.subr.mxu0 0.0
  %1053 = vmatpush2.msra.mxu0 0.0
  %1054 = vmatprep.subr.mxu0 0.0
  %1055 = vmatpush2.msra.mxu0 0.0
  %1056 = vmatprep.subr.mxu0 0.0
  %1057 = vmatpush2.msra.mxu0 0.0
  %1058 = vmatprep.subr.mxu0 0.0
  %1059 = vmatpush2.msra.mxu0 0.0
  %1060 = vmatprep.subr.mxu0 0.0
  %1061 = vmatpush2.msra.mxu0 0.0
  %1062 = vmatprep.subr.mxu0 0.0
  %1063 = vmatpush2.msra.mxu0 0.0
  %1064 = vmatprep.subr.mxu0 0.0
  %1065 = vmatpush2.msra.mxu0 0.0
  %1066 = vmatprep.mubr.f32.mxu0 0.0
  %1067 = vmatmul.mubr.f32.gmra.mxu0 %v1000
  %v1068 = vpop.f32.mrf.mxu0
  %v1069 = vadd.f32 0.0, %v1068
  %v1070 = vpop.f32.mrf.mxu0
  %1071 = vdwg.mxu0
  %1072 = vrot.lane.b32.xlu0 %v156, 48
  %v1073 = vpop.permute.xlu0 %1072
  %v1076 = vsel %vm162, %v995, 0
  %1078 = vmatprep.subr.mxu0 0.0
  %1079 = vmatpush1.msra.mxu0 0.0
  %1080 = vmatprep.subr.mxu0 0.0
  %1081 = vmatpush1.msra.mxu0 0.0
  %1082 = vmatprep.subr.mxu0 0.0
  %1083 = vmatpush1.msra.mxu0 0.0
  %1084 = vmatprep.subr.mxu0 0.0
  %1085 = vmatpush1.msra.mxu0 0.0
  %1086 = vmatprep.subr.mxu0 0.0
  %1087 = vmatpush1.msra.mxu0 0.0
  %1088 = vmatprep.subr.mxu0 0.0
  %1089 = vmatpush1.msra.mxu0 0.0
  %1090 = vmatprep.subr.mxu0 0.0
  %1091 = vmatpush1.msra.mxu0 0.0
  %1092 = vmatprep.subr.mxu0 0.0
  %1093 = vmatpush1.msra.mxu0 0.0
  %1094 = vmatprep.subr.mxu0 0.0
  %1095 = vmatpush1.msra.mxu0 0.0
  %1096 = vmatprep.subr.mxu0 0.0
  %1097 = vmatpush1.msra.mxu0 0.0
  %1098 = vmatprep.subr.mxu0 0.0
  %1099 = vmatpush1.msra.mxu0 0.0
  %1100 = vmatprep.subr.mxu0 0.0
  %1101 = vmatpush1.msra.mxu0 0.0
  %1102 = vmatprep.subr.mxu0 0.0
  %1103 = vmatpush1.msra.mxu0 0.0
  %1104 = vmatprep.subr.mxu0 0.0
  %1105 = vmatpush1.msra.mxu0 0.0
  %1106 = vmatprep.subr.mxu0 0.0
  %1107 = vmatpush1.msra.mxu0 0.0
  %1108 = vmatprep.subr.mxu0 0.0
  %1109 = vmatpush1.msra.mxu0 %v1073
  %1110 = vmatprep.subr.mxu0 0.0
  %1111 = vmatpush2.msra.mxu0 0.0
  %1112 = vmatprep.subr.mxu0 0.0
  %1113 = vmatpush2.msra.mxu0 0.0
  %1114 = vmatprep.subr.mxu0 0.0
  %1115 = vmatpush2.msra.mxu0 0.0
  %1116 = vmatprep.subr.mxu0 0.0
  %1117 = vmatpush2.msra.mxu0 0.0
  %1118 = vmatprep.subr.mxu0 0.0
  %1119 = vmatpush2.msra.mxu0 0.0
  %1120 = vmatprep.subr.mxu0 0.0
  %1121 = vmatpush2.msra.mxu0 0.0
  %1122 = vmatprep.subr.mxu0 0.0
  %1123 = vmatpush2.msra.mxu0 0.0
  %1124 = vmatprep.subr.mxu0 0.0
  %1125 = vmatpush2.msra.mxu0 0.0
  %1126 = vmatprep.subr.mxu0 0.0
  %1127 = vmatpush2.msra.mxu0 0.0
  %1128 = vmatprep.subr.mxu0 0.0
  %1129 = vmatpush2.msra.mxu0 0.0
  %1130 = vmatprep.subr.mxu0 0.0
  %1131 = vmatpush2.msra.mxu0 0.0
  %1132 = vmatprep.subr.mxu0 0.0
  %1133 = vmatpush2.msra.mxu0 0.0
  %1134 = vmatprep.subr.mxu0 0.0
  %1135 = vmatpush2.msra.mxu0 0.0
  %1136 = vmatprep.subr.mxu0 0.0
  %1137 = vmatpush2.msra.mxu0 0.0
  %1138 = vmatprep.subr.mxu0 0.0
  %1139 = vmatpush2.msra.mxu0 0.0
  %1140 = vmatprep.subr.mxu0 0.0
  %1141 = vmatpush2.msra.mxu0 0.0
  %1142 = vmatprep.mubr.f32.mxu0 0.0
  %1143 = vmatmul.mubr.f32.gmra.mxu0 %v1076
  %v1144 = vpop.f32.mrf.mxu0
  %v1145 = vadd.f32 0.0, %v1144
  %v1146 = vpop.f32.mrf.mxu0
  %1147 = vdwg.mxu0
  %1148 = vrot.lane.b32.xlu0 %v151, 104
  %v1149 = vpop.permute.xlu0 %1148
  %1150 = vrot.lane.b32.xlu0 %v151, 72
  %v1151 = vpop.permute.xlu0 %1150
  %v1152 = vsel %vm162, %v1149, 0
  %v1154 = vsel %vm162, %v1151, 0
  %1156 = vmatprep.subr.mxu0 0.0
  %1157 = vmatpush1.xpose.msra.mxu0 0.0
  %1158 = vmatprep.subr.mxu0 0.0
  %1159 = vmatpush1.xpose.msra.mxu0 0.0
  %1160 = vmatprep.subr.mxu0 0.0
  %1161 = vmatpush1.xpose.msra.mxu0 0.0
  %1162 = vmatprep.subr.mxu0 0.0
  %1163 = vmatpush1.xpose.msra.mxu0 0.0
  %1164 = vmatprep.subr.mxu0 0.0
  %1165 = vmatpush1.xpose.msra.mxu0 0.0
  %1166 = vmatprep.subr.mxu0 0.0
  %1167 = vmatpush1.xpose.msra.mxu0 0.0
  %1168 = vmatprep.subr.mxu0 0.0
  %1169 = vmatpush1.xpose.msra.mxu0 0.0
  %1170 = vmatprep.subr.mxu0 0.0
  %1171 = vmatpush1.xpose.msra.mxu0 0.0
  %1172 = vmatprep.subr.mxu0 0.0
  %1173 = vmatpush1.xpose.msra.mxu0 0.0
  %1174 = vmatprep.subr.mxu0 0.0
  %1175 = vmatpush1.xpose.msra.mxu0 0.0
  %1176 = vmatprep.subr.mxu0 0.0
  %1177 = vmatpush1.xpose.msra.mxu0 0.0
  %1178 = vmatprep.subr.mxu0 0.0
  %1179 = vmatpush1.xpose.msra.mxu0 0.0
  %1180 = vmatprep.subr.mxu0 0.0
  %1181 = vmatpush1.xpose.msra.mxu0 0.0
  %1182 = vmatprep.subr.mxu0 0.0
  %1183 = vmatpush1.xpose.msra.mxu0 0.0
  %1184 = vmatprep.subr.mxu0 0.0
  %1185 = vmatpush1.xpose.msra.mxu0 0.0
  %1186 = vmatprep.subr.mxu0 0.0
  %1187 = vmatpush1.xpose.msra.mxu0 %v1154
  %1188 = vmatprep.subr.mxu0 0.0
  %1189 = vmatpush2.xpose.msra.mxu0 0.0
  %1190 = vmatprep.subr.mxu0 0.0
  %1191 = vmatpush2.xpose.msra.mxu0 0.0
  %1192 = vmatprep.subr.mxu0 0.0
  %1193 = vmatpush2.xpose.msra.mxu0 0.0
  %1194 = vmatprep.subr.mxu0 0.0
  %1195 = vmatpush2.xpose.msra.mxu0 0.0
  %1196 = vmatprep.subr.mxu0 0.0
  %1197 = vmatpush2.xpose.msra.mxu0 0.0
  %1198 = vmatprep.subr.mxu0 0.0
  %1199 = vmatpush2.xpose.msra.mxu0 0.0
  %1200 = vmatprep.subr.mxu0 0.0
  %1201 = vmatpush2.xpose.msra.mxu0 0.0
  %1202 = vmatprep.subr.mxu0 0.0
  %1203 = vmatpush2.xpose.msra.mxu0 0.0
  %1204 = vmatprep.subr.mxu0 0.0
  %1205 = vmatpush2.xpose.msra.mxu0 0.0
  %1206 = vmatprep.subr.mxu0 0.0
  %1207 = vmatpush2.xpose.msra.mxu0 0.0
  %1208 = vmatprep.subr.mxu0 0.0
  %1209 = vmatpush2.xpose.msra.mxu0 0.0
  %1210 = vmatprep.subr.mxu0 0.0
  %1211 = vmatpush2.xpose.msra.mxu0 0.0
  %1212 = vmatprep.subr.mxu0 0.0
  %1213 = vmatpush2.xpose.msra.mxu0 0.0
  %1214 = vmatprep.subr.mxu0 0.0
  %1215 = vmatpush2.xpose.msra.mxu0 0.0
  %1216 = vmatprep.subr.mxu0 0.0
  %1217 = vmatpush2.xpose.msra.mxu0 0.0
  %1218 = vmatprep.subr.mxu0 0.0
  %1219 = vmatpush2.xpose.msra.mxu0 0.0
  %1220 = vmatprep.mubr.f32.mxu0 0.0
  %1221 = vmatmul.mubr.f32.gmra.mxu0 %v1152
  %v1222 = vpop.f32.mrf.mxu0
  %v1223 = vadd.f32 %v57, %v1222
  %v1224 = vpop.f32.mrf.mxu0
  %1225 = vdwg.mxu0
  %1226 = vrot.lane.b32.xlu0 %v156, 104
  %v1227 = vpop.permute.xlu0 %1226
  %1228 = vrot.lane.b32.xlu0 %v156, 72
  %v1229 = vpop.permute.xlu0 %1228
  %v1230 = vsel %vm162, %v1227, 0
  %v1232 = vsel %vm162, %v1229, 0
  %1234 = vmatprep.subr.mxu0 0.0
  %1235 = vmatpush1.xpose.msra.mxu0 0.0
  %1236 = vmatprep.subr.mxu0 0.0
  %1237 = vmatpush1.xpose.msra.mxu0 0.0
  %1238 = vmatprep.subr.mxu0 0.0
  %1239 = vmatpush1.xpose.msra.mxu0 0.0
  %1240 = vmatprep.subr.mxu0 0.0
  %1241 = vmatpush1.xpose.msra.mxu0 0.0
  %1242 = vmatprep.subr.mxu0 0.0
  %1243 = vmatpush1.xpose.msra.mxu0 0.0
  %1244 = vmatprep.subr.mxu0 0.0
  %1245 = vmatpush1.xpose.msra.mxu0 0.0
  %1246 = vmatprep.subr.mxu0 0.0
  %1247 = vmatpush1.xpose.msra.mxu0 0.0
  %1248 = vmatprep.subr.mxu0 0.0
  %1249 = vmatpush1.xpose.msra.mxu0 0.0
  %1250 = vmatprep.subr.mxu0 0.0
  %1251 = vmatpush1.xpose.msra.mxu0 0.0
  %1252 = vmatprep.subr.mxu0 0.0
  %1253 = vmatpush1.xpose.msra.mxu0 0.0
  %1254 = vmatprep.subr.mxu0 0.0
  %1255 = vmatpush1.xpose.msra.mxu0 0.0
  %1256 = vmatprep.subr.mxu0 0.0
  %1257 = vmatpush1.xpose.msra.mxu0 0.0
  %1258 = vmatprep.subr.mxu0 0.0
  %1259 = vmatpush1.xpose.msra.mxu0 0.0
  %1260 = vmatprep.subr.mxu0 0.0
  %1261 = vmatpush1.xpose.msra.mxu0 0.0
  %1262 = vmatprep.subr.mxu0 0.0
  %1263 = vmatpush1.xpose.msra.mxu0 0.0
  %1264 = vmatprep.subr.mxu0 0.0
  %1265 = vmatpush1.xpose.msra.mxu0 %v1232
  %1266 = vmatprep.subr.mxu0 0.0
  %1267 = vmatpush2.xpose.msra.mxu0 0.0
  %1268 = vmatprep.subr.mxu0 0.0
  %1269 = vmatpush2.xpose.msra.mxu0 0.0
  %1270 = vmatprep.subr.mxu0 0.0
  %1271 = vmatpush2.xpose.msra.mxu0 0.0
  %1272 = vmatprep.subr.mxu0 0.0
  %1273 = vmatpush2.xpose.msra.mxu0 0.0
  %1274 = vmatprep.subr.mxu0 0.0
  %1275 = vmatpush2.xpose.msra.mxu0 0.0
  %1276 = vmatprep.subr.mxu0 0.0
  %1277 = vmatpush2.xpose.msra.mxu0 0.0
  %1278 = vmatprep.subr.mxu0 0.0
  %1279 = vmatpush2.xpose.msra.mxu0 0.0
  %1280 = vmatprep.subr.mxu0 0.0
  %1281 = vmatpush2.xpose.msra.mxu0 0.0
  %1282 = vmatprep.subr.mxu0 0.0
  %1283 = vmatpush2.xpose.msra.mxu0 0.0
  %1284 = vmatprep.subr.mxu0 0.0
  %1285 = vmatpush2.xpose.msra.mxu0 0.0
  %1286 = vmatprep.subr.mxu0 0.0
  %1287 = vmatpush2.xpose.msra.mxu0 0.0
  %1288 = vmatprep.subr.mxu0 0.0
  %1289 = vmatpush2.xpose.msra.mxu0 0.0
  %1290 = vmatprep.subr.mxu0 0.0
  %1291 = vmatpush2.xpose.msra.mxu0 0.0
  %1292 = vmatprep.subr.mxu0 0.0
  %1293 = vmatpush2.xpose.msra.mxu0 0.0
  %1294 = vmatprep.subr.mxu0 0.0
  %1295 = vmatpush2.xpose.msra.mxu0 0.0
  %1296 = vmatprep.subr.mxu0 0.0
  %1297 = vmatpush2.xpose.msra.mxu0 0.0
  %1298 = vmatprep.mubr.f32.mxu0 0.0
  %1299 = vmatmul.mubr.f32.gmra.mxu0 %v1230
  %v1300 = vpop.f32.mrf.mxu0
  %v1301 = vadd.f32 %v58, %v1300
  %v1302 = vpop.f32.mrf.mxu0
  %1303 = vdwg.mxu0
  %v1304 = vsel %vm162, %v1223, -inf
  %1305 = vmax.xlane.f32.xlu0 %v1304
  %v1306 = vpop.xlane.xlu0 %1305
  %v1307 = vsel %vm162, %v1301, -inf
  %1308 = vmax.xlane.f32.xlu0 %v1307
  %v1309 = vpop.xlane.xlu0 %1308
  %v1310 = vsub.f32 %v1223, %v1306
  %v1311 = vsub.f32 %v1301, %v1309
  %v1312 = vmul.f32 %v1310, 1.442695
  %v1313 = vpow.pop %v1312
  %v1314 = vmul.f32 %v1311, 1.442695
  %v1315 = vpow.pop %v1314
  %v1316 = vsel %vm162, %v1313, 0.0
  %1317 = vadd.xlane.f32.xlu0 %v1316
  %v1318 = vpop.xlane.xlu0 %1317
  %v1319 = vsel %vm162, %v1315, 0.0
  %1320 = vadd.xlane.f32.xlu0 %v1319
  %v1321 = vpop.xlane.xlu0 %1320
  %v1322 = vrcp.pop %v1318
  %v1323 = vrcp.pop %v1321
  %v1324 = vmul.f32 %v1313, %v1322
  %v1325 = vmul.f32 %v1315, %v1323
  %1326 = vrot.lane.b32.xlu0 %v151, 40
  %v1327 = vpop.permute.xlu0 %1326
  %v1330 = vsel %vm162, %v1324, 0
  %1332 = vmatprep.subr.mxu0 0.0
  %1333 = vmatpush1.msra.mxu0 0.0
  %1334 = vmatprep.subr.mxu0 0.0
  %1335 = vmatpush1.msra.mxu0 0.0
  %1336 = vmatprep.subr.mxu0 0.0
  %1337 = vmatpush1.msra.mxu0 0.0
  %1338 = vmatprep.subr.mxu0 0.0
  %1339 = vmatpush1.msra.mxu0 0.0
  %1340 = vmatprep.subr.mxu0 0.0
  %1341 = vmatpush1.msra.mxu0 0.0
  %1342 = vmatprep.subr.mxu0 0.0
  %1343 = vmatpush1.msra.mxu0 0.0
  %1344 = vmatprep.subr.mxu0 0.0
  %1345 = vmatpush1.msra.mxu0 0.0
  %1346 = vmatprep.subr.mxu0 0.0
  %1347 = vmatpush1.msra.mxu0 0.0
  %1348 = vmatprep.subr.mxu0 0.0
  %1349 = vmatpush1.msra.mxu0 0.0
  %1350 = vmatprep.subr.mxu0 0.0
  %1351 = vmatpush1.msra.mxu0 0.0
  %1352 = vmatprep.subr.mxu0 0.0
  %1353 = vmatpush1.msra.mxu0 0.0
  %1354 = vmatprep.subr.mxu0 0.0
  %1355 = vmatpush1.msra.mxu0 0.0
  %1356 = vmatprep.subr.mxu0 0.0
  %1357 = vmatpush1.msra.mxu0 0.0
  %1358 = vmatprep.subr.mxu0 0.0
  %1359 = vmatpush1.msra.mxu0 0.0
  %1360 = vmatprep.subr.mxu0 0.0
  %1361 = vmatpush1.msra.mxu0 0.0
  %1362 = vmatprep.subr.mxu0 0.0
  %1363 = vmatpush1.msra.mxu0 %v1327
  %1364 = vmatprep.subr.mxu0 0.0
  %1365 = vmatpush2.msra.mxu0 0.0
  %1366 = vmatprep.subr.mxu0 0.0
  %1367 = vmatpush2.msra.mxu0 0.0
  %1368 = vmatprep.subr.mxu0 0.0
  %1369 = vmatpush2.msra.mxu0 0.0
  %1370 = vmatprep.subr.mxu0 0.0
  %1371 = vmatpush2.msra.mxu0 0.0
  %1372 = vmatprep.subr.mxu0 0.0
  %1373 = vmatpush2.msra.mxu0 0.0
  %1374 = vmatprep.subr.mxu0 0.0
  %1375 = vmatpush2.msra.mxu0 0.0
  %1376 = vmatprep.subr.mxu0 0.0
  %1377 = vmatpush2.msra.mxu0 0.0
  %1378 = vmatprep.subr.mxu0 0.0
  %1379 = vmatpush2.msra.mxu0 0.0
  %1380 = vmatprep.subr.mxu0 0.0
  %1381 = vmatpush2.msra.mxu0 0.0
  %1382 = vmatprep.subr.mxu0 0.0
  %1383 = vmatpush2.msra.mxu0 0.0
  %1384 = vmatprep.subr.mxu0 0.0
  %1385 = vmatpush2.msra.mxu0 0.0
  %1386 = vmatprep.subr.mxu0 0.0
  %1387 = vmatpush2.msra.mxu0 0.0
  %1388 = vmatprep.subr.mxu0 0.0
  %1389 = vmatpush2.msra.mxu0 0.0
  %1390 = vmatprep.subr.mxu0 0.0
  %1391 = vmatpush2.msra.mxu0 0.0
  %1392 = vmatprep.subr.mxu0 0.0
  %1393 = vmatpush2.msra.mxu0 0.0
  %1394 = vmatprep.subr.mxu0 0.0
  %1395 = vmatpush2.msra.mxu0 0.0
  %1396 = vmatprep.mubr.f32.mxu0 0.0
  %1397 = vmatmul.mubr.f32.gmra.mxu0 %v1330
  %v1398 = vpop.f32.mrf.mxu0
  %v1399 = vadd.f32 0.0, %v1398
  %v1400 = vpop.f32.mrf.mxu0
  %1401 = vdwg.mxu0
  %1402 = vrot.lane.b32.xlu0 %v156, 40
  %v1403 = vpop.permute.xlu0 %1402
  %v1406 = vsel %vm162, %v1325, 0
  %1408 = vmatprep.subr.mxu0 0.0
  %1409 = vmatpush1.msra.mxu0 0.0
  %1410 = vmatprep.subr.mxu0 0.0
  %1411 = vmatpush1.msra.mxu0 0.0
  %1412 = vmatprep.subr.mxu0 0.0
  %1413 = vmatpush1.msra.mxu0 0.0
  %1414 = vmatprep.subr.mxu0 0.0
  %1415 = vmatpush1.msra.mxu0 0.0
  %1416 = vmatprep.subr.mxu0 0.0
  %1417 = vmatpush1.msra.mxu0 0.0
  %1418 = vmatprep.subr.mxu0 0.0
  %1419 = vmatpush1.msra.mxu0 0.0
  %1420 = vmatprep.subr.mxu0 0.0
  %1421 = vmatpush1.msra.mxu0 0.0
  %1422 = vmatprep.subr.mxu0 0.0
  %1423 = vmatpush1.msra.mxu0 0.0
  %1424 = vmatprep.subr.mxu0 0.0
  %1425 = vmatpush1.msra.mxu0 0.0
  %1426 = vmatprep.subr.mxu0 0.0
  %1427 = vmatpush1.msra.mxu0 0.0
  %1428 = vmatprep.subr.mxu0 0.0
  %1429 = vmatpush1.msra.mxu0 0.0
  %1430 = vmatprep.subr.mxu0 0.0
  %1431 = vmatpush1.msra.mxu0 0.0
  %1432 = vmatprep.subr.mxu0 0.0
  %1433 = vmatpush1.msra.mxu0 0.0
  %1434 = vmatprep.subr.mxu0 0.0
  %1435 = vmatpush1.msra.mxu0 0.0
  %1436 = vmatprep.subr.mxu0 0.0
  %1437 = vmatpush1.msra.mxu0 0.0
  %1438 = vmatprep.subr.mxu0 0.0
  %1439 = vmatpush1.msra.mxu0 %v1403
  %1440 = vmatprep.subr.mxu0 0.0
  %1441 = vmatpush2.msra.mxu0 0.0
  %1442 = vmatprep.subr.mxu0 0.0
  %1443 = vmatpush2.msra.mxu0 0.0
  %1444 = vmatprep.subr.mxu0 0.0
  %1445 = vmatpush2.msra.mxu0 0.0
  %1446 = vmatprep.subr.mxu0 0.0
  %1447 = vmatpush2.msra.mxu0 0.0
  %1448 = vmatprep.subr.mxu0 0.0
  %1449 = vmatpush2.msra.mxu0 0.0
  %1450 = vmatprep.subr.mxu0 0.0
  %1451 = vmatpush2.msra.mxu0 0.0
  %1452 = vmatprep.subr.mxu0 0.0
  %1453 = vmatpush2.msra.mxu0 0.0
  %1454 = vmatprep.subr.mxu0 0.0
  %1455 = vmatpush2.msra.mxu0 0.0
  %1456 = vmatprep.subr.mxu0 0.0
  %1457 = vmatpush2.msra.mxu0 0.0
  %1458 = vmatprep.subr.mxu0 0.0
  %1459 = vmatpush2.msra.mxu0 0.0
  %1460 = vmatprep.subr.mxu0 0.0
  %1461 = vmatpush2.msra.mxu0 0.0
  %1462 = vmatprep.subr.mxu0 0.0
  %1463 = vmatpush2.msra.mxu0 0.0
  %1464 = vmatprep.subr.mxu0 0.0
  %1465 = vmatpush2.msra.mxu0 0.0
  %1466 = vmatprep.subr.mxu0 0.0
  %1467 = vmatpush2.msra.mxu0 0.0
  %1468 = vmatprep.subr.mxu0 0.0
  %1469 = vmatpush2.msra.mxu0 0.0
  %1470 = vmatprep.subr.mxu0 0.0
  %1471 = vmatpush2.msra.mxu0 0.0
  %1472 = vmatprep.mubr.f32.mxu0 0.0
  %1473 = vmatmul.mubr.f32.gmra.mxu0 %v1406
  %v1474 = vpop.f32.mrf.mxu0
  %v1475 = vadd.f32 0.0, %v1474
  %v1476 = vpop.f32.mrf.mxu0
  %1477 = vdwg.mxu0
  %1480 = vrot.lane.b32.xlu0 %v739, 8
  %v1481 = vpop.permute.xlu0 %1480
  %1482 = vrot.lane.b32.xlu0 %v815, 8
  %v1483 = vpop.permute.xlu0 %1482
  %1488 = vrot.lane.b32.xlu0 %v1069, 16
  %v1489 = vpop.permute.xlu0 %1488
  %1490 = vrot.lane.b32.xlu0 %v1145, 16
  %v1491 = vpop.permute.xlu0 %1490
  %1496 = vrot.lane.b32.xlu0 %v1399, 24
  %v1497 = vpop.permute.xlu0 %1496
  %1498 = vrot.lane.b32.xlu0 %v1475, 24
  %v1499 = vpop.permute.xlu0 %1498
  %v1502 = vsel %vm162, %v409, %v1481
  %v1503 = vsel %vm162, %v485, %v1483
  %vm1504 = vcmask 130048
  %v1505 = vsel %vm1504, %v1502, %v1489
  %v1506 = vsel %vm1504, %v1503, %v1491
  %vm1507 = vcmask 195584
  %v1508 = vsel %vm1507, %v1505, %v1497
  %v1509 = vsel %vm1507, %v1506, %v1499
  %v1511 = vlaneseq
  %v1512 = vshrl.u32 %v1511, 7
  %v1513 = vsub.s32 0, %v1512
  %v1514 = vrot.slane %v68, %v1513
  %v1517 = vsel %vm77, %v1508, 0
  %v1520 = vsel %vm77, %v1509, 0
  %1522 = vmatprep.subr.mxu0 0.0
  %1523 = vmatpush1.msra.mxu0 0.0
  %1524 = vmatprep.subr.mxu0 0.0
  %1525 = vmatpush1.msra.mxu0 0.0
  %1526 = vmatprep.subr.mxu0 0.0
  %1527 = vmatpush1.msra.mxu0 0.0
  %1528 = vmatprep.subr.mxu0 0.0
  %1529 = vmatpush1.msra.mxu0 0.0
  %1530 = vmatprep.subr.mxu0 0.0
  %1531 = vmatpush1.msra.mxu0 0.0
  %1532 = vmatprep.subr.mxu0 0.0
  %1533 = vmatpush1.msra.mxu0 0.0
  %1534 = vmatprep.subr.mxu0 0.0
  %1535 = vmatpush1.msra.mxu0 0.0
  %1536 = vmatprep.subr.mxu0 0.0
  %1537 = vmatpush1.msra.mxu0 0.0
  %1538 = vmatprep.subr.mxu0 0.0
  %1539 = vmatpush1.msra.mxu0 0.0
  %1540 = vmatprep.subr.mxu0 0.0
  %1541 = vmatpush1.msra.mxu0 0.0
  %1542 = vmatprep.subr.mxu0 0.0
  %1543 = vmatpush1.msra.mxu0 0.0
  %1544 = vmatprep.subr.mxu0 0.0
  %1545 = vmatpush1.msra.mxu0 0.0
  %1546 = vmatprep.subr.mxu0 0.0
  %1547 = vmatpush1.msra.mxu0 %v67
  %1548 = vmatprep.subr.mxu0 0.0
  %1549 = vmatpush1.msra.mxu0 %v66
  %1550 = vmatprep.subr.mxu0 0.0
  %1551 = vmatpush1.msra.mxu0 %v65
  %1552 = vmatprep.subr.mxu0 0.0
  %1553 = vmatpush1.msra.mxu0 %v64
  %1554 = vmatprep.subr.mxu0 0.0
  %1555 = vmatpush2.msra.mxu0 0.0
  %1556 = vmatprep.subr.mxu0 0.0
  %1557 = vmatpush2.msra.mxu0 0.0
  %1558 = vmatprep.subr.mxu0 0.0
  %1559 = vmatpush2.msra.mxu0 0.0
  %1560 = vmatprep.subr.mxu0 0.0
  %1561 = vmatpush2.msra.mxu0 0.0
  %1562 = vmatprep.subr.mxu0 0.0
  %1563 = vmatpush2.msra.mxu0 0.0
  %1564 = vmatprep.subr.mxu0 0.0
  %1565 = vmatpush2.msra.mxu0 0.0
  %1566 = vmatprep.subr.mxu0 0.0
  %1567 = vmatpush2.msra.mxu0 0.0
  %1568 = vmatprep.subr.mxu0 0.0
  %1569 = vmatpush2.msra.mxu0 0.0
  %1570 = vmatprep.subr.mxu0 0.0
  %1571 = vmatpush2.msra.mxu0 0.0
  %1572 = vmatprep.subr.mxu0 0.0
  %1573 = vmatpush2.msra.mxu0 0.0
  %1574 = vmatprep.subr.mxu0 0.0
  %1575 = vmatpush2.msra.mxu0 0.0
  %1576 = vmatprep.subr.mxu0 0.0
  %1577 = vmatpush2.msra.mxu0 0.0
  %1578 = vmatprep.subr.mxu0 0.0
  %1579 = vmatpush2.msra.mxu0 0.0
  %1580 = vmatprep.subr.mxu0 0.0
  %1581 = vmatpush2.msra.mxu0 0.0
  %1582 = vmatprep.subr.mxu0 0.0
  %1583 = vmatpush2.msra.mxu0 0.0
  %1584 = vmatprep.subr.mxu0 0.0
  %1585 = vmatpush2.msra.mxu0 0.0
  %1586 = vmatprep.mubr.f32.mxu0 0.0
  %1587 = vmatmul.mubr.f32.gmra.mxu0 %v1517
  %v1588 = vpop.f32.mrf.mxu0
  %v1589 = vadd.f32 %v1514, %v1588
  %v1590 = vpop.f32.mrf.mxu0
  %1591 = vmatprep.mubr.f32.mxu0 0.0
  %1592 = vmatmul.mubr.f32.gmra.mxu0 %v1520
  %v1593 = vpop.f32.mrf.mxu0
  %v1594 = vadd.f32 %v1514, %v1593
  %v1595 = vpop.f32.mrf.mxu0
  %1596 = vdwg.mxu0
  %v1597 = vadd.f32 %v53, %v1589
  %v1598 = vadd.f32 %v54, %v1594
  %v1599 = vsel %vm77, %v1597, 0.0
  %1600 = vadd.xlane.f32.xlu0 %v1599
  %v1601 = vpop.xlane.xlu0 %1600
  %v1602 = vsel %vm77, %v1598, 0.0
  %1603 = vadd.xlane.f32.xlu0 %v1602
  %v1604 = vpop.xlane.xlu0 %1603
  %v1605 = vrcp.pop 32.0
  %v1606 = vmul.f32 %v1601, %v1605
  %v1607 = vmul.f32 %v1604, %v1605
  %v1608 = vsub.f32 %v1597, %v1606
  %v1609 = vsub.f32 %v1598, %v1607
  %v1610 = vmul.f32 %v1608, %v1608
  %v1611 = vmul.f32 %v1609, %v1609
  %v1612 = vsel %vm77, %v1610, 0.0
  %1613 = vadd.xlane.f32.xlu0 %v1612
  %v1614 = vpop.xlane.xlu0 %1613
  %v1615 = vsel %vm77, %v1611, 0.0
  %1616 = vadd.xlane.f32.xlu0 %v1615
  %v1617 = vpop.xlane.xlu0 %1616
  %v1618 = vmul.f32 %v1614, %v1605
  %v1619 = vmul.f32 %v1617, %v1605
  %v1620 = vadd.f32 %v1618, 1e-05
  %v1621 = vadd.f32 %v1619, 1e-05
  %v1622 = vrsqrt.pop %v1620
  %v1623 = vrsqrt.pop %v1621
  %v1624 = vmul.f32 %v1608, %v1622
  %v1625 = vmul.f32 %v1609, %v1623
  %v1627 = vlaneseq
  %v1628 = vshrl.u32 %v1627, 7
  %v1629 = vsub.s32 0, %v1628
  %v1630 = vrot.slane %v69, %v1629
  %v1632 = vmul.f32 %v1624, %v1630
  %v1633 = vmul.f32 %v1625, %v1630
  %v1635 = vlaneseq
  %v1636 = vshrl.u32 %v1635, 7
  %v1637 = vsub.s32 0, %v1636
  %v1638 = vrot.slane %v70, %v1637
  %v1640 = vadd.f32 %v1632, %v1638
  %v1641 = vadd.f32 %v1633, %v1638
  %1646 = vrot.lane.b32.xlu0 %v59, 96
  %v1647 = vpop.permute.xlu0 %1646
  %1648 = vrot.lane.b32.xlu0 %v60, 96
  %v1649 = vpop.permute.xlu0 %1648
  %1650 = vrot.lane.b32.xlu0 %v61, 96
  %v1651 = vpop.permute.xlu0 %1650
  %1652 = vrot.lane.b32.xlu0 %v62, 96
  %v1653 = vpop.permute.xlu0 %1652
  %1658 = vrot.lane.b32.xlu0 %v75, 96
  %v1659 = vpop.permute.xlu0 %1658
  %v1662 = vsel %vm77, %v55, 0
  %v1665 = vsel %vm77, %v56, 0
  %1667 = vmatprep.subr.mxu0 0.0
  %1668 = vmatpush1.msra.mxu0 0.0
  %1669 = vmatprep.subr.mxu0 0.0
  %1670 = vmatpush1.msra.mxu0 0.0
  %1671 = vmatprep.subr.mxu0 0.0
  %1672 = vmatpush1.msra.mxu0 0.0
  %1673 = vmatprep.subr.mxu0 0.0
  %1674 = vmatpush1.msra.mxu0 0.0
  %1675 = vmatprep.subr.mxu0 0.0
  %1676 = vmatpush1.msra.mxu0 0.0
  %1677 = vmatprep.subr.mxu0 0.0
  %1678 = vmatpush1.msra.mxu0 0.0
  %1679 = vmatprep.subr.mxu0 0.0
  %1680 = vmatpush1.msra.mxu0 0.0
  %1681 = vmatprep.subr.mxu0 0.0
  %1682 = vmatpush1.msra.mxu0 0.0
  %1683 = vmatprep.subr.mxu0 0.0
  %1684 = vmatpush1.msra.mxu0 0.0
  %1685 = vmatprep.subr.mxu0 0.0
  %1686 = vmatpush1.msra.mxu0 0.0
  %1687 = vmatprep.subr.mxu0 0.0
  %1688 = vmatpush1.msra.mxu0 0.0
  %1689 = vmatprep.subr.mxu0 0.0
  %1690 = vmatpush1.msra.mxu0 0.0
  %1691 = vmatprep.subr.mxu0 0.0
  %1692 = vmatpush1.msra.mxu0 %v1653
  %1693 = vmatprep.subr.mxu0 0.0
  %1694 = vmatpush1.msra.mxu0 %v1651
  %1695 = vmatprep.subr.mxu0 0.0
  %1696 = vmatpush1.msra.mxu0 %v1649
  %1697 = vmatprep.subr.mxu0 0.0
  %1698 = vmatpush1.msra.mxu0 %v1647
  %1699 = vmatprep.subr.mxu0 0.0
  %1700 = vmatpush2.msra.mxu0 0.0
  %1701 = vmatprep.subr.mxu0 0.0
  %1702 = vmatpush2.msra.mxu0 0.0
  %1703 = vmatprep.subr.mxu0 0.0
  %1704 = vmatpush2.msra.mxu0 0.0
  %1705 = vmatprep.subr.mxu0 0.0
  %1706 = vmatpush2.msra.mxu0 0.0
  %1707 = vmatprep.subr.mxu0 0.0
  %1708 = vmatpush2.msra.mxu0 0.0
  %1709 = vmatprep.subr.mxu0 0.0
  %1710 = vmatpush2.msra.mxu0 0.0
  %1711 = vmatprep.subr.mxu0 0.0
  %1712 = vmatpush2.msra.mxu0 0.0
  %1713 = vmatprep.subr.mxu0 0.0
  %1714 = vmatpush2.msra.mxu0 0.0
  %1715 = vmatprep.subr.mxu0 0.0
  %1716 = vmatpush2.msra.mxu0 0.0
  %1717 = vmatprep.subr.mxu0 0.0
  %1718 = vmatpush2.msra.mxu0 0.0
  %1719 = vmatprep.subr.mxu0 0.0
  %1720 = vmatpush2.msra.mxu0 0.0
  %1721 = vmatprep.subr.mxu0 0.0
  %1722 = vmatpush2.msra.mxu0 0.0
  %1723 = vmatprep.subr.mxu0 0.0
  %1724 = vmatpush2.msra.mxu0 0.0
  %1725 = vmatprep.subr.mxu0 0.0
  %1726 = vmatpush2.msra.mxu0 0.0
  %1727 = vmatprep.subr.mxu0 0.0
  %1728 = vmatpush2.msra.mxu0 0.0
  %1729 = vmatprep.subr.mxu0 0.0
  %1730 = vmatpush2.msra.mxu0 0.0
  %1731 = vmatprep.mubr.f32.mxu0 0.0
  %1732 = vmatmul.mubr.f32.gmra.mxu0 %v1662
  %v1733 = vpop.f32.mrf.mxu0
  %v1734 = vadd.f32 %v1659, %v1733
  %v1735 = vpop.f32.mrf.mxu0
  %1736 = vmatprep.mubr.f32.mxu0 0.0
  %1737 = vmatmul.mubr.f32.gmra.mxu0 %v1665
  %v1738 = vpop.f32.mrf.mxu0
  %v1739 = vadd.f32 %v1659, %v1738
  %v1740 = vpop.f32.mrf.mxu0
  %1741 = vdwg.mxu0
  %v1743 = vsel %vm77, %v1640, 0
  %v1746 = vsel %vm77, %v1641, 0
  %1748 = vmatprep.subr.mxu0 0.0
  %1749 = vmatpush1.msra.mxu0 0.0
  %1750 = vmatprep.subr.mxu0 0.0
  %1751 = vmatpush1.msra.mxu0 0.0
  %1752 = vmatprep.subr.mxu0 0.0
  %1753 = vmatpush1.msra.mxu0 0.0
  %1754 = vmatprep.subr.mxu0 0.0
  %1755 = vmatpush1.msra.mxu0 0.0
  %1756 = vmatprep.subr.mxu0 0.0
  %1757 = vmatpush1.msra.mxu0 0.0
  %1758 = vmatprep.subr.mxu0 0.0
  %1759 = vmatpush1.msra.mxu0 0.0
  %1760 = vmatprep.subr.mxu0 0.0
  %1761 = vmatpush1.msra.mxu0 0.0
  %1762 = vmatprep.subr.mxu0 0.0
  %1763 = vmatpush1.msra.mxu0 0.0
  %1764 = vmatprep.subr.mxu0 0.0
  %1765 = vmatpush1.msra.mxu0 0.0
  %1766 = vmatprep.subr.mxu0 0.0
  %1767 = vmatpush1.msra.mxu0 0.0
  %1768 = vmatprep.subr.mxu0 0.0
  %1769 = vmatpush1.msra.mxu0 0.0
  %1770 = vmatprep.subr.mxu0 0.0
  %1771 = vmatpush1.msra.mxu0 0.0
  %1772 = vmatprep.subr.mxu0 0.0
  %1773 = vmatpush1.msra.mxu0 %v62
  %1774 = vmatprep.subr.mxu0 0.0
  %1775 = vmatpush1.msra.mxu0 %v61
  %1776 = vmatprep.subr.mxu0 0.0
  %1777 = vmatpush1.msra.mxu0 %v60
  %1778 = vmatprep.subr.mxu0 0.0
  %1779 = vmatpush1.msra.mxu0 %v59
  %1780 = vmatprep.subr.mxu0 0.0
  %1781 = vmatpush2.msra.mxu0 0.0
  %1782 = vmatprep.subr.mxu0 0.0
  %1783 = vmatpush2.msra.mxu0 0.0
  %1784 = vmatprep.subr.mxu0 0.0
  %1785 = vmatpush2.msra.mxu0 0.0
  %1786 = vmatprep.subr.mxu0 0.0
  %1787 = vmatpush2.msra.mxu0 0.0
  %1788 = vmatprep.subr.mxu0 0.0
  %1789 = vmatpush2.msra.mxu0 0.0
  %1790 = vmatprep.subr.mxu0 0.0
  %1791 = vmatpush2.msra.mxu0 0.0
  %1792 = vmatprep.subr.mxu0 0.0
  %1793 = vmatpush2.msra.mxu0 0.0
  %1794 = vmatprep.subr.mxu0 0.0
  %1795 = vmatpush2.msra.mxu0 0.0
  %1796 = vmatprep.subr.mxu0 0.0
  %1797 = vmatpush2.msra.mxu0 0.0
  %1798 = vmatprep.subr.mxu0 0.0
  %1799 = vmatpush2.msra.mxu0 0.0
  %1800 = vmatprep.subr.mxu0 0.0
  %1801 = vmatpush2.msra.mxu0 0.0
  %1802 = vmatprep.subr.mxu0 0.0
  %1803 = vmatpush2.msra.mxu0 0.0
  %1804 = vmatprep.subr.mxu0 0.0
  %1805 = vmatpush2.msra.mxu0 0.0
  %1806 = vmatprep.subr.mxu0 0.0
  %1807 = vmatpush2.msra.mxu0 0.0
  %1808 = vmatprep.subr.mxu0 0.0
  %1809 = vmatpush2.msra.mxu0 0.0
  %1810 = vmatprep.subr.mxu0 0.0
  %1811 = vmatpush2.msra.mxu0 0.0
  %1812 = vmatprep.mubr.f32.mxu0 0.0
  %1813 = vmatmul.mubr.f32.gmra.mxu0 %v1743
  %v1814 = vpop.f32.mrf.mxu0
  %v1815 = vadd.f32 %v75, %v1814
  %v1816 = vpop.f32.mrf.mxu0
  %1817 = vmatprep.mubr.f32.mxu0 0.0
  %1818 = vmatmul.mubr.f32.gmra.mxu0 %v1746
  %v1819 = vpop.f32.mrf.mxu0
  %v1820 = vadd.f32 %v75, %v1819
  %v1821 = vpop.f32.mrf.mxu0
  %1822 = vdwg.mxu0
  %v1824 = vsel %vm162, %v1815, 0
  %v1827 = vsel %vm162, %v1734, 0
  %1829 = vmatprep.subr.mxu0 0.0
  %1830 = vmatpush1.xpose.msra.mxu0 0.0
  %1831 = vmatprep.subr.mxu0 0.0
  %1832 = vmatpush1.xpose.msra.mxu0 0.0
  %1833 = vmatprep.subr.mxu0 0.0
  %1834 = vmatpush1.xpose.msra.mxu0 0.0
  %1835 = vmatprep.subr.mxu0 0.0
  %1836 = vmatpush1.xpose.msra.mxu0 0.0
  %1837 = vmatprep.subr.mxu0 0.0
  %1838 = vmatpush1.xpose.msra.mxu0 0.0
  %1839 = vmatprep.subr.mxu0 0.0
  %1840 = vmatpush1.xpose.msra.mxu0 0.0
  %1841 = vmatprep.subr.mxu0 0.0
  %1842 = vmatpush1.xpose.msra.mxu0 0.0
  %1843 = vmatprep.subr.mxu0 0.0
  %1844 = vmatpush1.xpose.msra.mxu0 0.0
  %1845 = vmatprep.subr.mxu0 0.0
  %1846 = vmatpush1.xpose.msra.mxu0 0.0
  %1847 = vmatprep.subr.mxu0 0.0
  %1848 = vmatpush1.xpose.msra.mxu0 0.0
  %1849 = vmatprep.subr.mxu0 0.0
  %1850 = vmatpush1.xpose.msra.mxu0 0.0
  %1851 = vmatprep.subr.mxu0 0.0
  %1852 = vmatpush1.xpose.msra.mxu0 0.0
  %1853 = vmatprep.subr.mxu0 0.0
  %1854 = vmatpush1.xpose.msra.mxu0 0.0
  %1855 = vmatprep.subr.mxu0 0.0
  %1856 = vmatpush1.xpose.msra.mxu0 0.0
  %1857 = vmatprep.subr.mxu0 0.0
  %1858 = vmatpush1.xpose.msra.mxu0 0.0
  %1859 = vmatprep.subr.mxu0 0.0
  %1860 = vmatpush1.xpose.msra.mxu0 %v1827
  %1861 = vmatprep.subr.mxu0 0.0
  %1862 = vmatpush2.xpose.msra.mxu0 0.0
  %1863 = vmatprep.subr.mxu0 0.0
  %1864 = vmatpush2.xpose.msra.mxu0 0.0
  %1865 = vmatprep.subr.mxu0 0.0
  %1866 = vmatpush2.xpose.msra.mxu0 0.0
  %1867 = vmatprep.subr.mxu0 0.0
  %1868 = vmatpush2.xpose.msra.mxu0 0.0
  %1869 = vmatprep.subr.mxu0 0.0
  %1870 = vmatpush2.xpose.msra.mxu0 0.0
  %1871 = vmatprep.subr.mxu0 0.0
  %1872 = vmatpush2.xpose.msra.mxu0 0.0
  %1873 = vmatprep.subr.mxu0 0.0
  %1874 = vmatpush2.xpose.msra.mxu0 0.0
  %1875 = vmatprep.subr.mxu0 0.0
  %1876 = vmatpush2.xpose.msra.mxu0 0.0
  %1877 = vmatprep.subr.mxu0 0.0
  %1878 = vmatpush2.xpose.msra.mxu0 0.0
  %1879 = vmatprep.subr.mxu0 0.0
  %1880 = vmatpush2.xpose.msra.mxu0 0.0
  %1881 = vmatprep.subr.mxu0 0.0
  %1882 = vmatpush2.xpose.msra.mxu0 0.0
  %1883 = vmatprep.subr.mxu0 0.0
  %1884 = vmatpush2.xpose.msra.mxu0 0.0
  %1885 = vmatprep.subr.mxu0 0.0
  %1886 = vmatpush2.xpose.msra.mxu0 0.0
  %1887 = vmatprep.subr.mxu0 0.0
  %1888 = vmatpush2.xpose.msra.mxu0 0.0
  %1889 = vmatprep.subr.mxu0 0.0
  %1890 = vmatpush2.xpose.msra.mxu0 0.0
  %1891 = vmatprep.subr.mxu0 0.0
  %1892 = vmatpush2.xpose.msra.mxu0 0.0
  %1893 = vmatprep.mubr.f32.mxu0 0.0
  %1894 = vmatmul.mubr.f32.gmra.mxu0 %v1824
  %v1895 = vpop.f32.mrf.mxu0
  %v1896 = vadd.f32 0.0, %v1895
  %v1897 = vpop.f32.mrf.mxu0
  %1898 = vdwg.mxu0
  %v1900 = vsel %vm162, %v1820, 0
  %v1903 = vsel %vm162, %v1739, 0
  %1905 = vmatprep.subr.mxu0 0.0
  %1906 = vmatpush1.xpose.msra.mxu0 0.0
  %1907 = vmatprep.subr.mxu0 0.0
  %1908 = vmatpush1.xpose.msra.mxu0 0.0
  %1909 = vmatprep.subr.mxu0 0.0
  %1910 = vmatpush1.xpose.msra.mxu0 0.0
  %1911 = vmatprep.subr.mxu0 0.0
  %1912 = vmatpush1.xpose.msra.mxu0 0.0
  %1913 = vmatprep.subr.mxu0 0.0
  %1914 = vmatpush1.xpose.msra.mxu0 0.0
  %1915 = vmatprep.subr.mxu0 0.0
  %1916 = vmatpush1.xpose.msra.mxu0 0.0
  %1917 = vmatprep.subr.mxu0 0.0
  %1918 = vmatpush1.xpose.msra.mxu0 0.0
  %1919 = vmatprep.subr.mxu0 0.0
  %1920 = vmatpush1.xpose.msra.mxu0 0.0
  %1921 = vmatprep.subr.mxu0 0.0
  %1922 = vmatpush1.xpose.msra.mxu0 0.0
  %1923 = vmatprep.subr.mxu0 0.0
  %1924 = vmatpush1.xpose.msra.mxu0 0.0
  %1925 = vmatprep.subr.mxu0 0.0
  %1926 = vmatpush1.xpose.msra.mxu0 0.0
  %1927 = vmatprep.subr.mxu0 0.0
  %1928 = vmatpush1.xpose.msra.mxu0 0.0
  %1929 = vmatprep.subr.mxu0 0.0
  %1930 = vmatpush1.xpose.msra.mxu0 0.0
  %1931 = vmatprep.subr.mxu0 0.0
  %1932 = vmatpush1.xpose.msra.mxu0 0.0
  %1933 = vmatprep.subr.mxu0 0.0
  %1934 = vmatpush1.xpose.msra.mxu0 0.0
  %1935 = vmatprep.subr.mxu0 0.0
  %1936 = vmatpush1.xpose.msra.mxu0 %v1903
  %1937 = vmatprep.subr.mxu0 0.0
  %1938 = vmatpush2.xpose.msra.mxu0 0.0
  %1939 = vmatprep.subr.mxu0 0.0
  %1940 = vmatpush2.xpose.msra.mxu0 0.0
  %1941 = vmatprep.subr.mxu0 0.0
  %1942 = vmatpush2.xpose.msra.mxu0 0.0
  %1943 = vmatprep.subr.mxu0 0.0
  %1944 = vmatpush2.xpose.msra.mxu0 0.0
  %1945 = vmatprep.subr.mxu0 0.0
  %1946 = vmatpush2.xpose.msra.mxu0 0.0
  %1947 = vmatprep.subr.mxu0 0.0
  %1948 = vmatpush2.xpose.msra.mxu0 0.0
  %1949 = vmatprep.subr.mxu0 0.0
  %1950 = vmatpush2.xpose.msra.mxu0 0.0
  %1951 = vmatprep.subr.mxu0 0.0
  %1952 = vmatpush2.xpose.msra.mxu0 0.0
  %1953 = vmatprep.subr.mxu0 0.0
  %1954 = vmatpush2.xpose.msra.mxu0 0.0
  %1955 = vmatprep.subr.mxu0 0.0
  %1956 = vmatpush2.xpose.msra.mxu0 0.0
  %1957 = vmatprep.subr.mxu0 0.0
  %1958 = vmatpush2.xpose.msra.mxu0 0.0
  %1959 = vmatprep.subr.mxu0 0.0
  %1960 = vmatpush2.xpose.msra.mxu0 0.0
  %1961 = vmatprep.subr.mxu0 0.0
  %1962 = vmatpush2.xpose.msra.mxu0 0.0
  %1963 = vmatprep.subr.mxu0 0.0
  %1964 = vmatpush2.xpose.msra.mxu0 0.0
  %1965 = vmatprep.subr.mxu0 0.0
  %1966 = vmatpush2.xpose.msra.mxu0 0.0
  %1967 = vmatprep.subr.mxu0 0.0
  %1968 = vmatpush2.xpose.msra.mxu0 0.0
  %1969 = vmatprep.mubr.f32.mxu0 0.0
  %1970 = vmatmul.mubr.f32.gmra.mxu0 %v1900
  %v1971 = vpop.f32.mrf.mxu0
  %v1972 = vadd.f32 0.0, %v1971
  %v1973 = vpop.f32.mrf.mxu0
  %1974 = vdwg.mxu0
  %v1975 = vsel %vm162, %v1896, -inf
  %1976 = vmax.xlane.f32.xlu0 %v1975
  %v1977 = vpop.xlane.xlu0 %1976
  %v1978 = vsel %vm162, %v1972, -inf
  %1979 = vmax.xlane.f32.xlu0 %v1978
  %v1980 = vpop.xlane.xlu0 %1979
  %v1981 = vsub.f32 %v1896, %v1977
  %v1982 = vsub.f32 %v1972, %v1980
  %v1983 = vmul.f32 %v1981, 1.442695
  %v1984 = vpow.pop %v1983
  %v1985 = vmul.f32 %v1982, 1.442695
  %v1986 = vpow.pop %v1985
  %v1987 = vsel %vm162, %v1984, 0.0
  %1988 = vadd.xlane.f32.xlu0 %v1987
  %v1989 = vpop.xlane.xlu0 %1988
  %v1990 = vsel %vm162, %v1986, 0.0
  %1991 = vadd.xlane.f32.xlu0 %v1990
  %v1992 = vpop.xlane.xlu0 %1991
  %v1993 = vrcp.pop %v1989
  %v1994 = vrcp.pop %v1992
  %v1995 = vmul.f32 %v1984, %v1993
  %v1996 = vmul.f32 %v1986, %v1994
  %1997 = vrot.lane.b32.xlu0 %v1734, 96
  %v1998 = vpop.permute.xlu0 %1997
  %v2001 = vsel %vm162, %v1995, 0
  %2003 = vmatprep.subr.mxu0 0.0
  %2004 = vmatpush1.msra.mxu0 0.0
  %2005 = vmatprep.subr.mxu0 0.0
  %2006 = vmatpush1.msra.mxu0 0.0
  %2007 = vmatprep.subr.mxu0 0.0
  %2008 = vmatpush1.msra.mxu0 0.0
  %2009 = vmatprep.subr.mxu0 0.0
  %2010 = vmatpush1.msra.mxu0 0.0
  %2011 = vmatprep.subr.mxu0 0.0
  %2012 = vmatpush1.msra.mxu0 0.0
  %2013 = vmatprep.subr.mxu0 0.0
  %2014 = vmatpush1.msra.mxu0 0.0
  %2015 = vmatprep.subr.mxu0 0.0
  %2016 = vmatpush1.msra.mxu0 0.0
  %2017 = vmatprep.subr.mxu0 0.0
  %2018 = vmatpush1.msra.mxu0 0.0
  %2019 = vmatprep.subr.mxu0 0.0
  %2020 = vmatpush1.msra.mxu0 0.0
  %2021 = vmatprep.subr.mxu0 0.0
  %2022 = vmatpush1.msra.mxu0 0.0
  %2023 = vmatprep.subr.mxu0 0.0
  %2024 = vmatpush1.msra.mxu0 0.0
  %2025 = vmatprep.subr.mxu0 0.0
  %2026 = vmatpush1.msra.mxu0 0.0
  %2027 = vmatprep.subr.mxu0 0.0
  %2028 = vmatpush1.msra.mxu0 0.0
  %2029 = vmatprep.subr.mxu0 0.0
  %2030 = vmatpush1.msra.mxu0 0.0
  %2031 = vmatprep.subr.mxu0 0.0
  %2032 = vmatpush1.msra.mxu0 0.0
  %2033 = vmatprep.subr.mxu0 0.0
  %2034 = vmatpush1.msra.mxu0 %v1998
  %2035 = vmatprep.subr.mxu0 0.0
  %2036 = vmatpush2.msra.mxu0 0.0
  %2037 = vmatprep.subr.mxu0 0.0
  %2038 = vmatpush2.msra.mxu0 0.0
  %2039 = vmatprep.subr.mxu0 0.0
  %2040 = vmatpush2.msra.mxu0 0.0
  %2041 = vmatprep.subr.mxu0 0.0
  %2042 = vmatpush2.msra.mxu0 0.0
  %2043 = vmatprep.subr.mxu0 0.0
  %2044 = vmatpush2.msra.mxu0 0.0
  %2045 = vmatprep.subr.mxu0 0.0
  %2046 = vmatpush2.msra.mxu0 0.0
  %2047 = vmatprep.subr.mxu0 0.0
  %2048 = vmatpush2.msra.mxu0 0.0
  %2049 = vmatprep.subr.mxu0 0.0
  %2050 = vmatpush2.msra.mxu0 0.0
  %2051 = vmatprep.subr.mxu0 0.0
  %2052 = vmatpush2.msra.mxu0 0.0
  %2053 = vmatprep.subr.mxu0 0.0
  %2054 = vmatpush2.msra.mxu0 0.0
  %2055 = vmatprep.subr.mxu0 0.0
  %2056 = vmatpush2.msra.mxu0 0.0
  %2057 = vmatprep.subr.mxu0 0.0
  %2058 = vmatpush2.msra.mxu0 0.0
  %2059 = vmatprep.subr.mxu0 0.0
  %2060 = vmatpush2.msra.mxu0 0.0
  %2061 = vmatprep.subr.mxu0 0.0
  %2062 = vmatpush2.msra.mxu0 0.0
  %2063 = vmatprep.subr.mxu0 0.0
  %2064 = vmatpush2.msra.mxu0 0.0
  %2065 = vmatprep.subr.mxu0 0.0
  %2066 = vmatpush2.msra.mxu0 0.0
  %2067 = vmatprep.mubr.f32.mxu0 0.0
  %2068 = vmatmul.mubr.f32.gmra.mxu0 %v2001
  %v2069 = vpop.f32.mrf.mxu0
  %v2070 = vadd.f32 0.0, %v2069
  %v2071 = vpop.f32.mrf.mxu0
  %2072 = vdwg.mxu0
  %2073 = vrot.lane.b32.xlu0 %v1739, 96
  %v2074 = vpop.permute.xlu0 %2073
  %v2077 = vsel %vm162, %v1996, 0
  %2079 = vmatprep.subr.mxu0 0.0
  %2080 = vmatpush1.msra.mxu0 0.0
  %2081 = vmatprep.subr.mxu0 0.0
  %2082 = vmatpush1.msra.mxu0 0.0
  %2083 = vmatprep.subr.mxu0 0.0
  %2084 = vmatpush1.msra.mxu0 0.0
  %2085 = vmatprep.subr.mxu0 0.0
  %2086 = vmatpush1.msra.mxu0 0.0
  %2087 = vmatprep.subr.mxu0 0.0
  %2088 = vmatpush1.msra.mxu0 0.0
  %2089 = vmatprep.subr.mxu0 0.0
  %2090 = vmatpush1.msra.mxu0 0.0
  %2091 = vmatprep.subr.mxu0 0.0
  %2092 = vmatpush1.msra.mxu0 0.0
  %2093 = vmatprep.subr.mxu0 0.0
  %2094 = vmatpush1.msra.mxu0 0.0
  %2095 = vmatprep.subr.mxu0 0.0
  %2096 = vmatpush1.msra.mxu0 0.0
  %2097 = vmatprep.subr.mxu0 0.0
  %2098 = vmatpush1.msra.mxu0 0.0
  %2099 = vmatprep.subr.mxu0 0.0
  %2100 = vmatpush1.msra.mxu0 0.0
  %2101 = vmatprep.subr.mxu0 0.0
  %2102 = vmatpush1.msra.mxu0 0.0
  %2103 = vmatprep.subr.mxu0 0.0
  %2104 = vmatpush1.msra.mxu0 0.0
  %2105 = vmatprep.subr.mxu0 0.0
  %2106 = vmatpush1.msra.mxu0 0.0
  %2107 = vmatprep.subr.mxu0 0.0
  %2108 = vmatpush1.msra.mxu0 0.0
  %2109 = vmatprep.subr.mxu0 0.0
  %2110 = vmatpush1.msra.mxu0 %v2074
  %2111 = vmatprep.subr.mxu0 0.0
  %2112 = vmatpush2.msra.mxu0 0.0
  %2113 = vmatprep.subr.mxu0 0.0
  %2114 = vmatpush2.msra.mxu0 0.0
  %2115 = vmatprep.subr.mxu0 0.0
  %2116 = vmatpush2.msra.mxu0 0.0
  %2117 = vmatprep.subr.mxu0 0.0
  %2118 = vmatpush2.msra.mxu0 0.0
  %2119 = vmatprep.subr.mxu0 0.0
  %2120 = vmatpush2.msra.mxu0 0.0
  %2121 = vmatprep.subr.mxu0 0.0
  %2122 = vmatpush2.msra.mxu0 0.0
  %2123 = vmatprep.subr.mxu0 0.0
  %2124 = vmatpush2.msra.mxu0 0.0
  %2125 = vmatprep.subr.mxu0 0.0
  %2126 = vmatpush2.msra.mxu0 0.0
  %2127 = vmatprep.subr.mxu0 0.0
  %2128 = vmatpush2.msra.mxu0 0.0
  %2129 = vmatprep.subr.mxu0 0.0
  %2130 = vmatpush2.msra.mxu0 0.0
  %2131 = vmatprep.subr.mxu0 0.0
  %2132 = vmatpush2.msra.mxu0 0.0
  %2133 = vmatprep.subr.mxu0 0.0
  %2134 = vmatpush2.msra.mxu0 0.0
  %2135 = vmatprep.subr.mxu0 0.0
  %2136 = vmatpush2.msra.mxu0 0.0
  %2137 = vmatprep.subr.mxu0 0.0
  %2138 = vmatpush2.msra.mxu0 0.0
  %2139 = vmatprep.subr.mxu0 0.0
  %2140 = vmatpush2.msra.mxu0 0.0
  %2141 = vmatprep.subr.mxu0 0.0
  %2142 = vmatpush2.msra.mxu0 0.0
  %2143 = vmatprep.mubr.f32.mxu0 0.0
  %2144 = vmatmul.mubr.f32.gmra.mxu0 %v2077
  %v2145 = vpop.f32.mrf.mxu0
  %v2146 = vadd.f32 0.0, %v2145
  %v2147 = vpop.f32.mrf.mxu0
  %2148 = vdwg.mxu0
  %2149 = vrot.lane.b32.xlu0 %v1815, 120
  %v2150 = vpop.permute.xlu0 %2149
  %2151 = vrot.lane.b32.xlu0 %v1734, 120
  %v2152 = vpop.permute.xlu0 %2151
  %v2153 = vsel %vm162, %v2150, 0
  %v2155 = vsel %vm162, %v2152, 0
  %2157 = vmatprep.subr.mxu0 0.0
  %2158 = vmatpush1.xpose.msra.mxu0 0.0
  %2159 = vmatprep.subr.mxu0 0.0
  %2160 = vmatpush1.xpose.msra.mxu0 0.0
  %2161 = vmatprep.subr.mxu0 0.0
  %2162 = vmatpush1.xpose.msra.mxu0 0.0
  %2163 = vmatprep.subr.mxu0 0.0
  %2164 = vmatpush1.xpose.msra.mxu0 0.0
  %2165 = vmatprep.subr.mxu0 0.0
  %2166 = vmatpush1.xpose.msra.mxu0 0.0
  %2167 = vmatprep.subr.mxu0 0.0
  %2168 = vmatpush1.xpose.msra.mxu0 0.0
  %2169 = vmatprep.subr.mxu0 0.0
  %2170 = vmatpush1.xpose.msra.mxu0 0.0
  %2171 = vmatprep.subr.mxu0 0.0
  %2172 = vmatpush1.xpose.msra.mxu0 0.0
  %2173 = vmatprep.subr.mxu0 0.0
  %2174 = vmatpush1.xpose.msra.mxu0 0.0
  %2175 = vmatprep.subr.mxu0 0.0
  %2176 = vmatpush1.xpose.msra.mxu0 0.0
  %2177 = vmatprep.subr.mxu0 0.0
  %2178 = vmatpush1.xpose.msra.mxu0 0.0
  %2179 = vmatprep.subr.mxu0 0.0
  %2180 = vmatpush1.xpose.msra.mxu0 0.0
  %2181 = vmatprep.subr.mxu0 0.0
  %2182 = vmatpush1.xpose.msra.mxu0 0.0
  %2183 = vmatprep.subr.mxu0 0.0
  %2184 = vmatpush1.xpose.msra.mxu0 0.0
  %2185 = vmatprep.subr.mxu0 0.0
  %2186 = vmatpush1.xpose.msra.mxu0 0.0
  %2187 = vmatprep.subr.mxu0 0.0
  %2188 = vmatpush1.xpose.msra.mxu0 %v2155
  %2189 = vmatprep.subr.mxu0 0.0
  %2190 = vmatpush2.xpose.msra.mxu0 0.0
  %2191 = vmatprep.subr.mxu0 0.0
  %2192 = vmatpush2.xpose.msra.mxu0 0.0
  %2193 = vmatprep.subr.mxu0 0.0
  %2194 = vmatpush2.xpose.msra.mxu0 0.0
  %2195 = vmatprep.subr.mxu0 0.0
  %2196 = vmatpush2.xpose.msra.mxu0 0.0
  %2197 = vmatprep.subr.mxu0 0.0
  %2198 = vmatpush2.xpose.msra.mxu0 0.0
  %2199 = vmatprep.subr.mxu0 0.0
  %2200 = vmatpush2.xpose.msra.mxu0 0.0
  %2201 = vmatprep.subr.mxu0 0.0
  %2202 = vmatpush2.xpose.msra.mxu0 0.0
  %2203 = vmatprep.subr.mxu0 0.0
  %2204 = vmatpush2.xpose.msra.mxu0 0.0
  %2205 = vmatprep.subr.mxu0 0.0
  %2206 = vmatpush2.xpose.msra.mxu0 0.0
  %2207 = vmatprep.subr.mxu0 0.0
  %2208 = vmatpush2.xpose.msra.mxu0 0.0
  %2209 = vmatprep.subr.mxu0 0.0
  %2210 = vmatpush2.xpose.msra.mxu0 0.0
  %2211 = vmatprep.subr.mxu0 0.0
  %2212 = vmatpush2.xpose.msra.mxu0 0.0
  %2213 = vmatprep.subr.mxu0 0.0
  %2214 = vmatpush2.xpose.msra.mxu0 0.0
  %2215 = vmatprep.subr.mxu0 0.0
  %2216 = vmatpush2.xpose.msra.mxu0 0.0
  %2217 = vmatprep.subr.mxu0 0.0
  %2218 = vmatpush2.xpose.msra.mxu0 0.0
  %2219 = vmatprep.subr.mxu0 0.0
  %2220 = vmatpush2.xpose.msra.mxu0 0.0
  %2221 = vmatprep.mubr.f32.mxu0 0.0
  %2222 = vmatmul.mubr.f32.gmra.mxu0 %v2153
  %v2223 = vpop.f32.mrf.mxu0
  %v2224 = vadd.f32 0.0, %v2223
  %v2225 = vpop.f32.mrf.mxu0
  %2226 = vdwg.mxu0
  %2227 = vrot.lane.b32.xlu0 %v1820, 120
  %v2228 = vpop.permute.xlu0 %2227
  %2229 = vrot.lane.b32.xlu0 %v1739, 120
  %v2230 = vpop.permute.xlu0 %2229
  %v2231 = vsel %vm162, %v2228, 0
  %v2233 = vsel %vm162, %v2230, 0
  %2235 = vmatprep.subr.mxu0 0.0
  %2236 = vmatpush1.xpose.msra.mxu0 0.0
  %2237 = vmatprep.subr.mxu0 0.0
  %2238 = vmatpush1.xpose.msra.mxu0 0.0
  %2239 = vmatprep.subr.mxu0 0.0
  %2240 = vmatpush1.xpose.msra.mxu0 0.0
  %2241 = vmatprep.subr.mxu0 0.0
  %2242 = vmatpush1.xpose.msra.mxu0 0.0
  %2243 = vmatprep.subr.mxu0 0.0
  %2244 = vmatpush1.xpose.msra.mxu0 0.0
  %2245 = vmatprep.subr.mxu0 0.0
  %2246 = vmatpush1.xpose.msra.mxu0 0.0
  %2247 = vmatprep.subr.mxu0 0.0
  %2248 = vmatpush1.xpose.msra.mxu0 0.0
  %2249 = vmatprep.subr.mxu0 0.0
  %2250 = vmatpush1.xpose.msra.mxu0 0.0
  %2251 = vmatprep.subr.mxu0 0.0
  %2252 = vmatpush1.xpose.msra.mxu0 0.0
  %2253 = vmatprep.subr.mxu0 0.0
  %2254 = vmatpush1.xpose.msra.mxu0 0.0
  %2255 = vmatprep.subr.mxu0 0.0
  %2256 = vmatpush1.xpose.msra.mxu0 0.0
  %2257 = vmatprep.subr.mxu0 0.0
  %2258 = vmatpush1.xpose.msra.mxu0 0.0
  %2259 = vmatprep.subr.mxu0 0.0
  %2260 = vmatpush1.xpose.msra.mxu0 0.0
  %2261 = vmatprep.subr.mxu0 0.0
  %2262 = vmatpush1.xpose.msra.mxu0 0.0
  %2263 = vmatprep.subr.mxu0 0.0
  %2264 = vmatpush1.xpose.msra.mxu0 0.0
  %2265 = vmatprep.subr.mxu0 0.0
  %2266 = vmatpush1.xpose.msra.mxu0 %v2233
  %2267 = vmatprep.subr.mxu0 0.0
  %2268 = vmatpush2.xpose.msra.mxu0 0.0
  %2269 = vmatprep.subr.mxu0 0.0
  %2270 = vmatpush2.xpose.msra.mxu0 0.0
  %2271 = vmatprep.subr.mxu0 0.0
  %2272 = vmatpush2.xpose.msra.mxu0 0.0
  %2273 = vmatprep.subr.mxu0 0.0
  %2274 = vmatpush2.xpose.msra.mxu0 0.0
  %2275 = vmatprep.subr.mxu0 0.0
  %2276 = vmatpush2.xpose.msra.mxu0 0.0
  %2277 = vmatprep.subr.mxu0 0.0
  %2278 = vmatpush2.xpose.msra.mxu0 0.0
  %2279 = vmatprep.subr.mxu0 0.0
  %2280 = vmatpush2.xpose.msra.mxu0 0.0
  %2281 = vmatprep.subr.mxu0 0.0
  %2282 = vmatpush2.xpose.msra.mxu0 0.0
  %2283 = vmatprep.subr.mxu0 0.0
  %2284 = vmatpush2.xpose.msra.mxu0 0.0
  %2285 = vmatprep.subr.mxu0 0.0
  %2286 = vmatpush2.xpose.msra.mxu0 0.0
  %2287 = vmatprep.subr.mxu0 0.0
  %2288 = vmatpush2.xpose.msra.mxu0 0.0
  %2289 = vmatprep.subr.mxu0 0.0
  %2290 = vmatpush2.xpose.msra.mxu0 0.0
  %2291 = vmatprep.subr.mxu0 0.0
  %2292 = vmatpush2.xpose.msra.mxu0 0.0
  %2293 = vmatprep.subr.mxu0 0.0
  %2294 = vmatpush2.xpose.msra.mxu0 0.0
  %2295 = vmatprep.subr.mxu0 0.0
  %2296 = vmatpush2.xpose.msra.mxu0 0.0
  %2297 = vmatprep.subr.mxu0 0.0
  %2298 = vmatpush2.xpose.msra.mxu0 0.0
  %2299 = vmatprep.mubr.f32.mxu0 0.0
  %2300 = vmatmul.mubr.f32.gmra.mxu0 %v2231
  %v2301 = vpop.f32.mrf.mxu0
  %v2302 = vadd.f32 0.0, %v2301
  %v2303 = vpop.f32.mrf.mxu0
  %2304 = vdwg.mxu0
  %v2305 = vsel %vm162, %v2224, -inf
  %2306 = vmax.xlane.f32.xlu0 %v2305
  %v2307 = vpop.xlane.xlu0 %2306
  %v2308 = vsel %vm162, %v2302, -inf
  %2309 = vmax.xlane.f32.xlu0 %v2308
  %v2310 = vpop.xlane.xlu0 %2309
  %v2311 = vsub.f32 %v2224, %v2307
  %v2312 = vsub.f32 %v2302, %v2310
  %v2313 = vmul.f32 %v2311, 1.442695
  %v2314 = vpow.pop %v2313
  %v2315 = vmul.f32 %v2312, 1.442695
  %v2316 = vpow.pop %v2315
  %v2317 = vsel %vm162, %v2314, 0.0
  %2318 = vadd.xlane.f32.xlu0 %v2317
  %v2319 = vpop.xlane.xlu0 %2318
  %v2320 = vsel %vm162, %v2316, 0.0
  %2321 = vadd.xlane.f32.xlu0 %v2320
  %v2322 = vpop.xlane.xlu0 %2321
  %v2323 = vrcp.pop %v2319
  %v2324 = vrcp.pop %v2322
  %v2325 = vmul.f32 %v2314, %v2323
  %v2326 = vmul.f32 %v2316, %v2324
  %2327 = vrot.lane.b32.xlu0 %v1734, 88
  %v2328 = vpop.permute.xlu0 %2327
  %v2331 = vsel %vm162, %v2325, 0
  %2333 = vmatprep.subr.mxu0 0.0
  %2334 = vmatpush1.msra.mxu0 0.0
  %2335 = vmatprep.subr.mxu0 0.0
  %2336 = vmatpush1.msra.mxu0 0.0
  %2337 = vmatprep.subr.mxu0 0.0
  %2338 = vmatpush1.msra.mxu0 0.0
  %2339 = vmatprep.subr.mxu0 0.0
  %2340 = vmatpush1.msra.mxu0 0.0
  %2341 = vmatprep.subr.mxu0 0.0
  %2342 = vmatpush1.msra.mxu0 0.0
  %2343 = vmatprep.subr.mxu0 0.0
  %2344 = vmatpush1.msra.mxu0 0.0
  %2345 = vmatprep.subr.mxu0 0.0
  %2346 = vmatpush1.msra.mxu0 0.0
  %2347 = vmatprep.subr.mxu0 0.0
  %2348 = vmatpush1.msra.mxu0 0.0
  %2349 = vmatprep.subr.mxu0 0.0
  %2350 = vmatpush1.msra.mxu0 0.0
  %2351 = vmatprep.subr.mxu0 0.0
  %2352 = vmatpush1.msra.mxu0 0.0
  %2353 = vmatprep.subr.mxu0 0.0
  %2354 = vmatpush1.msra.mxu0 0.0
  %2355 = vmatprep.subr.mxu0 0.0
  %2356 = vmatpush1.msra.mxu0 0.0
  %2357 = vmatprep.subr.mxu0 0.0
  %2358 = vmatpush1.msra.mxu0 0.0
  %2359 = vmatprep.subr.mxu0 0.0
  %2360 = vmatpush1.msra.mxu0 0.0
  %2361 = vmatprep.subr.mxu0 0.0
  %2362 = vmatpush1.msra.mxu0 0.0
  %2363 = vmatprep.subr.mxu0 0.0
  %2364 = vmatpush1.msra.mxu0 %v2328
  %2365 = vmatprep.subr.mxu0 0.0
  %2366 = vmatpush2.msra.mxu0 0.0
  %2367 = vmatprep.subr.mxu0 0.0
  %2368 = vmatpush2.msra.mxu0 0.0
  %2369 = vmatprep.subr.mxu0 0.0
  %2370 = vmatpush2.msra.mxu0 0.0
  %2371 = vmatprep.subr.mxu0 0.0
  %2372 = vmatpush2.msra.mxu0 0.0
  %2373 = vmatprep.subr.mxu0 0.0
  %2374 = vmatpush2.msra.mxu0 0.0
  %2375 = vmatprep.subr.mxu0 0.0
  %2376 = vmatpush2.msra.mxu0 0.0
  %2377 = vmatprep.subr.mxu0 0.0
  %2378 = vmatpush2.msra.mxu0 0.0
  %2379 = vmatprep.subr.mxu0 0.0
  %2380 = vmatpush2.msra.mxu0 0.0
  %2381 = vmatprep.subr.mxu0 0.0
  %2382 = vmatpush2.msra.mxu0 0.0
  %2383 = vmatprep.subr.mxu0 0.0
  %2384 = vmatpush2.msra.mxu0 0.0
  %2385 = vmatprep.subr.mxu0 0.0
  %2386 = vmatpush2.msra.mxu0 0.0
  %2387 = vmatprep.subr.mxu0 0.0
  %2388 = vmatpush2.msra.mxu0 0.0
  %2389 = vmatprep.subr.mxu0 0.0
  %2390 = vmatpush2.msra.mxu0 0.0
  %2391 = vmatprep.subr.mxu0 0.0
  %2392 = vmatpush2.msra.mxu0 0.0
  %2393 = vmatprep.subr.mxu0 0.0
  %2394 = vmatpush2.msra.mxu0 0.0
  %2395 = vmatprep.subr.mxu0 0.0
  %2396 = vmatpush2.msra.mxu0 0.0
  %2397 = vmatprep.mubr.f32.mxu0 0.0
  %2398 = vmatmul.mubr.f32.gmra.mxu0 %v2331
  %v2399 = vpop.f32.mrf.mxu0
  %v2400 = vadd.f32 0.0, %v2399
  %v2401 = vpop.f32.mrf.mxu0
  %2402 = vdwg.mxu0
  %2403 = vrot.lane.b32.xlu0 %v1739, 88
  %v2404 = vpop.permute.xlu0 %2403
  %v2407 = vsel %vm162, %v2326, 0
  %2409 = vmatprep.subr.mxu0 0.0
  %2410 = vmatpush1.msra.mxu0 0.0
  %2411 = vmatprep.subr.mxu0 0.0
  %2412 = vmatpush1.msra.mxu0 0.0
  %2413 = vmatprep.subr.mxu0 0.0
  %2414 = vmatpush1.msra.mxu0 0.0
  %2415 = vmatprep.subr.mxu0 0.0
  %2416 = vmatpush1.msra.mxu0 0.0
  %2417 = vmatprep.subr.mxu0 0.0
  %2418 = vmatpush1.msra.mxu0 0.0
  %2419 = vmatprep.subr.mxu0 0.0
  %2420 = vmatpush1.msra.mxu0 0.0
  %2421 = vmatprep.subr.mxu0 0.0
  %2422 = vmatpush1.msra.mxu0 0.0
  %2423 = vmatprep.subr.mxu0 0.0
  %2424 = vmatpush1.msra.mxu0 0.0
  %2425 = vmatprep.subr.mxu0 0.0
  %2426 = vmatpush1.msra.mxu0 0.0
  %2427 = vmatprep.subr.mxu0 0.0
  %2428 = vmatpush1.msra.mxu0 0.0
  %2429 = vmatprep.subr.mxu0 0.0
  %2430 = vmatpush1.msra.mxu0 0.0
  %2431 = vmatprep.subr.mxu0 0.0
  %2432 = vmatpush1.msra.mxu0 0.0
  %2433 = vmatprep.subr.mxu0 0.0
  %2434 = vmatpush1.msra.mxu0 0.0
  %2435 = vmatprep.subr.mxu0 0.0
  %2436 = vmatpush1.msra.mxu0 0.0
  %2437 = vmatprep.subr.mxu0 0.0
  %2438 = vmatpush1.msra.mxu0 0.0
  %2439 = vmatprep.subr.mxu0 0.0
  %2440 = vmatpush1.msra.mxu0 %v2404
  %2441 = vmatprep.subr.mxu0 0.0
  %2442 = vmatpush2.msra.mxu0 0.0
  %2443 = vmatprep.subr.mxu0 0.0
  %2444 = vmatpush2.msra.mxu0 0.0
  %2445 = vmatprep.subr.mxu0 0.0
  %2446 = vmatpush2.msra.mxu0 0.0
  %2447 = vmatprep.subr.mxu0 0.0
  %2448 = vmatpush2.msra.mxu0 0.0
  %2449 = vmatprep.subr.mxu0 0.0
  %2450 = vmatpush2.msra.mxu0 0.0
  %2451 = vmatprep.subr.mxu0 0.0
  %2452 = vmatpush2.msra.mxu0 0.0
  %2453 = vmatprep.subr.mxu0 0.0
  %2454 = vmatpush2.msra.mxu0 0.0
  %2455 = vmatprep.subr.mxu0 0.0
  %2456 = vmatpush2.msra.mxu0 0.0
  %2457 = vmatprep.subr.mxu0 0.0
  %2458 = vmatpush2.msra.mxu0 0.0
  %2459 = vmatprep.subr.mxu0 0.0
  %2460 = vmatpush2.msra.mxu0 0.0
  %2461 = vmatprep.subr.mxu0 0.0
  %2462 = vmatpush2.msra.mxu0 0.0
  %2463 = vmatprep.subr.mxu0 0.0
  %2464 = vmatpush2.msra.mxu0 0.0
  %2465 = vmatprep.subr.mxu0 0.0
  %2466 = vmatpush2.msra.mxu0 0.0
  %2467 = vmatprep.subr.mxu0 0.0
  %2468 = vmatpush2.msra.mxu0 0.0
  %2469 = vmatprep.subr.mxu0 0.0
  %2470 = vmatpush2.msra.mxu0 0.0
  %2471 = vmatprep.subr.mxu0 0.0
  %2472 = vmatpush2.msra.mxu0 0.0
  %2473 = vmatprep.mubr.f32.mxu0 0.0
  %2474 = vmatmul.mubr.f32.gmra.mxu0 %v2407
  %v2475 = vpop.f32.mrf.mxu0
  %v2476 = vadd.f32 0.0, %v2475
  %v2477 = vpop.f32.mrf.mxu0
  %2478 = vdwg.mxu0
  %2479 = vrot.lane.b32.xlu0 %v1815, 112
  %v2480 = vpop.permute.xlu0 %2479
  %2481 = vrot.lane.b32.xlu0 %v1734, 112
  %v2482 = vpop.permute.xlu0 %2481
  %v2483 = vsel %vm162, %v2480, 0
  %v2485 = vsel %vm162, %v2482, 0
  %2487 = vmatprep.subr.mxu0 0.0
  %2488 = vmatpush1.xpose.msra.mxu0 0.0
  %2489 = vmatprep.subr.mxu0 0.0
  %2490 = vmatpush1.xpose.msra.mxu0 0.0
  %2491 = vmatprep.subr.mxu0 0.0
  %2492 = vmatpush1.xpose.msra.mxu0 0.0
  %2493 = vmatprep.subr.mxu0 0.0
  %2494 = vmatpush1.xpose.msra.mxu0 0.0
  %2495 = vmatprep.subr.mxu0 0.0
  %2496 = vmatpush1.xpose.msra.mxu0 0.0
  %2497 = vmatprep.subr.mxu0 0.0
  %2498 = vmatpush1.xpose.msra.mxu0 0.0
  %2499 = vmatprep.subr.mxu0 0.0
  %2500 = vmatpush1.xpose.msra.mxu0 0.0
  %2501 = vmatprep.subr.mxu0 0.0
  %2502 = vmatpush1.xpose.msra.mxu0 0.0
  %2503 = vmatprep.subr.mxu0 0.0
  %2504 = vmatpush1.xpose.msra.mxu0 0.0
  %2505 = vmatprep.subr.mxu0 0.0
  %2506 = vmatpush1.xpose.msra.mxu0 0.0
  %2507 = vmatprep.subr.mxu0 0.0
  %2508 = vmatpush1.xpose.msra.mxu0 0.0
  %2509 = vmatprep.subr.mxu0 0.0
  %2510 = vmatpush1.xpose.msra.mxu0 0.0
  %2511 = vmatprep.subr.mxu0 0.0
  %2512 = vmatpush1.xpose.msra.mxu0 0.0
  %2513 = vmatprep.subr.mxu0 0.0
  %2514 = vmatpush1.xpose.msra.mxu0 0.0
  %2515 = vmatprep.subr.mxu0 0.0
  %2516 = vmatpush1.xpose.msra.mxu0 0.0
  %2517 = vmatprep.subr.mxu0 0.0
  %2518 = vmatpush1.xpose.msra.mxu0 %v2485
  %2519 = vmatprep.subr.mxu0 0.0
  %2520 = vmatpush2.xpose.msra.mxu0 0.0
  %2521 = vmatprep.subr.mxu0 0.0
  %2522 = vmatpush2.xpose.msra.mxu0 0.0
  %2523 = vmatprep.subr.mxu0 0.0
  %2524 = vmatpush2.xpose.msra.mxu0 0.0
  %2525 = vmatprep.subr.mxu0 0.0
  %2526 = vmatpush2.xpose.msra.mxu0 0.0
  %2527 = vmatprep.subr.mxu0 0.0
  %2528 = vmatpush2.xpose.msra.mxu0 0.0
  %2529 = vmatprep.subr.mxu0 0.0
  %2530 = vmatpush2.xpose.msra.mxu0 0.0
  %2531 = vmatprep.subr.mxu0 0.0
  %2532 = vmatpush2.xpose.msra.mxu0 0.0
  %2533 = vmatprep.subr.mxu0 0.0
  %2534 = vmatpush2.xpose.msra.mxu0 0.0
  %2535 = vmatprep.subr.mxu0 0.0
  %2536 = vmatpush2.xpose.msra.mxu0 0.0
  %2537 = vmatprep.subr.mxu0 0.0
  %2538 = vmatpush2.xpose.msra.mxu0 0.0
  %2539 = vmatprep.subr.mxu0 0.0
  %2540 = vmatpush2.xpose.msra.mxu0 0.0
  %2541 = vmatprep.subr.mxu0 0.0
  %2542 = vmatpush2.xpose.msra.mxu0 0.0
  %2543 = vmatprep.subr.mxu0 0.0
  %2544 = vmatpush2.xpose.msra.mxu0 0.0
  %2545 = vmatprep.subr.mxu0 0.0
  %2546 = vmatpush2.xpose.msra.mxu0 0.0
  %2547 = vmatprep.subr.mxu0 0.0
  %2548 = vmatpush2.xpose.msra.mxu0 0.0
  %2549 = vmatprep.subr.mxu0 0.0
  %2550 = vmatpush2.xpose.msra.mxu0 0.0
  %2551 = vmatprep.mubr.f32.mxu0 0.0
  %2552 = vmatmul.mubr.f32.gmra.mxu0 %v2483
  %v2553 = vpop.f32.mrf.mxu0
  %v2554 = vadd.f32 0.0, %v2553
  %v2555 = vpop.f32.mrf.mxu0
  %2556 = vdwg.mxu0
  %2557 = vrot.lane.b32.xlu0 %v1820, 112
  %v2558 = vpop.permute.xlu0 %2557
  %2559 = vrot.lane.b32.xlu0 %v1739, 112
  %v2560 = vpop.permute.xlu0 %2559
  %v2561 = vsel %vm162, %v2558, 0
  %v2563 = vsel %vm162, %v2560, 0
  %2565 = vmatprep.subr.mxu0 0.0
  %2566 = vmatpush1.xpose.msra.mxu0 0.0
  %2567 = vmatprep.subr.mxu0 0.0
  %2568 = vmatpush1.xpose.msra.mxu0 0.0
  %2569 = vmatprep.subr.mxu0 0.0
  %2570 = vmatpush1.xpose.msra.mxu0 0.0
  %2571 = vmatprep.subr.mxu0 0.0
  %2572 = vmatpush1.xpose.msra.mxu0 0.0
  %2573 = vmatprep.subr.mxu0 0.0
  %2574 = vmatpush1.xpose.msra.mxu0 0.0
  %2575 = vmatprep.subr.mxu0 0.0
  %2576 = vmatpush1.xpose.msra.mxu0 0.0
  %2577 = vmatprep.subr.mxu0 0.0
  %2578 = vmatpush1.xpose.msra.mxu0 0.0
  %2579 = vmatprep.subr.mxu0 0.0
  %2580 = vmatpush1.xpose.msra.mxu0 0.0
  %2581 = vmatprep.subr.mxu0 0.0
  %2582 = vmatpush1.xpose.msra.mxu0 0.0
  %2583 = vmatprep.subr.mxu0 0.0
  %2584 = vmatpush1.xpose.msra.mxu0 0.0
  %2585 = vmatprep.subr.mxu0 0.0
  %2586 = vmatpush1.xpose.msra.mxu0 0.0
  %2587 = vmatprep.subr.mxu0 0.0
  %2588 = vmatpush1.xpose.msra.mxu0 0.0
  %2589 = vmatprep.subr.mxu0 0.0
  %2590 = vmatpush1.xpose.msra.mxu0 0.0
  %2591 = vmatprep.subr.mxu0 0.0
  %2592 = vmatpush1.xpose.msra.mxu0 0.0
  %2593 = vmatprep.subr.mxu0 0.0
  %2594 = vmatpush1.xpose.msra.mxu0 0.0
  %2595 = vmatprep.subr.mxu0 0.0
  %2596 = vmatpush1.xpose.msra.mxu0 %v2563
  %2597 = vmatprep.subr.mxu0 0.0
  %2598 = vmatpush2.xpose.msra.mxu0 0.0
  %2599 = vmatprep.subr.mxu0 0.0
  %2600 = vmatpush2.xpose.msra.mxu0 0.0
  %2601 = vmatprep.subr.mxu0 0.0
  %2602 = vmatpush2.xpose.msra.mxu0 0.0
  %2603 = vmatprep.subr.mxu0 0.0
  %2604 = vmatpush2.xpose.msra.mxu0 0.0
  %2605 = vmatprep.subr.mxu0 0.0
  %2606 = vmatpush2.xpose.msra.mxu0 0.0
  %2607 = vmatprep.subr.mxu0 0.0
  %2608 = vmatpush2.xpose.msra.mxu0 0.0
  %2609 = vmatprep.subr.mxu0 0.0
  %2610 = vmatpush2.xpose.msra.mxu0 0.0
  %2611 = vmatprep.subr.mxu0 0.0
  %2612 = vmatpush2.xpose.msra.mxu0 0.0
  %2613 = vmatprep.subr.mxu0 0.0
  %2614 = vmatpush2.xpose.msra.mxu0 0.0
  %2615 = vmatprep.subr.mxu0 0.0
  %2616 = vmatpush2.xpose.msra.mxu0 0.0
  %2617 = vmatprep.subr.mxu0 0.0
  %2618 = vmatpush2.xpose.msra.mxu0 0.0
  %2619 = vmatprep.subr.mxu0 0.0
  %2620 = vmatpush2.xpose.msra.mxu0 0.0
  %2621 = vmatprep.subr.mxu0 0.0
  %2622 = vmatpush2.xpose.msra.mxu0 0.0
  %2623 = vmatprep.subr.mxu0 0.0
  %2624 = vmatpush2.xpose.msra.mxu0 0.0
  %2625 = vmatprep.subr.mxu0 0.0
  %2626 = vmatpush2.xpose.msra.mxu0 0.0
  %2627 = vmatprep.subr.mxu0 0.0
  %2628 = vmatpush2.xpose.msra.mxu0 0.0
  %2629 = vmatprep.mubr.f32.mxu0 0.0
  %2630 = vmatmul.mubr.f32.gmra.mxu0 %v2561
  %v2631 = vpop.f32.mrf.mxu0
  %v2632 = vadd.f32 0.0, %v2631
  %v2633 = vpop.f32.mrf.mxu0
  %2634 = vdwg.mxu0
  %v2635 = vsel %vm162, %v2554, -inf
  %2636 = vmax.xlane.f32.xlu0 %v2635
  %v2637 = vpop.xlane.xlu0 %2636
  %v2638 = vsel %vm162, %v2632, -inf
  %2639 = vmax.xlane.f32.xlu0 %v2638
  %v2640 = vpop.xlane.xlu0 %2639
  %v2641 = vsub.f32 %v2554, %v2637
  %v2642 = vsub.f32 %v2632, %v2640
  %v2643 = vmul.f32 %v2641, 1.442695
  %v2644 = vpow.pop %v2643
  %v2645 = vmul.f32 %v2642, 1.442695
  %v2646 = vpow.pop %v2645
  %v2647 = vsel %vm162, %v2644, 0.0
  %2648 = vadd.xlane.f32.xlu0 %v2647
  %v2649 = vpop.xlane.xlu0 %2648
  %v2650 = vsel %vm162, %v2646, 0.0
  %2651 = vadd.xlane.f32.xlu0 %v2650
  %v2652 = vpop.xlane.xlu0 %2651
  %v2653 = vrcp.pop %v2649
  %v2654 = vrcp.pop %v2652
  %v2655 = vmul.f32 %v2644, %v2653
  %v2656 = vmul.f32 %v2646, %v2654
  %2657 = vrot.lane.b32.xlu0 %v1734, 80
  %v2658 = vpop.permute.xlu0 %2657
  %v2661 = vsel %vm162, %v2655, 0
  %2663 = vmatprep.subr.mxu0 0.0
  %2664 = vmatpush1.msra.mxu0 0.0
  %2665 = vmatprep.subr.mxu0 0.0
  %2666 = vmatpush1.msra.mxu0 0.0
  %2667 = vmatprep.subr.mxu0 0.0
  %2668 = vmatpush1.msra.mxu0 0.0
  %2669 = vmatprep.subr.mxu0 0.0
  %2670 = vmatpush1.msra.mxu0 0.0
  %2671 = vmatprep.subr.mxu0 0.0
  %2672 = vmatpush1.msra.mxu0 0.0
  %2673 = vmatprep.subr.mxu0 0.0
  %2674 = vmatpush1.msra.mxu0 0.0
  %2675 = vmatprep.subr.mxu0 0.0
  %2676 = vmatpush1.msra.mxu0 0.0
  %2677 = vmatprep.subr.mxu0 0.0
  %2678 = vmatpush1.msra.mxu0 0.0
  %2679 = vmatprep.subr.mxu0 0.0
  %2680 = vmatpush1.msra.mxu0 0.0
  %2681 = vmatprep.subr.mxu0 0.0
  %2682 = vmatpush1.msra.mxu0 0.0
  %2683 = vmatprep.subr.mxu0 0.0
  %2684 = vmatpush1.msra.mxu0 0.0
  %2685 = vmatprep.subr.mxu0 0.0
  %2686 = vmatpush1.msra.mxu0 0.0
  %2687 = vmatprep.subr.mxu0 0.0
  %2688 = vmatpush1.msra.mxu0 0.0
  %2689 = vmatprep.subr.mxu0 0.0
  %2690 = vmatpush1.msra.mxu0 0.0
  %2691 = vmatprep.subr.mxu0 0.0
  %2692 = vmatpush1.msra.mxu0 0.0
  %2693 = vmatprep.subr.mxu0 0.0
  %2694 = vmatpush1.msra.mxu0 %v2658
  %2695 = vmatprep.subr.mxu0 0.0
  %2696 = vmatpush2.msra.mxu0 0.0
  %2697 = vmatprep.subr.mxu0 0.0
  %2698 = vmatpush2.msra.mxu0 0.0
  %2699 = vmatprep.subr.mxu0 0.0
  %2700 = vmatpush2.msra.mxu0 0.0
  %2701 = vmatprep.subr.mxu0 0.0
  %2702 = vmatpush2.msra.mxu0 0.0
  %2703 = vmatprep.subr.mxu0 0.0
  %2704 = vmatpush2.msra.mxu0 0.0
  %2705 = vmatprep.subr.mxu0 0.0
  %2706 = vmatpush2.msra.mxu0 0.0
  %2707 = vmatprep.subr.mxu0 0.0
  %2708 = vmatpush2.msra.mxu0 0.0
  %2709 = vmatprep.subr.mxu0 0.0
  %2710 = vmatpush2.msra.mxu0 0.0
  %2711 = vmatprep.subr.mxu0 0.0
  %2712 = vmatpush2.msra.mxu0 0.0
  %2713 = vmatprep.subr.mxu0 0.0
  %2714 = vmatpush2.msra.mxu0 0.0
  %2715 = vmatprep.subr.mxu0 0.0
  %2716 = vmatpush2.msra.mxu0 0.0
  %2717 = vmatprep.subr.mxu0 0.0
  %2718 = vmatpush2.msra.mxu0 0.0
  %2719 = vmatprep.subr.mxu0 0.0
  %2720 = vmatpush2.msra.mxu0 0.0
  %2721 = vmatprep.subr.mxu0 0.0
  %2722 = vmatpush2.msra.mxu0 0.0
  %2723 = vmatprep.subr.mxu0 0.0
  %2724 = vmatpush2.msra.mxu0 0.0
  %2725 = vmatprep.subr.mxu0 0.0
  %2726 = vmatpush2.msra.mxu0 0.0
  %2727 = vmatprep.mubr.f32.mxu0 0.0
  %2728 = vmatmul.mubr.f32.gmra.mxu0 %v2661
  %v2729 = vpop.f32.mrf.mxu0
  %v2730 = vadd.f32 0.0, %v2729
  %v2731 = vpop.f32.mrf.mxu0
  %2732 = vdwg.mxu0
  %2733 = vrot.lane.b32.xlu0 %v1739, 80
  %v2734 = vpop.permute.xlu0 %2733
  %v2737 = vsel %vm162, %v2656, 0
  %2739 = vmatprep.subr.mxu0 0.0
  %2740 = vmatpush1.msra.mxu0 0.0
  %2741 = vmatprep.subr.mxu0 0.0
  %2742 = vmatpush1.msra.mxu0 0.0
  %2743 = vmatprep.subr.mxu0 0.0
  %2744 = vmatpush1.msra.mxu0 0.0
  %2745 = vmatprep.subr.mxu0 0.0
  %2746 = vmatpush1.msra.mxu0 0.0
  %2747 = vmatprep.subr.mxu0 0.0
  %2748 = vmatpush1.msra.mxu0 0.0
  %2749 = vmatprep.subr.mxu0 0.0
  %2750 = vmatpush1.msra.mxu0 0.0
  %2751 = vmatprep.subr.mxu0 0.0
  %2752 = vmatpush1.msra.mxu0 0.0
  %2753 = vmatprep.subr.mxu0 0.0
  %2754 = vmatpush1.msra.mxu0 0.0
  %2755 = vmatprep.subr.mxu0 0.0
  %2756 = vmatpush1.msra.mxu0 0.0
  %2757 = vmatprep.subr.mxu0 0.0
  %2758 = vmatpush1.msra.mxu0 0.0
  %2759 = vmatprep.subr.mxu0 0.0
  %2760 = vmatpush1.msra.mxu0 0.0
  %2761 = vmatprep.subr.mxu0 0.0
  %2762 = vmatpush1.msra.mxu0 0.0
  %2763 = vmatprep.subr.mxu0 0.0
  %2764 = vmatpush1.msra.mxu0 0.0
  %2765 = vmatprep.subr.mxu0 0.0
  %2766 = vmatpush1.msra.mxu0 0.0
  %2767 = vmatprep.subr.mxu0 0.0
  %2768 = vmatpush1.msra.mxu0 0.0
  %2769 = vmatprep.subr.mxu0 0.0
  %2770 = vmatpush1.msra.mxu0 %v2734
  %2771 = vmatprep.subr.mxu0 0.0
  %2772 = vmatpush2.msra.mxu0 0.0
  %2773 = vmatprep.subr.mxu0 0.0
  %2774 = vmatpush2.msra.mxu0 0.0
  %2775 = vmatprep.subr.mxu0 0.0
  %2776 = vmatpush2.msra.mxu0 0.0
  %2777 = vmatprep.subr.mxu0 0.0
  %2778 = vmatpush2.msra.mxu0 0.0
  %2779 = vmatprep.subr.mxu0 0.0
  %2780 = vmatpush2.msra.mxu0 0.0
  %2781 = vmatprep.subr.mxu0 0.0
  %2782 = vmatpush2.msra.mxu0 0.0
  %2783 = vmatprep.subr.mxu0 0.0
  %2784 = vmatpush2.msra.mxu0 0.0
  %2785 = vmatprep.subr.mxu0 0.0
  %2786 = vmatpush2.msra.mxu0 0.0
  %2787 = vmatprep.subr.mxu0 0.0
  %2788 = vmatpush2.msra.mxu0 0.0
  %2789 = vmatprep.subr.mxu0 0.0
  %2790 = vmatpush2.msra.mxu0 0.0
  %2791 = vmatprep.subr.mxu0 0.0
  %2792 = vmatpush2.msra.mxu0 0.0
  %2793 = vmatprep.subr.mxu0 0.0
  %2794 = vmatpush2.msra.mxu0 0.0
  %2795 = vmatprep.subr.mxu0 0.0
  %2796 = vmatpush2.msra.mxu0 0.0
  %2797 = vmatprep.subr.mxu0 0.0
  %2798 = vmatpush2.msra.mxu0 0.0
  %2799 = vmatprep.subr.mxu0 0.0
  %2800 = vmatpush2.msra.mxu0 0.0
  %2801 = vmatprep.subr.mxu0 0.0
  %2802 = vmatpush2.msra.mxu0 0.0
  %2803 = vmatprep.mubr.f32.mxu0 0.0
  %2804 = vmatmul.mubr.f32.gmra.mxu0 %v2737
  %v2805 = vpop.f32.mrf.mxu0
  %v2806 = vadd.f32 0.0, %v2805
  %v2807 = vpop.f32.mrf.mxu0
  %2808 = vdwg.mxu0
  %2809 = vrot.lane.b32.xlu0 %v1815, 104
  %v2810 = vpop.permute.xlu0 %2809
  %2811 = vrot.lane.b32.xlu0 %v1734, 104
  %v2812 = vpop.permute.xlu0 %2811
  %v2813 = vsel %vm162, %v2810, 0
  %v2815 = vsel %vm162, %v2812, 0
  %2817 = vmatprep.subr.mxu0 0.0
  %2818 = vmatpush1.xpose.msra.mxu0 0.0
  %2819 = vmatprep.subr.mxu0 0.0
  %2820 = vmatpush1.xpose.msra.mxu0 0.0
  %2821 = vmatprep.subr.mxu0 0.0
  %2822 = vmatpush1.xpose.msra.mxu0 0.0
  %2823 = vmatprep.subr.mxu0 0.0
  %2824 = vmatpush1.xpose.msra.mxu0 0.0
  %2825 = vmatprep.subr.mxu0 0.0
  %2826 = vmatpush1.xpose.msra.mxu0 0.0
  %2827 = vmatprep.subr.mxu0 0.0
  %2828 = vmatpush1.xpose.msra.mxu0 0.0
  %2829 = vmatprep.subr.mxu0 0.0
  %2830 = vmatpush1.xpose.msra.mxu0 0.0
  %2831 = vmatprep.subr.mxu0 0.0
  %2832 = vmatpush1.xpose.msra.mxu0 0.0
  %2833 = vmatprep.subr.mxu0 0.0
  %2834 = vmatpush1.xpose.msra.mxu0 0.0
  %2835 = vmatprep.subr.mxu0 0.0
  %2836 = vmatpush1.xpose.msra.mxu0 0.0
  %2837 = vmatprep.subr.mxu0 0.0
  %2838 = vmatpush1.xpose.msra.mxu0 0.0
  %2839 = vmatprep.subr.mxu0 0.0
  %2840 = vmatpush1.xpose.msra.mxu0 0.0
  %2841 = vmatprep.subr.mxu0 0.0
  %2842 = vmatpush1.xpose.msra.mxu0 0.0
  %2843 = vmatprep.subr.mxu0 0.0
  %2844 = vmatpush1.xpose.msra.mxu0 0.0
  %2845 = vmatprep.subr.mxu0 0.0
  %2846 = vmatpush1.xpose.msra.mxu0 0.0
  %2847 = vmatprep.subr.mxu0 0.0
  %2848 = vmatpush1.xpose.msra.mxu0 %v2815
  %2849 = vmatprep.subr.mxu0 0.0
  %2850 = vmatpush2.xpose.msra.mxu0 0.0
  %2851 = vmatprep.subr.mxu0 0.0
  %2852 = vmatpush2.xpose.msra.mxu0 0.0
  %2853 = vmatprep.subr.mxu0 0.0
  %2854 = vmatpush2.xpose.msra.mxu0 0.0
  %2855 = vmatprep.subr.mxu0 0.0
  %2856 = vmatpush2.xpose.msra.mxu0 0.0
  %2857 = vmatprep.subr.mxu0 0.0
  %2858 = vmatpush2.xpose.msra.mxu0 0.0
  %2859 = vmatprep.subr.mxu0 0.0
  %2860 = vmatpush2.xpose.msra.mxu0 0.0
  %2861 = vmatprep.subr.mxu0 0.0
  %2862 = vmatpush2.xpose.msra.mxu0 0.0
  %2863 = vmatprep.subr.mxu0 0.0
  %2864 = vmatpush2.xpose.msra.mxu0 0.0
  %2865 = vmatprep.subr.mxu0 0.0
  %2866 = vmatpush2.xpose.msra.mxu0 0.0
  %2867 = vmatprep.subr.mxu0 0.0
  %2868 = vmatpush2.xpose.msra.mxu0 0.0
  %2869 = vmatprep.subr.mxu0 0.0
  %2870 = vmatpush2.xpose.msra.mxu0 0.0
  %2871 = vmatprep.subr.mxu0 0.0
  %2872 = vmatpush2.xpose.msra.mxu0 0.0
  %2873 = vmatprep.subr.mxu0 0.0
  %2874 = vmatpush2.xpose.msra.mxu0 0.0
  %2875 = vmatprep.subr.mxu0 0.0
  %2876 = vmatpush2.xpose.msra.mxu0 0.0
  %2877 = vmatprep.subr.mxu0 0.0
  %2878 = vmatpush2.xpose.msra.mxu0 0.0
  %2879 = vmatprep.subr.mxu0 0.0
  %2880 = vmatpush2.xpose.msra.mxu0 0.0
  %2881 = vmatprep.mubr.f32.mxu0 0.0
  %2882 = vmatmul.mubr.f32.gmra.mxu0 %v2813
  %v2883 = vpop.f32.mrf.mxu0
  %v2884 = vadd.f32 0.0, %v2883
  %v2885 = vpop.f32.mrf.mxu0
  %2886 = vdwg.mxu0
  %2887 = vrot.lane.b32.xlu0 %v1820, 104
  %v2888 = vpop.permute.xlu0 %2887
  %2889 = vrot.lane.b32.xlu0 %v1739, 104
  %v2890 = vpop.permute.xlu0 %2889
  %v2891 = vsel %vm162, %v2888, 0
  %v2893 = vsel %vm162, %v2890, 0
  %2895 = vmatprep.subr.mxu0 0.0
  %2896 = vmatpush1.xpose.msra.mxu0 0.0
  %2897 = vmatprep.subr.mxu0 0.0
  %2898 = vmatpush1.xpose.msra.mxu0 0.0
  %2899 = vmatprep.subr.mxu0 0.0
  %2900 = vmatpush1.xpose.msra.mxu0 0.0
  %2901 = vmatprep.subr.mxu0 0.0
  %2902 = vmatpush1.xpose.msra.mxu0 0.0
  %2903 = vmatprep.subr.mxu0 0.0
  %2904 = vmatpush1.xpose.msra.mxu0 0.0
  %2905 = vmatprep.subr.mxu0 0.0
  %2906 = vmatpush1.xpose.msra.mxu0 0.0
  %2907 = vmatprep.subr.mxu0 0.0
  %2908 = vmatpush1.xpose.msra.mxu0 0.0
  %2909 = vmatprep.subr.mxu0 0.0
  %2910 = vmatpush1.xpose.msra.mxu0 0.0
  %2911 = vmatprep.subr.mxu0 0.0
  %2912 = vmatpush1.xpose.msra.mxu0 0.0
  %2913 = vmatprep.subr.mxu0 0.0
  %2914 = vmatpush1.xpose.msra.mxu0 0.0
  %2915 = vmatprep.subr.mxu0 0.0
  %2916 = vmatpush1.xpose.msra.mxu0 0.0
  %2917 = vmatprep.subr.mxu0 0.0
  %2918 = vmatpush1.xpose.msra.mxu0 0.0
  %2919 = vmatprep.subr.mxu0 0.0
  %2920 = vmatpush1.xpose.msra.mxu0 0.0
  %2921 = vmatprep.subr.mxu0 0.0
  %2922 = vmatpush1.xpose.msra.mxu0 0.0
  %2923 = vmatprep.subr.mxu0 0.0
  %2924 = vmatpush1.xpose.msra.mxu0 0.0
  %2925 = vmatprep.subr.mxu0 0.0
  %2926 = vmatpush1.xpose.msra.mxu0 %v2893
  %2927 = vmatprep.subr.mxu0 0.0
  %2928 = vmatpush2.xpose.msra.mxu0 0.0
  %2929 = vmatprep.subr.mxu0 0.0
  %2930 = vmatpush2.xpose.msra.mxu0 0.0
  %2931 = vmatprep.subr.mxu0 0.0
  %2932 = vmatpush2.xpose.msra.mxu0 0.0
  %2933 = vmatprep.subr.mxu0 0.0
  %2934 = vmatpush2.xpose.msra.mxu0 0.0
  %2935 = vmatprep.subr.mxu0 0.0
  %2936 = vmatpush2.xpose.msra.mxu0 0.0
  %2937 = vmatprep.subr.mxu0 0.0
  %2938 = vmatpush2.xpose.msra.mxu0 0.0
  %2939 = vmatprep.subr.mxu0 0.0
  %2940 = vmatpush2.xpose.msra.mxu0 0.0
  %2941 = vmatprep.subr.mxu0 0.0
  %2942 = vmatpush2.xpose.msra.mxu0 0.0
  %2943 = vmatprep.subr.mxu0 0.0
  %2944 = vmatpush2.xpose.msra.mxu0 0.0
  %2945 = vmatprep.subr.mxu0 0.0
  %2946 = vmatpush2.xpose.msra.mxu0 0.0
  %2947 = vmatprep.subr.mxu0 0.0
  %2948 = vmatpush2.xpose.msra.mxu0 0.0
  %2949 = vmatprep.subr.mxu0 0.0
  %2950 = vmatpush2.xpose.msra.mxu0 0.0
  %2951 = vmatprep.subr.mxu0 0.0
  %2952 = vmatpush2.xpose.msra.mxu0 0.0
  %2953 = vmatprep.subr.mxu0 0.0
  %2954 = vmatpush2.xpose.msra.mxu0 0.0
  %2955 = vmatprep.subr.mxu0 0.0
  %2956 = vmatpush2.xpose.msra.mxu0 0.0
  %2957 = vmatprep.subr.mxu0 0.0
  %2958 = vmatpush2.xpose.msra.mxu0 0.0
  %2959 = vmatprep.mubr.f32.mxu0 0.0
  %2960 = vmatmul.mubr.f32.gmra.mxu0 %v2891
  %v2961 = vpop.f32.mrf.mxu0
  %v2962 = vadd.f32 0.0, %v2961
  %v2963 = vpop.f32.mrf.mxu0
  %2964 = vdwg.mxu0
  %v2965 = vsel %vm162, %v2884, -inf
  %2966 = vmax.xlane.f32.xlu0 %v2965
  %v2967 = vpop.xlane.xlu0 %2966
  %v2968 = vsel %vm162, %v2962, -inf
  %2969 = vmax.xlane.f32.xlu0 %v2968
  %v2970 = vpop.xlane.xlu0 %2969
  %v2971 = vsub.f32 %v2884, %v2967
  %v2972 = vsub.f32 %v2962, %v2970
  %v2973 = vmul.f32 %v2971, 1.442695
  %v2974 = vpow.pop %v2973
  %v2975 = vmul.f32 %v2972, 1.442695
  %v2976 = vpow.pop %v2975
  %v2977 = vsel %vm162, %v2974, 0.0
  %2978 = vadd.xlane.f32.xlu0 %v2977
  %v2979 = vpop.xlane.xlu0 %2978
  %v2980 = vsel %vm162, %v2976, 0.0
  %2981 = vadd.xlane.f32.xlu0 %v2980
  %v2982 = vpop.xlane.xlu0 %2981
  %v2983 = vrcp.pop %v2979
  %v2984 = vrcp.pop %v2982
  %v2985 = vmul.f32 %v2974, %v2983
  %v2986 = vmul.f32 %v2976, %v2984
  %2987 = vrot.lane.b32.xlu0 %v1734, 72
  %v2988 = vpop.permute.xlu0 %2987
  %v2991 = vsel %vm162, %v2985, 0
  %2993 = vmatprep.subr.mxu0 0.0
  %2994 = vmatpush1.msra.mxu0 0.0
  %2995 = vmatprep.subr.mxu0 0.0
  %2996 = vmatpush1.msra.mxu0 0.0
  %2997 = vmatprep.subr.mxu0 0.0
  %2998 = vmatpush1.msra.mxu0 0.0
  %2999 = vmatprep.subr.mxu0 0.0
  %3000 = vmatpush1.msra.mxu0 0.0
  %3001 = vmatprep.subr.mxu0 0.0
  %3002 = vmatpush1.msra.mxu0 0.0
  %3003 = vmatprep.subr.mxu0 0.0
  %3004 = vmatpush1.msra.mxu0 0.0
  %3005 = vmatprep.subr.mxu0 0.0
  %3006 = vmatpush1.msra.mxu0 0.0
  %3007 = vmatprep.subr.mxu0 0.0
  %3008 = vmatpush1.msra.mxu0 0.0
  %3009 = vmatprep.subr.mxu0 0.0
  %3010 = vmatpush1.msra.mxu0 0.0
  %3011 = vmatprep.subr.mxu0 0.0
  %3012 = vmatpush1.msra.mxu0 0.0
  %3013 = vmatprep.subr.mxu0 0.0
  %3014 = vmatpush1.msra.mxu0 0.0
  %3015 = vmatprep.subr.mxu0 0.0
  %3016 = vmatpush1.msra.mxu0 0.0
  %3017 = vmatprep.subr.mxu0 0.0
  %3018 = vmatpush1.msra.mxu0 0.0
  %3019 = vmatprep.subr.mxu0 0.0
  %3020 = vmatpush1.msra.mxu0 0.0
  %3021 = vmatprep.subr.mxu0 0.0
  %3022 = vmatpush1.msra.mxu0 0.0
  %3023 = vmatprep.subr.mxu0 0.0
  %3024 = vmatpush1.msra.mxu0 %v2988
  %3025 = vmatprep.subr.mxu0 0.0
  %3026 = vmatpush2.msra.mxu0 0.0
  %3027 = vmatprep.subr.mxu0 0.0
  %3028 = vmatpush2.msra.mxu0 0.0
  %3029 = vmatprep.subr.mxu0 0.0
  %3030 = vmatpush2.msra.mxu0 0.0
  %3031 = vmatprep.subr.mxu0 0.0
  %3032 = vmatpush2.msra.mxu0 0.0
  %3033 = vmatprep.subr.mxu0 0.0
  %3034 = vmatpush2.msra.mxu0 0.0
  %3035 = vmatprep.subr.mxu0 0.0
  %3036 = vmatpush2.msra.mxu0 0.0
  %3037 = vmatprep.subr.mxu0 0.0
  %3038 = vmatpush2.msra.mxu0 0.0
  %3039 = vmatprep.subr.mxu0 0.0
  %3040 = vmatpush2.msra.mxu0 0.0
  %3041 = vmatprep.subr.mxu0 0.0
  %3042 = vmatpush2.msra.mxu0 0.0
  %3043 = vmatprep.subr.mxu0 0.0
  %3044 = vmatpush2.msra.mxu0 0.0
  %3045 = vmatprep.subr.mxu0 0.0
  %3046 = vmatpush2.msra.mxu0 0.0
  %3047 = vmatprep.subr.mxu0 0.0
  %3048 = vmatpush2.msra.mxu0 0.0
  %3049 = vmatprep.subr.mxu0 0.0
  %3050 = vmatpush2.msra.mxu0 0.0
  %3051 = vmatprep.subr.mxu0 0.0
  %3052 = vmatpush2.msra.mxu0 0.0
  %3053 = vmatprep.subr.mxu0 0.0
  %3054 = vmatpush2.msra.mxu0 0.0
  %3055 = vmatprep.subr.mxu0 0.0
  %3056 = vmatpush2.msra.mxu0 0.0
  %3057 = vmatprep.mubr.f32.mxu0 0.0
  %3058 = vmatmul.mubr.f32.gmra.mxu0 %v2991
  %v3059 = vpop.f32.mrf.mxu0
  %v3060 = vadd.f32 0.0, %v3059
  %v3061 = vpop.f32.mrf.mxu0
  %3062 = vdwg.mxu0
  %3063 = vrot.lane.b32.xlu0 %v1739, 72
  %v3064 = vpop.permute.xlu0 %3063
  %v3067 = vsel %vm162, %v2986, 0
  %3069 = vmatprep.subr.mxu0 0.0
  %3070 = vmatpush1.msra.mxu0 0.0
  %3071 = vmatprep.subr.mxu0 0.0
  %3072 = vmatpush1.msra.mxu0 0.0
  %3073 = vmatprep.subr.mxu0 0.0
  %3074 = vmatpush1.msra.mxu0 0.0
  %3075 = vmatprep.subr.mxu0 0.0
  %3076 = vmatpush1.msra.mxu0 0.0
  %3077 = vmatprep.subr.mxu0 0.0
  %3078 = vmatpush1.msra.mxu0 0.0
  %3079 = vmatprep.subr.mxu0 0.0
  %3080 = vmatpush1.msra.mxu0 0.0
  %3081 = vmatprep.subr.mxu0 0.0
  %3082 = vmatpush1.msra.mxu0 0.0
  %3083 = vmatprep.subr.mxu0 0.0
  %3084 = vmatpush1.msra.mxu0 0.0
  %3085 = vmatprep.subr.mxu0 0.0
  %3086 = vmatpush1.msra.mxu0 0.0
  %3087 = vmatprep.subr.mxu0 0.0
  %3088 = vmatpush1.msra.mxu0 0.0
  %3089 = vmatprep.subr.mxu0 0.0
  %3090 = vmatpush1.msra.mxu0 0.0
  %3091 = vmatprep.subr.mxu0 0.0
  %3092 = vmatpush1.msra.mxu0 0.0
  %3093 = vmatprep.subr.mxu0 0.0
  %3094 = vmatpush1.msra.mxu0 0.0
  %3095 = vmatprep.subr.mxu0 0.0
  %3096 = vmatpush1.msra.mxu0 0.0
  %3097 = vmatprep.subr.mxu0 0.0
  %3098 = vmatpush1.msra.mxu0 0.0
  %3099 = vmatprep.subr.mxu0 0.0
  %3100 = vmatpush1.msra.mxu0 %v3064
  %3101 = vmatprep.subr.mxu0 0.0
  %3102 = vmatpush2.msra.mxu0 0.0
  %3103 = vmatprep.subr.mxu0 0.0
  %3104 = vmatpush2.msra.mxu0 0.0
  %3105 = vmatprep.subr.mxu0 0.0
  %3106 = vmatpush2.msra.mxu0 0.0
  %3107 = vmatprep.subr.mxu0 0.0
  %3108 = vmatpush2.msra.mxu0 0.0
  %3109 = vmatprep.subr.mxu0 0.0
  %3110 = vmatpush2.msra.mxu0 0.0
  %3111 = vmatprep.subr.mxu0 0.0
  %3112 = vmatpush2.msra.mxu0 0.0
  %3113 = vmatprep.subr.mxu0 0.0
  %3114 = vmatpush2.msra.mxu0 0.0
  %3115 = vmatprep.subr.mxu0 0.0
  %3116 = vmatpush2.msra.mxu0 0.0
  %3117 = vmatprep.subr.mxu0 0.0
  %3118 = vmatpush2.msra.mxu0 0.0
  %3119 = vmatprep.subr.mxu0 0.0
  %3120 = vmatpush2.msra.mxu0 0.0
  %3121 = vmatprep.subr.mxu0 0.0
  %3122 = vmatpush2.msra.mxu0 0.0
  %3123 = vmatprep.subr.mxu0 0.0
  %3124 = vmatpush2.msra.mxu0 0.0
  %3125 = vmatprep.subr.mxu0 0.0
  %3126 = vmatpush2.msra.mxu0 0.0
  %3127 = vmatprep.subr.mxu0 0.0
  %3128 = vmatpush2.msra.mxu0 0.0
  %3129 = vmatprep.subr.mxu0 0.0
  %3130 = vmatpush2.msra.mxu0 0.0
  %3131 = vmatprep.subr.mxu0 0.0
  %3132 = vmatpush2.msra.mxu0 0.0
  %3133 = vmatprep.mubr.f32.mxu0 0.0
  %3134 = vmatmul.mubr.f32.gmra.mxu0 %v3067
  %v3135 = vpop.f32.mrf.mxu0
  %v3136 = vadd.f32 0.0, %v3135
  %v3137 = vpop.f32.mrf.mxu0
  %3138 = vdwg.mxu0
  %3141 = vrot.lane.b32.xlu0 %v2400, 8
  %v3142 = vpop.permute.xlu0 %3141
  %3143 = vrot.lane.b32.xlu0 %v2476, 8
  %v3144 = vpop.permute.xlu0 %3143
  %3149 = vrot.lane.b32.xlu0 %v2730, 16
  %v3150 = vpop.permute.xlu0 %3149
  %3151 = vrot.lane.b32.xlu0 %v2806, 16
  %v3152 = vpop.permute.xlu0 %3151
  %3157 = vrot.lane.b32.xlu0 %v3060, 24
  %v3158 = vpop.permute.xlu0 %3157
  %3159 = vrot.lane.b32.xlu0 %v3136, 24
  %v3160 = vpop.permute.xlu0 %3159
  %v3163 = vsel %vm162, %v2070, %v3142
  %v3164 = vsel %vm162, %v2146, %v3144
  %v3165 = vsel %vm1504, %v3163, %v3150
  %v3166 = vsel %vm1504, %v3164, %v3152
  %v3167 = vsel %vm1507, %v3165, %v3158
  %v3168 = vsel %vm1507, %v3166, %v3160
  %v3170 = vsel %vm77, %v3167, 0
  %v3173 = vsel %vm77, %v3168, 0
  %3175 = vmatprep.subr.mxu0 0.0
  %3176 = vmatpush1.msra.mxu0 0.0
  %3177 = vmatprep.subr.mxu0 0.0
  %3178 = vmatpush1.msra.mxu0 0.0
  %3179 = vmatprep.subr.mxu0 0.0
  %3180 = vmatpush1.msra.mxu0 0.0
  %3181 = vmatprep.subr.mxu0 0.0
  %3182 = vmatpush1.msra.mxu0 0.0
  %3183 = vmatprep.subr.mxu0 0.0
  %3184 = vmatpush1.msra.mxu0 0.0
  %3185 = vmatprep.subr.mxu0 0.0
  %3186 = vmatpush1.msra.mxu0 0.0
  %3187 = vmatprep.subr.mxu0 0.0
  %3188 = vmatpush1.msra.mxu0 0.0
  %3189 = vmatprep.subr.mxu0 0.0
  %3190 = vmatpush1.msra.mxu0 0.0
  %3191 = vmatprep.subr.mxu0 0.0
  %3192 = vmatpush1.msra.mxu0 0.0
  %3193 = vmatprep.subr.mxu0 0.0
  %3194 = vmatpush1.msra.mxu0 0.0
  %3195 = vmatprep.subr.mxu0 0.0
  %3196 = vmatpush1.msra.mxu0 0.0
  %3197 = vmatprep.subr.mxu0 0.0
  %3198 = vmatpush1.msra.mxu0 0.0
  %3199 = vmatprep.subr.mxu0 0.0
  %3200 = vmatpush1.msra.mxu0 %v67
  %3201 = vmatprep.subr.mxu0 0.0
  %3202 = vmatpush1.msra.mxu0 %v66
  %3203 = vmatprep.subr.mxu0 0.0
  %3204 = vmatpush1.msra.mxu0 %v65
  %3205 = vmatprep.subr.mxu0 0.0
  %3206 = vmatpush1.msra.mxu0 %v64
  %3207 = vmatprep.subr.mxu0 0.0
  %3208 = vmatpush2.msra.mxu0 0.0
  %3209 = vmatprep.subr.mxu0 0.0
  %3210 = vmatpush2.msra.mxu0 0.0
  %3211 = vmatprep.subr.mxu0 0.0
  %3212 = vmatpush2.msra.mxu0 0.0
  %3213 = vmatprep.subr.mxu0 0.0
  %3214 = vmatpush2.msra.mxu0 0.0
  %3215 = vmatprep.subr.mxu0 0.0
  %3216 = vmatpush2.msra.mxu0 0.0
  %3217 = vmatprep.subr.mxu0 0.0
  %3218 = vmatpush2.msra.mxu0 0.0
  %3219 = vmatprep.subr.mxu0 0.0
  %3220 = vmatpush2.msra.mxu0 0.0
  %3221 = vmatprep.subr.mxu0 0.0
  %3222 = vmatpush2.msra.mxu0 0.0
  %3223 = vmatprep.subr.mxu0 0.0
  %3224 = vmatpush2.msra.mxu0 0.0
  %3225 = vmatprep.subr.mxu0 0.0
  %3226 = vmatpush2.msra.mxu0 0.0
  %3227 = vmatprep.subr.mxu0 0.0
  %3228 = vmatpush2.msra.mxu0 0.0
  %3229 = vmatprep.subr.mxu0 0.0
  %3230 = vmatpush2.msra.mxu0 0.0
  %3231 = vmatprep.subr.mxu0 0.0
  %3232 = vmatpush2.msra.mxu0 0.0
  %3233 = vmatprep.subr.mxu0 0.0
  %3234 = vmatpush2.msra.mxu0 0.0
  %3235 = vmatprep.subr.mxu0 0.0
  %3236 = vmatpush2.msra.mxu0 0.0
  %3237 = vmatprep.subr.mxu0 0.0
  %3238 = vmatpush2.msra.mxu0 0.0
  %3239 = vmatprep.mubr.f32.mxu0 0.0
  %3240 = vmatmul.mubr.f32.gmra.mxu0 %v3170
  %v3241 = vpop.f32.mrf.mxu0
  %v3242 = vadd.f32 %v1514, %v3241
  %v3243 = vpop.f32.mrf.mxu0
  %3244 = vmatprep.mubr.f32.mxu0 0.0
  %3245 = vmatmul.mubr.f32.gmra.mxu0 %v3173
  %v3246 = vpop.f32.mrf.mxu0
  %v3247 = vadd.f32 %v1514, %v3246
  %v3248 = vpop.f32.mrf.mxu0
  %3249 = vdwg.mxu0
  %v3250 = vadd.f32 %v1640, %v3242
  %v3251 = vadd.f32 %v1641, %v3247
  %v3252 = vsel %vm77, %v3250, 0.0
  %3253 = vadd.xlane.f32.xlu0 %v3252
  %v3254 = vpop.xlane.xlu0 %3253
  %v3255 = vsel %vm77, %v3251, 0.0
  %3256 = vadd.xlane.f32.xlu0 %v3255
  %v3257 = vpop.xlane.xlu0 %3256
  %v3258 = vmul.f32 %v3254, %v1605
  %v3259 = vmul.f32 %v3257, %v1605
  %v3260 = vsub.f32 %v3250, %v3258
  %v3261 = vsub.f32 %v3251, %v3259
  %v3262 = vmul.f32 %v3260, %v3260
  %v3263 = vmul.f32 %v3261, %v3261
  %v3264 = vsel %vm77, %v3262, 0.0
  %3265 = vadd.xlane.f32.xlu0 %v3264
  %v3266 = vpop.xlane.xlu0 %3265
  %v3267 = vsel %vm77, %v3263, 0.0
  %3268 = vadd.xlane.f32.xlu0 %v3267
  %v3269 = vpop.xlane.xlu0 %3268
  %v3270 = vmul.f32 %v3266, %v1605
  %v3271 = vmul.f32 %v3269, %v1605
  %v3272 = vadd.f32 %v3270, 1e-05
  %v3273 = vadd.f32 %v3271, 1e-05
  %v3274 = vrsqrt.pop %v3272
  %v3275 = vrsqrt.pop %v3273
  %v3276 = vmul.f32 %v3260, %v3274
  %v3277 = vmul.f32 %v3261, %v3275
  %v3278 = vmul.f32 %v3276, %v1630
  %v3279 = vmul.f32 %v3277, %v1630
  %v3280 = vadd.f32 %v3278, %v1638
  %v3281 = vadd.f32 %v3279, %v1638
  %v3282 = vld [vmem:[%s9] sm:$0xff]
  %v3283 = vld [vmem:[%s9 + $0x8] sm:$0xff]
  %v3284 = vld [vmem:[%s9 + $0x10] sm:$0xff]
  %v3285 = vld [vmem:[%s9 + $0x18] sm:$0xff]
  %v3286 = vld [vmem:[%s10] sm:$0x1]
  %v3288 = vlaneseq
  %v3289 = vshrl.u32 %v3288, 7
  %v3290 = vsub.s32 0, %v3289
  %v3291 = vrot.slane %v3286, %v3290
  %v3294 = vsel %vm77, %v3280, 0
  %v3297 = vsel %vm77, %v3281, 0
  %3299 = vmatprep.subr.mxu0 0.0
  %3300 = vmatpush1.msra.mxu0 0.0
  %3301 = vmatprep.subr.mxu0 0.0
  %3302 = vmatpush1.msra.mxu0 0.0
  %3303 = vmatprep.subr.mxu0 0.0
  %3304 = vmatpush1.msra.mxu0 0.0
  %3305 = vmatprep.subr.mxu0 0.0
  %3306 = vmatpush1.msra.mxu0 0.0
  %3307 = vmatprep.subr.mxu0 0.0
  %3308 = vmatpush1.msra.mxu0 0.0
  %3309 = vmatprep.subr.mxu0 0.0
  %3310 = vmatpush1.msra.mxu0 0.0
  %3311 = vmatprep.subr.mxu0 0.0
  %3312 = vmatpush1.msra.mxu0 0.0
  %3313 = vmatprep.subr.mxu0 0.0
  %3314 = vmatpush1.msra.mxu0 0.0
  %3315 = vmatprep.subr.mxu0 0.0
  %3316 = vmatpush1.msra.mxu0 0.0
  %3317 = vmatprep.subr.mxu0 0.0
  %3318 = vmatpush1.msra.mxu0 0.0
  %3319 = vmatprep.subr.mxu0 0.0
  %3320 = vmatpush1.msra.mxu0 0.0
  %3321 = vmatprep.subr.mxu0 0.0
  %3322 = vmatpush1.msra.mxu0 0.0
  %3323 = vmatprep.subr.mxu0 0.0
  %3324 = vmatpush1.msra.mxu0 %v3285
  %3325 = vmatprep.subr.mxu0 0.0
  %3326 = vmatpush1.msra.mxu0 %v3284
  %3327 = vmatprep.subr.mxu0 0.0
  %3328 = vmatpush1.msra.mxu0 %v3283
  %3329 = vmatprep.subr.mxu0 0.0
  %3330 = vmatpush1.msra.mxu0 %v3282
  %3331 = vmatprep.subr.mxu0 0.0
  %3332 = vmatpush2.msra.mxu0 0.0
  %3333 = vmatprep.subr.mxu0 0.0
  %3334 = vmatpush2.msra.mxu0 0.0
  %3335 = vmatprep.subr.mxu0 0.0
  %3336 = vmatpush2.msra.mxu0 0.0
  %3337 = vmatprep.subr.mxu0 0.0
  %3338 = vmatpush2.msra.mxu0 0.0
  %3339 = vmatprep.subr.mxu0 0.0
  %3340 = vmatpush2.msra.mxu0 0.0
  %3341 = vmatprep.subr.mxu0 0.0
  %3342 = vmatpush2.msra.mxu0 0.0
  %3343 = vmatprep.subr.mxu0 0.0
  %3344 = vmatpush2.msra.mxu0 0.0
  %3345 = vmatprep.subr.mxu0 0.0
  %3346 = vmatpush2.msra.mxu0 0.0
  %3347 = vmatprep.subr.mxu0 0.0
  %3348 = vmatpush2.msra.mxu0 0.0
  %3349 = vmatprep.subr.mxu0 0.0
  %3350 = vmatpush2.msra.mxu0 0.0
  %3351 = vmatprep.subr.mxu0 0.0
  %3352 = vmatpush2.msra.mxu0 0.0
  %3353 = vmatprep.subr.mxu0 0.0
  %3354 = vmatpush2.msra.mxu0 0.0
  %3355 = vmatprep.subr.mxu0 0.0
  %3356 = vmatpush2.msra.mxu0 0.0
  %3357 = vmatprep.subr.mxu0 0.0
  %3358 = vmatpush2.msra.mxu0 0.0
  %3359 = vmatprep.subr.mxu0 0.0
  %3360 = vmatpush2.msra.mxu0 0.0
  %3361 = vmatprep.subr.mxu0 0.0
  %3362 = vmatpush2.msra.mxu0 0.0
  %3363 = vmatprep.mubr.f32.mxu0 0.0
  %3364 = vmatmul.mubr.f32.gmra.mxu0 %v3294
  %v3365 = vpop.f32.mrf.mxu0
  %v3366 = vadd.f32 %v3291, %v3365
  %v3367 = vpop.f32.mrf.mxu0
  %3368 = vmatprep.mubr.f32.mxu0 0.0
  %3369 = vmatmul.mubr.f32.gmra.mxu0 %v3297
  %v3370 = vpop.f32.mrf.mxu0
  %v3371 = vadd.f32 %v3291, %v3370
  %v3372 = vpop.f32.mrf.mxu0
  %3373 = vdwg.mxu0
  %v3374 = vmax.f32 %v3366, 0.0
  %v3375 = vmax.f32 %v3371, 0.0
  %v3376 = vld [vmem:[%s11] sm:$0xff]
  %v3377 = vld [vmem:[%s11 + $0x8] sm:$0xff]
  %v3378 = vld [vmem:[%s11 + $0x10] sm:$0xff]
  %v3379 = vld [vmem:[%s11 + $0x18] sm:$0xff]
  %v3380 = vld [vmem:[%s11 + $0x20] sm:$0xff]
  %v3381 = vld [vmem:[%s11 + $0x28] sm:$0xff]
  %v3382 = vld [vmem:[%s11 + $0x30] sm:$0xff]
  %v3383 = vld [vmem:[%s11 + $0x38] sm:$0xff]
  %v3384 = vld [vmem:[%s12] sm:$0x1]
  %v3386 = vlaneseq
  %v3387 = vshrl.u32 %v3386, 7
  %v3388 = vsub.s32 0, %v3387
  %v3389 = vrot.slane %v3384, %v3388
  %vm3391 = vcmask 523264
  %v3393 = vsel %vm3391, %v3374, 0
  %v3396 = vsel %vm3391, %v3375, 0
  %3398 = vmatprep.subr.mxu0 0.0
  %3399 = vmatpush1.msra.mxu0 0.0
  %3400 = vmatprep.subr.mxu0 0.0
  %3401 = vmatpush1.msra.mxu0 0.0
  %3402 = vmatprep.subr.mxu0 0.0
  %3403 = vmatpush1.msra.mxu0 0.0
  %3404 = vmatprep.subr.mxu0 0.0
  %3405 = vmatpush1.msra.mxu0 0.0
  %3406 = vmatprep.subr.mxu0 0.0
  %3407 = vmatpush1.msra.mxu0 0.0
  %3408 = vmatprep.subr.mxu0 0.0
  %3409 = vmatpush1.msra.mxu0 0.0
  %3410 = vmatprep.subr.mxu0 0.0
  %3411 = vmatpush1.msra.mxu0 0.0
  %3412 = vmatprep.subr.mxu0 0.0
  %3413 = vmatpush1.msra.mxu0 0.0
  %3414 = vmatprep.subr.mxu0 0.0
  %3415 = vmatpush1.msra.mxu0 %v3383
  %3416 = vmatprep.subr.mxu0 0.0
  %3417 = vmatpush1.msra.mxu0 %v3382
  %3418 = vmatprep.subr.mxu0 0.0
  %3419 = vmatpush1.msra.mxu0 %v3381
  %3420 = vmatprep.subr.mxu0 0.0
  %3421 = vmatpush1.msra.mxu0 %v3380
  %3422 = vmatprep.subr.mxu0 0.0
  %3423 = vmatpush1.msra.mxu0 %v3379
  %3424 = vmatprep.subr.mxu0 0.0
  %3425 = vmatpush1.msra.mxu0 %v3378
  %3426 = vmatprep.subr.mxu0 0.0
  %3427 = vmatpush1.msra.mxu0 %v3377
  %3428 = vmatprep.subr.mxu0 0.0
  %3429 = vmatpush1.msra.mxu0 %v3376
  %3430 = vmatprep.subr.mxu0 0.0
  %3431 = vmatpush2.msra.mxu0 0.0
  %3432 = vmatprep.subr.mxu0 0.0
  %3433 = vmatpush2.msra.mxu0 0.0
  %3434 = vmatprep.subr.mxu0 0.0
  %3435 = vmatpush2.msra.mxu0 0.0
  %3436 = vmatprep.subr.mxu0 0.0
  %3437 = vmatpush2.msra.mxu0 0.0
  %3438 = vmatprep.subr.mxu0 0.0
  %3439 = vmatpush2.msra.mxu0 0.0
  %3440 = vmatprep.subr.mxu0 0.0
  %3441 = vmatpush2.msra.mxu0 0.0
  %3442 = vmatprep.subr.mxu0 0.0
  %3443 = vmatpush2.msra.mxu0 0.0
  %3444 = vmatprep.subr.mxu0 0.0
  %3445 = vmatpush2.msra.mxu0 0.0
  %3446 = vmatprep.subr.mxu0 0.0
  %3447 = vmatpush2.msra.mxu0 0.0
  %3448 = vmatprep.subr.mxu0 0.0
  %3449 = vmatpush2.msra.mxu0 0.0
  %3450 = vmatprep.subr.mxu0 0.0
  %3451 = vmatpush2.msra.mxu0 0.0
  %3452 = vmatprep.subr.mxu0 0.0
  %3453 = vmatpush2.msra.mxu0 0.0
  %3454 = vmatprep.subr.mxu0 0.0
  %3455 = vmatpush2.msra.mxu0 0.0
  %3456 = vmatprep.subr.mxu0 0.0
  %3457 = vmatpush2.msra.mxu0 0.0
  %3458 = vmatprep.subr.mxu0 0.0
  %3459 = vmatpush2.msra.mxu0 0.0
  %3460 = vmatprep.subr.mxu0 0.0
  %3461 = vmatpush2.msra.mxu0 0.0
  %3462 = vmatprep.mubr.f32.mxu0 0.0
  %3463 = vmatmul.mubr.f32.gmra.mxu0 %v3393
  %v3464 = vpop.f32.mrf.mxu0
  %v3465 = vadd.f32 %v3389, %v3464
  %v3466 = vpop.f32.mrf.mxu0
  %3467 = vmatprep.mubr.f32.mxu0 0.0
  %3468 = vmatmul.mubr.f32.gmra.mxu0 %v3396
  %v3469 = vpop.f32.mrf.mxu0
  %v3470 = vadd.f32 %v3389, %v3469
  %v3471 = vpop.f32.mrf.mxu0
  %3472 = vdwg.mxu0
  %v3473 = vadd.f32 %v3280, %v3465
  %v3474 = vadd.f32 %v3281, %v3470
  %v3475 = vld [vmem:[%s13] sm:$0x1]
  %v3476 = vld [vmem:[%s14] sm:$0x1]
  %v3477 = vsel %vm77, %v3473, 0.0
  %3478 = vadd.xlane.f32.xlu0 %v3477
  %v3479 = vpop.xlane.xlu0 %3478
  %v3480 = vsel %vm77, %v3474, 0.0
  %3481 = vadd.xlane.f32.xlu0 %v3480
  %v3482 = vpop.xlane.xlu0 %3481
  %v3483 = vmul.f32 %v3479, %v1605
  %v3484 = vmul.f32 %v3482, %v1605
  %v3485 = vsub.f32 %v3473, %v3483
  %v3486 = vsub.f32 %v3474, %v3484
  %v3487 = vmul.f32 %v3485, %v3485
  %v3488 = vmul.f32 %v3486, %v3486
  %v3489 = vsel %vm77, %v3487, 0.0
  %3490 = vadd.xlane.f32.xlu0 %v3489
  %v3491 = vpop.xlane.xlu0 %3490
  %v3492 = vsel %vm77, %v3488, 0.0
  %3493 = vadd.xlane.f32.xlu0 %v3492
  %v3494 = vpop.xlane.xlu0 %3493
  %v3495 = vmul.f32 %v3491, %v1605
  %v3496 = vmul.f32 %v3494, %v1605
  %v3497 = vadd.f32 %v3495, 1e-05
  %v3498 = vadd.f32 %v3496, 1e-05
  %v3499 = vrsqrt.pop %v3497
  %v3500 = vrsqrt.pop %v3498
  %v3501 = vmul.f32 %v3485, %v3499
  %v3502 = vmul.f32 %v3486, %v3500
  %v3504 = vlaneseq
  %v3505 = vshrl.u32 %v3504, 7
  %v3506 = vsub.s32 0, %v3505
  %v3507 = vrot.slane %v3475, %v3506
  %v3509 = vmul.f32 %v3501, %v3507
  %v3510 = vmul.f32 %v3502, %v3507
  %v3512 = vlaneseq
  %v3513 = vshrl.u32 %v3512, 7
  %v3514 = vsub.s32 0, %v3513
  %v3515 = vrot.slane %v3476, %v3514
  %v3517 = vadd.f32 %v3509, %v3515
  %v3518 = vadd.f32 %v3510, %v3515
  %s3519 = scalar_lea.vmem %s3, 32
  %v3520 = vld [vmem:[%s3519] sm:$0xff]
  %v3521 = vld [vmem:[%s3519 + $0x8] sm:$0xff]
  %v3522 = vld [vmem:[%s3519 + $0x10] sm:$0xff]
  %v3523 = vld [vmem:[%s3519 + $0x18] sm:$0xff]
  %s3524 = scalar_lea.vmem %s4, 1
  %v3525 = vld [vmem:[%s3524] sm:$0x1]
  %s3526 = scalar_lea.vmem %s5, 32
  %v3527 = vld [vmem:[%s3526] sm:$0xff]
  %v3528 = vld [vmem:[%s3526 + $0x8] sm:$0xff]
  %v3529 = vld [vmem:[%s3526 + $0x10] sm:$0xff]
  %v3530 = vld [vmem:[%s3526 + $0x18] sm:$0xff]
  %s3531 = scalar_lea.vmem %s6, 1
  %v3532 = vld [vmem:[%s3531] sm:$0x1]
  %s3533 = scalar_lea.vmem %s7, 1
  %v3534 = vld [vmem:[%s3533] sm:$0x1]
  %s3535 = scalar_lea.vmem %s8, 1
  %v3536 = vld [vmem:[%s3535] sm:$0x1]
  %v3538 = vlaneseq
  %v3539 = vshrl.u32 %v3538, 7
  %v3540 = vsub.s32 0, %v3539
  %v3541 = vrot.slane %v3525, %v3540
  %v3544 = vsel %vm77, %v3517, 0
  %v3547 = vsel %vm77, %v3518, 0
  %3549 = vmatprep.subr.mxu0 0.0
  %3550 = vmatpush1.msra.mxu0 0.0
  %3551 = vmatprep.subr.mxu0 0.0
  %3552 = vmatpush1.msra.mxu0 0.0
  %3553 = vmatprep.subr.mxu0 0.0
  %3554 = vmatpush1.msra.mxu0 0.0
  %3555 = vmatprep.subr.mxu0 0.0
  %3556 = vmatpush1.msra.mxu0 0.0
  %3557 = vmatprep.subr.mxu0 0.0
  %3558 = vmatpush1.msra.mxu0 0.0
  %3559 = vmatprep.subr.mxu0 0.0
  %3560 = vmatpush1.msra.mxu0 0.0
  %3561 = vmatprep.subr.mxu0 0.0
  %3562 = vmatpush1.msra.mxu0 0.0
  %3563 = vmatprep.subr.mxu0 0.0
  %3564 = vmatpush1.msra.mxu0 0.0
  %3565 = vmatprep.subr.mxu0 0.0
  %3566 = vmatpush1.msra.mxu0 0.0
  %3567 = vmatprep.subr.mxu0 0.0
  %3568 = vmatpush1.msra.mxu0 0.0
  %3569 = vmatprep.subr.mxu0 0.0
  %3570 = vmatpush1.msra.mxu0 0.0
  %3571 = vmatprep.subr.mxu0 0.0
  %3572 = vmatpush1.msra.mxu0 0.0
  %3573 = vmatprep.subr.mxu0 0.0
  %3574 = vmatpush1.msra.mxu0 %v3523
  %3575 = vmatprep.subr.mxu0 0.0
  %3576 = vmatpush1.msra.mxu0 %v3522
  %3577 = vmatprep.subr.mxu0 0.0
  %3578 = vmatpush1.msra.mxu0 %v3521
  %3579 = vmatprep.subr.mxu0 0.0
  %3580 = vmatpush1.msra.mxu0 %v3520
  %3581 = vmatprep.subr.mxu0 0.0
  %3582 = vmatpush2.msra.mxu0 0.0
  %3583 = vmatprep.subr.mxu0 0.0
  %3584 = vmatpush2.msra.mxu0 0.0
  %3585 = vmatprep.subr.mxu0 0.0
  %3586 = vmatpush2.msra.mxu0 0.0
  %3587 = vmatprep.subr.mxu0 0.0
  %3588 = vmatpush2.msra.mxu0 0.0
  %3589 = vmatprep.subr.mxu0 0.0
  %3590 = vmatpush2.msra.mxu0 0.0
  %3591 = vmatprep.subr.mxu0 0.0
  %3592 = vmatpush2.msra.mxu0 0.0
  %3593 = vmatprep.subr.mxu0 0.0
  %3594 = vmatpush2.msra.mxu0 0.0
  %3595 = vmatprep.subr.mxu0 0.0
  %3596 = vmatpush2.msra.mxu0 0.0
  %3597 = vmatprep.subr.mxu0 0.0
  %3598 = vmatpush2.msra.mxu0 0.0
  %3599 = vmatprep.subr.mxu0 0.0
  %3600 = vmatpush2.msra.mxu0 0.0
  %3601 = vmatprep.subr.mxu0 0.0
  %3602 = vmatpush2.msra.mxu0 0.0
  %3603 = vmatprep.subr.mxu0 0.0
  %3604 = vmatpush2.msra.mxu0 0.0
  %3605 = vmatprep.subr.mxu0 0.0
  %3606 = vmatpush2.msra.mxu0 0.0
  %3607 = vmatprep.subr.mxu0 0.0
  %3608 = vmatpush2.msra.mxu0 0.0
  %3609 = vmatprep.subr.mxu0 0.0
  %3610 = vmatpush2.msra.mxu0 0.0
  %3611 = vmatprep.subr.mxu0 0.0
  %3612 = vmatpush2.msra.mxu0 0.0
  %3613 = vmatprep.mubr.f32.mxu0 0.0
  %3614 = vmatmul.mubr.f32.gmra.mxu0 %v3544
  %v3615 = vpop.f32.mrf.mxu0
  %v3616 = vadd.f32 %v3541, %v3615
  %v3617 = vpop.f32.mrf.mxu0
  %3618 = vmatprep.mubr.f32.mxu0 0.0
  %3619 = vmatmul.mubr.f32.gmra.mxu0 %v3547
  %v3620 = vpop.f32.mrf.mxu0
  %v3621 = vadd.f32 %v3541, %v3620
  %v3622 = vpop.f32.mrf.mxu0
  %3623 = vdwg.mxu0
  %3625 = vrot.lane.b32.xlu0 %v3616, 96
  %v3626 = vpop.permute.xlu0 %3625
  %v3627 = vsel %vm162, %v3616, 0
  %v3629 = vsel %vm162, %v3626, 0
  %3631 = vmatprep.subr.mxu0 0.0
  %3632 = vmatpush1.xpose.msra.mxu0 0.0
  %3633 = vmatprep.subr.mxu0 0.0
  %3634 = vmatpush1.xpose.msra.mxu0 0.0
  %3635 = vmatprep.subr.mxu0 0.0
  %3636 = vmatpush1.xpose.msra.mxu0 0.0
  %3637 = vmatprep.subr.mxu0 0.0
  %3638 = vmatpush1.xpose.msra.mxu0 0.0
  %3639 = vmatprep.subr.mxu0 0.0
  %3640 = vmatpush1.xpose.msra.mxu0 0.0
  %3641 = vmatprep.subr.mxu0 0.0
  %3642 = vmatpush1.xpose.msra.mxu0 0.0
  %3643 = vmatprep.subr.mxu0 0.0
  %3644 = vmatpush1.xpose.msra.mxu0 0.0
  %3645 = vmatprep.subr.mxu0 0.0
  %3646 = vmatpush1.xpose.msra.mxu0 0.0
  %3647 = vmatprep.subr.mxu0 0.0
  %3648 = vmatpush1.xpose.msra.mxu0 0.0
  %3649 = vmatprep.subr.mxu0 0.0
  %3650 = vmatpush1.xpose.msra.mxu0 0.0
  %3651 = vmatprep.subr.mxu0 0.0
  %3652 = vmatpush1.xpose.msra.mxu0 0.0
  %3653 = vmatprep.subr.mxu0 0.0
  %3654 = vmatpush1.xpose.msra.mxu0 0.0
  %3655 = vmatprep.subr.mxu0 0.0
  %3656 = vmatpush1.xpose.msra.mxu0 0.0
  %3657 = vmatprep.subr.mxu0 0.0
  %3658 = vmatpush1.xpose.msra.mxu0 0.0
  %3659 = vmatprep.subr.mxu0 0.0
  %3660 = vmatpush1.xpose.msra.mxu0 0.0
  %3661 = vmatprep.subr.mxu0 0.0
  %3662 = vmatpush1.xpose.msra.mxu0 %v3629
  %3663 = vmatprep.subr.mxu0 0.0
  %3664 = vmatpush2.xpose.msra.mxu0 0.0
  %3665 = vmatprep.subr.mxu0 0.0
  %3666 = vmatpush2.xpose.msra.mxu0 0.0
  %3667 = vmatprep.subr.mxu0 0.0
  %3668 = vmatpush2.xpose.msra.mxu0 0.0
  %3669 = vmatprep.subr.mxu0 0.0
  %3670 = vmatpush2.xpose.msra.mxu0 0.0
  %3671 = vmatprep.subr.mxu0 0.0
  %3672 = vmatpush2.xpose.msra.mxu0 0.0
  %3673 = vmatprep.subr.mxu0 0.0
  %3674 = vmatpush2.xpose.msra.mxu0 0.0
  %3675 = vmatprep.subr.mxu0 0.0
  %3676 = vmatpush2.xpose.msra.mxu0 0.0
  %3677 = vmatprep.subr.mxu0 0.0
  %3678 = vmatpush2.xpose.msra.mxu0 0.0
  %3679 = vmatprep.subr.mxu0 0.0
  %3680 = vmatpush2.xpose.msra.mxu0 0.0
  %3681 = vmatprep.subr.mxu0 0.0
  %3682 = vmatpush2.xpose.msra.mxu0 0.0
  %3683 = vmatprep.subr.mxu0 0.0
  %3684 = vmatpush2.xpose.msra.mxu0 0.0
  %3685 = vmatprep.subr.mxu0 0.0
  %3686 = vmatpush2.xpose.msra.mxu0 0.0
  %3687 = vmatprep.subr.mxu0 0.0
  %3688 = vmatpush2.xpose.msra.mxu0 0.0
  %3689 = vmatprep.subr.mxu0 0.0
  %3690 = vmatpush2.xpose.msra.mxu0 0.0
  %3691 = vmatprep.subr.mxu0 0.0
  %3692 = vmatpush2.xpose.msra.mxu0 0.0
  %3693 = vmatprep.subr.mxu0 0.0
  %3694 = vmatpush2.xpose.msra.mxu0 0.0
  %3695 = vmatprep.mubr.f32.mxu0 0.0
  %3696 = vmatmul.mubr.f32.gmra.mxu0 %v3627
  %v3697 = vpop.f32.mrf.mxu0
  %v3698 = vadd.f32 %v57, %v3697
  %v3699 = vpop.f32.mrf.mxu0
  %3700 = vdwg.mxu0
  %3702 = vrot.lane.b32.xlu0 %v3621, 96
  %v3703 = vpop.permute.xlu0 %3702
  %v3704 = vsel %vm162, %v3621, 0
  %v3706 = vsel %vm162, %v3703, 0
  %3708 = vmatprep.subr.mxu0 0.0
  %3709 = vmatpush1.xpose.msra.mxu0 0.0
  %3710 = vmatprep.subr.mxu0 0.0
  %3711 = vmatpush1.xpose.msra.mxu0 0.0
  %3712 = vmatprep.subr.mxu0 0.0
  %3713 = vmatpush1.xpose.msra.mxu0 0.0
  %3714 = vmatprep.subr.mxu0 0.0
  %3715 = vmatpush1.xpose.msra.mxu0 0.0
  %3716 = vmatprep.subr.mxu0 0.0
  %3717 = vmatpush1.xpose.msra.mxu0 0.0
  %3718 = vmatprep.subr.mxu0 0.0
  %3719 = vmatpush1.xpose.msra.mxu0 0.0
  %3720 = vmatprep.subr.mxu0 0.0
  %3721 = vmatpush1.xpose.msra.mxu0 0.0
  %3722 = vmatprep.subr.mxu0 0.0
  %3723 = vmatpush1.xpose.msra.mxu0 0.0
  %3724 = vmatprep.subr.mxu0 0.0
  %3725 = vmatpush1.xpose.msra.mxu0 0.0
  %3726 = vmatprep.subr.mxu0 0.0
  %3727 = vmatpush1.xpose.msra.mxu0 0.0
  %3728 = vmatprep.subr.mxu0 0.0
  %3729 = vmatpush1.xpose.msra.mxu0 0.0
  %3730 = vmatprep.subr.mxu0 0.0
  %3731 = vmatpush1.xpose.msra.mxu0 0.0
  %3732 = vmatprep.subr.mxu0 0.0
  %3733 = vmatpush1.xpose.msra.mxu0 0.0
  %3734 = vmatprep.subr.mxu0 0.0
  %3735 = vmatpush1.xpose.msra.mxu0 0.0
  %3736 = vmatprep.subr.mxu0 0.0
  %3737 = vmatpush1.xpose.msra.mxu0 0.0
  %3738 = vmatprep.subr.mxu0 0.0
  %3739 = vmatpush1.xpose.msra.mxu0 %v3706
  %3740 = vmatprep.subr.mxu0 0.0
  %3741 = vmatpush2.xpose.msra.mxu0 0.0
  %3742 = vmatprep.subr.mxu0 0.0
  %3743 = vmatpush2.xpose.msra.mxu0 0.0
  %3744 = vmatprep.subr.mxu0 0.0
  %3745 = vmatpush2.xpose.msra.mxu0 0.0
  %3746 = vmatprep.subr.mxu0 0.0
  %3747 = vmatpush2.xpose.msra.mxu0 0.0
  %3748 = vmatprep.subr.mxu0 0.0
  %3749 = vmatpush2.xpose.msra.mxu0 0.0
  %3750 = vmatprep.subr.mxu0 0.0
  %3751 = vmatpush2.xpose.msra.mxu0 0.0
  %3752 = vmatprep.subr.mxu0 0.0
  %3753 = vmatpush2.xpose.msra.mxu0 0.0
  %3754 = vmatprep.subr.mxu0 0.0
  %3755 = vmatpush2.xpose.msra.mxu0 0.0
  %3756 = vmatprep.subr.mxu0 0.0
  %3757 = vmatpush2.xpose.msra.mxu0 0.0
  %3758 = vmatprep.subr.mxu0 0.0
  %3759 = vmatpush2.xpose.msra.mxu0 0.0
  %3760 = vmatprep.subr.mxu0 0.0
  %3761 = vmatpush2.xpose.msra.mxu0 0.0
  %3762 = vmatprep.subr.mxu0 0.0
  %3763 = vmatpush2.xpose.msra.mxu0 0.0
  %3764 = vmatprep.subr.mxu0 0.0
  %3765 = vmatpush2.xpose.msra.mxu0 0.0
  %3766 = vmatprep.subr.mxu0 0.0
  %3767 = vmatpush2.xpose.msra.mxu0 0.0
  %3768 = vmatprep.subr.mxu0 0.0
  %3769 = vmatpush2.xpose.msra.mxu0 0.0
  %3770 = vmatprep.subr.mxu0 0.0
  %3771 = vmatpush2.xpose.msra.mxu0 0.0
  %3772 = vmatprep.mubr.f32.mxu0 0.0
  %3773 = vmatmul.mubr.f32.gmra.mxu0 %v3704
  %v3774 = vpop.f32.mrf.mxu0
  %v3775 = vadd.f32 %v58, %v3774
  %v3776 = vpop.f32.mrf.mxu0
  %3777 = vdwg.mxu0
  %v3778 = vsel %vm162, %v3698, -inf
  %3779 = vmax.xlane.f32.xlu0 %v3778
  %v3780 = vpop.xlane.xlu0 %3779
  %v3781 = vsel %vm162, %v3775, -inf
  %3782 = vmax.xlane.f32.xlu0 %v3781
  %v3783 = vpop.xlane.xlu0 %3782
  %v3784 = vsub.f32 %v3698, %v3780
  %v3785 = vsub.f32 %v3775, %v3783
  %v3786 = vmul.f32 %v3784, 1.442695
  %v3787 = vpow.pop %v3786
  %v3788 = vmul.f32 %v3785, 1.442695
  %v3789 = vpow.pop %v3788
  %v3790 = vsel %vm162, %v3787, 0.0
  %3791 = vadd.xlane.f32.xlu0 %v3790
  %v3792 = vpop.xlane.xlu0 %3791
  %v3793 = vsel %vm162, %v3789, 0.0
  %3794 = vadd.xlane.f32.xlu0 %v3793
  %v3795 = vpop.xlane.xlu0 %3794
  %v3796 = vrcp.pop %v3792
  %v3797 = vrcp.pop %v3795
  %v3798 = vmul.f32 %v3787, %v3796
  %v3799 = vmul.f32 %v3789, %v3797
  %3800 = vrot.lane.b32.xlu0 %v3616, 64
  %v3801 = vpop.permute.xlu0 %3800
  %v3804 = vsel %vm162, %v3798, 0
  %3806 = vmatprep.subr.mxu0 0.0
  %3807 = vmatpush1.msra.mxu0 0.0
  %3808 = vmatprep.subr.mxu0 0.0
  %3809 = vmatpush1.msra.mxu0 0.0
  %3810 = vmatprep.subr.mxu0 0.0
  %3811 = vmatpush1.msra.mxu0 0.0
  %3812 = vmatprep.subr.mxu0 0.0
  %3813 = vmatpush1.msra.mxu0 0.0
  %3814 = vmatprep.subr.mxu0 0.0
  %3815 = vmatpush1.msra.mxu0 0.0
  %3816 = vmatprep.subr.mxu0 0.0
  %3817 = vmatpush1.msra.mxu0 0.0
  %3818 = vmatprep.subr.mxu0 0.0
  %3819 = vmatpush1.msra.mxu0 0.0
  %3820 = vmatprep.subr.mxu0 0.0
  %3821 = vmatpush1.msra.mxu0 0.0
  %3822 = vmatprep.subr.mxu0 0.0
  %3823 = vmatpush1.msra.mxu0 0.0
  %3824 = vmatprep.subr.mxu0 0.0
  %3825 = vmatpush1.msra.mxu0 0.0
  %3826 = vmatprep.subr.mxu0 0.0
  %3827 = vmatpush1.msra.mxu0 0.0
  %3828 = vmatprep.subr.mxu0 0.0
  %3829 = vmatpush1.msra.mxu0 0.0
  %3830 = vmatprep.subr.mxu0 0.0
  %3831 = vmatpush1.msra.mxu0 0.0
  %3832 = vmatprep.subr.mxu0 0.0
  %3833 = vmatpush1.msra.mxu0 0.0
  %3834 = vmatprep.subr.mxu0 0.0
  %3835 = vmatpush1.msra.mxu0 0.0
  %3836 = vmatprep.subr.mxu0 0.0
  %3837 = vmatpush1.msra.mxu0 %v3801
  %3838 = vmatprep.subr.mxu0 0.0
  %3839 = vmatpush2.msra.mxu0 0.0
  %3840 = vmatprep.subr.mxu0 0.0
  %3841 = vmatpush2.msra.mxu0 0.0
  %3842 = vmatprep.subr.mxu0 0.0
  %3843 = vmatpush2.msra.mxu0 0.0
  %3844 = vmatprep.subr.mxu0 0.0
  %3845 = vmatpush2.msra.mxu0 0.0
  %3846 = vmatprep.subr.mxu0 0.0
  %3847 = vmatpush2.msra.mxu0 0.0
  %3848 = vmatprep.subr.mxu0 0.0
  %3849 = vmatpush2.msra.mxu0 0.0
  %3850 = vmatprep.subr.mxu0 0.0
  %3851 = vmatpush2.msra.mxu0 0.0
  %3852 = vmatprep.subr.mxu0 0.0
  %3853 = vmatpush2.msra.mxu0 0.0
  %3854 = vmatprep.subr.mxu0 0.0
  %3855 = vmatpush2.msra.mxu0 0.0
  %3856 = vmatprep.subr.mxu0 0.0
  %3857 = vmatpush2.msra.mxu0 0.0
  %3858 = vmatprep.subr.mxu0 0.0
  %3859 = vmatpush2.msra.mxu0 0.0
  %3860 = vmatprep.subr.mxu0 0.0
  %3861 = vmatpush2.msra.mxu0 0.0
  %3862 = vmatprep.subr.mxu0 0.0
  %3863 = vmatpush2.msra.mxu0 0.0
  %3864 = vmatprep.subr.mxu0 0.0
  %3865 = vmatpush2.msra.mxu0 0.0
  %3866 = vmatprep.subr.mxu0 0.0
  %3867 = vmatpush2.msra.mxu0 0.0
  %3868 = vmatprep.subr.mxu0 0.0
  %3869 = vmatpush2.msra.mxu0 0.0
  %3870 = vmatprep.mubr.f32.mxu0 0.0
  %3871 = vmatmul.mubr.f32.gmra.mxu0 %v3804
  %v3872 = vpop.f32.mrf.mxu0
  %v3873 = vadd.f32 0.0, %v3872
  %v3874 = vpop.f32.mrf.mxu0
  %3875 = vdwg.mxu0
  %3876 = vrot.lane.b32.xlu0 %v3621, 64
  %v3877 = vpop.permute.xlu0 %3876
  %v3880 = vsel %vm162, %v3799, 0
  %3882 = vmatprep.subr.mxu0 0.0
  %3883 = vmatpush1.msra.mxu0 0.0
  %3884 = vmatprep.subr.mxu0 0.0
  %3885 = vmatpush1.msra.mxu0 0.0
  %3886 = vmatprep.subr.mxu0 0.0
  %3887 = vmatpush1.msra.mxu0 0.0
  %3888 = vmatprep.subr.mxu0 0.0
  %3889 = vmatpush1.msra.mxu0 0.0
  %3890 = vmatprep.subr.mxu0 0.0
  %3891 = vmatpush1.msra.mxu0 0.0
  %3892 = vmatprep.subr.mxu0 0.0
  %3893 = vmatpush1.msra.mxu0 0.0
  %3894 = vmatprep.subr.mxu0 0.0
  %3895 = vmatpush1.msra.mxu0 0.0
  %3896 = vmatprep.subr.mxu0 0.0
  %3897 = vmatpush1.msra.mxu0 0.0
  %3898 = vmatprep.subr.mxu0 0.0
  %3899 = vmatpush1.msra.mxu0 0.0
  %3900 = vmatprep.subr.mxu0 0.0
  %3901 = vmatpush1.msra.mxu0 0.0
  %3902 = vmatprep.subr.mxu0 0.0
  %3903 = vmatpush1.msra.mxu0 0.0
  %3904 = vmatprep.subr.mxu0 0.0
  %3905 = vmatpush1.msra.mxu0 0.0
  %3906 = vmatprep.subr.mxu0 0.0
  %3907 = vmatpush1.msra.mxu0 0.0
  %3908 = vmatprep.subr.mxu0 0.0
  %3909 = vmatpush1.msra.mxu0 0.0
  %3910 = vmatprep.subr.mxu0 0.0
  %3911 = vmatpush1.msra.mxu0 0.0
  %3912 = vmatprep.subr.mxu0 0.0
  %3913 = vmatpush1.msra.mxu0 %v3877
  %3914 = vmatprep.subr.mxu0 0.0
  %3915 = vmatpush2.msra.mxu0 0.0
  %3916 = vmatprep.subr.mxu0 0.0
  %3917 = vmatpush2.msra.mxu0 0.0
  %3918 = vmatprep.subr.mxu0 0.0
  %3919 = vmatpush2.msra.mxu0 0.0
  %3920 = vmatprep.subr.mxu0 0.0
  %3921 = vmatpush2.msra.mxu0 0.0
  %3922 = vmatprep.subr.mxu0 0.0
  %3923 = vmatpush2.msra.mxu0 0.0
  %3924 = vmatprep.subr.mxu0 0.0
  %3925 = vmatpush2.msra.mxu0 0.0
  %3926 = vmatprep.subr.mxu0 0.0
  %3927 = vmatpush2.msra.mxu0 0.0
  %3928 = vmatprep.subr.mxu0 0.0
  %3929 = vmatpush2.msra.mxu0 0.0
  %3930 = vmatprep.subr.mxu0 0.0
  %3931 = vmatpush2.msra.mxu0 0.0
  %3932 = vmatprep.subr.mxu0 0.0
  %3933 = vmatpush2.msra.mxu0 0.0
  %3934 = vmatprep.subr.mxu0 0.0
  %3935 = vmatpush2.msra.mxu0 0.0
  %3936 = vmatprep.subr.mxu0 0.0
  %3937 = vmatpush2.msra.mxu0 0.0
  %3938 = vmatprep.subr.mxu0 0.0
  %3939 = vmatpush2.msra.mxu0 0.0
  %3940 = vmatprep.subr.mxu0 0.0
  %3941 = vmatpush2.msra.mxu0 0.0
  %3942 = vmatprep.subr.mxu0 0.0
  %3943 = vmatpush2.msra.mxu0 0.0
  %3944 = vmatprep.subr.mxu0 0.0
  %3945 = vmatpush2.msra.mxu0 0.0
  %3946 = vmatprep.mubr.f32.mxu0 0.0
  %3947 = vmatmul.mubr.f32.gmra.mxu0 %v3880
  %v3948 = vpop.f32.mrf.mxu0
  %v3949 = vadd.f32 0.0, %v3948
  %v3950 = vpop.f32.mrf.mxu0
  %3951 = vdwg.mxu0
  %3952 = vrot.lane.b32.xlu0 %v3616, 120
  %v3953 = vpop.permute.xlu0 %3952
  %3954 = vrot.lane.b32.xlu0 %v3616, 88
  %v3955 = vpop.permute.xlu0 %3954
  %v3956 = vsel %vm162, %v3953, 0
  %v3958 = vsel %vm162, %v3955, 0
  %3960 = vmatprep.subr.mxu0 0.0
  %3961 = vmatpush1.xpose.msra.mxu0 0.0
  %3962 = vmatprep.subr.mxu0 0.0
  %3963 = vmatpush1.xpose.msra.mxu0 0.0
  %3964 = vmatprep.subr.mxu0 0.0
  %3965 = vmatpush1.xpose.msra.mxu0 0.0
  %3966 = vmatprep.subr.mxu0 0.0
  %3967 = vmatpush1.xpose.msra.mxu0 0.0
  %3968 = vmatprep.subr.mxu0 0.0
  %3969 = vmatpush1.xpose.msra.mxu0 0.0
  %3970 = vmatprep.subr.mxu0 0.0
  %3971 = vmatpush1.xpose.msra.mxu0 0.0
  %3972 = vmatprep.subr.mxu0 0.0
  %3973 = vmatpush1.xpose.msra.mxu0 0.0
  %3974 = vmatprep.subr.mxu0 0.0
  %3975 = vmatpush1.xpose.msra.mxu0 0.0
  %3976 = vmatprep.subr.mxu0 0.0
  %3977 = vmatpush1.xpose.msra.mxu0 0.0
  %3978 = vmatprep.subr.mxu0 0.0
  %3979 = vmatpush1.xpose.msra.mxu0 0.0
  %3980 = vmatprep.subr.mxu0 0.0
  %3981 = vmatpush1.xpose.msra.mxu0 0.0
  %3982 = vmatprep.subr.mxu0 0.0
  %3983 = vmatpush1.xpose.msra.mxu0 0.0
  %3984 = vmatprep.subr.mxu0 0.0
  %3985 = vmatpush1.xpose.msra.mxu0 0.0
  %3986 = vmatprep.subr.mxu0 0.0
  %3987 = vmatpush1.xpose.msra.mxu0 0.0
  %3988 = vmatprep.subr.mxu0 0.0
  %3989 = vmatpush1.xpose.msra.mxu0 0.0
  %3990 = vmatprep.subr.mxu0 0.0
  %3991 = vmatpush1.xpose.msra.mxu0 %v3958
  %3992 = vmatprep.subr.mxu0 0.0
  %3993 = vmatpush2.xpose.msra.mxu0 0.0
  %3994 = vmatprep.subr.mxu0 0.0
  %3995 = vmatpush2.xpose.msra.mxu0 0.0
  %3996 = vmatprep.subr.mxu0 0.0
  %3997 = vmatpush2.xpose.msra.mxu0 0.0
  %3998 = vmatprep.subr.mxu0 0.0
  %3999 = vmatpush2.xpose.msra.mxu0 0.0
  %4000 = vmatprep.subr.mxu0 0.0
  %4001 = vmatpush2.xpose.msra.mxu0 0.0
  %4002 = vmatprep.subr.mxu0 0.0
  %4003 = vmatpush2.xpose.msra.mxu0 0.0
  %4004 = vmatprep.subr.mxu0 0.0
  %4005 = vmatpush2.xpose.msra.mxu0 0.0
  %4006 = vmatprep.subr.mxu0 0.0
  %4007 = vmatpush2.xpose.msra.mxu0 0.0
  %4008 = vmatprep.subr.mxu0 0.0
  %4009 = vmatpush2.xpose.msra.mxu0 0.0
  %4010 = vmatprep.subr.mxu0 0.0
  %4011 = vmatpush2.xpose.msra.mxu0 0.0
  %4012 = vmatprep.subr.mxu0 0.0
  %4013 = vmatpush2.xpose.msra.mxu0 0.0
  %4014 = vmatprep.subr.mxu0 0.0
  %4015 = vmatpush2.xpose.msra.mxu0 0.0
  %4016 = vmatprep.subr.mxu0 0.0
  %4017 = vmatpush2.xpose.msra.mxu0 0.0
  %4018 = vmatprep.subr.mxu0 0.0
  %4019 = vmatpush2.xpose.msra.mxu0 0.0
  %4020 = vmatprep.subr.mxu0 0.0
  %4021 = vmatpush2.xpose.msra.mxu0 0.0
  %4022 = vmatprep.subr.mxu0 0.0
  %4023 = vmatpush2.xpose.msra.mxu0 0.0
  %4024 = vmatprep.mubr.f32.mxu0 0.0
  %4025 = vmatmul.mubr.f32.gmra.mxu0 %v3956
  %v4026 = vpop.f32.mrf.mxu0
  %v4027 = vadd.f32 %v57, %v4026
  %v4028 = vpop.f32.mrf.mxu0
  %4029 = vdwg.mxu0
  %4030 = vrot.lane.b32.xlu0 %v3621, 120
  %v4031 = vpop.permute.xlu0 %4030
  %4032 = vrot.lane.b32.xlu0 %v3621, 88
  %v4033 = vpop.permute.xlu0 %4032
  %v4034 = vsel %vm162, %v4031, 0
  %v4036 = vsel %vm162, %v4033, 0
  %4038 = vmatprep.subr.mxu0 0.0
  %4039 = vmatpush1.xpose.msra.mxu0 0.0
  %4040 = vmatprep.subr.mxu0 0.0
  %4041 = vmatpush1.xpose.msra.mxu0 0.0
  %4042 = vmatprep.subr.mxu0 0.0
  %4043 = vmatpush1.xpose.msra.mxu0 0.0
  %4044 = vmatprep.subr.mxu0 0.0
  %4045 = vmatpush1.xpose.msra.mxu0 0.0
  %4046 = vmatprep.subr.mxu0 0.0
  %4047 = vmatpush1.xpose.msra.mxu0 0.0
  %4048 = vmatprep.subr.mxu0 0.0
  %4049 = vmatpush1.xpose.msra.mxu0 0.0
  %4050 = vmatprep.subr.mxu0 0.0
  %4051 = vmatpush1.xpose.msra.mxu0 0.0
  %4052 = vmatprep.subr.mxu0 0.0
  %4053 = vmatpush1.xpose.msra.mxu0 0.0
  %4054 = vmatprep.subr.mxu0 0.0
  %4055 = vmatpush1.xpose.msra.mxu0 0.0
  %4056 = vmatprep.subr.mxu0 0.0
  %4057 = vmatpush1.xpose.msra.mxu0 0.0
  %4058 = vmatprep.subr.mxu0 0.0
  %4059 = vmatpush1.xpose.msra.mxu0 0.0
  %4060 = vmatprep.subr.mxu0 0.0
  %4061 = vmatpush1.xpose.msra.mxu0 0.0
  %4062 = vmatprep.subr.mxu0 0.0
  %4063 = vmatpush1.xpose.msra.mxu0 0.0
  %4064 = vmatprep.subr.mxu0 0.0
  %4065 = vmatpush1.xpose.msra.mxu0 0.0
  %4066 = vmatprep.subr.mxu0 0.0
  %4067 = vmatpush1.xpose.msra.mxu0 0.0
  %4068 = vmatprep.subr.mxu0 0.0
  %4069 = vmatpush1.xpose.msra.mxu0 %v4036
  %4070 = vmatprep.subr.mxu0 0.0
  %4071 = vmatpush2.xpose.msra.mxu0 0.0
  %4072 = vmatprep.subr.mxu0 0.0
  %4073 = vmatpush2.xpose.msra.mxu0 0.0
  %4074 = vmatprep.subr.mxu0 0.0
  %4075 = vmatpush2.xpose.msra.mxu0 0.0
  %4076 = vmatprep.subr.mxu0 0.0
  %4077 = vmatpush2.xpose.msra.mxu0 0.0
  %4078 = vmatprep.subr.mxu0 0.0
  %4079 = vmatpush2.xpose.msra.mxu0 0.0
  %4080 = vmatprep.subr.mxu0 0.0
  %4081 = vmatpush2.xpose.msra.mxu0 0.0
  %4082 = vmatprep.subr.mxu0 0.0
  %4083 = vmatpush2.xpose.msra.mxu0 0.0
  %4084 = vmatprep.subr.mxu0 0.0
  %4085 = vmatpush2.xpose.msra.mxu0 0.0
  %4086 = vmatprep.subr.mxu0 0.0
  %4087 = vmatpush2.xpose.msra.mxu0 0.0
  %4088 = vmatprep.subr.mxu0 0.0
  %4089 = vmatpush2.xpose.msra.mxu0 0.0
  %4090 = vmatprep.subr.mxu0 0.0
  %4091 = vmatpush2.xpose.msra.mxu0 0.0
  %4092 = vmatprep.subr.mxu0 0.0
  %4093 = vmatpush2.xpose.msra.mxu0 0.0
  %4094 = vmatprep.subr.mxu0 0.0
  %4095 = vmatpush2.xpose.msra.mxu0 0.0
  %4096 = vmatprep.subr.mxu0 0.0
  %4097 = vmatpush2.xpose.msra.mxu0 0.0
  %4098 = vmatprep.subr.mxu0 0.0
  %4099 = vmatpush2.xpose.msra.mxu0 0.0
  %4100 = vmatprep.subr.mxu0 0.0
  %4101 = vmatpush2.xpose.msra.mxu0 0.0
  %4102 = vmatprep.mubr.f32.mxu0 0.0
  %4103 = vmatmul.mubr.f32.gmra.mxu0 %v4034
  %v4104 = vpop.f32.mrf.mxu0
  %v4105 = vadd.f32 %v58, %v4104
  %v4106 = vpop.f32.mrf.mxu0
  %4107 = vdwg.mxu0
  %v4108 = vsel %vm162, %v4027, -inf
  %4109 = vmax.xlane.f32.xlu0 %v4108
  %v4110 = vpop.xlane.xlu0 %4109
  %v4111 = vsel %vm162, %v4105, -inf
  %4112 = vmax.xlane.f32.xlu0 %v4111
  %v4113 = vpop.xlane.xlu0 %4112
  %v4114 = vsub.f32 %v4027, %v4110
  %v4115 = vsub.f32 %v4105, %v4113
  %v4116 = vmul.f32 %v4114, 1.442695
  %v4117 = vpow.pop %v4116
  %v4118 = vmul.f32 %v4115, 1.442695
  %v4119 = vpow.pop %v4118
  %v4120 = vsel %vm162, %v4117, 0.0
  %4121 = vadd.xlane.f32.xlu0 %v4120
  %v4122 = vpop.xlane.xlu0 %4121
  %v4123 = vsel %vm162, %v4119, 0.0
  %4124 = vadd.xlane.f32.xlu0 %v4123
  %v4125 = vpop.xlane.xlu0 %4124
  %v4126 = vrcp.pop %v4122
  %v4127 = vrcp.pop %v4125
  %v4128 = vmul.f32 %v4117, %v4126
  %v4129 = vmul.f32 %v4119, %v4127
  %4130 = vrot.lane.b32.xlu0 %v3616, 56
  %v4131 = vpop.permute.xlu0 %4130
  %v4134 = vsel %vm162, %v4128, 0
  %4136 = vmatprep.subr.mxu0 0.0
  %4137 = vmatpush1.msra.mxu0 0.0
  %4138 = vmatprep.subr.mxu0 0.0
  %4139 = vmatpush1.msra.mxu0 0.0
  %4140 = vmatprep.subr.mxu0 0.0
  %4141 = vmatpush1.msra.mxu0 0.0
  %4142 = vmatprep.subr.mxu0 0.0
  %4143 = vmatpush1.msra.mxu0 0.0
  %4144 = vmatprep.subr.mxu0 0.0
  %4145 = vmatpush1.msra.mxu0 0.0
  %4146 = vmatprep.subr.mxu0 0.0
  %4147 = vmatpush1.msra.mxu0 0.0
  %4148 = vmatprep.subr.mxu0 0.0
  %4149 = vmatpush1.msra.mxu0 0.0
  %4150 = vmatprep.subr.mxu0 0.0
  %4151 = vmatpush1.msra.mxu0 0.0
  %4152 = vmatprep.subr.mxu0 0.0
  %4153 = vmatpush1.msra.mxu0 0.0
  %4154 = vmatprep.subr.mxu0 0.0
  %4155 = vmatpush1.msra.mxu0 0.0
  %4156 = vmatprep.subr.mxu0 0.0
  %4157 = vmatpush1.msra.mxu0 0.0
  %4158 = vmatprep.subr.mxu0 0.0
  %4159 = vmatpush1.msra.mxu0 0.0
  %4160 = vmatprep.subr.mxu0 0.0
  %4161 = vmatpush1.msra.mxu0 0.0
  %4162 = vmatprep.subr.mxu0 0.0
  %4163 = vmatpush1.msra.mxu0 0.0
  %4164 = vmatprep.subr.mxu0 0.0
  %4165 = vmatpush1.msra.mxu0 0.0
  %4166 = vmatprep.subr.mxu0 0.0
  %4167 = vmatpush1.msra.mxu0 %v4131
  %4168 = vmatprep.subr.mxu0 0.0
  %4169 = vmatpush2.msra.mxu0 0.0
  %4170 = vmatprep.subr.mxu0 0.0
  %4171 = vmatpush2.msra.mxu0 0.0
  %4172 = vmatprep.subr.mxu0 0.0
  %4173 = vmatpush2.msra.mxu0 0.0
  %4174 = vmatprep.subr.mxu0 0.0
  %4175 = vmatpush2.msra.mxu0 0.0
  %4176 = vmatprep.subr.mxu0 0.0
  %4177 = vmatpush2.msra.mxu0 0.0
  %4178 = vmatprep.subr.mxu0 0.0
  %4179 = vmatpush2.msra.mxu0 0.0
  %4180 = vmatprep.subr.mxu0 0.0
  %4181 = vmatpush2.msra.mxu0 0.0
  %4182 = vmatprep.subr.mxu0 0.0
  %4183 = vmatpush2.msra.mxu0 0.0
  %4184 = vmatprep.subr.mxu0 0.0
  %4185 = vmatpush2.msra.mxu0 0.0
  %4186 = vmatprep.subr.mxu0 0.0
  %4187 = vmatpush2.msra.mxu0 0.0
  %4188 = vmatprep.subr.mxu0 0.0
  %4189 = vmatpush2.msra.mxu0 0.0
  %4190 = vmatprep.subr.mxu0 0.0
  %4191 = vmatpush2.msra.mxu0 0.0
  %4192 = vmatprep.subr.mxu0 0.0
  %4193 = vmatpush2.msra.mxu0 0.0
  %4194 = vmatprep.subr.mxu0 0.0
  %4195 = vmatpush2.msra.mxu0 0.0
  %4196 = vmatprep.subr.mxu0 0.0
  %4197 = vmatpush2.msra.mxu0 0.0
  %4198 = vmatprep.subr.mxu0 0.0
  %4199 = vmatpush2.msra.mxu0 0.0
  %4200 = vmatprep.mubr.f32.mxu0 0.0
  %4201 = vmatmul.mubr.f32.gmra.mxu0 %v4134
  %v4202 = vpop.f32.mrf.mxu0
  %v4203 = vadd.f32 0.0, %v4202
  %v4204 = vpop.f32.mrf.mxu0
  %4205 = vdwg.mxu0
  %4206 = vrot.lane.b32.xlu0 %v3621, 56
  %v4207 = vpop.permute.xlu0 %4206
  %v4210 = vsel %vm162, %v4129, 0
  %4212 = vmatprep.subr.mxu0 0.0
  %4213 = vmatpush1.msra.mxu0 0.0
  %4214 = vmatprep.subr.mxu0 0.0
  %4215 = vmatpush1.msra.mxu0 0.0
  %4216 = vmatprep.subr.mxu0 0.0
  %4217 = vmatpush1.msra.mxu0 0.0
  %4218 = vmatprep.subr.mxu0 0.0
  %4219 = vmatpush1.msra.mxu0 0.0
  %4220 = vmatprep.subr.mxu0 0.0
  %4221 = vmatpush1.msra.mxu0 0.0
  %4222 = vmatprep.subr.mxu0 0.0
  %4223 = vmatpush1.msra.mxu0 0.0
  %4224 = vmatprep.subr.mxu0 0.0
  %4225 = vmatpush1.msra.mxu0 0.0
  %4226 = vmatprep.subr.mxu0 0.0
  %4227 = vmatpush1.msra.mxu0 0.0
  %4228 = vmatprep.subr.mxu0 0.0
  %4229 = vmatpush1.msra.mxu0 0.0
  %4230 = vmatprep.subr.mxu0 0.0
  %4231 = vmatpush1.msra.mxu0 0.0
  %4232 = vmatprep.subr.mxu0 0.0
  %4233 = vmatpush1.msra.mxu0 0.0
  %4234 = vmatprep.subr.mxu0 0.0
  %4235 = vmatpush1.msra.mxu0 0.0
  %4236 = vmatprep.subr.mxu0 0.0
  %4237 = vmatpush1.msra.mxu0 0.0
  %4238 = vmatprep.subr.mxu0 0.0
  %4239 = vmatpush1.msra.mxu0 0.0
  %4240 = vmatprep.subr.mxu0 0.0
  %4241 = vmatpush1.msra.mxu0 0.0
  %4242 = vmatprep.subr.mxu0 0.0
  %4243 = vmatpush1.msra.mxu0 %v4207
  %4244 = vmatprep.subr.mxu0 0.0
  %4245 = vmatpush2.msra.mxu0 0.0
  %4246 = vmatprep.subr.mxu0 0.0
  %4247 = vmatpush2.msra.mxu0 0.0
  %4248 = vmatprep.subr.mxu0 0.0
  %4249 = vmatpush2.msra.mxu0 0.0
  %4250 = vmatprep.subr.mxu0 0.0
  %4251 = vmatpush2.msra.mxu0 0.0
  %4252 = vmatprep.subr.mxu0 0.0
  %4253 = vmatpush2.msra.mxu0 0.0
  %4254 = vmatprep.subr.mxu0 0.0
  %4255 = vmatpush2.msra.mxu0 0.0
  %4256 = vmatprep.subr.mxu0 0.0
  %4257 = vmatpush2.msra.mxu0 0.0
  %4258 = vmatprep.subr.mxu0 0.0
  %4259 = vmatpush2.msra.mxu0 0.0
  %4260 = vmatprep.subr.mxu0 0.0
  %4261 = vmatpush2.msra.mxu0 0.0
  %4262 = vmatprep.subr.mxu0 0.0
  %4263 = vmatpush2.msra.mxu0 0.0
  %4264 = vmatprep.subr.mxu0 0.0
  %4265 = vmatpush2.msra.mxu0 0.0
  %4266 = vmatprep.subr.mxu0 0.0
  %4267 = vmatpush2.msra.mxu0 0.0
  %4268 = vmatprep.subr.mxu0 0.0
  %4269 = vmatpush2.msra.mxu0 0.0
  %4270 = vmatprep.subr.mxu0 0.0
  %4271 = vmatpush2.msra.mxu0 0.0
  %4272 = vmatprep.subr.mxu0 0.0
  %4273 = vmatpush2.msra.mxu0 0.0
  %4274 = vmatprep.subr.mxu0 0.0
  %4275 = vmatpush2.msra.mxu0 0.0
  %4276 = vmatprep.mubr.f32.mxu0 0.0
  %4277 = vmatmul.mubr.f32.gmra.mxu0 %v4210
  %v4278 = vpop.f32.mrf.mxu0
  %v4279 = vadd.f32 0.0, %v4278
  %v4280 = vpop.f32.mrf.mxu0
  %4281 = vdwg.mxu0
  %4282 = vrot.lane.b32.xlu0 %v3616, 112
  %v4283 = vpop.permute.xlu0 %4282
  %4284 = vrot.lane.b32.xlu0 %v3616, 80
  %v4285 = vpop.permute.xlu0 %4284
  %v4286 = vsel %vm162, %v4283, 0
  %v4288 = vsel %vm162, %v4285, 0
  %4290 = vmatprep.subr.mxu0 0.0
  %4291 = vmatpush1.xpose.msra.mxu0 0.0
  %4292 = vmatprep.subr.mxu0 0.0
  %4293 = vmatpush1.xpose.msra.mxu0 0.0
  %4294 = vmatprep.subr.mxu0 0.0
  %4295 = vmatpush1.xpose.msra.mxu0 0.0
  %4296 = vmatprep.subr.mxu0 0.0
  %4297 = vmatpush1.xpose.msra.mxu0 0.0
  %4298 = vmatprep.subr.mxu0 0.0
  %4299 = vmatpush1.xpose.msra.mxu0 0.0
  %4300 = vmatprep.subr.mxu0 0.0
  %4301 = vmatpush1.xpose.msra.mxu0 0.0
  %4302 = vmatprep.subr.mxu0 0.0
  %4303 = vmatpush1.xpose.msra.mxu0 0.0
  %4304 = vmatprep.subr.mxu0 0.0
  %4305 = vmatpush1.xpose.msra.mxu0 0.0
  %4306 = vmatprep.subr.mxu0 0.0
  %4307 = vmatpush1.xpose.msra.mxu0 0.0
  %4308 = vmatprep.subr.mxu0 0.0
  %4309 = vmatpush1.xpose.msra.mxu0 0.0
  %4310 = vmatprep.subr.mxu0 0.0
  %4311 = vmatpush1.xpose.msra.mxu0 0.0
  %4312 = vmatprep.subr.mxu0 0.0
  %4313 = vmatpush1.xpose.msra.mxu0 0.0
  %4314 = vmatprep.subr.mxu0 0.0
  %4315 = vmatpush1.xpose.msra.mxu0 0.0
  %4316 = vmatprep.subr.mxu0 0.0
  %4317 = vmatpush1.xpose.msra.mxu0 0.0
  %4318 = vmatprep.subr.mxu0 0.0
  %4319 = vmatpush1.xpose.msra.mxu0 0.0
  %4320 = vmatprep.subr.mxu0 0.0
  %4321 = vmatpush1.xpose.msra.mxu0 %v4288
  %4322 = vmatprep.subr.mxu0 0.0
  %4323 = vmatpush2.xpose.msra.mxu0 0.0
  %4324 = vmatprep.subr.mxu0 0.0
  %4325 = vmatpush2.xpose.msra.mxu0 0.0
  %4326 = vmatprep.subr.mxu0 0.0
  %4327 = vmatpush2.xpose.msra.mxu0 0.0
  %4328 = vmatprep.subr.mxu0 0.0
  %4329 = vmatpush2.xpose.msra.mxu0 0.0
  %4330 = vmatprep.subr.mxu0 0.0
  %4331 = vmatpush2.xpose.msra.mxu0 0.0
  %4332 = vmatprep.subr.mxu0 0.0
  %4333 = vmatpush2.xpose.msra.mxu0 0.0
  %4334 = vmatprep.subr.mxu0 0.0
  %4335 = vmatpush2.xpose.msra.mxu0 0.0
  %4336 = vmatprep.subr.mxu0 0.0
  %4337 = vmatpush2.xpose.msra.mxu0 0.0
  %4338 = vmatprep.subr.mxu0 0.0
  %4339 = vmatpush2.xpose.msra.mxu0 0.0
  %4340 = vmatprep.subr.mxu0 0.0
  %4341 = vmatpush2.xpose.msra.mxu0 0.0
  %4342 = vmatprep.subr.mxu0 0.0
  %4343 = vmatpush2.xpose.msra.mxu0 0.0
  %4344 = vmatprep.subr.mxu0 0.0
  %4345 = vmatpush2.xpose.msra.mxu0 0.0
  %4346 = vmatprep.subr.mxu0 0.0
  %4347 = vmatpush2.xpose.msra.mxu0 0.0
  %4348 = vmatprep.subr.mxu0 0.0
  %4349 = vmatpush2.xpose.msra.mxu0 0.0
  %4350 = vmatprep.subr.mxu0 0.0
  %4351 = vmatpush2.xpose.msra.mxu0 0.0
  %4352 = vmatprep.subr.mxu0 0.0
  %4353 = vmatpush2.xpose.msra.mxu0 0.0
  %4354 = vmatprep.mubr.f32.mxu0 0.0
  %4355 = vmatmul.mubr.f32.gmra.mxu0 %v4286
  %v4356 = vpop.f32.mrf.mxu0
  %v4357 = vadd.f32 %v57, %v4356
  %v4358 = vpop.f32.mrf.mxu0
  %4359 = vdwg.mxu0
  %4360 = vrot.lane.b32.xlu0 %v3621, 112
  %v4361 = vpop.permute.xlu0 %4360
  %4362 = vrot.lane.b32.xlu0 %v3621, 80
  %v4363 = vpop.permute.xlu0 %4362
  %v4364 = vsel %vm162, %v4361, 0
  %v4366 = vsel %vm162, %v4363, 0
  %4368 = vmatprep.subr.mxu0 0.0
  %4369 = vmatpush1.xpose.msra.mxu0 0.0
  %4370 = vmatprep.subr.mxu0 0.0
  %4371 = vmatpush1.xpose.msra.mxu0 0.0
  %4372 = vmatprep.subr.mxu0 0.0
  %4373 = vmatpush1.xpose.msra.mxu0 0.0
  %4374 = vmatprep.subr.mxu0 0.0
  %4375 = vmatpush1.xpose.msra.mxu0 0.0
  %4376 = vmatprep.subr.mxu0 0.0
  %4377 = vmatpush1.xpose.msra.mxu0 0.0
  %4378 = vmatprep.subr.mxu0 0.0
  %4379 = vmatpush1.xpose.msra.mxu0 0.0
  %4380 = vmatprep.subr.mxu0 0.0
  %4381 = vmatpush1.xpose.msra.mxu0 0.0
  %4382 = vmatprep.subr.mxu0 0.0
  %4383 = vmatpush1.xpose.msra.mxu0 0.0
  %4384 = vmatprep.subr.mxu0 0.0
  %4385 = vmatpush1.xpose.msra.mxu0 0.0
  %4386 = vmatprep.subr.mxu0 0.0
  %4387 = vmatpush1.xpose.msra.mxu0 0.0
  %4388 = vmatprep.subr.mxu0 0.0
  %4389 = vmatpush1.xpose.msra.mxu0 0.0
  %4390 = vmatprep.subr.mxu0 0.0
  %4391 = vmatpush1.xpose.msra.mxu0 0.0
  %4392 = vmatprep.subr.mxu0 0.0
  %4393 = vmatpush1.xpose.msra.mxu0 0.0
  %4394 = vmatprep.subr.mxu0 0.0
  %4395 = vmatpush1.xpose.msra.mxu0 0.0
  %4396 = vmatprep.subr.mxu0 0.0
  %4397 = vmatpush1.xpose.msra.mxu0 0.0
  %4398 = vmatprep.subr.mxu0 0.0
  %4399 = vmatpush1.xpose.msra.mxu0 %v4366
  %4400 = vmatprep.subr.mxu0 0.0
  %4401 = vmatpush2.xpose.msra.mxu0 0.0
  %4402 = vmatprep.subr.mxu0 0.0
  %4403 = vmatpush2.xpose.msra.mxu0 0.0
  %4404 = vmatprep.subr.mxu0 0.0
  %4405 = vmatpush2.xpose.msra.mxu0 0.0
  %4406 = vmatprep.subr.mxu0 0.0
  %4407 = vmatpush2.xpose.msra.mxu0 0.0
  %4408 = vmatprep.subr.mxu0 0.0
  %4409 = vmatpush2.xpose.msra.mxu0 0.0
  %4410 = vmatprep.subr.mxu0 0.0
  %4411 = vmatpush2.xpose.msra.mxu0 0.0
  %4412 = vmatprep.subr.mxu0 0.0
  %4413 = vmatpush2.xpose.msra.mxu0 0.0
  %4414 = vmatprep.subr.mxu0 0.0
  %4415 = vmatpush2.xpose.msra.mxu0 0.0
  %4416 = vmatprep.subr.mxu0 0.0
  %4417 = vmatpush2.xpose.msra.mxu0 0.0
  %4418 = vmatprep.subr.mxu0 0.0
  %4419 = vmatpush2.xpose.msra.mxu0 0.0
  %4420 = vmatprep.subr.mxu0 0.0
  %4421 = vmatpush2.xpose.msra.mxu0 0.0
  %4422 = vmatprep.subr.mxu0 0.0
  %4423 = vmatpush2.xpose.msra.mxu0 0.0
  %4424 = vmatprep.subr.mxu0 0.0
  %4425 = vmatpush2.xpose.msra.mxu0 0.0
  %4426 = vmatprep.subr.mxu0 0.0
  %4427 = vmatpush2.xpose.msra.mxu0 0.0
  %4428 = vmatprep.subr.mxu0 0.0
  %4429 = vmatpush2.xpose.msra.mxu0 0.0
  %4430 = vmatprep.subr.mxu0 0.0
  %4431 = vmatpush2.xpose.msra.mxu0 0.0
  %4432 = vmatprep.mubr.f32.mxu0 0.0
  %4433 = vmatmul.mubr.f32.gmra.mxu0 %v4364
  %v4434 = vpop.f32.mrf.mxu0
  %v4435 = vadd.f32 %v58, %v4434
  %v4436 = vpop.f32.mrf.mxu0
  %4437 = vdwg.mxu0
  %v4438 = vsel %vm162, %v4357, -inf
  %4439 = vmax.xlane.f32.xlu0 %v4438
  %v4440 = vpop.xlane.xlu0 %4439
  %v4441 = vsel %vm162, %v4435, -inf
  %4442 = vmax.xlane.f32.xlu0 %v4441
  %v4443 = vpop.xlane.xlu0 %4442
  %v4444 = vsub.f32 %v4357, %v4440
  %v4445 = vsub.f32 %v4435, %v4443
  %v4446 = vmul.f32 %v4444, 1.442695
  %v4447 = vpow.pop %v4446
  %v4448 = vmul.f32 %v4445, 1.442695
  %v4449 = vpow.pop %v4448
  %v4450 = vsel %vm162, %v4447, 0.0
  %4451 = vadd.xlane.f32.xlu0 %v4450
  %v4452 = vpop.xlane.xlu0 %4451
  %v4453 = vsel %vm162, %v4449, 0.0
  %4454 = vadd.xlane.f32.xlu0 %v4453
  %v4455 = vpop.xlane.xlu0 %4454
  %v4456 = vrcp.pop %v4452
  %v4457 = vrcp.pop %v4455
  %v4458 = vmul.f32 %v4447, %v4456
  %v4459 = vmul.f32 %v4449, %v4457
  %4460 = vrot.lane.b32.xlu0 %v3616, 48
  %v4461 = vpop.permute.xlu0 %4460
  %v4464 = vsel %vm162, %v4458, 0
  %4466 = vmatprep.subr.mxu0 0.0
  %4467 = vmatpush1.msra.mxu0 0.0
  %4468 = vmatprep.subr.mxu0 0.0
  %4469 = vmatpush1.msra.mxu0 0.0
  %4470 = vmatprep.subr.mxu0 0.0
  %4471 = vmatpush1.msra.mxu0 0.0
  %4472 = vmatprep.subr.mxu0 0.0
  %4473 = vmatpush1.msra.mxu0 0.0
  %4474 = vmatprep.subr.mxu0 0.0
  %4475 = vmatpush1.msra.mxu0 0.0
  %4476 = vmatprep.subr.mxu0 0.0
  %4477 = vmatpush1.msra.mxu0 0.0
  %4478 = vmatprep.subr.mxu0 0.0
  %4479 = vmatpush1.msra.mxu0 0.0
  %4480 = vmatprep.subr.mxu0 0.0
  %4481 = vmatpush1.msra.mxu0 0.0
  %4482 = vmatprep.subr.mxu0 0.0
  %4483 = vmatpush1.msra.mxu0 0.0
  %4484 = vmatprep.subr.mxu0 0.0
  %4485 = vmatpush1.msra.mxu0 0.0
  %4486 = vmatprep.subr.mxu0 0.0
  %4487 = vmatpush1.msra.mxu0 0.0
  %4488 = vmatprep.subr.mxu0 0.0
  %4489 = vmatpush1.msra.mxu0 0.0
  %4490 = vmatprep.subr.mxu0 0.0
  %4491 = vmatpush1.msra.mxu0 0.0
  %4492 = vmatprep.subr.mxu0 0.0
  %4493 = vmatpush1.msra.mxu0 0.0
  %4494 = vmatprep.subr.mxu0 0.0
  %4495 = vmatpush1.msra.mxu0 0.0
  %4496 = vmatprep.subr.mxu0 0.0
  %4497 = vmatpush1.msra.mxu0 %v4461
  %4498 = vmatprep.subr.mxu0 0.0
  %4499 = vmatpush2.msra.mxu0 0.0
  %4500 = vmatprep.subr.mxu0 0.0
  %4501 = vmatpush2.msra.mxu0 0.0
  %4502 = vmatprep.subr.mxu0 0.0
  %4503 = vmatpush2.msra.mxu0 0.0
  %4504 = vmatprep.subr.mxu0 0.0
  %4505 = vmatpush2.msra.mxu0 0.0
  %4506 = vmatprep.subr.mxu0 0.0
  %4507 = vmatpush2.msra.mxu0 0.0
  %4508 = vmatprep.subr.mxu0 0.0
  %4509 = vmatpush2.msra.mxu0 0.0
  %4510 = vmatprep.subr.mxu0 0.0
  %4511 = vmatpush2.msra.mxu0 0.0
  %4512 = vmatprep.subr.mxu0 0.0
  %4513 = vmatpush2.msra.mxu0 0.0
  %4514 = vmatprep.subr.mxu0 0.0
  %4515 = vmatpush2.msra.mxu0 0.0
  %4516 = vmatprep.subr.mxu0 0.0
  %4517 = vmatpush2.msra.mxu0 0.0
  %4518 = vmatprep.subr.mxu0 0.0
  %4519 = vmatpush2.msra.mxu0 0.0
  %4520 = vmatprep.subr.mxu0 0.0
  %4521 = vmatpush2.msra.mxu0 0.0
  %4522 = vmatprep.subr.mxu0 0.0
  %4523 = vmatpush2.msra.mxu0 0.0
  %4524 = vmatprep.subr.mxu0 0.0
  %4525 = vmatpush2.msra.mxu0 0.0
  %4526 = vmatprep.subr.mxu0 0.0
  %4527 = vmatpush2.msra.mxu0 0.0
  %4528 = vmatprep.subr.mxu0 0.0
  %4529 = vmatpush2.msra.mxu0 0.0
  %4530 = vmatprep.mubr.f32.mxu0 0.0
  %4531 = vmatmul.mubr.f32.gmra.mxu0 %v4464
  %v4532 = vpop.f32.mrf.mxu0
  %v4533 = vadd.f32 0.0, %v4532
  %v4534 = vpop.f32.mrf.mxu0
  %4535 = vdwg.mxu0
  %4536 = vrot.lane.b32.xlu0 %v3621, 48
  %v4537 = vpop.permute.xlu0 %4536
  %v4540 = vsel %vm162, %v4459, 0
  %4542 = vmatprep.subr.mxu0 0.0
  %4543 = vmatpush1.msra.mxu0 0.0
  %4544 = vmatprep.subr.mxu0 0.0
  %4545 = vmatpush1.msra.mxu0 0.0
  %4546 = vmatprep.subr.mxu0 0.0
  %4547 = vmatpush1.msra.mxu0 0.0
  %4548 = vmatprep.subr.mxu0 0.0
  %4549 = vmatpush1.msra.mxu0 0.0
  %4550 = vmatprep.subr.mxu0 0.0
  %4551 = vmatpush1.msra.mxu0 0.0
  %4552 = vmatprep.subr.mxu0 0.0
  %4553 = vmatpush1.msra.mxu0 0.0
  %4554 = vmatprep.subr.mxu0 0.0
  %4555 = vmatpush1.msra.mxu0 0.0
  %4556 = vmatprep.subr.mxu0 0.0
  %4557 = vmatpush1.msra.mxu0 0.0
  %4558 = vmatprep.subr.mxu0 0.0
  %4559 = vmatpush1.msra.mxu0 0.0
  %4560 = vmatprep.subr.mxu0 0.0
  %4561 = vmatpush1.msra.mxu0 0.0
  %4562 = vmatprep.subr.mxu0 0.0
  %4563 = vmatpush1.msra.mxu0 0.0
  %4564 = vmatprep.subr.mxu0 0.0
  %4565 = vmatpush1.msra.mxu0 0.0
  %4566 = vmatprep.subr.mxu0 0.0
  %4567 = vmatpush1.msra.mxu0 0.0
  %4568 = vmatprep.subr.mxu0 0.0
  %4569 = vmatpush1.msra.mxu0 0.0
  %4570 = vmatprep.subr.mxu0 0.0
  %4571 = vmatpush1.msra.mxu0 0.0
  %4572 = vmatprep.subr.mxu0 0.0
  %4573 = vmatpush1.msra.mxu0 %v4537
  %4574 = vmatprep.subr.mxu0 0.0
  %4575 = vmatpush2.msra.mxu0 0.0
  %4576 = vmatprep.subr.mxu0 0.0
  %4577 = vmatpush2.msra.mxu0 0.0
  %4578 = vmatprep.subr.mxu0 0.0
  %4579 = vmatpush2.msra.mxu0 0.0
  %4580 = vmatprep.subr.mxu0 0.0
  %4581 = vmatpush2.msra.mxu0 0.0
  %4582 = vmatprep.subr.mxu0 0.0
  %4583 = vmatpush2.msra.mxu0 0.0
  %4584 = vmatprep.subr.mxu0 0.0
  %4585 = vmatpush2.msra.mxu0 0.0
  %4586 = vmatprep.subr.mxu0 0.0
  %4587 = vmatpush2.msra.mxu0 0.0
  %4588 = vmatprep.subr.mxu0 0.0
  %4589 = vmatpush2.msra.mxu0 0.0
  %4590 = vmatprep.subr.mxu0 0.0
  %4591 = vmatpush2.msra.mxu0 0.0
  %4592 = vmatprep.subr.mxu0 0.0
  %4593 = vmatpush2.msra.mxu0 0.0
  %4594 = vmatprep.subr.mxu0 0.0
  %4595 = vmatpush2.msra.mxu0 0.0
  %4596 = vmatprep.subr.mxu0 0.0
  %4597 = vmatpush2.msra.mxu0 0.0
  %4598 = vmatprep.subr.mxu0 0.0
  %4599 = vmatpush2.msra.mxu0 0.0
  %4600 = vmatprep.subr.mxu0 0.0
  %4601 = vmatpush2.msra.mxu0 0.0
  %4602 = vmatprep.subr.mxu0 0.0
  %4603 = vmatpush2.msra.mxu0 0.0
  %4604 = vmatprep.subr.mxu0 0.0
  %4605 = vmatpush2.msra.mxu0 0.0
  %4606 = vmatprep.mubr.f32.mxu0 0.0
  %4607 = vmatmul.mubr.f32.gmra.mxu0 %v4540
  %v4608 = vpop.f32.mrf.mxu0
  %v4609 = vadd.f32 0.0, %v4608
  %v4610 = vpop.f32.mrf.mxu0
  %4611 = vdwg.mxu0
  %4612 = vrot.lane.b32.xlu0 %v3616, 104
  %v4613 = vpop.permute.xlu0 %4612
  %4614 = vrot.lane.b32.xlu0 %v3616, 72
  %v4615 = vpop.permute.xlu0 %4614
  %v4616 = vsel %vm162, %v4613, 0
  %v4618 = vsel %vm162, %v4615, 0
  %4620 = vmatprep.subr.mxu0 0.0
  %4621 = vmatpush1.xpose.msra.mxu0 0.0
  %4622 = vmatprep.subr.mxu0 0.0
  %4623 = vmatpush1.xpose.msra.mxu0 0.0
  %4624 = vmatprep.subr.mxu0 0.0
  %4625 = vmatpush1.xpose.msra.mxu0 0.0
  %4626 = vmatprep.subr.mxu0 0.0
  %4627 = vmatpush1.xpose.msra.mxu0 0.0
  %4628 = vmatprep.subr.mxu0 0.0
  %4629 = vmatpush1.xpose.msra.mxu0 0.0
  %4630 = vmatprep.subr.mxu0 0.0
  %4631 = vmatpush1.xpose.msra.mxu0 0.0
  %4632 = vmatprep.subr.mxu0 0.0
  %4633 = vmatpush1.xpose.msra.mxu0 0.0
  %4634 = vmatprep.subr.mxu0 0.0
  %4635 = vmatpush1.xpose.msra.mxu0 0.0
  %4636 = vmatprep.subr.mxu0 0.0
  %4637 = vmatpush1.xpose.msra.mxu0 0.0
  %4638 = vmatprep.subr.mxu0 0.0
  %4639 = vmatpush1.xpose.msra.mxu0 0.0
  %4640 = vmatprep.subr.mxu0 0.0
  %4641 = vmatpush1.xpose.msra.mxu0 0.0
  %4642 = vmatprep.subr.mxu0 0.0
  %4643 = vmatpush1.xpose.msra.mxu0 0.0
  %4644 = vmatprep.subr.mxu0 0.0
  %4645 = vmatpush1.xpose.msra.mxu0 0.0
  %4646 = vmatprep.subr.mxu0 0.0
  %4647 = vmatpush1.xpose.msra.mxu0 0.0
  %4648 = vmatprep.subr.mxu0 0.0
  %4649 = vmatpush1.xpose.msra.mxu0 0.0
  %4650 = vmatprep.subr.mxu0 0.0
  %4651 = vmatpush1.xpose.msra.mxu0 %v4618
  %4652 = vmatprep.subr.mxu0 0.0
  %4653 = vmatpush2.xpose.msra.mxu0 0.0
  %4654 = vmatprep.subr.mxu0 0.0
  %4655 = vmatpush2.xpose.msra.mxu0 0.0
  %4656 = vmatprep.subr.mxu0 0.0
  %4657 = vmatpush2.xpose.msra.mxu0 0.0
  %4658 = vmatprep.subr.mxu0 0.0
  %4659 = vmatpush2.xpose.msra.mxu0 0.0
  %4660 = vmatprep.subr.mxu0 0.0
  %4661 = vmatpush2.xpose.msra.mxu0 0.0
  %4662 = vmatprep.subr.mxu0 0.0
  %4663 = vmatpush2.xpose.msra.mxu0 0.0
  %4664 = vmatprep.subr.mxu0 0.0
  %4665 = vmatpush2.xpose.msra.mxu0 0.0
  %4666 = vmatprep.subr.mxu0 0.0
  %4667 = vmatpush2.xpose.msra.mxu0 0.0
  %4668 = vmatprep.subr.mxu0 0.0
  %4669 = vmatpush2.xpose.msra.mxu0 0.0
  %4670 = vmatprep.subr.mxu0 0.0
  %4671 = vmatpush2.xpose.msra.mxu0 0.0
  %4672 = vmatprep.subr.mxu0 0.0
  %4673 = vmatpush2.xpose.msra.mxu0 0.0
  %4674 = vmatprep.subr.mxu0 0.0
  %4675 = vmatpush2.xpose.msra.mxu0 0.0
  %4676 = vmatprep.subr.mxu0 0.0
  %4677 = vmatpush2.xpose.msra.mxu0 0.0
  %4678 = vmatprep.subr.mxu0 0.0
  %4679 = vmatpush2.xpose.msra.mxu0 0.0
  %4680 = vmatprep.subr.mxu0 0.0
  %4681 = vmatpush2.xpose.msra.mxu0 0.0
  %4682 = vmatprep.subr.mxu0 0.0
  %4683 = vmatpush2.xpose.msra.mxu0 0.0
  %4684 = vmatprep.mubr.f32.mxu0 0.0
  %4685 = vmatmul.mubr.f32.gmra.mxu0 %v4616
  %v4686 = vpop.f32.mrf.mxu0
  %v4687 = vadd.f32 %v57, %v4686
  %v4688 = vpop.f32.mrf.mxu0
  %4689 = vdwg.mxu0
  %4690 = vrot.lane.b32.xlu0 %v3621, 104
  %v4691 = vpop.permute.xlu0 %4690
  %4692 = vrot.lane.b32.xlu0 %v3621, 72
  %v4693 = vpop.permute.xlu0 %4692
  %v4694 = vsel %vm162, %v4691, 0
  %v4696 = vsel %vm162, %v4693, 0
  %4698 = vmatprep.subr.mxu0 0.0
  %4699 = vmatpush1.xpose.msra.mxu0 0.0
  %4700 = vmatprep.subr.mxu0 0.0
  %4701 = vmatpush1.xpose.msra.mxu0 0.0
  %4702 = vmatprep.subr.mxu0 0.0
  %4703 = vmatpush1.xpose.msra.mxu0 0.0
  %4704 = vmatprep.subr.mxu0 0.0
  %4705 = vmatpush1.xpose.msra.mxu0 0.0
  %4706 = vmatprep.subr.mxu0 0.0
  %4707 = vmatpush1.xpose.msra.mxu0 0.0
  %4708 = vmatprep.subr.mxu0 0.0
  %4709 = vmatpush1.xpose.msra.mxu0 0.0
  %4710 = vmatprep.subr.mxu0 0.0
  %4711 = vmatpush1.xpose.msra.mxu0 0.0
  %4712 = vmatprep.subr.mxu0 0.0
  %4713 = vmatpush1.xpose.msra.mxu0 0.0
  %4714 = vmatprep.subr.mxu0 0.0
  %4715 = vmatpush1.xpose.msra.mxu0 0.0
  %4716 = vmatprep.subr.mxu0 0.0
  %4717 = vmatpush1.xpose.msra.mxu0 0.0
  %4718 = vmatprep.subr.mxu0 0.0
  %4719 = vmatpush1.xpose.msra.mxu0 0.0
  %4720 = vmatprep.subr.mxu0 0.0
  %4721 = vmatpush1.xpose.msra.mxu0 0.0
  %4722 = vmatprep.subr.mxu0 0.0
  %4723 = vmatpush1.xpose.msra.mxu0 0.0
  %4724 = vmatprep.subr.mxu0 0.0
  %4725 = vmatpush1.xpose.msra.mxu0 0.0
  %4726 = vmatprep.subr.mxu0 0.0
  %4727 = vmatpush1.xpose.msra.mxu0 0.0
  %4728 = vmatprep.subr.mxu0 0.0
  %4729 = vmatpush1.xpose.msra.mxu0 %v4696
  %4730 = vmatprep.subr.mxu0 0.0
  %4731 = vmatpush2.xpose.msra.mxu0 0.0
  %4732 = vmatprep.subr.mxu0 0.0
  %4733 = vmatpush2.xpose.msra.mxu0 0.0
  %4734 = vmatprep.subr.mxu0 0.0
  %4735 = vmatpush2.xpose.msra.mxu0 0.0
  %4736 = vmatprep.subr.mxu0 0.0
  %4737 = vmatpush2.xpose.msra.mxu0 0.0
  %4738 = vmatprep.subr.mxu0 0.0
  %4739 = vmatpush2.xpose.msra.mxu0 0.0
  %4740 = vmatprep.subr.mxu0 0.0
  %4741 = vmatpush2.xpose.msra.mxu0 0.0
  %4742 = vmatprep.subr.mxu0 0.0
  %4743 = vmatpush2.xpose.msra.mxu0 0.0
  %4744 = vmatprep.subr.mxu0 0.0
  %4745 = vmatpush2.xpose.msra.mxu0 0.0
  %4746 = vmatprep.subr.mxu0 0.0
  %4747 = vmatpush2.xpose.msra.mxu0 0.0
  %4748 = vmatprep.subr.mxu0 0.0
  %4749 = vmatpush2.xpose.msra.mxu0 0.0
  %4750 = vmatprep.subr.mxu0 0.0
  %4751 = vmatpush2.xpose.msra.mxu0 0.0
  %4752 = vmatprep.subr.mxu0 0.0
  %4753 = vmatpush2.xpose.msra.mxu0 0.0
  %4754 = vmatprep.subr.mxu0 0.0
  %4755 = vmatpush2.xpose.msra.mxu0 0.0
  %4756 = vmatprep.subr.mxu0 0.0
  %4757 = vmatpush2.xpose.msra.mxu0 0.0
  %4758 = vmatprep.subr.mxu0 0.0
  %4759 = vmatpush2.xpose.msra.mxu0 0.0
  %4760 = vmatprep.subr.mxu0 0.0
  %4761 = vmatpush2.xpose.msra.mxu0 0.0
  %4762 = vmatprep.mubr.f32.mxu0 0.0
  %4763 = vmatmul.mubr.f32.gmra.mxu0 %v4694
  %v4764 = vpop.f32.mrf.mxu0
  %v4765 = vadd.f32 %v58, %v4764
  %v4766 = vpop.f32.mrf.mxu0
  %4767 = vdwg.mxu0
  %v4768 = vsel %vm162, %v4687, -inf
  %4769 = vmax.xlane.f32.xlu0 %v4768
  %v4770 = vpop.xlane.xlu0 %4769
  %v4771 = vsel %vm162, %v4765, -inf
  %4772 = vmax.xlane.f32.xlu0 %v4771
  %v4773 = vpop.xlane.xlu0 %4772
  %v4774 = vsub.f32 %v4687, %v4770
  %v4775 = vsub.f32 %v4765, %v4773
  %v4776 = vmul.f32 %v4774, 1.442695
  %v4777 = vpow.pop %v4776
  %v4778 = vmul.f32 %v4775, 1.442695
  %v4779 = vpow.pop %v4778
  %v4780 = vsel %vm162, %v4777, 0.0
  %4781 = vadd.xlane.f32.xlu0 %v4780
  %v4782 = vpop.xlane.xlu0 %4781
  %v4783 = vsel %vm162, %v4779, 0.0
  %4784 = vadd.xlane.f32.xlu0 %v4783
  %v4785 = vpop.xlane.xlu0 %4784
  %v4786 = vrcp.pop %v4782
  %v4787 = vrcp.pop %v4785
  %v4788 = vmul.f32 %v4777, %v4786
  %v4789 = vmul.f32 %v4779, %v4787
  %4790 = vrot.lane.b32.xlu0 %v3616, 40
  %v4791 = vpop.permute.xlu0 %4790
  %v4794 = vsel %vm162, %v4788, 0
  %4796 = vmatprep.subr.mxu0 0.0
  %4797 = vmatpush1.msra.mxu0 0.0
  %4798 = vmatprep.subr.mxu0 0.0
  %4799 = vmatpush1.msra.mxu0 0.0
  %4800 = vmatprep.subr.mxu0 0.0
  %4801 = vmatpush1.msra.mxu0 0.0
  %4802 = vmatprep.subr.mxu0 0.0
  %4803 = vmatpush1.msra.mxu0 0.0
  %4804 = vmatprep.subr.mxu0 0.0
  %4805 = vmatpush1.msra.mxu0 0.0
  %4806 = vmatprep.subr.mxu0 0.0
  %4807 = vmatpush1.msra.mxu0 0.0
  %4808 = vmatprep.subr.mxu0 0.0
  %4809 = vmatpush1.msra.mxu0 0.0
  %4810 = vmatprep.subr.mxu0 0.0
  %4811 = vmatpush1.msra.mxu0 0.0
  %4812 = vmatprep.subr.mxu0 0.0
  %4813 = vmatpush1.msra.mxu0 0.0
  %4814 = vmatprep.subr.mxu0 0.0
  %4815 = vmatpush1.msra.mxu0 0.0
  %4816 = vmatprep.subr.mxu0 0.0
  %4817 = vmatpush1.msra.mxu0 0.0
  %4818 = vmatprep.subr.mxu0 0.0
  %4819 = vmatpush1.msra.mxu0 0.0
  %4820 = vmatprep.subr.mxu0 0.0
  %4821 = vmatpush1.msra.mxu0 0.0
  %4822 = vmatprep.subr.mxu0 0.0
  %4823 = vmatpush1.msra.mxu0 0.0
  %4824 = vmatprep.subr.mxu0 0.0
  %4825 = vmatpush1.msra.mxu0 0.0
  %4826 = vmatprep.subr.mxu0 0.0
  %4827 = vmatpush1.msra.mxu0 %v4791
  %4828 = vmatprep.subr.mxu0 0.0
  %4829 = vmatpush2.msra.mxu0 0.0
  %4830 = vmatprep.subr.mxu0 0.0
  %4831 = vmatpush2.msra.mxu0 0.0
  %4832 = vmatprep.subr.mxu0 0.0
  %4833 = vmatpush2.msra.mxu0 0.0
  %4834 = vmatprep.subr.mxu0 0.0
  %4835 = vmatpush2.msra.mxu0 0.0
  %4836 = vmatprep.subr.mxu0 0.0
  %4837 = vmatpush2.msra.mxu0 0.0
  %4838 = vmatprep.subr.mxu0 0.0
  %4839 = vmatpush2.msra.mxu0 0.0
  %4840 = vmatprep.subr.mxu0 0.0
  %4841 = vmatpush2.msra.mxu0 0.0
  %4842 = vmatprep.subr.mxu0 0.0
  %4843 = vmatpush2.msra.mxu0 0.0
  %4844 = vmatprep.subr.mxu0 0.0
  %4845 = vmatpush2.msra.mxu0 0.0
  %4846 = vmatprep.subr.mxu0 0.0
  %4847 = vmatpush2.msra.mxu0 0.0
  %4848 = vmatprep.subr.mxu0 0.0
  %4849 = vmatpush2.msra.mxu0 0.0
  %4850 = vmatprep.subr.mxu0 0.0
  %4851 = vmatpush2.msra.mxu0 0.0
  %4852 = vmatprep.subr.mxu0 0.0
  %4853 = vmatpush2.msra.mxu0 0.0
  %4854 = vmatprep.subr.mxu0 0.0
  %4855 = vmatpush2.msra.mxu0 0.0
  %4856 = vmatprep.subr.mxu0 0.0
  %4857 = vmatpush2.msra.mxu0 0.0
  %4858 = vmatprep.subr.mxu0 0.0
  %4859 = vmatpush2.msra.mxu0 0.0
  %4860 = vmatprep.mubr.f32.mxu0 0.0
  %4861 = vmatmul.mubr.f32.gmra.mxu0 %v4794
  %v4862 = vpop.f32.mrf.mxu0
  %v4863 = vadd.f32 0.0, %v4862
  %v4864 = vpop.f32.mrf.mxu0
  %4865 = vdwg.mxu0
  %4866 = vrot.lane.b32.xlu0 %v3621, 40
  %v4867 = vpop.permute.xlu0 %4866
  %v4870 = vsel %vm162, %v4789, 0
  %4872 = vmatprep.subr.mxu0 0.0
  %4873 = vmatpush1.msra.mxu0 0.0
  %4874 = vmatprep.subr.mxu0 0.0
  %4875 = vmatpush1.msra.mxu0 0.0
  %4876 = vmatprep.subr.mxu0 0.0
  %4877 = vmatpush1.msra.mxu0 0.0
  %4878 = vmatprep.subr.mxu0 0.0
  %4879 = vmatpush1.msra.mxu0 0.0
  %4880 = vmatprep.subr.mxu0 0.0
  %4881 = vmatpush1.msra.mxu0 0.0
  %4882 = vmatprep.subr.mxu0 0.0
  %4883 = vmatpush1.msra.mxu0 0.0
  %4884 = vmatprep.subr.mxu0 0.0
  %4885 = vmatpush1.msra.mxu0 0.0
  %4886 = vmatprep.subr.mxu0 0.0
  %4887 = vmatpush1.msra.mxu0 0.0
  %4888 = vmatprep.subr.mxu0 0.0
  %4889 = vmatpush1.msra.mxu0 0.0
  %4890 = vmatprep.subr.mxu0 0.0
  %4891 = vmatpush1.msra.mxu0 0.0
  %4892 = vmatprep.subr.mxu0 0.0
  %4893 = vmatpush1.msra.mxu0 0.0
  %4894 = vmatprep.subr.mxu0 0.0
  %4895 = vmatpush1.msra.mxu0 0.0
  %4896 = vmatprep.subr.mxu0 0.0
  %4897 = vmatpush1.msra.mxu0 0.0
  %4898 = vmatprep.subr.mxu0 0.0
  %4899 = vmatpush1.msra.mxu0 0.0
  %4900 = vmatprep.subr.mxu0 0.0
  %4901 = vmatpush1.msra.mxu0 0.0
  %4902 = vmatprep.subr.mxu0 0.0
  %4903 = vmatpush1.msra.mxu0 %v4867
  %4904 = vmatprep.subr.mxu0 0.0
  %4905 = vmatpush2.msra.mxu0 0.0
  %4906 = vmatprep.subr.mxu0 0.0
  %4907 = vmatpush2.msra.mxu0 0.0
  %4908 = vmatprep.subr.mxu0 0.0
  %4909 = vmatpush2.msra.mxu0 0.0
  %4910 = vmatprep.subr.mxu0 0.0
  %4911 = vmatpush2.msra.mxu0 0.0
  %4912 = vmatprep.subr.mxu0 0.0
  %4913 = vmatpush2.msra.mxu0 0.0
  %4914 = vmatprep.subr.mxu0 0.0
  %4915 = vmatpush2.msra.mxu0 0.0
  %4916 = vmatprep.subr.mxu0 0.0
  %4917 = vmatpush2.msra.mxu0 0.0
  %4918 = vmatprep.subr.mxu0 0.0
  %4919 = vmatpush2.msra.mxu0 0.0
  %4920 = vmatprep.subr.mxu0 0.0
  %4921 = vmatpush2.msra.mxu0 0.0
  %4922 = vmatprep.subr.mxu0 0.0
  %4923 = vmatpush2.msra.mxu0 0.0
  %4924 = vmatprep.subr.mxu0 0.0
  %4925 = vmatpush2.msra.mxu0 0.0
  %4926 = vmatprep.subr.mxu0 0.0
  %4927 = vmatpush2.msra.mxu0 0.0
  %4928 = vmatprep.subr.mxu0 0.0
  %4929 = vmatpush2.msra.mxu0 0.0
  %4930 = vmatprep.subr.mxu0 0.0
  %4931 = vmatpush2.msra.mxu0 0.0
  %4932 = vmatprep.subr.mxu0 0.0
  %4933 = vmatpush2.msra.mxu0 0.0
  %4934 = vmatprep.subr.mxu0 0.0
  %4935 = vmatpush2.msra.mxu0 0.0
  %4936 = vmatprep.mubr.f32.mxu0 0.0
  %4937 = vmatmul.mubr.f32.gmra.mxu0 %v4870
  %v4938 = vpop.f32.mrf.mxu0
  %v4939 = vadd.f32 0.0, %v4938
  %v4940 = vpop.f32.mrf.mxu0
  %4941 = vdwg.mxu0
  %4944 = vrot.lane.b32.xlu0 %v4203, 8
  %v4945 = vpop.permute.xlu0 %4944
  %4946 = vrot.lane.b32.xlu0 %v4279, 8
  %v4947 = vpop.permute.xlu0 %4946
  %4952 = vrot.lane.b32.xlu0 %v4533, 16
  %v4953 = vpop.permute.xlu0 %4952
  %4954 = vrot.lane.b32.xlu0 %v4609, 16
  %v4955 = vpop.permute.xlu0 %4954
  %4960 = vrot.lane.b32.xlu0 %v4863, 24
  %v4961 = vpop.permute.xlu0 %4960
  %4962 = vrot.lane.b32.xlu0 %v4939, 24
  %v4963 = vpop.permute.xlu0 %4962
  %v4966 = vsel %vm162, %v3873, %v4945
  %v4967 = vsel %vm162, %v3949, %v4947
  %v4968 = vsel %vm1504, %v4966, %v4953
  %v4969 = vsel %vm1504, %v4967, %v4955
  %v4970 = vsel %vm1507, %v4968, %v4961
  %v4971 = vsel %vm1507, %v4969, %v4963
  %v4973 = vlaneseq
  %v4974 = vshrl.u32 %v4973, 7
  %v4975 = vsub.s32 0, %v4974
  %v4976 = vrot.slane %v3532, %v4975
  %v4979 = vsel %vm77, %v4970, 0
  %v4982 = vsel %vm77, %v4971, 0
  %4984 = vmatprep.subr.mxu0 0.0
  %4985 = vmatpush1.msra.mxu0 0.0
  %4986 = vmatprep.subr.mxu0 0.0
  %4987 = vmatpush1.msra.mxu0 0.0
  %4988 = vmatprep.subr.mxu0 0.0
  %4989 = vmatpush1.msra.mxu0 0.0
  %4990 = vmatprep.subr.mxu0 0.0
  %4991 = vmatpush1.msra.mxu0 0.0
  %4992 = vmatprep.subr.mxu0 0.0
  %4993 = vmatpush1.msra.mxu0 0.0
  %4994 = vmatprep.subr.mxu0 0.0
  %4995 = vmatpush1.msra.mxu0 0.0
  %4996 = vmatprep.subr.mxu0 0.0
  %4997 = vmatpush1.msra.mxu0 0.0
  %4998 = vmatprep.subr.mxu0 0.0
  %4999 = vmatpush1.msra.mxu0 0.0
  %5000 = vmatprep.subr.mxu0 0.0
  %5001 = vmatpush1.msra.mxu0 0.0
  %5002 = vmatprep.subr.mxu0 0.0
  %5003 = vmatpush1.msra.mxu0 0.0
  %5004 = vmatprep.subr.mxu0 0.0
  %5005 = vmatpush1.msra.mxu0 0.0
  %5006 = vmatprep.subr.mxu0 0.0
  %5007 = vmatpush1.msra.mxu0 0.0
  %5008 = vmatprep.subr.mxu0 0.0
  %5009 = vmatpush1.msra.mxu0 %v3530
  %5010 = vmatprep.subr.mxu0 0.0
  %5011 = vmatpush1.msra.mxu0 %v3529
  %5012 = vmatprep.subr.mxu0 0.0
  %5013 = vmatpush1.msra.mxu0 %v3528
  %5014 = vmatprep.subr.mxu0 0.0
  %5015 = vmatpush1.msra.mxu0 %v3527
  %5016 = vmatprep.subr.mxu0 0.0
  %5017 = vmatpush2.msra.mxu0 0.0
  %5018 = vmatprep.subr.mxu0 0.0
  %5019 = vmatpush2.msra.mxu0 0.0
  %5020 = vmatprep.subr.mxu0 0.0
  %5021 = vmatpush2.msra.mxu0 0.0
  %5022 = vmatprep.subr.mxu0 0.0
  %5023 = vmatpush2.msra.mxu0 0.0
  %5024 = vmatprep.subr.mxu0 0.0
  %5025 = vmatpush2.msra.mxu0 0.0
  %5026 = vmatprep.subr.mxu0 0.0
  %5027 = vmatpush2.msra.mxu0 0.0
  %5028 = vmatprep.subr.mxu0 0.0
  %5029 = vmatpush2.msra.mxu0 0.0
  %5030 = vmatprep.subr.mxu0 0.0
  %5031 = vmatpush2.msra.mxu0 0.0
  %5032 = vmatprep.subr.mxu0 0.0
  %5033 = vmatpush2.msra.mxu0 0.0
  %5034 = vmatprep.subr.mxu0 0.0
  %5035 = vmatpush2.msra.mxu0 0.0
  %5036 = vmatprep.subr.mxu0 0.0
  %5037 = vmatpush2.msra.mxu0 0.0
  %5038 = vmatprep.subr.mxu0 0.0
  %5039 = vmatpush2.msra.mxu0 0.0
  %5040 = vmatprep.subr.mxu0 0.0
  %5041 = vmatpush2.msra.mxu0 0.0
  %5042 = vmatprep.subr.mxu0 0.0
  %5043 = vmatpush2.msra.mxu0 0.0
  %5044 = vmatprep.subr.mxu0 0.0
  %5045 = vmatpush2.msra.mxu0 0.0
  %5046 = vmatprep.subr.mxu0 0.0
  %5047 = vmatpush2.msra.mxu0 0.0
  %5048 = vmatprep.mubr.f32.mxu0 0.0
  %5049 = vmatmul.mubr.f32.gmra.mxu0 %v4979
  %v5050 = vpop.f32.mrf.mxu0
  %v5051 = vadd.f32 %v4976, %v5050
  %v5052 = vpop.f32.mrf.mxu0
  %5053 = vmatprep.mubr.f32.mxu0 0.0
  %5054 = vmatmul.mubr.f32.gmra.mxu0 %v4982
  %v5055 = vpop.f32.mrf.mxu0
  %v5056 = vadd.f32 %v4976, %v5055
  %v5057 = vpop.f32.mrf.mxu0
  %5058 = vdwg.mxu0
  %v5059 = vadd.f32 %v3517, %v5051
  %v5060 = vadd.f32 %v3518, %v5056
  %v5061 = vsel %vm77, %v5059, 0.0
  %5062 = vadd.xlane.f32.xlu0 %v5061
  %v5063 = vpop.xlane.xlu0 %5062
  %v5064 = vsel %vm77, %v5060, 0.0
  %5065 = vadd.xlane.f32.xlu0 %v5064
  %v5066 = vpop.xlane.xlu0 %5065
  %v5067 = vmul.f32 %v5063, %v1605
  %v5068 = vmul.f32 %v5066, %v1605
  %v5069 = vsub.f32 %v5059, %v5067
  %v5070 = vsub.f32 %v5060, %v5068
  %v5071 = vmul.f32 %v5069, %v5069
  %v5072 = vmul.f32 %v5070, %v5070
  %v5073 = vsel %vm77, %v5071, 0.0
  %5074 = vadd.xlane.f32.xlu0 %v5073
  %v5075 = vpop.xlane.xlu0 %5074
  %v5076 = vsel %vm77, %v5072, 0.0
  %5077 = vadd.xlane.f32.xlu0 %v5076
  %v5078 = vpop.xlane.xlu0 %5077
  %v5079 = vmul.f32 %v5075, %v1605
  %v5080 = vmul.f32 %v5078, %v1605
  %v5081 = vadd.f32 %v5079, 1e-05
  %v5082 = vadd.f32 %v5080, 1e-05
  %v5083 = vrsqrt.pop %v5081
  %v5084 = vrsqrt.pop %v5082
  %v5085 = vmul.f32 %v5069, %v5083
  %v5086 = vmul.f32 %v5070, %v5084
  %v5088 = vlaneseq
  %v5089 = vshrl.u32 %v5088, 7
  %v5090 = vsub.s32 0, %v5089
  %v5091 = vrot.slane %v3534, %v5090
  %v5093 = vmul.f32 %v5085, %v5091
  %v5094 = vmul.f32 %v5086, %v5091
  %v5096 = vlaneseq
  %v5097 = vshrl.u32 %v5096, 7
  %v5098 = vsub.s32 0, %v5097
  %v5099 = vrot.slane %v3536, %v5098
  %v5101 = vadd.f32 %v5093, %v5099
  %v5102 = vadd.f32 %v5094, %v5099
  %5107 = vrot.lane.b32.xlu0 %v3520, 96
  %v5108 = vpop.permute.xlu0 %5107
  %5109 = vrot.lane.b32.xlu0 %v3521, 96
  %v5110 = vpop.permute.xlu0 %5109
  %5111 = vrot.lane.b32.xlu0 %v3522, 96
  %v5112 = vpop.permute.xlu0 %5111
  %5113 = vrot.lane.b32.xlu0 %v3523, 96
  %v5114 = vpop.permute.xlu0 %5113
  %5119 = vrot.lane.b32.xlu0 %v3541, 96
  %v5120 = vpop.permute.xlu0 %5119
  %5122 = vmatprep.subr.mxu0 0.0
  %5123 = vmatpush1.msra.mxu0 0.0
  %5124 = vmatprep.subr.mxu0 0.0
  %5125 = vmatpush1.msra.mxu0 0.0
  %5126 = vmatprep.subr.mxu0 0.0
  %5127 = vmatpush1.msra.mxu0 0.0
  %5128 = vmatprep.subr.mxu0 0.0
  %5129 = vmatpush1.msra.mxu0 0.0
  %5130 = vmatprep.subr.mxu0 0.0
  %5131 = vmatpush1.msra.mxu0 0.0
  %5132 = vmatprep.subr.mxu0 0.0
  %5133 = vmatpush1.msra.mxu0 0.0
  %5134 = vmatprep.subr.mxu0 0.0
  %5135 = vmatpush1.msra.mxu0 0.0
  %5136 = vmatprep.subr.mxu0 0.0
  %5137 = vmatpush1.msra.mxu0 0.0
  %5138 = vmatprep.subr.mxu0 0.0
  %5139 = vmatpush1.msra.mxu0 0.0
  %5140 = vmatprep.subr.mxu0 0.0
  %5141 = vmatpush1.msra.mxu0 0.0
  %5142 = vmatprep.subr.mxu0 0.0
  %5143 = vmatpush1.msra.mxu0 0.0
  %5144 = vmatprep.subr.mxu0 0.0
  %5145 = vmatpush1.msra.mxu0 0.0
  %5146 = vmatprep.subr.mxu0 0.0
  %5147 = vmatpush1.msra.mxu0 %v5114
  %5148 = vmatprep.subr.mxu0 0.0
  %5149 = vmatpush1.msra.mxu0 %v5112
  %5150 = vmatprep.subr.mxu0 0.0
  %5151 = vmatpush1.msra.mxu0 %v5110
  %5152 = vmatprep.subr.mxu0 0.0
  %5153 = vmatpush1.msra.mxu0 %v5108
  %5154 = vmatprep.subr.mxu0 0.0
  %5155 = vmatpush2.msra.mxu0 0.0
  %5156 = vmatprep.subr.mxu0 0.0
  %5157 = vmatpush2.msra.mxu0 0.0
  %5158 = vmatprep.subr.mxu0 0.0
  %5159 = vmatpush2.msra.mxu0 0.0
  %5160 = vmatprep.subr.mxu0 0.0
  %5161 = vmatpush2.msra.mxu0 0.0
  %5162 = vmatprep.subr.mxu0 0.0
  %5163 = vmatpush2.msra.mxu0 0.0
  %5164 = vmatprep.subr.mxu0 0.0
  %5165 = vmatpush2.msra.mxu0 0.0
  %5166 = vmatprep.subr.mxu0 0.0
  %5167 = vmatpush2.msra.mxu0 0.0
  %5168 = vmatprep.subr.mxu0 0.0
  %5169 = vmatpush2.msra.mxu0 0.0
  %5170 = vmatprep.subr.mxu0 0.0
  %5171 = vmatpush2.msra.mxu0 0.0
  %5172 = vmatprep.subr.mxu0 0.0
  %5173 = vmatpush2.msra.mxu0 0.0
  %5174 = vmatprep.subr.mxu0 0.0
  %5175 = vmatpush2.msra.mxu0 0.0
  %5176 = vmatprep.subr.mxu0 0.0
  %5177 = vmatpush2.msra.mxu0 0.0
  %5178 = vmatprep.subr.mxu0 0.0
  %5179 = vmatpush2.msra.mxu0 0.0
  %5180 = vmatprep.subr.mxu0 0.0
  %5181 = vmatpush2.msra.mxu0 0.0
  %5182 = vmatprep.subr.mxu0 0.0
  %5183 = vmatpush2.msra.mxu0 0.0
  %5184 = vmatprep.subr.mxu0 0.0
  %5185 = vmatpush2.msra.mxu0 0.0
  %5186 = vmatprep.mubr.f32.mxu0 0.0
  %5187 = vmatmul.mubr.f32.gmra.mxu0 %v1662
  %v5188 = vpop.f32.mrf.mxu0
  %v5189 = vadd.f32 %v5120, %v5188
  %v5190 = vpop.f32.mrf.mxu0
  %5191 = vmatprep.mubr.f32.mxu0 0.0
  %5192 = vmatmul.mubr.f32.gmra.mxu0 %v1665
  %v5193 = vpop.f32.mrf.mxu0
  %v5194 = vadd.f32 %v5120, %v5193
  %v5195 = vpop.f32.mrf.mxu0
  %5196 = vdwg.mxu0
  %v5198 = vsel %vm77, %v5101, 0
  %v5201 = vsel %vm77, %v5102, 0
  %5203 = vmatprep.subr.mxu0 0.0
  %5204 = vmatpush1.msra.mxu0 0.0
  %5205 = vmatprep.subr.mxu0 0.0
  %5206 = vmatpush1.msra.mxu0 0.0
  %5207 = vmatprep.subr.mxu0 0.0
  %5208 = vmatpush1.msra.mxu0 0.0
  %5209 = vmatprep.subr.mxu0 0.0
  %5210 = vmatpush1.msra.mxu0 0.0
  %5211 = vmatprep.subr.mxu0 0.0
  %5212 = vmatpush1.msra.mxu0 0.0
  %5213 = vmatprep.subr.mxu0 0.0
  %5214 = vmatpush1.msra.mxu0 0.0
  %5215 = vmatprep.subr.mxu0 0.0
  %5216 = vmatpush1.msra.mxu0 0.0
  %5217 = vmatprep.subr.mxu0 0.0
  %5218 = vmatpush1.msra.mxu0 0.0
  %5219 = vmatprep.subr.mxu0 0.0
  %5220 = vmatpush1.msra.mxu0 0.0
  %5221 = vmatprep.subr.mxu0 0.0
  %5222 = vmatpush1.msra.mxu0 0.0
  %5223 = vmatprep.subr.mxu0 0.0
  %5224 = vmatpush1.msra.mxu0 0.0
  %5225 = vmatprep.subr.mxu0 0.0
  %5226 = vmatpush1.msra.mxu0 0.0
  %5227 = vmatprep.subr.mxu0 0.0
  %5228 = vmatpush1.msra.mxu0 %v3523
  %5229 = vmatprep.subr.mxu0 0.0
  %5230 = vmatpush1.msra.mxu0 %v3522
  %5231 = vmatprep.subr.mxu0 0.0
  %5232 = vmatpush1.msra.mxu0 %v3521
  %5233 = vmatprep.subr.mxu0 0.0
  %5234 = vmatpush1.msra.mxu0 %v3520
  %5235 = vmatprep.subr.mxu0 0.0
  %5236 = vmatpush2.msra.mxu0 0.0
  %5237 = vmatprep.subr.mxu0 0.0
  %5238 = vmatpush2.msra.mxu0 0.0
  %5239 = vmatprep.subr.mxu0 0.0
  %5240 = vmatpush2.msra.mxu0 0.0
  %5241 = vmatprep.subr.mxu0 0.0
  %5242 = vmatpush2.msra.mxu0 0.0
  %5243 = vmatprep.subr.mxu0 0.0
  %5244 = vmatpush2.msra.mxu0 0.0
  %5245 = vmatprep.subr.mxu0 0.0
  %5246 = vmatpush2.msra.mxu0 0.0
  %5247 = vmatprep.subr.mxu0 0.0
  %5248 = vmatpush2.msra.mxu0 0.0
  %5249 = vmatprep.subr.mxu0 0.0
  %5250 = vmatpush2.msra.mxu0 0.0
  %5251 = vmatprep.subr.mxu0 0.0
  %5252 = vmatpush2.msra.mxu0 0.0
  %5253 = vmatprep.subr.mxu0 0.0
  %5254 = vmatpush2.msra.mxu0 0.0
  %5255 = vmatprep.subr.mxu0 0.0
  %5256 = vmatpush2.msra.mxu0 0.0
  %5257 = vmatprep.subr.mxu0 0.0
  %5258 = vmatpush2.msra.mxu0 0.0
  %5259 = vmatprep.subr.mxu0 0.0
  %5260 = vmatpush2.msra.mxu0 0.0
  %5261 = vmatprep.subr.mxu0 0.0
  %5262 = vmatpush2.msra.mxu0 0.0
  %5263 = vmatprep.subr.mxu0 0.0
  %5264 = vmatpush2.msra.mxu0 0.0
  %5265 = vmatprep.subr.mxu0 0.0
  %5266 = vmatpush2.msra.mxu0 0.0
  %5267 = vmatprep.mubr.f32.mxu0 0.0
  %5268 = vmatmul.mubr.f32.gmra.mxu0 %v5198
  %v5269 = vpop.f32.mrf.mxu0
  %v5270 = vadd.f32 %v3541, %v5269
  %v5271 = vpop.f32.mrf.mxu0
  %5272 = vmatprep.mubr.f32.mxu0 0.0
  %5273 = vmatmul.mubr.f32.gmra.mxu0 %v5201
  %v5274 = vpop.f32.mrf.mxu0
  %v5275 = vadd.f32 %v3541, %v5274
  %v5276 = vpop.f32.mrf.mxu0
  %5277 = vdwg.mxu0
  %v5279 = vsel %vm162, %v5270, 0
  %v5282 = vsel %vm162, %v5189, 0
  %5284 = vmatprep.subr.mxu0 0.0
  %5285 = vmatpush1.xpose.msra.mxu0 0.0
  %5286 = vmatprep.subr.mxu0 0.0
  %5287 = vmatpush1.xpose.msra.mxu0 0.0
  %5288 = vmatprep.subr.mxu0 0.0
  %5289 = vmatpush1.xpose.msra.mxu0 0.0
  %5290 = vmatprep.subr.mxu0 0.0
  %5291 = vmatpush1.xpose.msra.mxu0 0.0
  %5292 = vmatprep.subr.mxu0 0.0
  %5293 = vmatpush1.xpose.msra.mxu0 0.0
  %5294 = vmatprep.subr.mxu0 0.0
  %5295 = vmatpush1.xpose.msra.mxu0 0.0
  %5296 = vmatprep.subr.mxu0 0.0
  %5297 = vmatpush1.xpose.msra.mxu0 0.0
  %5298 = vmatprep.subr.mxu0 0.0
  %5299 = vmatpush1.xpose.msra.mxu0 0.0
  %5300 = vmatprep.subr.mxu0 0.0
  %5301 = vmatpush1.xpose.msra.mxu0 0.0
  %5302 = vmatprep.subr.mxu0 0.0
  %5303 = vmatpush1.xpose.msra.mxu0 0.0
  %5304 = vmatprep.subr.mxu0 0.0
  %5305 = vmatpush1.xpose.msra.mxu0 0.0
  %5306 = vmatprep.subr.mxu0 0.0
  %5307 = vmatpush1.xpose.msra.mxu0 0.0
  %5308 = vmatprep.subr.mxu0 0.0
  %5309 = vmatpush1.xpose.msra.mxu0 0.0
  %5310 = vmatprep.subr.mxu0 0.0
  %5311 = vmatpush1.xpose.msra.mxu0 0.0
  %5312 = vmatprep.subr.mxu0 0.0
  %5313 = vmatpush1.xpose.msra.mxu0 0.0
  %5314 = vmatprep.subr.mxu0 0.0
  %5315 = vmatpush1.xpose.msra.mxu0 %v5282
  %5316 = vmatprep.subr.mxu0 0.0
  %5317 = vmatpush2.xpose.msra.mxu0 0.0
  %5318 = vmatprep.subr.mxu0 0.0
  %5319 = vmatpush2.xpose.msra.mxu0 0.0
  %5320 = vmatprep.subr.mxu0 0.0
  %5321 = vmatpush2.xpose.msra.mxu0 0.0
  %5322 = vmatprep.subr.mxu0 0.0
  %5323 = vmatpush2.xpose.msra.mxu0 0.0
  %5324 = vmatprep.subr.mxu0 0.0
  %5325 = vmatpush2.xpose.msra.mxu0 0.0
  %5326 = vmatprep.subr.mxu0 0.0
  %5327 = vmatpush2.xpose.msra.mxu0 0.0
  %5328 = vmatprep.subr.mxu0 0.0
  %5329 = vmatpush2.xpose.msra.mxu0 0.0
  %5330 = vmatprep.subr.mxu0 0.0
  %5331 = vmatpush2.xpose.msra.mxu0 0.0
  %5332 = vmatprep.subr.mxu0 0.0
  %5333 = vmatpush2.xpose.msra.mxu0 0.0
  %5334 = vmatprep.subr.mxu0 0.0
  %5335 = vmatpush2.xpose.msra.mxu0 0.0
  %5336 = vmatprep.subr.mxu0 0.0
  %5337 = vmatpush2.xpose.msra.mxu0 0.0
  %5338 = vmatprep.subr.mxu0 0.0
  %5339 = vmatpush2.xpose.msra.mxu0 0.0
  %5340 = vmatprep.subr.mxu0 0.0
  %5341 = vmatpush2.xpose.msra.mxu0 0.0
  %5342 = vmatprep.subr.mxu0 0.0
  %5343 = vmatpush2.xpose.msra.mxu0 0.0
  %5344 = vmatprep.subr.mxu0 0.0
  %5345 = vmatpush2.xpose.msra.mxu0 0.0
  %5346 = vmatprep.subr.mxu0 0.0
  %5347 = vmatpush2.xpose.msra.mxu0 0.0
  %5348 = vmatprep.mubr.f32.mxu0 0.0
  %5349 = vmatmul.mubr.f32.gmra.mxu0 %v5279
  %v5350 = vpop.f32.mrf.mxu0
  %v5351 = vadd.f32 0.0, %v5350
  %v5352 = vpop.f32.mrf.mxu0
  %5353 = vdwg.mxu0
  %v5355 = vsel %vm162, %v5275, 0
  %v5358 = vsel %vm162, %v5194, 0
  %5360 = vmatprep.subr.mxu0 0.0
  %5361 = vmatpush1.xpose.msra.mxu0 0.0
  %5362 = vmatprep.subr.mxu0 0.0
  %5363 = vmatpush1.xpose.msra.mxu0 0.0
  %5364 = vmatprep.subr.mxu0 0.0
  %5365 = vmatpush1.xpose.msra.mxu0 0.0
  %5366 = vmatprep.subr.mxu0 0.0
  %5367 = vmatpush1.xpose.msra.mxu0 0.0
  %5368 = vmatprep.subr.mxu0 0.0
  %5369 = vmatpush1.xpose.msra.mxu0 0.0
  %5370 = vmatprep.subr.mxu0 0.0
  %5371 = vmatpush1.xpose.msra.mxu0 0.0
  %5372 = vmatprep.subr.mxu0 0.0
  %5373 = vmatpush1.xpose.msra.mxu0 0.0
  %5374 = vmatprep.subr.mxu0 0.0
  %5375 = vmatpush1.xpose.msra.mxu0 0.0
  %5376 = vmatprep.subr.mxu0 0.0
  %5377 = vmatpush1.xpose.msra.mxu0 0.0
  %5378 = vmatprep.subr.mxu0 0.0
  %5379 = vmatpush1.xpose.msra.mxu0 0.0
  %5380 = vmatprep.subr.mxu0 0.0
  %5381 = vmatpush1.xpose.msra.mxu0 0.0
  %5382 = vmatprep.subr.mxu0 0.0
  %5383 = vmatpush1.xpose.msra.mxu0 0.0
  %5384 = vmatprep.subr.mxu0 0.0
  %5385 = vmatpush1.xpose.msra.mxu0 0.0
  %5386 = vmatprep.subr.mxu0 0.0
  %5387 = vmatpush1.xpose.msra.mxu0 0.0
  %5388 = vmatprep.subr.mxu0 0.0
  %5389 = vmatpush1.xpose.msra.mxu0 0.0
  %5390 = vmatprep.subr.mxu0 0.0
  %5391 = vmatpush1.xpose.msra.mxu0 %v5358
  %5392 = vmatprep.subr.mxu0 0.0
  %5393 = vmatpush2.xpose.msra.mxu0 0.0
  %5394 = vmatprep.subr.mxu0 0.0
  %5395 = vmatpush2.xpose.msra.mxu0 0.0
  %5396 = vmatprep.subr.mxu0 0.0
  %5397 = vmatpush2.xpose.msra.mxu0 0.0
  %5398 = vmatprep.subr.mxu0 0.0
  %5399 = vmatpush2.xpose.msra.mxu0 0.0
  %5400 = vmatprep.subr.mxu0 0.0
  %5401 = vmatpush2.xpose.msra.mxu0 0.0
  %5402 = vmatprep.subr.mxu0 0.0
  %5403 = vmatpush2.xpose.msra.mxu0 0.0
  %5404 = vmatprep.subr.mxu0 0.0
  %5405 = vmatpush2.xpose.msra.mxu0 0.0
  %5406 = vmatprep.subr.mxu0 0.0
  %5407 = vmatpush2.xpose.msra.mxu0 0.0
  %5408 = vmatprep.subr.mxu0 0.0
  %5409 = vmatpush2.xpose.msra.mxu0 0.0
  %5410 = vmatprep.subr.mxu0 0.0
  %5411 = vmatpush2.xpose.msra.mxu0 0.0
  %5412 = vmatprep.subr.mxu0 0.0
  %5413 = vmatpush2.xpose.msra.mxu0 0.0
  %5414 = vmatprep.subr.mxu0 0.0
  %5415 = vmatpush2.xpose.msra.mxu0 0.0
  %5416 = vmatprep.subr.mxu0 0.0
  %5417 = vmatpush2.xpose.msra.mxu0 0.0
  %5418 = vmatprep.subr.mxu0 0.0
  %5419 = vmatpush2.xpose.msra.mxu0 0.0
  %5420 = vmatprep.subr.mxu0 0.0
  %5421 = vmatpush2.xpose.msra.mxu0 0.0
  %5422 = vmatprep.subr.mxu0 0.0
  %5423 = vmatpush2.xpose.msra.mxu0 0.0
  %5424 = vmatprep.mubr.f32.mxu0 0.0
  %5425 = vmatmul.mubr.f32.gmra.mxu0 %v5355
  %v5426 = vpop.f32.mrf.mxu0
  %v5427 = vadd.f32 0.0, %v5426
  %v5428 = vpop.f32.mrf.mxu0
  %5429 = vdwg.mxu0
  %v5430 = vsel %vm162, %v5351, -inf
  %5431 = vmax.xlane.f32.xlu0 %v5430
  %v5432 = vpop.xlane.xlu0 %5431
  %v5433 = vsel %vm162, %v5427, -inf
  %5434 = vmax.xlane.f32.xlu0 %v5433
  %v5435 = vpop.xlane.xlu0 %5434
  %v5436 = vsub.f32 %v5351, %v5432
  %v5437 = vsub.f32 %v5427, %v5435
  %v5438 = vmul.f32 %v5436, 1.442695
  %v5439 = vpow.pop %v5438
  %v5440 = vmul.f32 %v5437, 1.442695
  %v5441 = vpow.pop %v5440
  %v5442 = vsel %vm162, %v5439, 0.0
  %5443 = vadd.xlane.f32.xlu0 %v5442
  %v5444 = vpop.xlane.xlu0 %5443
  %v5445 = vsel %vm162, %v5441, 0.0
  %5446 = vadd.xlane.f32.xlu0 %v5445
  %v5447 = vpop.xlane.xlu0 %5446
  %v5448 = vrcp.pop %v5444
  %v5449 = vrcp.pop %v5447
  %v5450 = vmul.f32 %v5439, %v5448
  %v5451 = vmul.f32 %v5441, %v5449
  %5452 = vrot.lane.b32.xlu0 %v5189, 96
  %v5453 = vpop.permute.xlu0 %5452
  %v5456 = vsel %vm162, %v5450, 0
  %5458 = vmatprep.subr.mxu0 0.0
  %5459 = vmatpush1.msra.mxu0 0.0
  %5460 = vmatprep.subr.mxu0 0.0
  %5461 = vmatpush1.msra.mxu0 0.0
  %5462 = vmatprep.subr.mxu0 0.0
  %5463 = vmatpush1.msra.mxu0 0.0
  %5464 = vmatprep.subr.mxu0 0.0
  %5465 = vmatpush1.msra.mxu0 0.0
  %5466 = vmatprep.subr.mxu0 0.0
  %5467 = vmatpush1.msra.mxu0 0.0
  %5468 = vmatprep.subr.mxu0 0.0
  %5469 = vmatpush1.msra.mxu0 0.0
  %5470 = vmatprep.subr.mxu0 0.0
  %5471 = vmatpush1.msra.mxu0 0.0
  %5472 = vmatprep.subr.mxu0 0.0
  %5473 = vmatpush1.msra.mxu0 0.0
  %5474 = vmatprep.subr.mxu0 0.0
  %5475 = vmatpush1.msra.mxu0 0.0
  %5476 = vmatprep.subr.mxu0 0.0
  %5477 = vmatpush1.msra.mxu0 0.0
  %5478 = vmatprep.subr.mxu0 0.0
  %5479 = vmatpush1.msra.mxu0 0.0
  %5480 = vmatprep.subr.mxu0 0.0
  %5481 = vmatpush1.msra.mxu0 0.0
  %5482 = vmatprep.subr.mxu0 0.0
  %5483 = vmatpush1.msra.mxu0 0.0
  %5484 = vmatprep.subr.mxu0 0.0
  %5485 = vmatpush1.msra.mxu0 0.0
  %5486 = vmatprep.subr.mxu0 0.0
  %5487 = vmatpush1.msra.mxu0 0.0
  %5488 = vmatprep.subr.mxu0 0.0
  %5489 = vmatpush1.msra.mxu0 %v5453
  %5490 = vmatprep.subr.mxu0 0.0
  %5491 = vmatpush2.msra.mxu0 0.0
  %5492 = vmatprep.subr.mxu0 0.0
  %5493 = vmatpush2.msra.mxu0 0.0
  %5494 = vmatprep.subr.mxu0 0.0
  %5495 = vmatpush2.msra.mxu0 0.0
  %5496 = vmatprep.subr.mxu0 0.0
  %5497 = vmatpush2.msra.mxu0 0.0
  %5498 = vmatprep.subr.mxu0 0.0
  %5499 = vmatpush2.msra.mxu0 0.0
  %5500 = vmatprep.subr.mxu0 0.0
  %5501 = vmatpush2.msra.mxu0 0.0
  %5502 = vmatprep.subr.mxu0 0.0
  %5503 = vmatpush2.msra.mxu0 0.0
  %5504 = vmatprep.subr.mxu0 0.0
  %5505 = vmatpush2.msra.mxu0 0.0
  %5506 = vmatprep.subr.mxu0 0.0
  %5507 = vmatpush2.msra.mxu0 0.0
  %5508 = vmatprep.subr.mxu0 0.0
  %5509 = vmatpush2.msra.mxu0 0.0
  %5510 = vmatprep.subr.mxu0 0.0
  %5511 = vmatpush2.msra.mxu0 0.0
  %5512 = vmatprep.subr.mxu0 0.0
  %5513 = vmatpush2.msra.mxu0 0.0
  %5514 = vmatprep.subr.mxu0 0.0
  %5515 = vmatpush2.msra.mxu0 0.0
  %5516 = vmatprep.subr.mxu0 0.0
  %5517 = vmatpush2.msra.mxu0 0.0
  %5518 = vmatprep.subr.mxu0 0.0
  %5519 = vmatpush2.msra.mxu0 0.0
  %5520 = vmatprep.subr.mxu0 0.0
  %5521 = vmatpush2.msra.mxu0 0.0
  %5522 = vmatprep.mubr.f32.mxu0 0.0
  %5523 = vmatmul.mubr.f32.gmra.mxu0 %v5456
  %v5524 = vpop.f32.mrf.mxu0
  %v5525 = vadd.f32 0.0, %v5524
  %v5526 = vpop.f32.mrf.mxu0
  %5527 = vdwg.mxu0
  %5528 = vrot.lane.b32.xlu0 %v5194, 96
  %v5529 = vpop.permute.xlu0 %5528
  %v5532 = vsel %vm162, %v5451, 0
  %5534 = vmatprep.subr.mxu0 0.0
  %5535 = vmatpush1.msra.mxu0 0.0
  %5536 = vmatprep.subr.mxu0 0.0
  %5537 = vmatpush1.msra.mxu0 0.0
  %5538 = vmatprep.subr.mxu0 0.0
  %5539 = vmatpush1.msra.mxu0 0.0
  %5540 = vmatprep.subr.mxu0 0.0
  %5541 = vmatpush1.msra.mxu0 0.0
  %5542 = vmatprep.subr.mxu0 0.0
  %5543 = vmatpush1.msra.mxu0 0.0
  %5544 = vmatprep.subr.mxu0 0.0
  %5545 = vmatpush1.msra.mxu0 0.0
  %5546 = vmatprep.subr.mxu0 0.0
  %5547 = vmatpush1.msra.mxu0 0.0
  %5548 = vmatprep.subr.mxu0 0.0
  %5549 = vmatpush1.msra.mxu0 0.0
  %5550 = vmatprep.subr.mxu0 0.0
  %5551 = vmatpush1.msra.mxu0 0.0
  %5552 = vmatprep.subr.mxu0 0.0
  %5553 = vmatpush1.msra.mxu0 0.0
  %5554 = vmatprep.subr.mxu0 0.0
  %5555 = vmatpush1.msra.mxu0 0.0
  %5556 = vmatprep.subr.mxu0 0.0
  %5557 = vmatpush1.msra.mxu0 0.0
  %5558 = vmatprep.subr.mxu0 0.0
  %5559 = vmatpush1.msra.mxu0 0.0
  %5560 = vmatprep.subr.mxu0 0.0
  %5561 = vmatpush1.msra.mxu0 0.0
  %5562 = vmatprep.subr.mxu0 0.0
  %5563 = vmatpush1.msra.mxu0 0.0
  %5564 = vmatprep.subr.mxu0 0.0
  %5565 = vmatpush1.msra.mxu0 %v5529
  %5566 = vmatprep.subr.mxu0 0.0
  %5567 = vmatpush2.msra.mxu0 0.0
  %5568 = vmatprep.subr.mxu0 0.0
  %5569 = vmatpush2.msra.mxu0 0.0
  %5570 = vmatprep.subr.mxu0 0.0
  %5571 = vmatpush2.msra.mxu0 0.0
  %5572 = vmatprep.subr.mxu0 0.0
  %5573 = vmatpush2.msra.mxu0 0.0
  %5574 = vmatprep.subr.mxu0 0.0
  %5575 = vmatpush2.msra.mxu0 0.0
  %5576 = vmatprep.subr.mxu0 0.0
  %5577 = vmatpush2.msra.mxu0 0.0
  %5578 = vmatprep.subr.mxu0 0.0
  %5579 = vmatpush2.msra.mxu0 0.0
  %5580 = vmatprep.subr.mxu0 0.0
  %5581 = vmatpush2.msra.mxu0 0.0
  %5582 = vmatprep.subr.mxu0 0.0
  %5583 = vmatpush2.msra.mxu0 0.0
  %5584 = vmatprep.subr.mxu0 0.0
  %5585 = vmatpush2.msra.mxu0 0.0
  %5586 = vmatprep.subr.mxu0 0.0
  %5587 = vmatpush2.msra.mxu0 0.0
  %5588 = vmatprep.subr.mxu0 0.0
  %5589 = vmatpush2.msra.mxu0 0.0
  %5590 = vmatprep.subr.mxu0 0.0
  %5591 = vmatpush2.msra.mxu0 0.0
  %5592 = vmatprep.subr.mxu0 0.0
  %5593 = vmatpush2.msra.mxu0 0.0
  %5594 = vmatprep.subr.mxu0 0.0
  %5595 = vmatpush2.msra.mxu0 0.0
  %5596 = vmatprep.subr.mxu0 0.0
  %5597 = vmatpush2.msra.mxu0 0.0
  %5598 = vmatprep.mubr.f32.mxu0 0.0
  %5599 = vmatmul.mubr.f32.gmra.mxu0 %v5532
  %v5600 = vpop.f32.mrf.mxu0
  %v5601 = vadd.f32 0.0, %v5600
  %v5602 = vpop.f32.mrf.mxu0
  %5603 = vdwg.mxu0
  %5604 = vrot.lane.b32.xlu0 %v5270, 120
  %v5605 = vpop.permute.xlu0 %5604
  %5606 = vrot.lane.b32.xlu0 %v5189, 120
  %v5607 = vpop.permute.xlu0 %5606
  %v5608 = vsel %vm162, %v5605, 0
  %v5610 = vsel %vm162, %v5607, 0
  %5612 = vmatprep.subr.mxu0 0.0
  %5613 = vmatpush1.xpose.msra.mxu0 0.0
  %5614 = vmatprep.subr.mxu0 0.0
  %5615 = vmatpush1.xpose.msra.mxu0 0.0
  %5616 = vmatprep.subr.mxu0 0.0
  %5617 = vmatpush1.xpose.msra.mxu0 0.0
  %5618 = vmatprep.subr.mxu0 0.0
  %5619 = vmatpush1.xpose.msra.mxu0 0.0
  %5620 = vmatprep.subr.mxu0 0.0
  %5621 = vmatpush1.xpose.msra.mxu0 0.0
  %5622 = vmatprep.subr.mxu0 0.0
  %5623 = vmatpush1.xpose.msra.mxu0 0.0
  %5624 = vmatprep.subr.mxu0 0.0
  %5625 = vmatpush1.xpose.msra.mxu0 0.0
  %5626 = vmatprep.subr.mxu0 0.0
  %5627 = vmatpush1.xpose.msra.mxu0 0.0
  %5628 = vmatprep.subr.mxu0 0.0
  %5629 = vmatpush1.xpose.msra.mxu0 0.0
  %5630 = vmatprep.subr.mxu0 0.0
  %5631 = vmatpush1.xpose.msra.mxu0 0.0
  %5632 = vmatprep.subr.mxu0 0.0
  %5633 = vmatpush1.xpose.msra.mxu0 0.0
  %5634 = vmatprep.subr.mxu0 0.0
  %5635 = vmatpush1.xpose.msra.mxu0 0.0
  %5636 = vmatprep.subr.mxu0 0.0
  %5637 = vmatpush1.xpose.msra.mxu0 0.0
  %5638 = vmatprep.subr.mxu0 0.0
  %5639 = vmatpush1.xpose.msra.mxu0 0.0
  %5640 = vmatprep.subr.mxu0 0.0
  %5641 = vmatpush1.xpose.msra.mxu0 0.0
  %5642 = vmatprep.subr.mxu0 0.0
  %5643 = vmatpush1.xpose.msra.mxu0 %v5610
  %5644 = vmatprep.subr.mxu0 0.0
  %5645 = vmatpush2.xpose.msra.mxu0 0.0
  %5646 = vmatprep.subr.mxu0 0.0
  %5647 = vmatpush2.xpose.msra.mxu0 0.0
  %5648 = vmatprep.subr.mxu0 0.0
  %5649 = vmatpush2.xpose.msra.mxu0 0.0
  %5650 = vmatprep.subr.mxu0 0.0
  %5651 = vmatpush2.xpose.msra.mxu0 0.0
  %5652 = vmatprep.subr.mxu0 0.0
  %5653 = vmatpush2.xpose.msra.mxu0 0.0
  %5654 = vmatprep.subr.mxu0 0.0
  %5655 = vmatpush2.xpose.msra.mxu0 0.0
  %5656 = vmatprep.subr.mxu0 0.0
  %5657 = vmatpush2.xpose.msra.mxu0 0.0
  %5658 = vmatprep.subr.mxu0 0.0
  %5659 = vmatpush2.xpose.msra.mxu0 0.0
  %5660 = vmatprep.subr.mxu0 0.0
  %5661 = vmatpush2.xpose.msra.mxu0 0.0
  %5662 = vmatprep.subr.mxu0 0.0
  %5663 = vmatpush2.xpose.msra.mxu0 0.0
  %5664 = vmatprep.subr.mxu0 0.0
  %5665 = vmatpush2.xpose.msra.mxu0 0.0
  %5666 = vmatprep.subr.mxu0 0.0
  %5667 = vmatpush2.xpose.msra.mxu0 0.0
  %5668 = vmatprep.subr.mxu0 0.0
  %5669 = vmatpush2.xpose.msra.mxu0 0.0
  %5670 = vmatprep.subr.mxu0 0.0
  %5671 = vmatpush2.xpose.msra.mxu0 0.0
  %5672 = vmatprep.subr.mxu0 0.0
  %5673 = vmatpush2.xpose.msra.mxu0 0.0
  %5674 = vmatprep.subr.mxu0 0.0
  %5675 = vmatpush2.xpose.msra.mxu0 0.0
  %5676 = vmatprep.mubr.f32.mxu0 0.0
  %5677 = vmatmul.mubr.f32.gmra.mxu0 %v5608
  %v5678 = vpop.f32.mrf.mxu0
  %v5679 = vadd.f32 0.0, %v5678
  %v5680 = vpop.f32.mrf.mxu0
  %5681 = vdwg.mxu0
  %5682 = vrot.lane.b32.xlu0 %v5275, 120
  %v5683 = vpop.permute.xlu0 %5682
  %5684 = vrot.lane.b32.xlu0 %v5194, 120
  %v5685 = vpop.permute.xlu0 %5684
  %v5686 = vsel %vm162, %v5683, 0
  %v5688 = vsel %vm162, %v5685, 0
  %5690 = vmatprep.subr.mxu0 0.0
  %5691 = vmatpush1.xpose.msra.mxu0 0.0
  %5692 = vmatprep.subr.mxu0 0.0
  %5693 = vmatpush1.xpose.msra.mxu0 0.0
  %5694 = vmatprep.subr.mxu0 0.0
  %5695 = vmatpush1.xpose.msra.mxu0 0.0
  %5696 = vmatprep.subr.mxu0 0.0
  %5697 = vmatpush1.xpose.msra.mxu0 0.0
  %5698 = vmatprep.subr.mxu0 0.0
  %5699 = vmatpush1.xpose.msra.mxu0 0.0
  %5700 = vmatprep.subr.mxu0 0.0
  %5701 = vmatpush1.xpose.msra.mxu0 0.0
  %5702 = vmatprep.subr.mxu0 0.0
  %5703 = vmatpush1.xpose.msra.mxu0 0.0
  %5704 = vmatprep.subr.mxu0 0.0
  %5705 = vmatpush1.xpose.msra.mxu0 0.0
  %5706 = vmatprep.subr.mxu0 0.0
  %5707 = vmatpush1.xpose.msra.mxu0 0.0
  %5708 = vmatprep.subr.mxu0 0.0
  %5709 = vmatpush1.xpose.msra.mxu0 0.0
  %5710 = vmatprep.subr.mxu0 0.0
  %5711 = vmatpush1.xpose.msra.mxu0 0.0
  %5712 = vmatprep.subr.mxu0 0.0
  %5713 = vmatpush1.xpose.msra.mxu0 0.0
  %5714 = vmatprep.subr.mxu0 0.0
  %5715 = vmatpush1.xpose.msra.mxu0 0.0
  %5716 = vmatprep.subr.mxu0 0.0
  %5717 = vmatpush1.xpose.msra.mxu0 0.0
  %5718 = vmatprep.subr.mxu0 0.0
  %5719 = vmatpush1.xpose.msra.mxu0 0.0
  %5720 = vmatprep.subr.mxu0 0.0
  %5721 = vmatpush1.xpose.msra.mxu0 %v5688
  %5722 = vmatprep.subr.mxu0 0.0
  %5723 = vmatpush2.xpose.msra.mxu0 0.0
  %5724 = vmatprep.subr.mxu0 0.0
  %5725 = vmatpush2.xpose.msra.mxu0 0.0
  %5726 = vmatprep.subr.mxu0 0.0
  %5727 = vmatpush2.xpose.msra.mxu0 0.0
  %5728 = vmatprep.subr.mxu0 0.0
  %5729 = vmatpush2.xpose.msra.mxu0 0.0
  %5730 = vmatprep.subr.mxu0 0.0
  %5731 = vmatpush2.xpose.msra.mxu0 0.0
  %5732 = vmatprep.subr.mxu0 0.0
  %5733 = vmatpush2.xpose.msra.mxu0 0.0
  %5734 = vmatprep.subr.mxu0 0.0
  %5735 = vmatpush2.xpose.msra.mxu0 0.0
  %5736 = vmatprep.subr.mxu0 0.0
  %5737 = vmatpush2.xpose.msra.mxu0 0.0
  %5738 = vmatprep.subr.mxu0 0.0
  %5739 = vmatpush2.xpose.msra.mxu0 0.0
  %5740 = vmatprep.subr.mxu0 0.0
  %5741 = vmatpush2.xpose.msra.mxu0 0.0
  %5742 = vmatprep.subr.mxu0 0.0
  %5743 = vmatpush2.xpose.msra.mxu0 0.0
  %5744 = vmatprep.subr.mxu0 0.0
  %5745 = vmatpush2.xpose.msra.mxu0 0.0
  %5746 = vmatprep.subr.mxu0 0.0
  %5747 = vmatpush2.xpose.msra.mxu0 0.0
  %5748 = vmatprep.subr.mxu0 0.0
  %5749 = vmatpush2.xpose.msra.mxu0 0.0
  %5750 = vmatprep.subr.mxu0 0.0
  %5751 = vmatpush2.xpose.msra.mxu0 0.0
  %5752 = vmatprep.subr.mxu0 0.0
  %5753 = vmatpush2.xpose.msra.mxu0 0.0
  %5754 = vmatprep.mubr.f32.mxu0 0.0
  %5755 = vmatmul.mubr.f32.gmra.mxu0 %v5686
  %v5756 = vpop.f32.mrf.mxu0
  %v5757 = vadd.f32 0.0, %v5756
  %v5758 = vpop.f32.mrf.mxu0
  %5759 = vdwg.mxu0
  %v5760 = vsel %vm162, %v5679, -inf
  %5761 = vmax.xlane.f32.xlu0 %v5760
  %v5762 = vpop.xlane.xlu0 %5761
  %v5763 = vsel %vm162, %v5757, -inf
  %5764 = vmax.xlane.f32.xlu0 %v5763
  %v5765 = vpop.xlane.xlu0 %5764
  %v5766 = vsub.f32 %v5679, %v5762
  %v5767 = vsub.f32 %v5757, %v5765
  %v5768 = vmul.f32 %v5766, 1.442695
  %v5769 = vpow.pop %v5768
  %v5770 = vmul.f32 %v5767, 1.442695
  %v5771 = vpow.pop %v5770
  %v5772 = vsel %vm162, %v5769, 0.0
  %5773 = vadd.xlane.f32.xlu0 %v5772
  %v5774 = vpop.xlane.xlu0 %5773
  %v5775 = vsel %vm162, %v5771, 0.0
  %5776 = vadd.xlane.f32.xlu0 %v5775
  %v5777 = vpop.xlane.xlu0 %5776
  %v5778 = vrcp.pop %v5774
  %v5779 = vrcp.pop %v5777
  %v5780 = vmul.f32 %v5769, %v5778
  %v5781 = vmul.f32 %v5771, %v5779
  %5782 = vrot.lane.b32.xlu0 %v5189, 88
  %v5783 = vpop.permute.xlu0 %5782
  %v5786 = vsel %vm162, %v5780, 0
  %5788 = vmatprep.subr.mxu0 0.0
  %5789 = vmatpush1.msra.mxu0 0.0
  %5790 = vmatprep.subr.mxu0 0.0
  %5791 = vmatpush1.msra.mxu0 0.0
  %5792 = vmatprep.subr.mxu0 0.0
  %5793 = vmatpush1.msra.mxu0 0.0
  %5794 = vmatprep.subr.mxu0 0.0
  %5795 = vmatpush1.msra.mxu0 0.0
  %5796 = vmatprep.subr.mxu0 0.0
  %5797 = vmatpush1.msra.mxu0 0.0
  %5798 = vmatprep.subr.mxu0 0.0
  %5799 = vmatpush1.msra.mxu0 0.0
  %5800 = vmatprep.subr.mxu0 0.0
  %5801 = vmatpush1.msra.mxu0 0.0
  %5802 = vmatprep.subr.mxu0 0.0
  %5803 = vmatpush1.msra.mxu0 0.0
  %5804 = vmatprep.subr.mxu0 0.0
  %5805 = vmatpush1.msra.mxu0 0.0
  %5806 = vmatprep.subr.mxu0 0.0
  %5807 = vmatpush1.msra.mxu0 0.0
  %5808 = vmatprep.subr.mxu0 0.0
  %5809 = vmatpush1.msra.mxu0 0.0
  %5810 = vmatprep.subr.mxu0 0.0
  %5811 = vmatpush1.msra.mxu0 0.0
  %5812 = vmatprep.subr.mxu0 0.0
  %5813 = vmatpush1.msra.mxu0 0.0
  %5814 = vmatprep.subr.mxu0 0.0
  %5815 = vmatpush1.msra.mxu0 0.0
  %5816 = vmatprep.subr.mxu0 0.0
  %5817 = vmatpush1.msra.mxu0 0.0
  %5818 = vmatprep.subr.mxu0 0.0
  %5819 = vmatpush1.msra.mxu0 %v5783
  %5820 = vmatprep.subr.mxu0 0.0
  %5821 = vmatpush2.msra.mxu0 0.0
  %5822 = vmatprep.subr.mxu0 0.0
  %5823 = vmatpush2.msra.mxu0 0.0
  %5824 = vmatprep.subr.mxu0 0.0
  %5825 = vmatpush2.msra.mxu0 0.0
  %5826 = vmatprep.subr.mxu0 0.0
  %5827 = vmatpush2.msra.mxu0 0.0
  %5828 = vmatprep.subr.mxu0 0.0
  %5829 = vmatpush2.msra.mxu0 0.0
  %5830 = vmatprep.subr.mxu0 0.0
  %5831 = vmatpush2.msra.mxu0 0.0
  %5832 = vmatprep.subr.mxu0 0.0
  %5833 = vmatpush2.msra.mxu0 0.0
  %5834 = vmatprep.subr.mxu0 0.0
  %5835 = vmatpush2.msra.mxu0 0.0
  %5836 = vmatprep.subr.mxu0 0.0
  %5837 = vmatpush2.msra.mxu0 0.0
  %5838 = vmatprep.subr.mxu0 0.0
  %5839 = vmatpush2.msra.mxu0 0.0
  %5840 = vmatprep.subr.mxu0 0.0
  %5841 = vmatpush2.msra.mxu0 0.0
  %5842 = vmatprep.subr.mxu0 0.0
  %5843 = vmatpush2.msra.mxu0 0.0
  %5844 = vmatprep.subr.mxu0 0.0
  %5845 = vmatpush2.msra.mxu0 0.0
  %5846 = vmatprep.subr.mxu0 0.0
  %5847 = vmatpush2.msra.mxu0 0.0
  %5848 = vmatprep.subr.mxu0 0.0
  %5849 = vmatpush2.msra.mxu0 0.0
  %5850 = vmatprep.subr.mxu0 0.0
  %5851 = vmatpush2.msra.mxu0 0.0
  %5852 = vmatprep.mubr.f32.mxu0 0.0
  %5853 = vmatmul.mubr.f32.gmra.mxu0 %v5786
  %v5854 = vpop.f32.mrf.mxu0
  %v5855 = vadd.f32 0.0, %v5854
  %v5856 = vpop.f32.mrf.mxu0
  %5857 = vdwg.mxu0
  %5858 = vrot.lane.b32.xlu0 %v5194, 88
  %v5859 = vpop.permute.xlu0 %5858
  %v5862 = vsel %vm162, %v5781, 0
  %5864 = vmatprep.subr.mxu0 0.0
  %5865 = vmatpush1.msra.mxu0 0.0
  %5866 = vmatprep.subr.mxu0 0.0
  %5867 = vmatpush1.msra.mxu0 0.0
  %5868 = vmatprep.subr.mxu0 0.0
  %5869 = vmatpush1.msra.mxu0 0.0
  %5870 = vmatprep.subr.mxu0 0.0
  %5871 = vmatpush1.msra.mxu0 0.0
  %5872 = vmatprep.subr.mxu0 0.0
  %5873 = vmatpush1.msra.mxu0 0.0
  %5874 = vmatprep.subr.mxu0 0.0
  %5875 = vmatpush1.msra.mxu0 0.0
  %5876 = vmatprep.subr.mxu0 0.0
  %5877 = vmatpush1.msra.mxu0 0.0
  %5878 = vmatprep.subr.mxu0 0.0
  %5879 = vmatpush1.msra.mxu0 0.0
  %5880 = vmatprep.subr.mxu0 0.0
  %5881 = vmatpush1.msra.mxu0 0.0
  %5882 = vmatprep.subr.mxu0 0.0
  %5883 = vmatpush1.msra.mxu0 0.0
  %5884 = vmatprep.subr.mxu0 0.0
  %5885 = vmatpush1.msra.mxu0 0.0
  %5886 = vmatprep.subr.mxu0 0.0
  %5887 = vmatpush1.msra.mxu0 0.0
  %5888 = vmatprep.subr.mxu0 0.0
  %5889 = vmatpush1.msra.mxu0 0.0
  %5890 = vmatprep.subr.mxu0 0.0
  %5891 = vmatpush1.msra.mxu0 0.0
  %5892 = vmatprep.subr.mxu0 0.0
  %5893 = vmatpush1.msra.mxu0 0.0
  %5894 = vmatprep.subr.mxu0 0.0
  %5895 = vmatpush1.msra.mxu0 %v5859
  %5896 = vmatprep.subr.mxu0 0.0
  %5897 = vmatpush2.msra.mxu0 0.0
  %5898 = vmatprep.subr.mxu0 0.0
  %5899 = vmatpush2.msra.mxu0 0.0
  %5900 = vmatprep.subr.mxu0 0.0
  %5901 = vmatpush2.msra.mxu0 0.0
  %5902 = vmatprep.subr.mxu0 0.0
  %5903 = vmatpush2.msra.mxu0 0.0
  %5904 = vmatprep.subr.mxu0 0.0
  %5905 = vmatpush2.msra.mxu0 0.0
  %5906 = vmatprep.subr.mxu0 0.0
  %5907 = vmatpush2.msra.mxu0 0.0
  %5908 = vmatprep.subr.mxu0 0.0
  %5909 = vmatpush2.msra.mxu0 0.0
  %5910 = vmatprep.subr.mxu0 0.0
  %5911 = vmatpush2.msra.mxu0 0.0
  %5912 = vmatprep.subr.mxu0 0.0
  %5913 = vmatpush2.msra.mxu0 0.0
  %5914 = vmatprep.subr.mxu0 0.0
  %5915 = vmatpush2.msra.mxu0 0.0
  %5916 = vmatprep.subr.mxu0 0.0
  %5917 = vmatpush2.msra.mxu0 0.0
  %5918 = vmatprep.subr.mxu0 0.0
  %5919 = vmatpush2.msra.mxu0 0.0
  %5920 = vmatprep.subr.mxu0 0.0
  %5921 = vmatpush2.msra.mxu0 0.0
  %5922 = vmatprep.subr.mxu0 0.0
  %5923 = vmatpush2.msra.mxu0 0.0
  %5924 = vmatprep.subr.mxu0 0.0
  %5925 = vmatpush2.msra.mxu0 0.0
  %5926 = vmatprep.subr.mxu0 0.0
  %5927 = vmatpush2.msra.mxu0 0.0
  %5928 = vmatprep.mubr.f32.mxu0 0.0
  %5929 = vmatmul.mubr.f32.gmra.mxu0 %v5862
  %v5930 = vpop.f32.mrf.mxu0
  %v5931 = vadd.f32 0.0, %v5930
  %v5932 = vpop.f32.mrf.mxu0
  %5933 = vdwg.mxu0
  %5934 = vrot.lane.b32.xlu0 %v5270, 112
  %v5935 = vpop.permute.xlu0 %5934
  %5936 = vrot.lane.b32.xlu0 %v5189, 112
  %v5937 = vpop.permute.xlu0 %5936
  %v5938 = vsel %vm162, %v5935, 0
  %v5940 = vsel %vm162, %v5937, 0
  %5942 = vmatprep.subr.mxu0 0.0
  %5943 = vmatpush1.xpose.msra.mxu0 0.0
  %5944 = vmatprep.subr.mxu0 0.0
  %5945 = vmatpush1.xpose.msra.mxu0 0.0
  %5946 = vmatprep.subr.mxu0 0.0
  %5947 = vmatpush1.xpose.msra.mxu0 0.0
  %5948 = vmatprep.subr.mxu0 0.0
  %5949 = vmatpush1.xpose.msra.mxu0 0.0
  %5950 = vmatprep.subr.mxu0 0.0
  %5951 = vmatpush1.xpose.msra.mxu0 0.0
  %5952 = vmatprep.subr.mxu0 0.0
  %5953 = vmatpush1.xpose.msra.mxu0 0.0
  %5954 = vmatprep.subr.mxu0 0.0
  %5955 = vmatpush1.xpose.msra.mxu0 0.0
  %5956 = vmatprep.subr.mxu0 0.0
  %5957 = vmatpush1.xpose.msra.mxu0 0.0
  %5958 = vmatprep.subr.mxu0 0.0
  %5959 = vmatpush1.xpose.msra.mxu0 0.0
  %5960 = vmatprep.subr.mxu0 0.0
  %5961 = vmatpush1.xpose.msra.mxu0 0.0
  %5962 = vmatprep.subr.mxu0 0.0
  %5963 = vmatpush1.xpose.msra.mxu0 0.0
  %5964 = vmatprep.subr.mxu0 0.0
  %5965 = vmatpush1.xpose.msra.mxu0 0.0
  %5966 = vmatprep.subr.mxu0 0.0
  %5967 = vmatpush1.xpose.msra.mxu0 0.0
  %5968 = vmatprep.subr.mxu0 0.0
  %5969 = vmatpush1.xpose.msra.mxu0 0.0
  %5970 = vmatprep.subr.mxu0 0.0
  %5971 = vmatpush1.xpose.msra.mxu0 0.0
  %5972 = vmatprep.subr.mxu0 0.0
  %5973 = vmatpush1.xpose.msra.mxu0 %v5940
  %5974 = vmatprep.subr.mxu0 0.0
  %5975 = vmatpush2.xpose.msra.mxu0 0.0
  %5976 = vmatprep.subr.mxu0 0.0
  %5977 = vmatpush2.xpose.msra.mxu0 0.0
  %5978 = vmatprep.subr.mxu0 0.0
  %5979 = vmatpush2.xpose.msra.mxu0 0.0
  %5980 = vmatprep.subr.mxu0 0.0
  %5981 = vmatpush2.xpose.msra.mxu0 0.0
  %5982 = vmatprep.subr.mxu0 0.0
  %5983 = vmatpush2.xpose.msra.mxu0 0.0
  %5984 = vmatprep.subr.mxu0 0.0
  %5985 = vmatpush2.xpose.msra.mxu0 0.0
  %5986 = vmatprep.subr.mxu0 0.0
  %5987 = vmatpush2.xpose.msra.mxu0 0.0
  %5988 = vmatprep.subr.mxu0 0.0
  %5989 = vmatpush2.xpose.msra.mxu0 0.0
  %5990 = vmatprep.subr.mxu0 0.0
  %5991 = vmatpush2.xpose.msra.mxu0 0.0
  %5992 = vmatprep.subr.mxu0 0.0
  %5993 = vmatpush2.xpose.msra.mxu0 0.0
  %5994 = vmatprep.subr.mxu0 0.0
  %5995 = vmatpush2.xpose.msra.mxu0 0.0
  %5996 = vmatprep.subr.mxu0 0.0
  %5997 = vmatpush2.xpose.msra.mxu0 0.0
  %5998 = vmatprep.subr.mxu0 0.0
  %5999 = vmatpush2.xpose.msra.mxu0 0.0
  %6000 = vmatprep.subr.mxu0 0.0
  %6001 = vmatpush2.xpose.msra.mxu0 0.0
  %6002 = vmatprep.subr.mxu0 0.0
  %6003 = vmatpush2.xpose.msra.mxu0 0.0
  %6004 = vmatprep.subr.mxu0 0.0
  %6005 = vmatpush2.xpose.msra.mxu0 0.0
  %6006 = vmatprep.mubr.f32.mxu0 0.0
  %6007 = vmatmul.mubr.f32.gmra.mxu0 %v5938
  %v6008 = vpop.f32.mrf.mxu0
  %v6009 = vadd.f32 0.0, %v6008
  %v6010 = vpop.f32.mrf.mxu0
  %6011 = vdwg.mxu0
  %6012 = vrot.lane.b32.xlu0 %v5275, 112
  %v6013 = vpop.permute.xlu0 %6012
  %6014 = vrot.lane.b32.xlu0 %v5194, 112
  %v6015 = vpop.permute.xlu0 %6014
  %v6016 = vsel %vm162, %v6013, 0
  %v6018 = vsel %vm162, %v6015, 0
  %6020 = vmatprep.subr.mxu0 0.0
  %6021 = vmatpush1.xpose.msra.mxu0 0.0
  %6022 = vmatprep.subr.mxu0 0.0
  %6023 = vmatpush1.xpose.msra.mxu0 0.0
  %6024 = vmatprep.subr.mxu0 0.0
  %6025 = vmatpush1.xpose.msra.mxu0 0.0
  %6026 = vmatprep.subr.mxu0 0.0
  %6027 = vmatpush1.xpose.msra.mxu0 0.0
  %6028 = vmatprep.subr.mxu0 0.0
  %6029 = vmatpush1.xpose.msra.mxu0 0.0
  %6030 = vmatprep.subr.mxu0 0.0
  %6031 = vmatpush1.xpose.msra.mxu0 0.0
  %6032 = vmatprep.subr.mxu0 0.0
  %6033 = vmatpush1.xpose.msra.mxu0 0.0
  %6034 = vmatprep.subr.mxu0 0.0
  %6035 = vmatpush1.xpose.msra.mxu0 0.0
  %6036 = vmatprep.subr.mxu0 0.0
  %6037 = vmatpush1.xpose.msra.mxu0 0.0
  %6038 = vmatprep.subr.mxu0 0.0
  %6039 = vmatpush1.xpose.msra.mxu0 0.0
  %6040 = vmatprep.subr.mxu0 0.0
  %6041 = vmatpush1.xpose.msra.mxu0 0.0
  %6042 = vmatprep.subr.mxu0 0.0
  %6043 = vmatpush1.xpose.msra.mxu0 0.0
  %6044 = vmatprep.subr.mxu0 0.0
  %6045 = vmatpush1.xpose.msra.mxu0 0.0
  %6046 = vmatprep.subr.mxu0 0.0
  %6047 = vmatpush1.xpose.msra.mxu0 0.0
  %6048 = vmatprep.subr.mxu0 0.0
  %6049 = vmatpush1.xpose.msra.mxu0 0.0
  %6050 = vmatprep.subr.mxu0 0.0
  %6051 = vmatpush1.xpose.msra.mxu0 %v6018
  %6052 = vmatprep.subr.mxu0 0.0
  %6053 = vmatpush2.xpose.msra.mxu0 0.0
  %6054 = vmatprep.subr.mxu0 0.0
  %6055 = vmatpush2.xpose.msra.mxu0 0.0
  %6056 = vmatprep.subr.mxu0 0.0
  %6057 = vmatpush2.xpose.msra.mxu0 0.0
  %6058 = vmatprep.subr.mxu0 0.0
  %6059 = vmatpush2.xpose.msra.mxu0 0.0
  %6060 = vmatprep.subr.mxu0 0.0
  %6061 = vmatpush2.xpose.msra.mxu0 0.0
  %6062 = vmatprep.subr.mxu0 0.0
  %6063 = vmatpush2.xpose.msra.mxu0 0.0
  %6064 = vmatprep.subr.mxu0 0.0
  %6065 = vmatpush2.xpose.msra.mxu0 0.0
  %6066 = vmatprep.subr.mxu0 0.0
  %6067 = vmatpush2.xpose.msra.mxu0 0.0
  %6068 = vmatprep.subr.mxu0 0.0
  %6069 = vmatpush2.xpose.msra.mxu0 0.0
  %6070 = vmatprep.subr.mxu0 0.0
  %6071 = vmatpush2.xpose.msra.mxu0 0.0
  %6072 = vmatprep.subr.mxu0 0.0
  %6073 = vmatpush2.xpose.msra.mxu0 0.0
  %6074 = vmatprep.subr.mxu0 0.0
  %6075 = vmatpush2.xpose.msra.mxu0 0.0
  %6076 = vmatprep.subr.mxu0 0.0
  %6077 = vmatpush2.xpose.msra.mxu0 0.0
  %6078 = vmatprep.subr.mxu0 0.0
  %6079 = vmatpush2.xpose.msra.mxu0 0.0
  %6080 = vmatprep.subr.mxu0 0.0
  %6081 = vmatpush2.xpose.msra.mxu0 0.0
  %6082 = vmatprep.subr.mxu0 0.0
  %6083 = vmatpush2.xpose.msra.mxu0 0.0
  %6084 = vmatprep.mubr.f32.mxu0 0.0
  %6085 = vmatmul.mubr.f32.gmra.mxu0 %v6016
  %v6086 = vpop.f32.mrf.mxu0
  %v6087 = vadd.f32 0.0, %v6086
  %v6088 = vpop.f32.mrf.mxu0
  %6089 = vdwg.mxu0
  %v6090 = vsel %vm162, %v6009, -inf
  %6091 = vmax.xlane.f32.xlu0 %v6090
  %v6092 = vpop.xlane.xlu0 %6091
  %v6093 = vsel %vm162, %v6087, -inf
  %6094 = vmax.xlane.f32.xlu0 %v6093
  %v6095 = vpop.xlane.xlu0 %6094
  %v6096 = vsub.f32 %v6009, %v6092
  %v6097 = vsub.f32 %v6087, %v6095
  %v6098 = vmul.f32 %v6096, 1.442695
  %v6099 = vpow.pop %v6098
  %v6100 = vmul.f32 %v6097, 1.442695
  %v6101 = vpow.pop %v6100
  %v6102 = vsel %vm162, %v6099, 0.0
  %6103 = vadd.xlane.f32.xlu0 %v6102
  %v6104 = vpop.xlane.xlu0 %6103
  %v6105 = vsel %vm162, %v6101, 0.0
  %6106 = vadd.xlane.f32.xlu0 %v6105
  %v6107 = vpop.xlane.xlu0 %6106
  %v6108 = vrcp.pop %v6104
  %v6109 = vrcp.pop %v6107
  %v6110 = vmul.f32 %v6099, %v6108
  %v6111 = vmul.f32 %v6101, %v6109
  %6112 = vrot.lane.b32.xlu0 %v5189, 80
  %v6113 = vpop.permute.xlu0 %6112
  %v6116 = vsel %vm162, %v6110, 0
  %6118 = vmatprep.subr.mxu0 0.0
  %6119 = vmatpush1.msra.mxu0 0.0
  %6120 = vmatprep.subr.mxu0 0.0
  %6121 = vmatpush1.msra.mxu0 0.0
  %6122 = vmatprep.subr.mxu0 0.0
  %6123 = vmatpush1.msra.mxu0 0.0
  %6124 = vmatprep.subr.mxu0 0.0
  %6125 = vmatpush1.msra.mxu0 0.0
  %6126 = vmatprep.subr.mxu0 0.0
  %6127 = vmatpush1.msra.mxu0 0.0
  %6128 = vmatprep.subr.mxu0 0.0
  %6129 = vmatpush1.msra.mxu0 0.0
  %6130 = vmatprep.subr.mxu0 0.0
  %6131 = vmatpush1.msra.mxu0 0.0
  %6132 = vmatprep.subr.mxu0 0.0
  %6133 = vmatpush1.msra.mxu0 0.0
  %6134 = vmatprep.subr.mxu0 0.0
  %6135 = vmatpush1.msra.mxu0 0.0
  %6136 = vmatprep.subr.mxu0 0.0
  %6137 = vmatpush1.msra.mxu0 0.0
  %6138 = vmatprep.subr.mxu0 0.0
  %6139 = vmatpush1.msra.mxu0 0.0
  %6140 = vmatprep.subr.mxu0 0.0
  %6141 = vmatpush1.msra.mxu0 0.0
  %6142 = vmatprep.subr.mxu0 0.0
  %6143 = vmatpush1.msra.mxu0 0.0
  %6144 = vmatprep.subr.mxu0 0.0
  %6145 = vmatpush1.msra.mxu0 0.0
  %6146 = vmatprep.subr.mxu0 0.0
  %6147 = vmatpush1.msra.mxu0 0.0
  %6148 = vmatprep.subr.mxu0 0.0
  %6149 = vmatpush1.msra.mxu0 %v6113
  %6150 = vmatprep.subr.mxu0 0.0
  %6151 = vmatpush2.msra.mxu0 0.0
  %6152 = vmatprep.subr.mxu0 0.0
  %6153 = vmatpush2.msra.mxu0 0.0
  %6154 = vmatprep.subr.mxu0 0.0
  %6155 = vmatpush2.msra.mxu0 0.0
  %6156 = vmatprep.subr.mxu0 0.0
  %6157 = vmatpush2.msra.mxu0 0.0
  %6158 = vmatprep.subr.mxu0 0.0
  %6159 = vmatpush2.msra.mxu0 0.0
  %6160 = vmatprep.subr.mxu0 0.0
  %6161 = vmatpush2.msra.mxu0 0.0
  %6162 = vmatprep.subr.mxu0 0.0
  %6163 = vmatpush2.msra.mxu0 0.0
  %6164 = vmatprep.subr.mxu0 0.0
  %6165 = vmatpush2.msra.mxu0 0.0
  %6166 = vmatprep.subr.mxu0 0.0
  %6167 = vmatpush2.msra.mxu0 0.0
  %6168 = vmatprep.subr.mxu0 0.0
  %6169 = vmatpush2.msra.mxu0 0.0
  %6170 = vmatprep.subr.mxu0 0.0
  %6171 = vmatpush2.msra.mxu0 0.0
  %6172 = vmatprep.subr.mxu0 0.0
  %6173 = vmatpush2.msra.mxu0 0.0
  %6174 = vmatprep.subr.mxu0 0.0
  %6175 = vmatpush2.msra.mxu0 0.0
  %6176 = vmatprep.subr.mxu0 0.0
  %6177 = vmatpush2.msra.mxu0 0.0
  %6178 = vmatprep.subr.mxu0 0.0
  %6179 = vmatpush2.msra.mxu0 0.0
  %6180 = vmatprep.subr.mxu0 0.0
  %6181 = vmatpush2.msra.mxu0 0.0
  %6182 = vmatprep.mubr.f32.mxu0 0.0
  %6183 = vmatmul.mubr.f32.gmra.mxu0 %v6116
  %v6184 = vpop.f32.mrf.mxu0
  %v6185 = vadd.f32 0.0, %v6184
  %v6186 = vpop.f32.mrf.mxu0
  %6187 = vdwg.mxu0
  %6188 = vrot.lane.b32.xlu0 %v5194, 80
  %v6189 = vpop.permute.xlu0 %6188
  %v6192 = vsel %vm162, %v6111, 0
  %6194 = vmatprep.subr.mxu0 0.0
  %6195 = vmatpush1.msra.mxu0 0.0
  %6196 = vmatprep.subr.mxu0 0.0
  %6197 = vmatpush1.msra.mxu0 0.0
  %6198 = vmatprep.subr.mxu0 0.0
  %6199 = vmatpush1.msra.mxu0 0.0
  %6200 = vmatprep.subr.mxu0 0.0
  %6201 = vmatpush1.msra.mxu0 0.0
  %6202 = vmatprep.subr.mxu0 0.0
  %6203 = vmatpush1.msra.mxu0 0.0
  %6204 = vmatprep.subr.mxu0 0.0
  %6205 = vmatpush1.msra.mxu0 0.0
  %6206 = vmatprep.subr.mxu0 0.0
  %6207 = vmatpush1.msra.mxu0 0.0
  %6208 = vmatprep.subr.mxu0 0.0
  %6209 = vmatpush1.msra.mxu0 0.0
  %6210 = vmatprep.subr.mxu0 0.0
  %6211 = vmatpush1.msra.mxu0 0.0
  %6212 = vmatprep.subr.mxu0 0.0
  %6213 = vmatpush1.msra.mxu0 0.0
  %6214 = vmatprep.subr.mxu0 0.0
  %6215 = vmatpush1.msra.mxu0 0.0
  %6216 = vmatprep.subr.mxu0 0.0
  %6217 = vmatpush1.msra.mxu0 0.0
  %6218 = vmatprep.subr.mxu0 0.0
  %6219 = vmatpush1.msra.mxu0 0.0
  %6220 = vmatprep.subr.mxu0 0.0
  %6221 = vmatpush1.msra.mxu0 0.0
  %6222 = vmatprep.subr.mxu0 0.0
  %6223 = vmatpush1.msra.mxu0 0.0
  %6224 = vmatprep.subr.mxu0 0.0
  %6225 = vmatpush1.msra.mxu0 %v6189
  %6226 = vmatprep.subr.mxu0 0.0
  %6227 = vmatpush2.msra.mxu0 0.0
  %6228 = vmatprep.subr.mxu0 0.0
  %6229 = vmatpush2.msra.mxu0 0.0
  %6230 = vmatprep.subr.mxu0 0.0
  %6231 = vmatpush2.msra.mxu0 0.0
  %6232 = vmatprep.subr.mxu0 0.0
  %6233 = vmatpush2.msra.mxu0 0.0
  %6234 = vmatprep.subr.mxu0 0.0
  %6235 = vmatpush2.msra.mxu0 0.0
  %6236 = vmatprep.subr.mxu0 0.0
  %6237 = vmatpush2.msra.mxu0 0.0
  %6238 = vmatprep.subr.mxu0 0.0
  %6239 = vmatpush2.msra.mxu0 0.0
  %6240 = vmatprep.subr.mxu0 0.0
  %6241 = vmatpush2.msra.mxu0 0.0
  %6242 = vmatprep.subr.mxu0 0.0
  %6243 = vmatpush2.msra.mxu0 0.0
  %6244 = vmatprep.subr.mxu0 0.0
  %6245 = vmatpush2.msra.mxu0 0.0
  %6246 = vmatprep.subr.mxu0 0.0
  %6247 = vmatpush2.msra.mxu0 0.0
  %6248 = vmatprep.subr.mxu0 0.0
  %6249 = vmatpush2.msra.mxu0 0.0
  %6250 = vmatprep.subr.mxu0 0.0
  %6251 = vmatpush2.msra.mxu0 0.0
  %6252 = vmatprep.subr.mxu0 0.0
  %6253 = vmatpush2.msra.mxu0 0.0
  %6254 = vmatprep.subr.mxu0 0.0
  %6255 = vmatpush2.msra.mxu0 0.0
  %6256 = vmatprep.subr.mxu0 0.0
  %6257 = vmatpush2.msra.mxu0 0.0
  %6258 = vmatprep.mubr.f32.mxu0 0.0
  %6259 = vmatmul.mubr.f32.gmra.mxu0 %v6192
  %v6260 = vpop.f32.mrf.mxu0
  %v6261 = vadd.f32 0.0, %v6260
  %v6262 = vpop.f32.mrf.mxu0
  %6263 = vdwg.mxu0
  %6264 = vrot.lane.b32.xlu0 %v5270, 104
  %v6265 = vpop.permute.xlu0 %6264
  %6266 = vrot.lane.b32.xlu0 %v5189, 104
  %v6267 = vpop.permute.xlu0 %6266
  %v6268 = vsel %vm162, %v6265, 0
  %v6270 = vsel %vm162, %v6267, 0
  %6272 = vmatprep.subr.mxu0 0.0
  %6273 = vmatpush1.xpose.msra.mxu0 0.0
  %6274 = vmatprep.subr.mxu0 0.0
  %6275 = vmatpush1.xpose.msra.mxu0 0.0
  %6276 = vmatprep.subr.mxu0 0.0
  %6277 = vmatpush1.xpose.msra.mxu0 0.0
  %6278 = vmatprep.subr.mxu0 0.0
  %6279 = vmatpush1.xpose.msra.mxu0 0.0
  %6280 = vmatprep.subr.mxu0 0.0
  %6281 = vmatpush1.xpose.msra.mxu0 0.0
  %6282 = vmatprep.subr.mxu0 0.0
  %6283 = vmatpush1.xpose.msra.mxu0 0.0
  %6284 = vmatprep.subr.mxu0 0.0
  %6285 = vmatpush1.xpose.msra.mxu0 0.0
  %6286 = vmatprep.subr.mxu0 0.0
  %6287 = vmatpush1.xpose.msra.mxu0 0.0
  %6288 = vmatprep.subr.mxu0 0.0
  %6289 = vmatpush1.xpose.msra.mxu0 0.0
  %6290 = vmatprep.subr.mxu0 0.0
  %6291 = vmatpush1.xpose.msra.mxu0 0.0
  %6292 = vmatprep.subr.mxu0 0.0
  %6293 = vmatpush1.xpose.msra.mxu0 0.0
  %6294 = vmatprep.subr.mxu0 0.0
  %6295 = vmatpush1.xpose.msra.mxu0 0.0
  %6296 = vmatprep.subr.mxu0 0.0
  %6297 = vmatpush1.xpose.msra.mxu0 0.0
  %6298 = vmatprep.subr.mxu0 0.0
  %6299 = vmatpush1.xpose.msra.mxu0 0.0
  %6300 = vmatprep.subr.mxu0 0.0
  %6301 = vmatpush1.xpose.msra.mxu0 0.0
  %6302 = vmatprep.subr.mxu0 0.0
  %6303 = vmatpush1.xpose.msra.mxu0 %v6270
  %6304 = vmatprep.subr.mxu0 0.0
  %6305 = vmatpush2.xpose.msra.mxu0 0.0
  %6306 = vmatprep.subr.mxu0 0.0
  %6307 = vmatpush2.xpose.msra.mxu0 0.0
  %6308 = vmatprep.subr.mxu0 0.0
  %6309 = vmatpush2.xpose.msra.mxu0 0.0
  %6310 = vmatprep.subr.mxu0 0.0
  %6311 = vmatpush2.xpose.msra.mxu0 0.0
  %6312 = vmatprep.subr.mxu0 0.0
  %6313 = vmatpush2.xpose.msra.mxu0 0.0
  %6314 = vmatprep.subr.mxu0 0.0
  %6315 = vmatpush2.xpose.msra.mxu0 0.0
  %6316 = vmatprep.subr.mxu0 0.0
  %6317 = vmatpush2.xpose.msra.mxu0 0.0
  %6318 = vmatprep.subr.mxu0 0.0
  %6319 = vmatpush2.xpose.msra.mxu0 0.0
  %6320 = vmatprep.subr.mxu0 0.0
  %6321 = vmatpush2.xpose.msra.mxu0 0.0
  %6322 = vmatprep.subr.mxu0 0.0
  %6323 = vmatpush2.xpose.msra.mxu0 0.0
  %6324 = vmatprep.subr.mxu0 0.0
  %6325 = vmatpush2.xpose.msra.mxu0 0.0
  %6326 = vmatprep.subr.mxu0 0.0
  %6327 = vmatpush2.xpose.msra.mxu0 0.0
  %6328 = vmatprep.subr.mxu0 0.0
  %6329 = vmatpush2.xpose.msra.mxu0 0.0
  %6330 = vmatprep.subr.mxu0 0.0
  %6331 = vmatpush2.xpose.msra.mxu0 0.0
  %6332 = vmatprep.subr.mxu0 0.0
  %6333 = vmatpush2.xpose.msra.mxu0 0.0
  %6334 = vmatprep.subr.mxu0 0.0
  %6335 = vmatpush2.xpose.msra.mxu0 0.0
  %6336 = vmatprep.mubr.f32.mxu0 0.0
  %6337 = vmatmul.mubr.f32.gmra.mxu0 %v6268
  %v6338 = vpop.f32.mrf.mxu0
  %v6339 = vadd.f32 0.0, %v6338
  %v6340 = vpop.f32.mrf.mxu0
  %6341 = vdwg.mxu0
  %6342 = vrot.lane.b32.xlu0 %v5275, 104
  %v6343 = vpop.permute.xlu0 %6342
  %6344 = vrot.lane.b32.xlu0 %v5194, 104
  %v6345 = vpop.permute.xlu0 %6344
  %v6346 = vsel %vm162, %v6343, 0
  %v6348 = vsel %vm162, %v6345, 0
  %6350 = vmatprep.subr.mxu0 0.0
  %6351 = vmatpush1.xpose.msra.mxu0 0.0
  %6352 = vmatprep.subr.mxu0 0.0
  %6353 = vmatpush1.xpose.msra.mxu0 0.0
  %6354 = vmatprep.subr.mxu0 0.0
  %6355 = vmatpush1.xpose.msra.mxu0 0.0
  %6356 = vmatprep.subr.mxu0 0.0
  %6357 = vmatpush1.xpose.msra.mxu0 0.0
  %6358 = vmatprep.subr.mxu0 0.0
  %6359 = vmatpush1.xpose.msra.mxu0 0.0
  %6360 = vmatprep.subr.mxu0 0.0
  %6361 = vmatpush1.xpose.msra.mxu0 0.0
  %6362 = vmatprep.subr.mxu0 0.0
  %6363 = vmatpush1.xpose.msra.mxu0 0.0
  %6364 = vmatprep.subr.mxu0 0.0
  %6365 = vmatpush1.xpose.msra.mxu0 0.0
  %6366 = vmatprep.subr.mxu0 0.0
  %6367 = vmatpush1.xpose.msra.mxu0 0.0
  %6368 = vmatprep.subr.mxu0 0.0
  %6369 = vmatpush1.xpose.msra.mxu0 0.0
  %6370 = vmatprep.subr.mxu0 0.0
  %6371 = vmatpush1.xpose.msra.mxu0 0.0
  %6372 = vmatprep.subr.mxu0 0.0
  %6373 = vmatpush1.xpose.msra.mxu0 0.0
  %6374 = vmatprep.subr.mxu0 0.0
  %6375 = vmatpush1.xpose.msra.mxu0 0.0
  %6376 = vmatprep.subr.mxu0 0.0
  %6377 = vmatpush1.xpose.msra.mxu0 0.0
  %6378 = vmatprep.subr.mxu0 0.0
  %6379 = vmatpush1.xpose.msra.mxu0 0.0
  %6380 = vmatprep.subr.mxu0 0.0
  %6381 = vmatpush1.xpose.msra.mxu0 %v6348
  %6382 = vmatprep.subr.mxu0 0.0
  %6383 = vmatpush2.xpose.msra.mxu0 0.0
  %6384 = vmatprep.subr.mxu0 0.0
  %6385 = vmatpush2.xpose.msra.mxu0 0.0
  %6386 = vmatprep.subr.mxu0 0.0
  %6387 = vmatpush2.xpose.msra.mxu0 0.0
  %6388 = vmatprep.subr.mxu0 0.0
  %6389 = vmatpush2.xpose.msra.mxu0 0.0
  %6390 = vmatprep.subr.mxu0 0.0
  %6391 = vmatpush2.xpose.msra.mxu0 0.0
  %6392 = vmatprep.subr.mxu0 0.0
  %6393 = vmatpush2.xpose.msra.mxu0 0.0
  %6394 = vmatprep.subr.mxu0 0.0
  %6395 = vmatpush2.xpose.msra.mxu0 0.0
  %6396 = vmatprep.subr.mxu0 0.0
  %6397 = vmatpush2.xpose.msra.mxu0 0.0
  %6398 = vmatprep.subr.mxu0 0.0
  %6399 = vmatpush2.xpose.msra.mxu0 0.0
  %6400 = vmatprep.subr.mxu0 0.0
  %6401 = vmatpush2.xpose.msra.mxu0 0.0
  %6402 = vmatprep.subr.mxu0 0.0
  %6403 = vmatpush2.xpose.msra.mxu0 0.0
  %6404 = vmatprep.subr.mxu0 0.0
  %6405 = vmatpush2.xpose.msra.mxu0 0.0
  %6406 = vmatprep.subr.mxu0 0.0
  %6407 = vmatpush2.xpose.msra.mxu0 0.0
  %6408 = vmatprep.subr.mxu0 0.0
  %6409 = vmatpush2.xpose.msra.mxu0 0.0
  %6410 = vmatprep.subr.mxu0 0.0
  %6411 = vmatpush2.xpose.msra.mxu0 0.0
  %6412 = vmatprep.subr.mxu0 0.0
  %6413 = vmatpush2.xpose.msra.mxu0 0.0
  %6414 = vmatprep.mubr.f32.mxu0 0.0
  %6415 = vmatmul.mubr.f32.gmra.mxu0 %v6346
  %v6416 = vpop.f32.mrf.mxu0
  %v6417 = vadd.f32 0.0, %v6416
  %v6418 = vpop.f32.mrf.mxu0
  %6419 = vdwg.mxu0
  %v6420 = vsel %vm162, %v6339, -inf
  %6421 = vmax.xlane.f32.xlu0 %v6420
  %v6422 = vpop.xlane.xlu0 %6421
  %v6423 = vsel %vm162, %v6417, -inf
  %6424 = vmax.xlane.f32.xlu0 %v6423
  %v6425 = vpop.xlane.xlu0 %6424
  %v6426 = vsub.f32 %v6339, %v6422
  %v6427 = vsub.f32 %v6417, %v6425
  %v6428 = vmul.f32 %v6426, 1.442695
  %v6429 = vpow.pop %v6428
  %v6430 = vmul.f32 %v6427, 1.442695
  %v6431 = vpow.pop %v6430
  %v6432 = vsel %vm162, %v6429, 0.0
  %6433 = vadd.xlane.f32.xlu0 %v6432
  %v6434 = vpop.xlane.xlu0 %6433
  %v6435 = vsel %vm162, %v6431, 0.0
  %6436 = vadd.xlane.f32.xlu0 %v6435
  %v6437 = vpop.xlane.xlu0 %6436
  %v6438 = vrcp.pop %v6434
  %v6439 = vrcp.pop %v6437
  %v6440 = vmul.f32 %v6429, %v6438
  %v6441 = vmul.f32 %v6431, %v6439
  %6442 = vrot.lane.b32.xlu0 %v5189, 72
  %v6443 = vpop.permute.xlu0 %6442
  %v6446 = vsel %vm162, %v6440, 0
  %6448 = vmatprep.subr.mxu0 0.0
  %6449 = vmatpush1.msra.mxu0 0.0
  %6450 = vmatprep.subr.mxu0 0.0
  %6451 = vmatpush1.msra.mxu0 0.0
  %6452 = vmatprep.subr.mxu0 0.0
  %6453 = vmatpush1.msra.mxu0 0.0
  %6454 = vmatprep.subr.mxu0 0.0
  %6455 = vmatpush1.msra.mxu0 0.0
  %6456 = vmatprep.subr.mxu0 0.0
  %6457 = vmatpush1.msra.mxu0 0.0
  %6458 = vmatprep.subr.mxu0 0.0
  %6459 = vmatpush1.msra.mxu0 0.0
  %6460 = vmatprep.subr.mxu0 0.0
  %6461 = vmatpush1.msra.mxu0 0.0
  %6462 = vmatprep.subr.mxu0 0.0
  %6463 = vmatpush1.msra.mxu0 0.0
  %6464 = vmatprep.subr.mxu0 0.0
  %6465 = vmatpush1.msra.mxu0 0.0
  %6466 = vmatprep.subr.mxu0 0.0
  %6467 = vmatpush1.msra.mxu0 0.0
  %6468 = vmatprep.subr.mxu0 0.0
  %6469 = vmatpush1.msra.mxu0 0.0
  %6470 = vmatprep.subr.mxu0 0.0
  %6471 = vmatpush1.msra.mxu0 0.0
  %6472 = vmatprep.subr.mxu0 0.0
  %6473 = vmatpush1.msra.mxu0 0.0
  %6474 = vmatprep.subr.mxu0 0.0
  %6475 = vmatpush1.msra.mxu0 0.0
  %6476 = vmatprep.subr.mxu0 0.0
  %6477 = vmatpush1.msra.mxu0 0.0
  %6478 = vmatprep.subr.mxu0 0.0
  %6479 = vmatpush1.msra.mxu0 %v6443
  %6480 = vmatprep.subr.mxu0 0.0
  %6481 = vmatpush2.msra.mxu0 0.0
  %6482 = vmatprep.subr.mxu0 0.0
  %6483 = vmatpush2.msra.mxu0 0.0
  %6484 = vmatprep.subr.mxu0 0.0
  %6485 = vmatpush2.msra.mxu0 0.0
  %6486 = vmatprep.subr.mxu0 0.0
  %6487 = vmatpush2.msra.mxu0 0.0
  %6488 = vmatprep.subr.mxu0 0.0
  %6489 = vmatpush2.msra.mxu0 0.0
  %6490 = vmatprep.subr.mxu0 0.0
  %6491 = vmatpush2.msra.mxu0 0.0
  %6492 = vmatprep.subr.mxu0 0.0
  %6493 = vmatpush2.msra.mxu0 0.0
  %6494 = vmatprep.subr.mxu0 0.0
  %6495 = vmatpush2.msra.mxu0 0.0
  %6496 = vmatprep.subr.mxu0 0.0
  %6497 = vmatpush2.msra.mxu0 0.0
  %6498 = vmatprep.subr.mxu0 0.0
  %6499 = vmatpush2.msra.mxu0 0.0
  %6500 = vmatprep.subr.mxu0 0.0
  %6501 = vmatpush2.msra.mxu0 0.0
  %6502 = vmatprep.subr.mxu0 0.0
  %6503 = vmatpush2.msra.mxu0 0.0
  %6504 = vmatprep.subr.mxu0 0.0
  %6505 = vmatpush2.msra.mxu0 0.0
  %6506 = vmatprep.subr.mxu0 0.0
  %6507 = vmatpush2.msra.mxu0 0.0
  %6508 = vmatprep.subr.mxu0 0.0
  %6509 = vmatpush2.msra.mxu0 0.0
  %6510 = vmatprep.subr.mxu0 0.0
  %6511 = vmatpush2.msra.mxu0 0.0
  %6512 = vmatprep.mubr.f32.mxu0 0.0
  %6513 = vmatmul.mubr.f32.gmra.mxu0 %v6446
  %v6514 = vpop.f32.mrf.mxu0
  %v6515 = vadd.f32 0.0, %v6514
  %v6516 = vpop.f32.mrf.mxu0
  %6517 = vdwg.mxu0
  %6518 = vrot.lane.b32.xlu0 %v5194, 72
  %v6519 = vpop.permute.xlu0 %6518
  %v6522 = vsel %vm162, %v6441, 0
  %6524 = vmatprep.subr.mxu0 0.0
  %6525 = vmatpush1.msra.mxu0 0.0
  %6526 = vmatprep.subr.mxu0 0.0
  %6527 = vmatpush1.msra.mxu0 0.0
  %6528 = vmatprep.subr.mxu0 0.0
  %6529 = vmatpush1.msra.mxu0 0.0
  %6530 = vmatprep.subr.mxu0 0.0
  %6531 = vmatpush1.msra.mxu0 0.0
  %6532 = vmatprep.subr.mxu0 0.0
  %6533 = vmatpush1.msra.mxu0 0.0
  %6534 = vmatprep.subr.mxu0 0.0
  %6535 = vmatpush1.msra.mxu0 0.0
  %6536 = vmatprep.subr.mxu0 0.0
  %6537 = vmatpush1.msra.mxu0 0.0
  %6538 = vmatprep.subr.mxu0 0.0
  %6539 = vmatpush1.msra.mxu0 0.0
  %6540 = vmatprep.subr.mxu0 0.0
  %6541 = vmatpush1.msra.mxu0 0.0
  %6542 = vmatprep.subr.mxu0 0.0
  %6543 = vmatpush1.msra.mxu0 0.0
  %6544 = vmatprep.subr.mxu0 0.0
  %6545 = vmatpush1.msra.mxu0 0.0
  %6546 = vmatprep.subr.mxu0 0.0
  %6547 = vmatpush1.msra.mxu0 0.0
  %6548 = vmatprep.subr.mxu0 0.0
  %6549 = vmatpush1.msra.mxu0 0.0
  %6550 = vmatprep.subr.mxu0 0.0
  %6551 = vmatpush1.msra.mxu0 0.0
  %6552 = vmatprep.subr.mxu0 0.0
  %6553 = vmatpush1.msra.mxu0 0.0
  %6554 = vmatprep.subr.mxu0 0.0
  %6555 = vmatpush1.msra.mxu0 %v6519
  %6556 = vmatprep.subr.mxu0 0.0
  %6557 = vmatpush2.msra.mxu0 0.0
  %6558 = vmatprep.subr.mxu0 0.0
  %6559 = vmatpush2.msra.mxu0 0.0
  %6560 = vmatprep.subr.mxu0 0.0
  %6561 = vmatpush2.msra.mxu0 0.0
  %6562 = vmatprep.subr.mxu0 0.0
  %6563 = vmatpush2.msra.mxu0 0.0
  %6564 = vmatprep.subr.mxu0 0.0
  %6565 = vmatpush2.msra.mxu0 0.0
  %6566 = vmatprep.subr.mxu0 0.0
  %6567 = vmatpush2.msra.mxu0 0.0
  %6568 = vmatprep.subr.mxu0 0.0
  %6569 = vmatpush2.msra.mxu0 0.0
  %6570 = vmatprep.subr.mxu0 0.0
  %6571 = vmatpush2.msra.mxu0 0.0
  %6572 = vmatprep.subr.mxu0 0.0
  %6573 = vmatpush2.msra.mxu0 0.0
  %6574 = vmatprep.subr.mxu0 0.0
  %6575 = vmatpush2.msra.mxu0 0.0
  %6576 = vmatprep.subr.mxu0 0.0
  %6577 = vmatpush2.msra.mxu0 0.0
  %6578 = vmatprep.subr.mxu0 0.0
  %6579 = vmatpush2.msra.mxu0 0.0
  %6580 = vmatprep.subr.mxu0 0.0
  %6581 = vmatpush2.msra.mxu0 0.0
  %6582 = vmatprep.subr.mxu0 0.0
  %6583 = vmatpush2.msra.mxu0 0.0
  %6584 = vmatprep.subr.mxu0 0.0
  %6585 = vmatpush2.msra.mxu0 0.0
  %6586 = vmatprep.subr.mxu0 0.0
  %6587 = vmatpush2.msra.mxu0 0.0
  %6588 = vmatprep.mubr.f32.mxu0 0.0
  %6589 = vmatmul.mubr.f32.gmra.mxu0 %v6522
  %v6590 = vpop.f32.mrf.mxu0
  %v6591 = vadd.f32 0.0, %v6590
  %v6592 = vpop.f32.mrf.mxu0
  %6593 = vdwg.mxu0
  %6596 = vrot.lane.b32.xlu0 %v5855, 8
  %v6597 = vpop.permute.xlu0 %6596
  %6598 = vrot.lane.b32.xlu0 %v5931, 8
  %v6599 = vpop.permute.xlu0 %6598
  %6604 = vrot.lane.b32.xlu0 %v6185, 16
  %v6605 = vpop.permute.xlu0 %6604
  %6606 = vrot.lane.b32.xlu0 %v6261, 16
  %v6607 = vpop.permute.xlu0 %6606
  %6612 = vrot.lane.b32.xlu0 %v6515, 24
  %v6613 = vpop.permute.xlu0 %6612
  %6614 = vrot.lane.b32.xlu0 %v6591, 24
  %v6615 = vpop.permute.xlu0 %6614
  %v6618 = vsel %vm162, %v5525, %v6597
  %v6619 = vsel %vm162, %v5601, %v6599
  %v6620 = vsel %vm1504, %v6618, %v6605
  %v6621 = vsel %vm1504, %v6619, %v6607
  %v6622 = vsel %vm1507, %v6620, %v6613
  %v6623 = vsel %vm1507, %v6621, %v6615
  %v6625 = vsel %vm77, %v6622, 0
  %v6628 = vsel %vm77, %v6623, 0
  %6630 = vmatprep.subr.mxu0 0.0
  %6631 = vmatpush1.msra.mxu0 0.0
  %6632 = vmatprep.subr.mxu0 0.0
  %6633 = vmatpush1.msra.mxu0 0.0
  %6634 = vmatprep.subr.mxu0 0.0
  %6635 = vmatpush1.msra.mxu0 0.0
  %6636 = vmatprep.subr.mxu0 0.0
  %6637 = vmatpush1.msra.mxu0 0.0
  %6638 = vmatprep.subr.mxu0 0.0
  %6639 = vmatpush1.msra.mxu0 0.0
  %6640 = vmatprep.subr.mxu0 0.0
  %6641 = vmatpush1.msra.mxu0 0.0
  %6642 = vmatprep.subr.mxu0 0.0
  %6643 = vmatpush1.msra.mxu0 0.0
  %6644 = vmatprep.subr.mxu0 0.0
  %6645 = vmatpush1.msra.mxu0 0.0
  %6646 = vmatprep.subr.mxu0 0.0
  %6647 = vmatpush1.msra.mxu0 0.0
  %6648 = vmatprep.subr.mxu0 0.0
  %6649 = vmatpush1.msra.mxu0 0.0
  %6650 = vmatprep.subr.mxu0 0.0
  %6651 = vmatpush1.msra.mxu0 0.0
  %6652 = vmatprep.subr.mxu0 0.0
  %6653 = vmatpush1.msra.mxu0 0.0
  %6654 = vmatprep.subr.mxu0 0.0
  %6655 = vmatpush1.msra.mxu0 %v3530
  %6656 = vmatprep.subr.mxu0 0.0
  %6657 = vmatpush1.msra.mxu0 %v3529
  %6658 = vmatprep.subr.mxu0 0.0
  %6659 = vmatpush1.msra.mxu0 %v3528
  %6660 = vmatprep.subr.mxu0 0.0
  %6661 = vmatpush1.msra.mxu0 %v3527
  %6662 = vmatprep.subr.mxu0 0.0
  %6663 = vmatpush2.msra.mxu0 0.0
  %6664 = vmatprep.subr.mxu0 0.0
  %6665 = vmatpush2.msra.mxu0 0.0
  %6666 = vmatprep.subr.mxu0 0.0
  %6667 = vmatpush2.msra.mxu0 0.0
  %6668 = vmatprep.subr.mxu0 0.0
  %6669 = vmatpush2.msra.mxu0 0.0
  %6670 = vmatprep.subr.mxu0 0.0
  %6671 = vmatpush2.msra.mxu0 0.0
  %6672 = vmatprep.subr.mxu0 0.0
  %6673 = vmatpush2.msra.mxu0 0.0
  %6674 = vmatprep.subr.mxu0 0.0
  %6675 = vmatpush2.msra.mxu0 0.0
  %6676 = vmatprep.subr.mxu0 0.0
  %6677 = vmatpush2.msra.mxu0 0.0
  %6678 = vmatprep.subr.mxu0 0.0
  %6679 = vmatpush2.msra.mxu0 0.0
  %6680 = vmatprep.subr.mxu0 0.0
  %6681 = vmatpush2.msra.mxu0 0.0
  %6682 = vmatprep.subr.mxu0 0.0
  %6683 = vmatpush2.msra.mxu0 0.0
  %6684 = vmatprep.subr.mxu0 0.0
  %6685 = vmatpush2.msra.mxu0 0.0
  %6686 = vmatprep.subr.mxu0 0.0
  %6687 = vmatpush2.msra.mxu0 0.0
  %6688 = vmatprep.subr.mxu0 0.0
  %6689 = vmatpush2.msra.mxu0 0.0
  %6690 = vmatprep.subr.mxu0 0.0
  %6691 = vmatpush2.msra.mxu0 0.0
  %6692 = vmatprep.subr.mxu0 0.0
  %6693 = vmatpush2.msra.mxu0 0.0
  %6694 = vmatprep.mubr.f32.mxu0 0.0
  %6695 = vmatmul.mubr.f32.gmra.mxu0 %v6625
  %v6696 = vpop.f32.mrf.mxu0
  %v6697 = vadd.f32 %v4976, %v6696
  %v6698 = vpop.f32.mrf.mxu0
  %6699 = vmatprep.mubr.f32.mxu0 0.0
  %6700 = vmatmul.mubr.f32.gmra.mxu0 %v6628
  %v6701 = vpop.f32.mrf.mxu0
  %v6702 = vadd.f32 %v4976, %v6701
  %v6703 = vpop.f32.mrf.mxu0
  %6704 = vdwg.mxu0
  %v6705 = vadd.f32 %v5101, %v6697
  %v6706 = vadd.f32 %v5102, %v6702
  %v6707 = vsel %vm77, %v6705, 0.0
  %6708 = vadd.xlane.f32.xlu0 %v6707
  %v6709 = vpop.xlane.xlu0 %6708
  %v6710 = vsel %vm77, %v6706, 0.0
  %6711 = vadd.xlane.f32.xlu0 %v6710
  %v6712 = vpop.xlane.xlu0 %6711
  %v6713 = vmul.f32 %v6709, %v1605
  %v6714 = vmul.f32 %v6712, %v1605
  %v6715 = vsub.f32 %v6705, %v6713
  %v6716 = vsub.f32 %v6706, %v6714
  %v6717 = vmul.f32 %v6715, %v6715
  %v6718 = vmul.f32 %v6716, %v6716
  %v6719 = vsel %vm77, %v6717, 0.0
  %6720 = vadd.xlane.f32.xlu0 %v6719
  %v6721 = vpop.xlane.xlu0 %6720
  %v6722 = vsel %vm77, %v6718, 0.0
  %6723 = vadd.xlane.f32.xlu0 %v6722
  %v6724 = vpop.xlane.xlu0 %6723
  %v6725 = vmul.f32 %v6721, %v1605
  %v6726 = vmul.f32 %v6724, %v1605
  %v6727 = vadd.f32 %v6725, 1e-05
  %v6728 = vadd.f32 %v6726, 1e-05
  %v6729 = vrsqrt.pop %v6727
  %v6730 = vrsqrt.pop %v6728
  %v6731 = vmul.f32 %v6715, %v6729
  %v6732 = vmul.f32 %v6716, %v6730
  %v6733 = vmul.f32 %v6731, %v5091
  %v6734 = vmul.f32 %v6732, %v5091
  %v6735 = vadd.f32 %v6733, %v5099
  %v6736 = vadd.f32 %v6734, %v5099
  %s6737 = scalar_lea.vmem %s9, 32
  %v6738 = vld [vmem:[%s6737] sm:$0xff]
  %v6739 = vld [vmem:[%s6737 + $0x8] sm:$0xff]
  %v6740 = vld [vmem:[%s6737 + $0x10] sm:$0xff]
  %v6741 = vld [vmem:[%s6737 + $0x18] sm:$0xff]
  %s6742 = scalar_lea.vmem %s10, 1
  %v6743 = vld [vmem:[%s6742] sm:$0x1]
  %v6745 = vlaneseq
  %v6746 = vshrl.u32 %v6745, 7
  %v6747 = vsub.s32 0, %v6746
  %v6748 = vrot.slane %v6743, %v6747
  %v6751 = vsel %vm77, %v6735, 0
  %v6754 = vsel %vm77, %v6736, 0
  %6756 = vmatprep.subr.mxu0 0.0
  %6757 = vmatpush1.msra.mxu0 0.0
  %6758 = vmatprep.subr.mxu0 0.0
  %6759 = vmatpush1.msra.mxu0 0.0
  %6760 = vmatprep.subr.mxu0 0.0
  %6761 = vmatpush1.msra.mxu0 0.0
  %6762 = vmatprep.subr.mxu0 0.0
  %6763 = vmatpush1.msra.mxu0 0.0
  %6764 = vmatprep.subr.mxu0 0.0
  %6765 = vmatpush1.msra.mxu0 0.0
  %6766 = vmatprep.subr.mxu0 0.0
  %6767 = vmatpush1.msra.mxu0 0.0
  %6768 = vmatprep.subr.mxu0 0.0
  %6769 = vmatpush1.msra.mxu0 0.0
  %6770 = vmatprep.subr.mxu0 0.0
  %6771 = vmatpush1.msra.mxu0 0.0
  %6772 = vmatprep.subr.mxu0 0.0
  %6773 = vmatpush1.msra.mxu0 0.0
  %6774 = vmatprep.subr.mxu0 0.0
  %6775 = vmatpush1.msra.mxu0 0.0
  %6776 = vmatprep.subr.mxu0 0.0
  %6777 = vmatpush1.msra.mxu0 0.0
  %6778 = vmatprep.subr.mxu0 0.0
  %6779 = vmatpush1.msra.mxu0 0.0
  %6780 = vmatprep.subr.mxu0 0.0
  %6781 = vmatpush1.msra.mxu0 %v6741
  %6782 = vmatprep.subr.mxu0 0.0
  %6783 = vmatpush1.msra.mxu0 %v6740
  %6784 = vmatprep.subr.mxu0 0.0
  %6785 = vmatpush1.msra.mxu0 %v6739
  %6786 = vmatprep.subr.mxu0 0.0
  %6787 = vmatpush1.msra.mxu0 %v6738
  %6788 = vmatprep.subr.mxu0 0.0
  %6789 = vmatpush2.msra.mxu0 0.0
  %6790 = vmatprep.subr.mxu0 0.0
  %6791 = vmatpush2.msra.mxu0 0.0
  %6792 = vmatprep.subr.mxu0 0.0
  %6793 = vmatpush2.msra.mxu0 0.0
  %6794 = vmatprep.subr.mxu0 0.0
  %6795 = vmatpush2.msra.mxu0 0.0
  %6796 = vmatprep.subr.mxu0 0.0
  %6797 = vmatpush2.msra.mxu0 0.0
  %6798 = vmatprep.subr.mxu0 0.0
  %6799 = vmatpush2.msra.mxu0 0.0
  %6800 = vmatprep.subr.mxu0 0.0
  %6801 = vmatpush2.msra.mxu0 0.0
  %6802 = vmatprep.subr.mxu0 0.0
  %6803 = vmatpush2.msra.mxu0 0.0
  %6804 = vmatprep.subr.mxu0 0.0
  %6805 = vmatpush2.msra.mxu0 0.0
  %6806 = vmatprep.subr.mxu0 0.0
  %6807 = vmatpush2.msra.mxu0 0.0
  %6808 = vmatprep.subr.mxu0 0.0
  %6809 = vmatpush2.msra.mxu0 0.0
  %6810 = vmatprep.subr.mxu0 0.0
  %6811 = vmatpush2.msra.mxu0 0.0
  %6812 = vmatprep.subr.mxu0 0.0
  %6813 = vmatpush2.msra.mxu0 0.0
  %6814 = vmatprep.subr.mxu0 0.0
  %6815 = vmatpush2.msra.mxu0 0.0
  %6816 = vmatprep.subr.mxu0 0.0
  %6817 = vmatpush2.msra.mxu0 0.0
  %6818 = vmatprep.subr.mxu0 0.0
  %6819 = vmatpush2.msra.mxu0 0.0
  %6820 = vmatprep.mubr.f32.mxu0 0.0
  %6821 = vmatmul.mubr.f32.gmra.mxu0 %v6751
  %v6822 = vpop.f32.mrf.mxu0
  %v6823 = vadd.f32 %v6748, %v6822
  %v6824 = vpop.f32.mrf.mxu0
  %6825 = vmatprep.mubr.f32.mxu0 0.0
  %6826 = vmatmul.mubr.f32.gmra.mxu0 %v6754
  %v6827 = vpop.f32.mrf.mxu0
  %v6828 = vadd.f32 %v6748, %v6827
  %v6829 = vpop.f32.mrf.mxu0
  %6830 = vdwg.mxu0
  %v6831 = vmax.f32 %v6823, 0.0
  %v6832 = vmax.f32 %v6828, 0.0
  %s6833 = scalar_lea.vmem %s11, 64
  %v6834 = vld [vmem:[%s6833] sm:$0xff]
  %v6835 = vld [vmem:[%s6833 + $0x8] sm:$0xff]
  %v6836 = vld [vmem:[%s6833 + $0x10] sm:$0xff]
  %v6837 = vld [vmem:[%s6833 + $0x18] sm:$0xff]
  %v6838 = vld [vmem:[%s6833 + $0x20] sm:$0xff]
  %v6839 = vld [vmem:[%s6833 + $0x28] sm:$0xff]
  %v6840 = vld [vmem:[%s6833 + $0x30] sm:$0xff]
  %v6841 = vld [vmem:[%s6833 + $0x38] sm:$0xff]
  %s6842 = scalar_lea.vmem %s12, 1
  %v6843 = vld [vmem:[%s6842] sm:$0x1]
  %v6845 = vlaneseq
  %v6846 = vshrl.u32 %v6845, 7
  %v6847 = vsub.s32 0, %v6846
  %v6848 = vrot.slane %v6843, %v6847
  %v6851 = vsel %vm3391, %v6831, 0
  %v6854 = vsel %vm3391, %v6832, 0
  %6856 = vmatprep.subr.mxu0 0.0
  %6857 = vmatpush1.msra.mxu0 0.0
  %6858 = vmatprep.subr.mxu0 0.0
  %6859 = vmatpush1.msra.mxu0 0.0
  %6860 = vmatprep.subr.mxu0 0.0
  %6861 = vmatpush1.msra.mxu0 0.0
  %6862 = vmatprep.subr.mxu0 0.0
  %6863 = vmatpush1.msra.mxu0 0.0
  %6864 = vmatprep.subr.mxu0 0.0
  %6865 = vmatpush1.msra.mxu0 0.0
  %6866 = vmatprep.subr.mxu0 0.0
  %6867 = vmatpush1.msra.mxu0 0.0
  %6868 = vmatprep.subr.mxu0 0.0
  %6869 = vmatpush1.msra.mxu0 0.0
  %6870 = vmatprep.subr.mxu0 0.0
  %6871 = vmatpush1.msra.mxu0 0.0
  %6872 = vmatprep.subr.mxu0 0.0
  %6873 = vmatpush1.msra.mxu0 %v6841
  %6874 = vmatprep.subr.mxu0 0.0
  %6875 = vmatpush1.msra.mxu0 %v6840
  %6876 = vmatprep.subr.mxu0 0.0
  %6877 = vmatpush1.msra.mxu0 %v6839
  %6878 = vmatprep.subr.mxu0 0.0
  %6879 = vmatpush1.msra.mxu0 %v6838
  %6880 = vmatprep.subr.mxu0 0.0
  %6881 = vmatpush1.msra.mxu0 %v6837
  %6882 = vmatprep.subr.mxu0 0.0
  %6883 = vmatpush1.msra.mxu0 %v6836
  %6884 = vmatprep.subr.mxu0 0.0
  %6885 = vmatpush1.msra.mxu0 %v6835
  %6886 = vmatprep.subr.mxu0 0.0
  %6887 = vmatpush1.msra.mxu0 %v6834
  %6888 = vmatprep.subr.mxu0 0.0
  %6889 = vmatpush2.msra.mxu0 0.0
  %6890 = vmatprep.subr.mxu0 0.0
  %6891 = vmatpush2.msra.mxu0 0.0
  %6892 = vmatprep.subr.mxu0 0.0
  %6893 = vmatpush2.msra.mxu0 0.0
  %6894 = vmatprep.subr.mxu0 0.0
  %6895 = vmatpush2.msra.mxu0 0.0
  %6896 = vmatprep.subr.mxu0 0.0
  %6897 = vmatpush2.msra.mxu0 0.0
  %6898 = vmatprep.subr.mxu0 0.0
  %6899 = vmatpush2.msra.mxu0 0.0
  %6900 = vmatprep.subr.mxu0 0.0
  %6901 = vmatpush2.msra.mxu0 0.0
  %6902 = vmatprep.subr.mxu0 0.0
  %6903 = vmatpush2.msra.mxu0 0.0
  %6904 = vmatprep.subr.mxu0 0.0
  %6905 = vmatpush2.msra.mxu0 0.0
  %6906 = vmatprep.subr.mxu0 0.0
  %6907 = vmatpush2.msra.mxu0 0.0
  %6908 = vmatprep.subr.mxu0 0.0
  %6909 = vmatpush2.msra.mxu0 0.0
  %6910 = vmatprep.subr.mxu0 0.0
  %6911 = vmatpush2.msra.mxu0 0.0
  %6912 = vmatprep.subr.mxu0 0.0
  %6913 = vmatpush2.msra.mxu0 0.0
  %6914 = vmatprep.subr.mxu0 0.0
  %6915 = vmatpush2.msra.mxu0 0.0
  %6916 = vmatprep.subr.mxu0 0.0
  %6917 = vmatpush2.msra.mxu0 0.0
  %6918 = vmatprep.subr.mxu0 0.0
  %6919 = vmatpush2.msra.mxu0 0.0
  %6920 = vmatprep.mubr.f32.mxu0 0.0
  %6921 = vmatmul.mubr.f32.gmra.mxu0 %v6851
  %v6922 = vpop.f32.mrf.mxu0
  %v6923 = vadd.f32 %v6848, %v6922
  %v6924 = vpop.f32.mrf.mxu0
  %6925 = vmatprep.mubr.f32.mxu0 0.0
  %6926 = vmatmul.mubr.f32.gmra.mxu0 %v6854
  %v6927 = vpop.f32.mrf.mxu0
  %v6928 = vadd.f32 %v6848, %v6927
  %v6929 = vpop.f32.mrf.mxu0
  %6930 = vdwg.mxu0
  %v6931 = vadd.f32 %v6735, %v6923
  %v6932 = vadd.f32 %v6736, %v6928
  %s6933 = scalar_lea.vmem %s13, 1
  %v6934 = vld [vmem:[%s6933] sm:$0x1]
  %s6935 = scalar_lea.vmem %s14, 1
  %v6936 = vld [vmem:[%s6935] sm:$0x1]
  %v6937 = vsel %vm77, %v6931, 0.0
  %6938 = vadd.xlane.f32.xlu0 %v6937
  %v6939 = vpop.xlane.xlu0 %6938
  %v6940 = vsel %vm77, %v6932, 0.0
  %6941 = vadd.xlane.f32.xlu0 %v6940
  %v6942 = vpop.xlane.xlu0 %6941
  %v6943 = vmul.f32 %v6939, %v1605
  %v6944 = vmul.f32 %v6942, %v1605
  %v6945 = vsub.f32 %v6931, %v6943
  %v6946 = vsub.f32 %v6932, %v6944
  %v6947 = vmul.f32 %v6945, %v6945
  %v6948 = vmul.f32 %v6946, %v6946
  %v6949 = vsel %vm77, %v6947, 0.0
  %6950 = vadd.xlane.f32.xlu0 %v6949
  %v6951 = vpop.xlane.xlu0 %6950
  %v6952 = vsel %vm77, %v6948, 0.0
  %6953 = vadd.xlane.f32.xlu0 %v6952
  %v6954 = vpop.xlane.xlu0 %6953
  %v6955 = vmul.f32 %v6951, %v1605
  %v6956 = vmul.f32 %v6954, %v1605
  %v6957 = vadd.f32 %v6955, 1e-05
  %v6958 = vadd.f32 %v6956, 1e-05
  %v6959 = vrsqrt.pop %v6957
  %v6960 = vrsqrt.pop %v6958
  %v6961 = vmul.f32 %v6945, %v6959
  %v6962 = vmul.f32 %v6946, %v6960
  %v6964 = vlaneseq
  %v6965 = vshrl.u32 %v6964, 7
  %v6966 = vsub.s32 0, %v6965
  %v6967 = vrot.slane %v6934, %v6966
  %v6969 = vmul.f32 %v6961, %v6967
  %v6970 = vmul.f32 %v6962, %v6967
  %v6972 = vlaneseq
  %v6973 = vshrl.u32 %v6972, 7
  %v6974 = vsub.s32 0, %v6973
  %v6975 = vrot.slane %v6936, %v6974
  %v6977 = vadd.f32 %v6969, %v6975
  %v6978 = vadd.f32 %v6970, %v6975
  %v6979 = vld [vmem:[%s15] sm:$0xff]
  %v6980 = vld [vmem:[%s15 + $0x8] sm:$0xff]
  %v6981 = vld [vmem:[%s15 + $0x10] sm:$0xff]
  %v6982 = vld [vmem:[%s15 + $0x18] sm:$0xff]
  %v6984 = vsel %vm77, %v6977, 0
  %v6987 = vsel %vm77, %v6978, 0
  %6989 = vmatprep.subr.mxu0 0.0
  %6990 = vmatpush1.msra.mxu0 0.0
  %6991 = vmatprep.subr.mxu0 0.0
  %6992 = vmatpush1.msra.mxu0 0.0
  %6993 = vmatprep.subr.mxu0 0.0
  %6994 = vmatpush1.msra.mxu0 0.0
  %6995 = vmatprep.subr.mxu0 0.0
  %6996 = vmatpush1.msra.mxu0 0.0
  %6997 = vmatprep.subr.mxu0 0.0
  %6998 = vmatpush1.msra.mxu0 0.0
  %6999 = vmatprep.subr.mxu0 0.0
  %7000 = vmatpush1.msra.mxu0 0.0
  %7001 = vmatprep.subr.mxu0 0.0
  %7002 = vmatpush1.msra.mxu0 0.0
  %7003 = vmatprep.subr.mxu0 0.0
  %7004 = vmatpush1.msra.mxu0 0.0
  %7005 = vmatprep.subr.mxu0 0.0
  %7006 = vmatpush1.msra.mxu0 0.0
  %7007 = vmatprep.subr.mxu0 0.0
  %7008 = vmatpush1.msra.mxu0 0.0
  %7009 = vmatprep.subr.mxu0 0.0
  %7010 = vmatpush1.msra.mxu0 0.0
  %7011 = vmatprep.subr.mxu0 0.0
  %7012 = vmatpush1.msra.mxu0 0.0
  %7013 = vmatprep.subr.mxu0 0.0
  %7014 = vmatpush1.msra.mxu0 %v6982
  %7015 = vmatprep.subr.mxu0 0.0
  %7016 = vmatpush1.msra.mxu0 %v6981
  %7017 = vmatprep.subr.mxu0 0.0
  %7018 = vmatpush1.msra.mxu0 %v6980
  %7019 = vmatprep.subr.mxu0 0.0
  %7020 = vmatpush1.msra.mxu0 %v6979
  %7021 = vmatprep.subr.mxu0 0.0
  %7022 = vmatpush2.msra.mxu0 0.0
  %7023 = vmatprep.subr.mxu0 0.0
  %7024 = vmatpush2.msra.mxu0 0.0
  %7025 = vmatprep.subr.mxu0 0.0
  %7026 = vmatpush2.msra.mxu0 0.0
  %7027 = vmatprep.subr.mxu0 0.0
  %7028 = vmatpush2.msra.mxu0 0.0
  %7029 = vmatprep.subr.mxu0 0.0
  %7030 = vmatpush2.msra.mxu0 0.0
  %7031 = vmatprep.subr.mxu0 0.0
  %7032 = vmatpush2.msra.mxu0 0.0
  %7033 = vmatprep.subr.mxu0 0.0
  %7034 = vmatpush2.msra.mxu0 0.0
  %7035 = vmatprep.subr.mxu0 0.0
  %7036 = vmatpush2.msra.mxu0 0.0
  %7037 = vmatprep.subr.mxu0 0.0
  %7038 = vmatpush2.msra.mxu0 0.0
  %7039 = vmatprep.subr.mxu0 0.0
  %7040 = vmatpush2.msra.mxu0 0.0
  %7041 = vmatprep.subr.mxu0 0.0
  %7042 = vmatpush2.msra.mxu0 0.0
  %7043 = vmatprep.subr.mxu0 0.0
  %7044 = vmatpush2.msra.mxu0 0.0
  %7045 = vmatprep.subr.mxu0 0.0
  %7046 = vmatpush2.msra.mxu0 0.0
  %7047 = vmatprep.subr.mxu0 0.0
  %7048 = vmatpush2.msra.mxu0 0.0
  %7049 = vmatprep.subr.mxu0 0.0
  %7050 = vmatpush2.msra.mxu0 0.0
  %7051 = vmatprep.subr.mxu0 0.0
  %7052 = vmatpush2.msra.mxu0 0.0
  %7053 = vmatprep.mubr.f32.mxu0 0.0
  %7054 = vmatmul.mubr.f32.gmra.mxu0 %v6984
  %v7055 = vpop.f32.mrf.mxu0
  %v7056 = vadd.f32 0.0, %v7055
  %v7057 = vpop.f32.mrf.mxu0
  %7058 = vmatprep.mubr.f32.mxu0 0.0
  %7059 = vmatmul.mubr.f32.gmra.mxu0 %v6987
  %v7060 = vpop.f32.mrf.mxu0
  %v7061 = vadd.f32 0.0, %v7060
  %v7062 = vpop.f32.mrf.mxu0
  %7063 = vdwg.mxu0
  %7064 = vst [vmem:[%s16] sm:$0xff] %v7056
  %7065 = vst [vmem:[%s16 + $0x8] sm:$0xff] %v7061
  // Predicated region
  $region66: #{decoder_forward.1} parent=0 // pred_check
    _
  $region67: #{decoder_forward.1} parent=0 // pred_check_branch
    %7067 = sbr.rel (0) target = $region69
  $region68: #{decoder_forward.1} parent=0 // pred_region
    _
  $region69: #{decoder_forward.1} parent=0 // pred_fallthru
    _
  // Predicated region
  $region70: #{decoder_forward.1} parent=0 // pred_check
    _
  $region71: #{decoder_forward.1} parent=0 // pred_check_branch
    %7069 = sbr.rel (0) target = $region73
  $region72: #{decoder_forward.1} parent=0 // pred_region
    _
  $region73: #{decoder_forward.1} parent=0 // pred_fallthru
    _

</llo_original>
